<compile_context>
chip_gen: v6e
topology: v6e:2x2x1
jax: 0.10.0
libtpu: 0.0.40
codegen_flags: <defaults>
</compile_context>

<pallas_src>
import math
import functools

import numpy as np
import jax
import jax.numpy as jnp
from jax.experimental import pallas as pl
from jax.experimental.pallas import tpu as pltpu

OMICS_SIZE = 95

VMEM_SPEC = pl.BlockSpec(memory_space=pltpu.MemorySpace.VMEM)


# ----------------------------------------------------------------------------- in-kernel helpers
def _gelu(y):   # exact erf GELU == torch.nn.GELU() default
    return 0.5 * y * (1.0 + jax.lax.erf(y * (1.0 / math.sqrt(2.0))))


def _elu(y):    # torch.nn.ELU(alpha=1.0)
    return jnp.where(y > 0.0, y, jnp.exp(jnp.minimum(y, 0.0)) - 1.0)


def _sel_mats(n_rows, t_offset):
    # Selection matrices to build a flattened 32x32 outer product with two matmuls:
    #   (a @ r)[b, c] = a[b, c // 32]        (r[rr, c] = 1 iff rr == c // 32)
    #   (b @ t)[b, c] = b[b, (c % 32) + off] (t[rr, c] = 1 iff rr == c % 32 + t_offset)
    # so (a @ r) * (b @ t) == flatten_i*32+j( a_i * b_j ) with no reshape in the kernel.
    row = jax.lax.broadcasted_iota(jnp.int32, (n_rows, 32 * 32), 0)
    col = jax.lax.broadcasted_iota(jnp.int32, (n_rows, 32 * 32), 1)
    d = col - row * 32
    r = jnp.logical_and(d >= 0, d < 32).astype(jnp.float32)
    t = (jnp.bitwise_and(col, 31) + t_offset == row).astype(jnp.float32)
    return r, t


# ----------------------------------------------------------------------------- fused kernel
def _forward_kernel(treedef, n_params, x_ref, adj_ref, pool_ref, om_ref, *rest):
    p = jax.tree_util.tree_unflatten(treedef, rest[:n_params])
    out_ref = rest[n_params]
    f32 = jnp.float32

    def dot(a, b):
        return jnp.dot(a, b, preferred_element_type=f32)

    # ---------------- GNN branch ----------------
    adj = adj_ref[...]                               # adj[i, j] = 1 if edge j -> i
    neg_adj = (adj - 1.0) * 1e30                     # additive mask: 0 on edge, -1e30 off edge
    deg_ok = jnp.sum(adj, axis=1, keepdims=True) > 0.5

    x = x_ref[...]                                                        # (N, 1024) bf16
    h = _gelu(dot(x, p["first_w"][...]) + p["first_b"][...])              # Linear+BN(folded)+GELU -> (N, 64)
    z_sum = _gelu(dot(h, p["lin_w"][0][...]) + p["lin_b"][0][...])        # layer-0 score head (GELU)

    n_nodes = adj.shape[0]
    jb = min(n_nodes, 128)
    for l in range(3):
        # PyG EdgeConv(aggr='max'): out_i = max_{j in N(i)} nn([x_i, x_j - x_i])
        # nn = Linear(2*fin, fout)+BN(folded) => msg(i,j) = x_i @ Wi + x_j @ Wj + b
        a_i = dot(h, p["conv_wi"][l][...])            # self term        (N, F)
        b_j = dot(h, p["conv_wj"][l][...])            # neighbor term    (N, F)
        f_out = b_j.shape[1]
        mx = jnp.full((n_nodes, f_out), -1e30, f32)
        for j0 in range(0, n_nodes, jb):              # j-blocked running max (flash-style)
            blk = b_j[j0:j0 + jb]                     # (jb, F)
            msk = neg_adj[:, j0:j0 + jb]              # (N, jb)
            mx = jnp.maximum(mx, jnp.max(blk[None, :, :] + msk[:, :, None], axis=1))
        h = jnp.where(deg_ok, a_i + mx + p["conv_b"][l][...], 0.0)
        # TODO(synk): zero-in-degree nodes fall back to 0 (scatter-max fill); demo graph has none.
        z_sum = z_sum + dot(h, p["lin_w"][l + 1][...]) + p["lin_b"][l + 1][...]

    # out = sum_l mean_pool(z_l) == mean_pool(sum_l z_l) (pooling is linear, dropout p=0.0)
    grph_vec = dot(pool_ref[...], z_sum)                                  # (B, 32)

    # ---------------- omics MLP branch (MaxNet encoder, eval) ----------------
    o = om_ref[...]
    for l in range(4):
        o = _elu(dot(o, p["om_w"][l][...]) + p["om_b"][l][...])
    omic_vec = o                                                          # (B, 32)

    # ---------------- BilinearFusion (both gates stacked, eval) ----------------
    r32, t32 = _sel_mats(32, 0)
    outer12 = dot(grph_vec, r32) * dot(omic_vec, t32)                     # (B,1024): v1_i * v2_j at col i*32+j

    h_cat = jnp.maximum(dot(grph_vec, p["h_w1"][...]) + dot(omic_vec, p["h_w2"][...])
                        + p["h_b"][...], 0.0)                             # (B,64) = [h1 | h2]
    z_cat = dot(outer12, p["z_w"][...]) + p["z_b"][...]                   # (B,64) = [z1 | z2]
    g_cat = (1.0 / (1.0 + jnp.exp(-z_cat))) * h_cat
    o_cat = jnp.maximum(dot(g_cat, p["o_w"][...]) + p["o_b"][...], 0.0)   # (B,64) = [o1 | o2]

    # encoder1 on flatten([o1,1] x [o2,1]): 32x32 core via outer product + skip rows + const row
    r64, t64 = _sel_mats(64, 32)
    outer_oo = dot(o_cat, r64) * dot(o_cat, t64)                          # (B,1024): o1_i * o2_j
    enc1 = jnp.maximum(dot(outer_oo, p["enc1_core"][...]) + dot(o_cat, p["enc1_skip"][...])
                       + p["enc1_b"][...], 0.0)                           # (B,64)
    # encoder2 on concat(enc1, o1c, o2c): concat folded into split weights + bias
    feats = jnp.maximum(dot(enc1, p["enc2_a"][...]) + dot(o_cat, p["enc2_skip"][...])
                        + p["enc2_b"][...], 0.0)                          # (B,64)

    # lane-dense (B,128) output slab: [:, :64]=features (identity), [:, 64]=classifier hazard
    out_ref[...] = dot(feats, p["out_w"][...]) + p["out_b"][...]


# ----------------------------------------------------------------------------- parameters
def _dense_params(key, fan_in, fan_out, mode="torch"):
    kw, kb = jax.random.split(key)
    if mode == "max":  # init_max_weights: weight ~ N(0, 1/sqrt(fan_in)), bias = 0
        w = jax.random.normal(kw, (fan_in, fan_out), jnp.float32) / math.sqrt(fan_in)
        b = jnp.zeros((1, fan_out), jnp.float32)
    else:              # torch default Linear init
        bound = 1.0 / math.sqrt(fan_in)
        w = jax.random.uniform(kw, (fan_in, fan_out), jnp.float32, -bound, bound)
        b = jax.random.uniform(kb, (1, fan_out), jnp.float32, -bound, bound)
    return w, b


def _fold_bn(w, b, num_features, eps=1e-5):
    # BatchNorm1d (eval) with default params: gamma=1, beta=0, running_mean=0, running_var=1
    gamma = jnp.ones((num_features,), jnp.float32)
    beta = jnp.zeros((num_features,), jnp.float32)
    rmean = jnp.zeros((num_features,), jnp.float32)
    rvar = jnp.ones((num_features,), jnp.float32)
    s = gamma / jnp.sqrt(rvar + eps)
    return w * s[None, :], (b - rmean[None, :]) * s[None, :] + beta[None, :]


def build_params(key):
    keys = iter(jax.random.split(key, 40))

    # GNN(dim_features=1024, dim_target=32, layers=[64,48,32,32], pooling='mean', EdgeConv aggr='max')
    layers = [64, 48, 32, 32]
    fw, fb = _dense_params(next(keys), 1024, layers[0])
    fw, fb = _fold_bn(fw, fb, layers[0])
    lin_w, lin_b, conv_wi, conv_wj, conv_b = [], [], [], [], []
    for d in layers:                       # per-layer Linear(d, 32) score heads
        lw, lb = _dense_params(next(keys), d, 32)
        lin_w.append(lw); lin_b.append(lb)
    for l in range(1, len(layers)):        # EdgeConv nn = Linear(2*fin, fout) + BN(fout)
        fin, fout = layers[l - 1], layers[l]
        w, b = _dense_params(next(keys), 2 * fin, fout)
        w, b = _fold_bn(w, b, fout)
        conv_wi.append(w[:fin] - w[fin:])  # coefficient of x_i  (nn(cat([x_i, x_j - x_i])))
        conv_wj.append(w[fin:])            # coefficient of x_j
        conv_b.append(b)

    # MaxNet(input_dim=95, omic_dim=32) — init_max; classifier output discarded -> not built
    hidden = [OMICS_SIZE, 64, 48, 32, 32]
    om_w, om_b = [], []
    for i in range(4):
        w, b = _dense_params(next(keys), hidden[i], hidden[i + 1], mode="max")
        om_w.append(w); om_b.append(b)

    # BilinearFusion(dim1=dim2=32, mmhid=64, skip=1, use_bilinear=1, gate1=gate2=1)
    fus = {}
    for tag in ("1", "2"):
        fus[f"h{tag}_w"], fus[f"h{tag}_b"] = _dense_params(next(keys), 32, 32, mode="max")
        wb = jax.random.normal(next(keys), (32, 32, 32), jnp.float32) / math.sqrt(32.0)  # nn.Bilinear (out,in1,in2)
        fus[f"z{tag}_w"] = jnp.transpose(wb, (1, 2, 0)).reshape(32 * 32, 32)             # row = i*32 + j (i:vec1, j:vec2)
        fus[f"z{tag}_b"] = jax.random.uniform(next(keys), (1, 32), jnp.float32, -1.0, 1.0) / math.sqrt(32.0)
        fus[f"o{tag}_w"], fus[f"o{tag}_b"] = _dense_params(next(keys), 32, 32, mode="max")
    enc1_w, enc1_b = _dense_params(next(keys), 33 * 33, 64, mode="max")
    enc2_w, enc2_b = _dense_params(next(keys), 64 + 33 + 33, 64, mode="max")
    cls_w, cls_b = _dense_params(next(keys), 64, 1)     # GraphomicNet.classifier

    # ---------------- pack everything into the fused-kernel layout ----------------
    z32 = jnp.zeros((32, 32), jnp.float32)
    e1 = enc1_w.reshape(33, 33, 64)
    p = {
        "first_w": fw.astype(jnp.bfloat16), "first_b": fb,        # bf16 MXU operand, f32 accumulate
        "lin_w": lin_w, "lin_b": lin_b,
        "conv_wi": conv_wi, "conv_wj": conv_wj, "conv_b": conv_b,
        "om_w": om_w, "om_b": om_b,
        # both fusion gates stacked: columns [0:32]=gate1, [32:64]=gate2
        "h_w1": jnp.concatenate([fus["h1_w"], z32], axis=1),                      # v1 path  (32,64)
        "h_w2": jnp.concatenate([z32, fus["h2_w"]], axis=1),                      # v2 path  (32,64)
        "h_b":  jnp.concatenate([fus["h1_b"], fus["h2_b"]], axis=1),
        "z_w":  jnp.concatenate([fus["z1_w"], fus["z2_w"]], axis=1),              # (1024,64)
        "z_b":  jnp.concatenate([fus["z1_b"], fus["z2_b"]], axis=1),
        "o_w":  jnp.block([[fus["o1_w"], z32], [z32, fus["o2_w"]]]),              # (64,64) block-diag
        "o_b":  jnp.concatenate([fus["o1_b"], fus["o2_b"]], axis=1),
        # encoder1 split so the [o1,1]x[o2,1] outer product never needs in-kernel concat/reshape
        "enc1_core": e1[:32, :32, :].reshape(32 * 32, 64),                        # (1024,64)
        "enc1_skip": jnp.concatenate([e1[:32, 32, :], e1[32, :32, :]], axis=0),   # (64,64)
        "enc1_b":    enc1_b + e1[32, 32, :][None, :],
        # encoder2: skip-concat(enc1, o1c, o2c) folded into two matmuls + bias
        "enc2_a":    enc2_w[:64],
        "enc2_skip": jnp.concatenate([enc2_w[64:96], enc2_w[97:129]], axis=0),    # (64,64)
        "enc2_b":    enc2_b + enc2_w[96:97] + enc2_w[129:130],
        # lane-dense output slab: [:, :64]=features, [:, 64]=hazard (classifier folded in)
        "out_w": jnp.concatenate([jnp.eye(64, dtype=jnp.float32), cls_w,
                                  jnp.zeros((64, 63), jnp.float32)], axis=1),     # (64,128)
        "out_b": jnp.concatenate([jnp.zeros((1, 64), jnp.float32), cls_b,
                                  jnp.zeros((1, 63), jnp.float32)], axis=1),
    }
    return p


# ----------------------------------------------------------------------------- forward
def graphomic_forward(params, node_x, adj, pool_mat, omics):
    flat, treedef = jax.tree_util.tree_flatten(params)
    bsz = omics.shape[0]
    slab = pl.pallas_call(
        functools.partial(_forward_kernel, treedef, len(flat)),
        out_shape=jax.ShapeDtypeStruct((bsz, 128), jnp.float32),
        in_specs=[VMEM_SPEC] * (4 + len(flat)),
        out_specs=VMEM_SPEC,
    )(node_x.astype(jnp.bfloat16), adj, pool_mat, omics, *flat)
    hazard = slab[:, 64:65]          # (B, 1)
    features = slab[:, :64]          # (B, 64)
    return hazard, features


graphomic_forward_jit = jax.jit(graphomic_forward)


# ----------------------------------------------------------------------------- driver
if __name__ == "__main__":
    key = jax.random.PRNGKey(0)
    k_param, k_x, k_om = jax.random.split(key, 3)

    num_graphs = 2
    nodes_per_graph = 8
    n_nodes = num_graphs * nodes_per_graph

    node_x = jax.random.normal(k_x, (n_nodes, 1024), jnp.float32)              # data.x
    omics = jax.random.normal(k_om, (num_graphs, OMICS_SIZE), jnp.float32)     # data.omics.reshape([-1, 95])

    # bidirectional ring per graph -> edge_index (2, 32); every node has in-degree 2
    src, dst = [], []
    for g in range(num_graphs):
        base = g * nodes_per_graph
        for i in range(nodes_per_graph):
            j = (i + 1) % nodes_per_graph
            src += [base + i, base + j]
            dst += [base + j, base + i]
    edge_index = np.asarray([src, dst], dtype=np.int32)                        # data.edge_index

    adj_np = np.zeros((n_nodes, n_nodes), np.float32)
    adj_np[edge_index[1], edge_index[0]] = 1.0                                 # adj[target, source]
    adj = jnp.asarray(adj_np)

    batch = np.repeat(np.arange(num_graphs), nodes_per_graph)                  # data.batch
    pool_np = np.zeros((num_graphs, n_nodes), np.float32)
    pool_np[batch, np.arange(n_nodes)] = 1.0 / nodes_per_graph                 # global_mean_pool matrix
    pool_mat = jnp.asarray(pool_np)

    params = build_params(k_param)
    hazard, features = graphomic_forward_jit(params, node_x, adj, pool_mat, omics)
    jax.block_until_ready((hazard, features))
    assert hazard.shape == (num_graphs, 1) and features.shape == (num_graphs, 64)
    assert bool(jnp.all(jnp.isfinite(hazard))) and bool(jnp.all(jnp.isfinite(features)))
    print("KERNEL_OK")
</pallas_src>

<mosaic_0001>
module attributes {stable_mosaic.version = 11 : i64} {
  func.func @_forward_kernel(%arg0: memref<16x1024xbf16, #tpu.memory_space<vmem>>, %arg1: memref<16x16xf32, #tpu.memory_space<vmem>>, %arg2: memref<2x16xf32, #tpu.memory_space<vmem>>, %arg3: memref<2x95xf32, #tpu.memory_space<vmem>>, %arg4: memref<1x48xf32, #tpu.memory_space<vmem>>, %arg5: memref<1x32xf32, #tpu.memory_space<vmem>>, %arg6: memref<1x32xf32, #tpu.memory_space<vmem>>, %arg7: memref<64x48xf32, #tpu.memory_space<vmem>>, %arg8: memref<48x32xf32, #tpu.memory_space<vmem>>, %arg9: memref<32x32xf32, #tpu.memory_space<vmem>>, %arg10: memref<64x48xf32, #tpu.memory_space<vmem>>, %arg11: memref<48x32xf32, #tpu.memory_space<vmem>>, %arg12: memref<32x32xf32, #tpu.memory_space<vmem>>, %arg13: memref<1x64xf32, #tpu.memory_space<vmem>>, %arg14: memref<1024x64xf32, #tpu.memory_space<vmem>>, %arg15: memref<64x64xf32, #tpu.memory_space<vmem>>, %arg16: memref<64x64xf32, #tpu.memory_space<vmem>>, %arg17: memref<1x64xf32, #tpu.memory_space<vmem>>, %arg18: memref<64x64xf32, #tpu.memory_space<vmem>>, %arg19: memref<1x64xf32, #tpu.memory_space<vmem>>, %arg20: memref<1024x64xbf16, #tpu.memory_space<vmem>>, %arg21: memref<1x64xf32, #tpu.memory_space<vmem>>, %arg22: memref<32x64xf32, #tpu.memory_space<vmem>>, %arg23: memref<32x64xf32, #tpu.memory_space<vmem>>, %arg24: memref<1x32xf32, #tpu.memory_space<vmem>>, %arg25: memref<1x32xf32, #tpu.memory_space<vmem>>, %arg26: memref<1x32xf32, #tpu.memory_space<vmem>>, %arg27: memref<1x32xf32, #tpu.memory_space<vmem>>, %arg28: memref<64x32xf32, #tpu.memory_space<vmem>>, %arg29: memref<48x32xf32, #tpu.memory_space<vmem>>, %arg30: memref<32x32xf32, #tpu.memory_space<vmem>>, %arg31: memref<32x32xf32, #tpu.memory_space<vmem>>, %arg32: memref<1x64xf32, #tpu.memory_space<vmem>>, %arg33: memref<64x64xf32, #tpu.memory_space<vmem>>, %arg34: memref<1x64xf32, #tpu.memory_space<vmem>>, %arg35: memref<1x48xf32, #tpu.memory_space<vmem>>, %arg36: memref<1x32xf32, #tpu.memory_space<vmem>>, %arg37: memref<1x32xf32, #tpu.memory_space<vmem>>, %arg38: memref<95x64xf32, #tpu.memory_space<vmem>>, %arg39: memref<64x48xf32, #tpu.memory_space<vmem>>, %arg40: memref<48x32xf32, #tpu.memory_space<vmem>>, %arg41: memref<32x32xf32, #tpu.memory_space<vmem>>, %arg42: memref<1x128xf32, #tpu.memory_space<vmem>>, %arg43: memref<64x128xf32, #tpu.memory_space<vmem>>, %arg44: memref<1x64xf32, #tpu.memory_space<vmem>>, %arg45: memref<1024x64xf32, #tpu.memory_space<vmem>>, %arg46: memref<2x128xf32, #tpu.memory_space<vmem>>) attributes {dimension_semantics = [], scalar_prefetch = 0 : i64, scratch_operands = 0 : i64, tpu.core_type = #tpu.core_type<tc>} {
    %c0 = arith.constant 0 : index
    %c0_0 = arith.constant 0 : index
    %0 = vector.load %arg1[%c0, %c0_0] : memref<16x16xf32, #tpu.memory_space<vmem>>, vector<16x16xf32>
    %cst = arith.constant 1.000000e+00 : f32
    %1 = vector.broadcast %cst : f32 to vector<16x16xf32>
    %2 = arith.subf %0, %1 : vector<16x16xf32>
    %cst_1 = arith.constant 1.000000e+30 : f32
    %3 = vector.broadcast %cst_1 : f32 to vector<16x16xf32>
    %4 = arith.mulf %2, %3 : vector<16x16xf32>
    %cst_2 = arith.constant dense<0.000000e+00> : vector<16xf32>
    %5 = vector.multi_reduction <add>, %0, %cst_2 [1] : vector<16x16xf32> to vector<16xf32>
    %6 = vector.shape_cast %5 : vector<16xf32> to vector<16x1xf32>
    %cst_3 = arith.constant 5.000000e-01 : f32
    %7 = vector.broadcast %cst_3 : f32 to vector<16x1xf32>
    %8 = arith.cmpf ogt, %6, %7 : vector<16x1xf32>
    %c0_4 = arith.constant 0 : index
    %c0_5 = arith.constant 0 : index
    %9 = vector.load %arg0[%c0_4, %c0_5] : memref<16x1024xbf16, #tpu.memory_space<vmem>>, vector<16x1024xbf16>
    %c0_6 = arith.constant 0 : index
    %c0_7 = arith.constant 0 : index
    %10 = vector.load %arg20[%c0_6, %c0_7] : memref<1024x64xbf16, #tpu.memory_space<vmem>>, vector<1024x64xbf16>
    %cst_8 = arith.constant dense<0.000000e+00> : vector<16x64xf32>
    %11 = tpu.matmul %9, %10, %cst_8 {dimension_numbers = #tpu.dot_dimension_numbers<[1], [0], [0], [1], [0, 0, 1, 1], [], []>} : vector<16x1024xbf16>, vector<1024x64xbf16>, vector<16x64xf32> -> vector<16x64xf32>
    %c0_9 = arith.constant 0 : index
    %c0_10 = arith.constant 0 : index
    %12 = vector.load %arg19[%c0_9, %c0_10] : memref<1x64xf32, #tpu.memory_space<vmem>>, vector<1x64xf32>
    %13 = vector.broadcast %12 : vector<1x64xf32> to vector<16x64xf32>
    %14 = arith.addf %11, %13 : vector<16x64xf32>
    %cst_11 = arith.constant 5.000000e-01 : f32
    %15 = vector.broadcast %cst_11 : f32 to vector<16x64xf32>
    %16 = arith.mulf %15, %14 : vector<16x64xf32>
    %cst_12 = arith.constant 0.707106769 : f32
    %17 = vector.broadcast %cst_12 : f32 to vector<16x64xf32>
    %18 = arith.mulf %14, %17 : vector<16x64xf32>
    %19 = math.erf %18 : vector<16x64xf32>
    %cst_13 = arith.constant 1.000000e+00 : f32
    %20 = vector.broadcast %cst_13 : f32 to vector<16x64xf32>
    %21 = arith.addf %20, %19 : vector<16x64xf32>
    %22 = arith.mulf %16, %21 : vector<16x64xf32>
    %c0_14 = arith.constant 0 : index
    %c0_15 = arith.constant 0 : index
    %23 = vector.load %arg28[%c0_14, %c0_15] : memref<64x32xf32, #tpu.memory_space<vmem>>, vector<64x32xf32>
    %cst_16 = arith.constant dense<0.000000e+00> : vector<16x32xf32>
    %24 = tpu.matmul %22, %23, %cst_16 {dimension_numbers = #tpu.dot_dimension_numbers<[1], [0], [0], [1], [0, 0, 1, 1], [], []>} : vector<16x64xf32>, vector<64x32xf32>, vector<16x32xf32> -> vector<16x32xf32>
    %c0_17 = arith.constant 0 : index
    %c0_18 = arith.constant 0 : index
    %25 = vector.load %arg24[%c0_17, %c0_18] : memref<1x32xf32, #tpu.memory_space<vmem>>, vector<1x32xf32>
    %26 = vector.broadcast %25 : vector<1x32xf32> to vector<16x32xf32>
    %27 = arith.addf %24, %26 : vector<16x32xf32>
    %cst_19 = arith.constant 5.000000e-01 : f32
    %28 = vector.broadcast %cst_19 : f32 to vector<16x32xf32>
    %29 = arith.mulf %28, %27 : vector<16x32xf32>
    %cst_20 = arith.constant 0.707106769 : f32
    %30 = vector.broadcast %cst_20 : f32 to vector<16x32xf32>
    %31 = arith.mulf %27, %30 : vector<16x32xf32>
    %32 = math.erf %31 : vector<16x32xf32>
    %cst_21 = arith.constant 1.000000e+00 : f32
    %33 = vector.broadcast %cst_21 : f32 to vector<16x32xf32>
    %34 = arith.addf %33, %32 : vector<16x32xf32>
    %35 = arith.mulf %29, %34 : vector<16x32xf32>
    %c0_22 = arith.constant 0 : index
    %c0_23 = arith.constant 0 : index
    %36 = vector.load %arg7[%c0_22, %c0_23] : memref<64x48xf32, #tpu.memory_space<vmem>>, vector<64x48xf32>
    %cst_24 = arith.constant dense<0.000000e+00> : vector<16x48xf32>
    %37 = tpu.matmul %22, %36, %cst_24 {dimension_numbers = #tpu.dot_dimension_numbers<[1], [0], [0], [1], [0, 0, 1, 1], [], []>} : vector<16x64xf32>, vector<64x48xf32>, vector<16x48xf32> -> vector<16x48xf32>
    %c0_25 = arith.constant 0 : index
    %c0_26 = arith.constant 0 : index
    %38 = vector.load %arg10[%c0_25, %c0_26] : memref<64x48xf32, #tpu.memory_space<vmem>>, vector<64x48xf32>
    %cst_27 = arith.constant dense<0.000000e+00> : vector<16x48xf32>
    %39 = tpu.matmul %22, %38, %cst_27 {dimension_numbers = #tpu.dot_dimension_numbers<[1], [0], [0], [1], [0, 0, 1, 1], [], []>} : vector<16x64xf32>, vector<64x48xf32>, vector<16x48xf32> -> vector<16x48xf32>
    %cst_28 = arith.constant -1.000000e+30 : f32
    %40 = vector.broadcast %cst_28 : f32 to vector<16x48xf32>
    %41 = vector.shape_cast %39 : vector<16x48xf32> to vector<1x16x48xf32>
    %42 = vector.shape_cast %4 : vector<16x16xf32> to vector<16x16x1xf32>
    %43 = vector.broadcast %41 : vector<1x16x48xf32> to vector<16x16x48xf32>
    %44 = vector.broadcast %42 : vector<16x16x1xf32> to vector<16x16x48xf32>
    %45 = arith.addf %43, %44 : vector<16x16x48xf32>
    %cst_29 = arith.constant dense<0xFF800000> : vector<16x48xf32>
    %46 = vector.multi_reduction <maximumf>, %45, %cst_29 [1] : vector<16x16x48xf32> to vector<16x48xf32>
    %47 = arith.maximumf %40, %46 : vector<16x48xf32>
    %48 = arith.addf %37, %47 : vector<16x48xf32>
    %c0_30 = arith.constant 0 : index
    %c0_31 = arith.constant 0 : index
    %49 = vector.load %arg4[%c0_30, %c0_31] : memref<1x48xf32, #tpu.memory_space<vmem>>, vector<1x48xf32>
    %50 = vector.broadcast %49 : vector<1x48xf32> to vector<16x48xf32>
    %51 = arith.addf %48, %50 : vector<16x48xf32>
    %cst_32 = arith.constant 0.000000e+00 : f32
    %52 = vector.shape_cast %8 : vector<16x1xi1> to vector<16x1xi1>
    %53 = vector.broadcast %52 : vector<16x1xi1> to vector<16x48xi1>
    %54 = vector.broadcast %cst_32 : f32 to vector<16x48xf32>
    %55 = arith.select %53, %51, %54 : vector<16x48xi1>, vector<16x48xf32>
    %c0_33 = arith.constant 0 : index
    %c0_34 = arith.constant 0 : index
    %56 = vector.load %arg29[%c0_33, %c0_34] : memref<48x32xf32, #tpu.memory_space<vmem>>, vector<48x32xf32>
    %cst_35 = arith.constant dense<0.000000e+00> : vector<16x32xf32>
    %57 = tpu.matmul %55, %56, %cst_35 {dimension_numbers = #tpu.dot_dimension_numbers<[1], [0], [0], [1], [0, 0, 1, 1], [], []>} : vector<16x48xf32>, vector<48x32xf32>, vector<16x32xf32> -> vector<16x32xf32>
    %58 = arith.addf %35, %57 : vector<16x32xf32>
    %c0_36 = arith.constant 0 : index
    %c0_37 = arith.constant 0 : index
    %59 = vector.load %arg25[%c0_36, %c0_37] : memref<1x32xf32, #tpu.memory_space<vmem>>, vector<1x32xf32>
    %60 = vector.broadcast %59 : vector<1x32xf32> to vector<16x32xf32>
    %61 = arith.addf %58, %60 : vector<16x32xf32>
    %c0_38 = arith.constant 0 : index
    %c0_39 = arith.constant 0 : index
    %62 = vector.load %arg8[%c0_38, %c0_39] : memref<48x32xf32, #tpu.memory_space<vmem>>, vector<48x32xf32>
    %cst_40 = arith.constant dense<0.000000e+00> : vector<16x32xf32>
    %63 = tpu.matmul %55, %62, %cst_40 {dimension_numbers = #tpu.dot_dimension_numbers<[1], [0], [0], [1], [0, 0, 1, 1], [], []>} : vector<16x48xf32>, vector<48x32xf32>, vector<16x32xf32> -> vector<16x32xf32>
    %c0_41 = arith.constant 0 : index
    %c0_42 = arith.constant 0 : index
    %64 = vector.load %arg11[%c0_41, %c0_42] : memref<48x32xf32, #tpu.memory_space<vmem>>, vector<48x32xf32>
    %cst_43 = arith.constant dense<0.000000e+00> : vector<16x32xf32>
    %65 = tpu.matmul %55, %64, %cst_43 {dimension_numbers = #tpu.dot_dimension_numbers<[1], [0], [0], [1], [0, 0, 1, 1], [], []>} : vector<16x48xf32>, vector<48x32xf32>, vector<16x32xf32> -> vector<16x32xf32>
    %cst_44 = arith.constant -1.000000e+30 : f32
    %66 = vector.broadcast %cst_44 : f32 to vector<16x32xf32>
    %67 = vector.shape_cast %65 : vector<16x32xf32> to vector<1x16x32xf32>
    %68 = vector.shape_cast %4 : vector<16x16xf32> to vector<16x16x1xf32>
    %69 = vector.broadcast %67 : vector<1x16x32xf32> to vector<16x16x32xf32>
    %70 = vector.broadcast %68 : vector<16x16x1xf32> to vector<16x16x32xf32>
    %71 = arith.addf %69, %70 : vector<16x16x32xf32>
    %cst_45 = arith.constant dense<0xFF800000> : vector<16x32xf32>
    %72 = vector.multi_reduction <maximumf>, %71, %cst_45 [1] : vector<16x16x32xf32> to vector<16x32xf32>
    %73 = arith.maximumf %66, %72 : vector<16x32xf32>
    %74 = arith.addf %63, %73 : vector<16x32xf32>
    %c0_46 = arith.constant 0 : index
    %c0_47 = arith.constant 0 : index
    %75 = vector.load %arg5[%c0_46, %c0_47] : memref<1x32xf32, #tpu.memory_space<vmem>>, vector<1x32xf32>
    %76 = vector.broadcast %75 : vector<1x32xf32> to vector<16x32xf32>
    %77 = arith.addf %74, %76 : vector<16x32xf32>
    %cst_48 = arith.constant 0.000000e+00 : f32
    %78 = vector.shape_cast %8 : vector<16x1xi1> to vector<16x1xi1>
    %79 = vector.broadcast %78 : vector<16x1xi1> to vector<16x32xi1>
    %80 = vector.broadcast %cst_48 : f32 to vector<16x32xf32>
    %81 = arith.select %79, %77, %80 : vector<16x32xi1>, vector<16x32xf32>
    %c0_49 = arith.constant 0 : index
    %c0_50 = arith.constant 0 : index
    %82 = vector.load %arg30[%c0_49, %c0_50] : memref<32x32xf32, #tpu.memory_space<vmem>>, vector<32x32xf32>
    %cst_51 = arith.constant dense<0.000000e+00> : vector<16x32xf32>
    %83 = tpu.matmul %81, %82, %cst_51 {dimension_numbers = #tpu.dot_dimension_numbers<[1], [0], [0], [1], [0, 0, 1, 1], [], []>} : vector<16x32xf32>, vector<32x32xf32>, vector<16x32xf32> -> vector<16x32xf32>
    %84 = arith.addf %61, %83 : vector<16x32xf32>
    %c0_52 = arith.constant 0 : index
    %c0_53 = arith.constant 0 : index
    %85 = vector.load %arg26[%c0_52, %c0_53] : memref<1x32xf32, #tpu.memory_space<vmem>>, vector<1x32xf32>
    %86 = vector.broadcast %85 : vector<1x32xf32> to vector<16x32xf32>
    %87 = arith.addf %84, %86 : vector<16x32xf32>
    %c0_54 = arith.constant 0 : index
    %c0_55 = arith.constant 0 : index
    %88 = vector.load %arg9[%c0_54, %c0_55] : memref<32x32xf32, #tpu.memory_space<vmem>>, vector<32x32xf32>
    %cst_56 = arith.constant dense<0.000000e+00> : vector<16x32xf32>
    %89 = tpu.matmul %81, %88, %cst_56 {dimension_numbers = #tpu.dot_dimension_numbers<[1], [0], [0], [1], [0, 0, 1, 1], [], []>} : vector<16x32xf32>, vector<32x32xf32>, vector<16x32xf32> -> vector<16x32xf32>
    %c0_57 = arith.constant 0 : index
    %c0_58 = arith.constant 0 : index
    %90 = vector.load %arg12[%c0_57, %c0_58] : memref<32x32xf32, #tpu.memory_space<vmem>>, vector<32x32xf32>
    %cst_59 = arith.constant dense<0.000000e+00> : vector<16x32xf32>
    %91 = tpu.matmul %81, %90, %cst_59 {dimension_numbers = #tpu.dot_dimension_numbers<[1], [0], [0], [1], [0, 0, 1, 1], [], []>} : vector<16x32xf32>, vector<32x32xf32>, vector<16x32xf32> -> vector<16x32xf32>
    %cst_60 = arith.constant -1.000000e+30 : f32
    %92 = vector.broadcast %cst_60 : f32 to vector<16x32xf32>
    %93 = vector.shape_cast %91 : vector<16x32xf32> to vector<1x16x32xf32>
    %94 = vector.shape_cast %4 : vector<16x16xf32> to vector<16x16x1xf32>
    %95 = vector.broadcast %93 : vector<1x16x32xf32> to vector<16x16x32xf32>
    %96 = vector.broadcast %94 : vector<16x16x1xf32> to vector<16x16x32xf32>
    %97 = arith.addf %95, %96 : vector<16x16x32xf32>
    %cst_61 = arith.constant dense<0xFF800000> : vector<16x32xf32>
    %98 = vector.multi_reduction <maximumf>, %97, %cst_61 [1] : vector<16x16x32xf32> to vector<16x32xf32>
    %99 = arith.maximumf %92, %98 : vector<16x32xf32>
    %100 = arith.addf %89, %99 : vector<16x32xf32>
    %c0_62 = arith.constant 0 : index
    %c0_63 = arith.constant 0 : index
    %101 = vector.load %arg6[%c0_62, %c0_63] : memref<1x32xf32, #tpu.memory_space<vmem>>, vector<1x32xf32>
    %102 = vector.broadcast %101 : vector<1x32xf32> to vector<16x32xf32>
    %103 = arith.addf %100, %102 : vector<16x32xf32>
    %cst_64 = arith.constant 0.000000e+00 : f32
    %104 = vector.shape_cast %8 : vector<16x1xi1> to vector<16x1xi1>
    %105 = vector.broadcast %104 : vector<16x1xi1> to vector<16x32xi1>
    %106 = vector.broadcast %cst_64 : f32 to vector<16x32xf32>
    %107 = arith.select %105, %103, %106 : vector<16x32xi1>, vector<16x32xf32>
    %c0_65 = arith.constant 0 : index
    %c0_66 = arith.constant 0 : index
    %108 = vector.load %arg31[%c0_65, %c0_66] : memref<32x32xf32, #tpu.memory_space<vmem>>, vector<32x32xf32>
    %cst_67 = arith.constant dense<0.000000e+00> : vector<16x32xf32>
    %109 = tpu.matmul %107, %108, %cst_67 {dimension_numbers = #tpu.dot_dimension_numbers<[1], [0], [0], [1], [0, 0, 1, 1], [], []>} : vector<16x32xf32>, vector<32x32xf32>, vector<16x32xf32> -> vector<16x32xf32>
    %110 = arith.addf %87, %109 : vector<16x32xf32>
    %c0_68 = arith.constant 0 : index
    %c0_69 = arith.constant 0 : index
    %111 = vector.load %arg27[%c0_68, %c0_69] : memref<1x32xf32, #tpu.memory_space<vmem>>, vector<1x32xf32>
    %112 = vector.broadcast %111 : vector<1x32xf32> to vector<16x32xf32>
    %113 = arith.addf %110, %112 : vector<16x32xf32>
    %c0_70 = arith.constant 0 : index
    %c0_71 = arith.constant 0 : index
    %114 = vector.load %arg2[%c0_70, %c0_71] : memref<2x16xf32, #tpu.memory_space<vmem>>, vector<2x16xf32>
    %cst_72 = arith.constant dense<0.000000e+00> : vector<2x32xf32>
    %115 = tpu.matmul %114, %113, %cst_72 {dimension_numbers = #tpu.dot_dimension_numbers<[1], [0], [0], [1], [0, 0, 1, 1], [], []>} : vector<2x16xf32>, vector<16x32xf32>, vector<2x32xf32> -> vector<2x32xf32>
    %c0_73 = arith.constant 0 : index
    %c0_74 = arith.constant 0 : index
    %116 = vector.load %arg3[%c0_73, %c0_74] : memref<2x95xf32, #tpu.memory_space<vmem>>, vector<2x95xf32>
    %c0_75 = arith.constant 0 : index
    %c0_76 = arith.constant 0 : index
    %117 = vector.load %arg38[%c0_75, %c0_76] : memref<95x64xf32, #tpu.memory_space<vmem>>, vector<95x64xf32>
    %cst_77 = arith.constant dense<0.000000e+00> : vector<2x64xf32>
    %118 = tpu.matmul %116, %117, %cst_77 {dimension_numbers = #tpu.dot_dimension_numbers<[1], [0], [0], [1], [0, 0, 1, 1], [], []>} : vector<2x95xf32>, vector<95x64xf32>, vector<2x64xf32> -> vector<2x64xf32>
    %c0_78 = arith.constant 0 : index
    %c0_79 = arith.constant 0 : index
    %119 = vector.load %arg34[%c0_78, %c0_79] : memref<1x64xf32, #tpu.memory_space<vmem>>, vector<1x64xf32>
    %120 = vector.broadcast %119 : vector<1x64xf32> to vector<2x64xf32>
    %121 = arith.addf %118, %120 : vector<2x64xf32>
    %cst_80 = arith.constant 0.000000e+00 : f32
    %122 = vector.broadcast %cst_80 : f32 to vector<2x64xf32>
    %123 = arith.cmpf ogt, %121, %122 : vector<2x64xf32>
    %cst_81 = arith.constant 0.000000e+00 : f32
    %124 = vector.broadcast %cst_81 : f32 to vector<2x64xf32>
    %125 = arith.minimumf %121, %124 : vector<2x64xf32>
    %126 = math.exp %125 : vector<2x64xf32>
    %cst_82 = arith.constant 1.000000e+00 : f32
    %127 = vector.broadcast %cst_82 : f32 to vector<2x64xf32>
    %128 = arith.subf %126, %127 : vector<2x64xf32>
    %129 = arith.select %123, %121, %128 : vector<2x64xi1>, vector<2x64xf32>
    %c0_83 = arith.constant 0 : index
    %c0_84 = arith.constant 0 : index
    %130 = vector.load %arg39[%c0_83, %c0_84] : memref<64x48xf32, #tpu.memory_space<vmem>>, vector<64x48xf32>
    %cst_85 = arith.constant dense<0.000000e+00> : vector<2x48xf32>
    %131 = tpu.matmul %129, %130, %cst_85 {dimension_numbers = #tpu.dot_dimension_numbers<[1], [0], [0], [1], [0, 0, 1, 1], [], []>} : vector<2x64xf32>, vector<64x48xf32>, vector<2x48xf32> -> vector<2x48xf32>
    %c0_86 = arith.constant 0 : index
    %c0_87 = arith.constant 0 : index
    %132 = vector.load %arg35[%c0_86, %c0_87] : memref<1x48xf32, #tpu.memory_space<vmem>>, vector<1x48xf32>
    %133 = vector.broadcast %132 : vector<1x48xf32> to vector<2x48xf32>
    %134 = arith.addf %131, %133 : vector<2x48xf32>
    %cst_88 = arith.constant 0.000000e+00 : f32
    %135 = vector.broadcast %cst_88 : f32 to vector<2x48xf32>
    %136 = arith.cmpf ogt, %134, %135 : vector<2x48xf32>
    %cst_89 = arith.constant 0.000000e+00 : f32
    %137 = vector.broadcast %cst_89 : f32 to vector<2x48xf32>
    %138 = arith.minimumf %134, %137 : vector<2x48xf32>
    %139 = math.exp %138 : vector<2x48xf32>
    %cst_90 = arith.constant 1.000000e+00 : f32
    %140 = vector.broadcast %cst_90 : f32 to vector<2x48xf32>
    %141 = arith.subf %139, %140 : vector<2x48xf32>
    %142 = arith.select %136, %134, %141 : vector<2x48xi1>, vector<2x48xf32>
    %c0_91 = arith.constant 0 : index
    %c0_92 = arith.constant 0 : index
    %143 = vector.load %arg40[%c0_91, %c0_92] : memref<48x32xf32, #tpu.memory_space<vmem>>, vector<48x32xf32>
    %cst_93 = arith.constant dense<0.000000e+00> : vector<2x32xf32>
    %144 = tpu.matmul %142, %143, %cst_93 {dimension_numbers = #tpu.dot_dimension_numbers<[1], [0], [0], [1], [0, 0, 1, 1], [], []>} : vector<2x48xf32>, vector<48x32xf32>, vector<2x32xf32> -> vector<2x32xf32>
    %c0_94 = arith.constant 0 : index
    %c0_95 = arith.constant 0 : index
    %145 = vector.load %arg36[%c0_94, %c0_95] : memref<1x32xf32, #tpu.memory_space<vmem>>, vector<1x32xf32>
    %146 = vector.broadcast %145 : vector<1x32xf32> to vector<2x32xf32>
    %147 = arith.addf %144, %146 : vector<2x32xf32>
    %cst_96 = arith.constant 0.000000e+00 : f32
    %148 = vector.broadcast %cst_96 : f32 to vector<2x32xf32>
    %149 = arith.cmpf ogt, %147, %148 : vector<2x32xf32>
    %cst_97 = arith.constant 0.000000e+00 : f32
    %150 = vector.broadcast %cst_97 : f32 to vector<2x32xf32>
    %151 = arith.minimumf %147, %150 : vector<2x32xf32>
    %152 = math.exp %151 : vector<2x32xf32>
    %cst_98 = arith.constant 1.000000e+00 : f32
    %153 = vector.broadcast %cst_98 : f32 to vector<2x32xf32>
    %154 = arith.subf %152, %153 : vector<2x32xf32>
    %155 = arith.select %149, %147, %154 : vector<2x32xi1>, vector<2x32xf32>
    %c0_99 = arith.constant 0 : index
    %c0_100 = arith.constant 0 : index
    %156 = vector.load %arg41[%c0_99, %c0_100] : memref<32x32xf32, #tpu.memory_space<vmem>>, vector<32x32xf32>
    %cst_101 = arith.constant dense<0.000000e+00> : vector<2x32xf32>
    %157 = tpu.matmul %155, %156, %cst_101 {dimension_numbers = #tpu.dot_dimension_numbers<[1], [0], [0], [1], [0, 0, 1, 1], [], []>} : vector<2x32xf32>, vector<32x32xf32>, vector<2x32xf32> -> vector<2x32xf32>
    %c0_102 = arith.constant 0 : index
    %c0_103 = arith.constant 0 : index
    %158 = vector.load %arg37[%c0_102, %c0_103] : memref<1x32xf32, #tpu.memory_space<vmem>>, vector<1x32xf32>
    %159 = vector.broadcast %158 : vector<1x32xf32> to vector<2x32xf32>
    %160 = arith.addf %157, %159 : vector<2x32xf32>
    %cst_104 = arith.constant 0.000000e+00 : f32
    %161 = vector.broadcast %cst_104 : f32 to vector<2x32xf32>
    %162 = arith.cmpf ogt, %160, %161 : vector<2x32xf32>
    %cst_105 = arith.constant 0.000000e+00 : f32
    %163 = vector.broadcast %cst_105 : f32 to vector<2x32xf32>
    %164 = arith.minimumf %160, %163 : vector<2x32xf32>
    %165 = math.exp %164 : vector<2x32xf32>
    %cst_106 = arith.constant 1.000000e+00 : f32
    %166 = vector.broadcast %cst_106 : f32 to vector<2x32xf32>
    %167 = arith.subf %165, %166 : vector<2x32xf32>
    %168 = arith.select %162, %160, %167 : vector<2x32xi1>, vector<2x32xf32>
    %169 = tpu.iota {dimensions = array<i32: 0>} : vector<32x1024xi32>
    %170 = tpu.iota {dimensions = array<i32: 1>} : vector<32x1024xi32>
    %c32_i32 = arith.constant 32 : i32
    %171 = vector.broadcast %c32_i32 : i32 to vector<32x1024xi32>
    %172 = arith.muli %169, %171 : vector<32x1024xi32>
    %173 = arith.subi %170, %172 : vector<32x1024xi32>
    %c0_i32 = arith.constant 0 : i32
    %174 = vector.broadcast %c0_i32 : i32 to vector<32x1024xi32>
    %175 = arith.cmpi sge, %173, %174 : vector<32x1024xi32>
    %c32_i32_107 = arith.constant 32 : i32
    %176 = vector.broadcast %c32_i32_107 : i32 to vector<32x1024xi32>
    %177 = arith.cmpi slt, %173, %176 : vector<32x1024xi32>
    %178 = arith.andi %175, %177 : vector<32x1024xi1>
    %179 = arith.extui %178 : vector<32x1024xi1> to vector<32x1024xi32>
    %180 = arith.sitofp %179 : vector<32x1024xi32> to vector<32x1024xf32>
    %c31_i32 = arith.constant 31 : i32
    %181 = vector.broadcast %c31_i32 : i32 to vector<32x1024xi32>
    %182 = arith.andi %170, %181 : vector<32x1024xi32>
    %c0_i32_108 = arith.constant 0 : i32
    %183 = vector.broadcast %c0_i32_108 : i32 to vector<32x1024xi32>
    %184 = arith.addi %182, %183 : vector<32x1024xi32>
    %185 = arith.cmpi eq, %184, %169 : vector<32x1024xi32>
    %186 = arith.extui %185 : vector<32x1024xi1> to vector<32x1024xi32>
    %187 = arith.sitofp %186 : vector<32x1024xi32> to vector<32x1024xf32>
    %cst_109 = arith.constant dense<0.000000e+00> : vector<2x1024xf32>
    %188 = tpu.matmul %115, %180, %cst_109 {dimension_numbers = #tpu.dot_dimension_numbers<[1], [0], [0], [1], [0, 0, 1, 1], [], []>} : vector<2x32xf32>, vector<32x1024xf32>, vector<2x1024xf32> -> vector<2x1024xf32>
    %cst_110 = arith.constant dense<0.000000e+00> : vector<2x1024xf32>
    %189 = tpu.matmul %168, %187, %cst_110 {dimension_numbers = #tpu.dot_dimension_numbers<[1], [0], [0], [1], [0, 0, 1, 1], [], []>} : vector<2x32xf32>, vector<32x1024xf32>, vector<2x1024xf32> -> vector<2x1024xf32>
    %190 = arith.mulf %188, %189 : vector<2x1024xf32>
    %c0_111 = arith.constant 0 : index
    %c0_112 = arith.constant 0 : index
    %191 = vector.load %arg22[%c0_111, %c0_112] : memref<32x64xf32, #tpu.memory_space<vmem>>, vector<32x64xf32>
    %cst_113 = arith.constant dense<0.000000e+00> : vector<2x64xf32>
    %192 = tpu.matmul %115, %191, %cst_113 {dimension_numbers = #tpu.dot_dimension_numbers<[1], [0], [0], [1], [0, 0, 1, 1], [], []>} : vector<2x32xf32>, vector<32x64xf32>, vector<2x64xf32> -> vector<2x64xf32>
    %c0_114 = arith.constant 0 : index
    %c0_115 = arith.constant 0 : index
    %193 = vector.load %arg23[%c0_114, %c0_115] : memref<32x64xf32, #tpu.memory_space<vmem>>, vector<32x64xf32>
    %cst_116 = arith.constant dense<0.000000e+00> : vector<2x64xf32>
    %194 = tpu.matmul %168, %193, %cst_116 {dimension_numbers = #tpu.dot_dimension_numbers<[1], [0], [0], [1], [0, 0, 1, 1], [], []>} : vector<2x32xf32>, vector<32x64xf32>, vector<2x64xf32> -> vector<2x64xf32>
    %195 = arith.addf %192, %194 : vector<2x64xf32>
    %c0_117 = arith.constant 0 : index
    %c0_118 = arith.constant 0 : index
    %196 = vector.load %arg21[%c0_117, %c0_118] : memref<1x64xf32, #tpu.memory_space<vmem>>, vector<1x64xf32>
    %197 = vector.broadcast %196 : vector<1x64xf32> to vector<2x64xf32>
    %198 = arith.addf %195, %197 : vector<2x64xf32>
    %cst_119 = arith.constant 0.000000e+00 : f32
    %199 = vector.broadcast %cst_119 : f32 to vector<2x64xf32>
    %200 = arith.maximumf %198, %199 : vector<2x64xf32>
    %c0_120 = arith.constant 0 : index
    %c0_121 = arith.constant 0 : index
    %201 = vector.load %arg45[%c0_120, %c0_121] : memref<1024x64xf32, #tpu.memory_space<vmem>>, vector<1024x64xf32>
    %cst_122 = arith.constant dense<0.000000e+00> : vector<2x64xf32>
    %202 = tpu.matmul %190, %201, %cst_122 {dimension_numbers = #tpu.dot_dimension_numbers<[1], [0], [0], [1], [0, 0, 1, 1], [], []>} : vector<2x1024xf32>, vector<1024x64xf32>, vector<2x64xf32> -> vector<2x64xf32>
    %c0_123 = arith.constant 0 : index
    %c0_124 = arith.constant 0 : index
    %203 = vector.load %arg44[%c0_123, %c0_124] : memref<1x64xf32, #tpu.memory_space<vmem>>, vector<1x64xf32>
    %204 = vector.broadcast %203 : vector<1x64xf32> to vector<2x64xf32>
    %205 = arith.addf %202, %204 : vector<2x64xf32>
    %cst_125 = arith.constant 0.000000e+00 : f32
    %206 = vector.broadcast %cst_125 : f32 to vector<2x64xf32>
    %207 = arith.subf %206, %205 : vector<2x64xf32>
    %208 = math.exp %207 : vector<2x64xf32>
    %cst_126 = arith.constant 1.000000e+00 : f32
    %209 = vector.broadcast %cst_126 : f32 to vector<2x64xf32>
    %210 = arith.addf %209, %208 : vector<2x64xf32>
    %cst_127 = arith.constant 1.000000e+00 : f32
    %211 = vector.broadcast %cst_127 : f32 to vector<2x64xf32>
    %212 = arith.divf %211, %210 : vector<2x64xf32>
    %213 = arith.mulf %212, %200 : vector<2x64xf32>
    %c0_128 = arith.constant 0 : index
    %c0_129 = arith.constant 0 : index
    %214 = vector.load %arg33[%c0_128, %c0_129] : memref<64x64xf32, #tpu.memory_space<vmem>>, vector<64x64xf32>
    %cst_130 = arith.constant dense<0.000000e+00> : vector<2x64xf32>
    %215 = tpu.matmul %213, %214, %cst_130 {dimension_numbers = #tpu.dot_dimension_numbers<[1], [0], [0], [1], [0, 0, 1, 1], [], []>} : vector<2x64xf32>, vector<64x64xf32>, vector<2x64xf32> -> vector<2x64xf32>
    %c0_131 = arith.constant 0 : index
    %c0_132 = arith.constant 0 : index
    %216 = vector.load %arg32[%c0_131, %c0_132] : memref<1x64xf32, #tpu.memory_space<vmem>>, vector<1x64xf32>
    %217 = vector.broadcast %216 : vector<1x64xf32> to vector<2x64xf32>
    %218 = arith.addf %215, %217 : vector<2x64xf32>
    %cst_133 = arith.constant 0.000000e+00 : f32
    %219 = vector.broadcast %cst_133 : f32 to vector<2x64xf32>
    %220 = arith.maximumf %218, %219 : vector<2x64xf32>
    %221 = tpu.iota {dimensions = array<i32: 0>} : vector<64x1024xi32>
    %222 = tpu.iota {dimensions = array<i32: 1>} : vector<64x1024xi32>
    %c32_i32_134 = arith.constant 32 : i32
    %223 = vector.broadcast %c32_i32_134 : i32 to vector<64x1024xi32>
    %224 = arith.muli %221, %223 : vector<64x1024xi32>
    %225 = arith.subi %222, %224 : vector<64x1024xi32>
    %c0_i32_135 = arith.constant 0 : i32
    %226 = vector.broadcast %c0_i32_135 : i32 to vector<64x1024xi32>
    %227 = arith.cmpi sge, %225, %226 : vector<64x1024xi32>
    %c32_i32_136 = arith.constant 32 : i32
    %228 = vector.broadcast %c32_i32_136 : i32 to vector<64x1024xi32>
    %229 = arith.cmpi slt, %225, %228 : vector<64x1024xi32>
    %230 = arith.andi %227, %229 : vector<64x1024xi1>
    %231 = arith.extui %230 : vector<64x1024xi1> to vector<64x1024xi32>
    %232 = arith.sitofp %231 : vector<64x1024xi32> to vector<64x1024xf32>
    %c31_i32_137 = arith.constant 31 : i32
    %233 = vector.broadcast %c31_i32_137 : i32 to vector<64x1024xi32>
    %234 = arith.andi %222, %233 : vector<64x1024xi32>
    %c32_i32_138 = arith.constant 32 : i32
    %235 = vector.broadcast %c32_i32_138 : i32 to vector<64x1024xi32>
    %236 = arith.addi %234, %235 : vector<64x1024xi32>
    %237 = arith.cmpi eq, %236, %221 : vector<64x1024xi32>
    %238 = arith.extui %237 : vector<64x1024xi1> to vector<64x1024xi32>
    %239 = arith.sitofp %238 : vector<64x1024xi32> to vector<64x1024xf32>
    %cst_139 = arith.constant dense<0.000000e+00> : vector<2x1024xf32>
    %240 = tpu.matmul %220, %232, %cst_139 {dimension_numbers = #tpu.dot_dimension_numbers<[1], [0], [0], [1], [0, 0, 1, 1], [], []>} : vector<2x64xf32>, vector<64x1024xf32>, vector<2x1024xf32> -> vector<2x1024xf32>
    %cst_140 = arith.constant dense<0.000000e+00> : vector<2x1024xf32>
    %241 = tpu.matmul %220, %239, %cst_140 {dimension_numbers = #tpu.dot_dimension_numbers<[1], [0], [0], [1], [0, 0, 1, 1], [], []>} : vector<2x64xf32>, vector<64x1024xf32>, vector<2x1024xf32> -> vector<2x1024xf32>
    %242 = arith.mulf %240, %241 : vector<2x1024xf32>
    %c0_141 = arith.constant 0 : index
    %c0_142 = arith.constant 0 : index
    %243 = vector.load %arg14[%c0_141, %c0_142] : memref<1024x64xf32, #tpu.memory_space<vmem>>, vector<1024x64xf32>
    %cst_143 = arith.constant dense<0.000000e+00> : vector<2x64xf32>
    %244 = tpu.matmul %242, %243, %cst_143 {dimension_numbers = #tpu.dot_dimension_numbers<[1], [0], [0], [1], [0, 0, 1, 1], [], []>} : vector<2x1024xf32>, vector<1024x64xf32>, vector<2x64xf32> -> vector<2x64xf32>
    %c0_144 = arith.constant 0 : index
    %c0_145 = arith.constant 0 : index
    %245 = vector.load %arg15[%c0_144, %c0_145] : memref<64x64xf32, #tpu.memory_space<vmem>>, vector<64x64xf32>
    %cst_146 = arith.constant dense<0.000000e+00> : vector<2x64xf32>
    %246 = tpu.matmul %220, %245, %cst_146 {dimension_numbers = #tpu.dot_dimension_numbers<[1], [0], [0], [1], [0, 0, 1, 1], [], []>} : vector<2x64xf32>, vector<64x64xf32>, vector<2x64xf32> -> vector<2x64xf32>
    %247 = arith.addf %244, %246 : vector<2x64xf32>
    %c0_147 = arith.constant 0 : index
    %c0_148 = arith.constant 0 : index
    %248 = vector.load %arg13[%c0_147, %c0_148] : memref<1x64xf32, #tpu.memory_space<vmem>>, vector<1x64xf32>
    %249 = vector.broadcast %248 : vector<1x64xf32> to vector<2x64xf32>
    %250 = arith.addf %247, %249 : vector<2x64xf32>
    %cst_149 = arith.constant 0.000000e+00 : f32
    %251 = vector.broadcast %cst_149 : f32 to vector<2x64xf32>
    %252 = arith.maximumf %250, %251 : vector<2x64xf32>
    %c0_150 = arith.constant 0 : index
    %c0_151 = arith.constant 0 : index
    %253 = vector.load %arg16[%c0_150, %c0_151] : memref<64x64xf32, #tpu.memory_space<vmem>>, vector<64x64xf32>
    %cst_152 = arith.constant dense<0.000000e+00> : vector<2x64xf32>
    %254 = tpu.matmul %252, %253, %cst_152 {dimension_numbers = #tpu.dot_dimension_numbers<[1], [0], [0], [1], [0, 0, 1, 1], [], []>} : vector<2x64xf32>, vector<64x64xf32>, vector<2x64xf32> -> vector<2x64xf32>
    %c0_153 = arith.constant 0 : index
    %c0_154 = arith.constant 0 : index
    %255 = vector.load %arg18[%c0_153, %c0_154] : memref<64x64xf32, #tpu.memory_space<vmem>>, vector<64x64xf32>
    %cst_155 = arith.constant dense<0.000000e+00> : vector<2x64xf32>
    %256 = tpu.matmul %220, %255, %cst_155 {dimension_numbers = #tpu.dot_dimension_numbers<[1], [0], [0], [1], [0, 0, 1, 1], [], []>} : vector<2x64xf32>, vector<64x64xf32>, vector<2x64xf32> -> vector<2x64xf32>
    %257 = arith.addf %254, %256 : vector<2x64xf32>
    %c0_156 = arith.constant 0 : index
    %c0_157 = arith.constant 0 : index
    %258 = vector.load %arg17[%c0_156, %c0_157] : memref<1x64xf32, #tpu.memory_space<vmem>>, vector<1x64xf32>
    %259 = vector.broadcast %258 : vector<1x64xf32> to vector<2x64xf32>
    %260 = arith.addf %257, %259 : vector<2x64xf32>
    %cst_158 = arith.constant 0.000000e+00 : f32
    %261 = vector.broadcast %cst_158 : f32 to vector<2x64xf32>
    %262 = arith.maximumf %260, %261 : vector<2x64xf32>
    %c0_159 = arith.constant 0 : index
    %c0_160 = arith.constant 0 : index
    %263 = vector.load %arg43[%c0_159, %c0_160] : memref<64x128xf32, #tpu.memory_space<vmem>>, vector<64x128xf32>
    %cst_161 = arith.constant dense<0.000000e+00> : vector<2x128xf32>
    %264 = tpu.matmul %262, %263, %cst_161 {dimension_numbers = #tpu.dot_dimension_numbers<[1], [0], [0], [1], [0, 0, 1, 1], [], []>} : vector<2x64xf32>, vector<64x128xf32>, vector<2x128xf32> -> vector<2x128xf32>
    %c0_162 = arith.constant 0 : index
    %c0_163 = arith.constant 0 : index
    %265 = vector.load %arg42[%c0_162, %c0_163] : memref<1x128xf32, #tpu.memory_space<vmem>>, vector<1x128xf32>
    %266 = vector.broadcast %265 : vector<1x128xf32> to vector<2x128xf32>
    %267 = arith.addf %264, %266 : vector<2x128xf32>
    %c0_164 = arith.constant 0 : index
    %c0_165 = arith.constant 0 : index
    %268 = vector.load %arg46[%c0_164, %c0_165] : memref<2x128xf32, #tpu.memory_space<vmem>>, vector<2x128xf32>
    tpu.vector_store %arg46[%c0_164, %c0_165], %267 {strides = array<i32>} : memref<2x128xf32, #tpu.memory_space<vmem>>, vector<2x128xf32>,
    return
  }
}

</mosaic_0001>

<llo_original>
// kernel: graphomic_forward.1
$region0: #{graphomic_forward.1}
  #allocation0 [shape = 'u32[]', space=smem, size = 0x4, offset = 0x4, fixed_abs, tag = 'smem constant byte address 0x4 - core index']
  #allocation1 [shape = 'u32[144,128]{1,0:T(1,128)}', space=vmem, size = 0x12000, scoped, tag = 'internal scratch']
  %s0 = inlined_call_operand.smem [shape: u32[47], index: -1, kind: input, shape index: {}]
  %s1 = sld [smem:[%s0]]
  %s2 = scalar_lea.smem %s0, 1
  %s3 = sld [smem:[%s2]]
  %s4 = scalar_lea.smem %s0, 2
  %s5 = sld [smem:[%s4]]
  %s6 = scalar_lea.smem %s0, 3
  %s7 = sld [smem:[%s6]]
  %s8 = scalar_lea.smem %s0, 4
  %s9 = sld [smem:[%s8]]
  %s10 = scalar_lea.smem %s0, 5
  %s11 = sld [smem:[%s10]]
  %s12 = scalar_lea.smem %s0, 6
  %s13 = sld [smem:[%s12]]
  %s14 = scalar_lea.smem %s0, 7
  %s15 = sld [smem:[%s14]]
  %s16 = scalar_lea.smem %s0, 8
  %s17 = sld [smem:[%s16]]
  %s18 = scalar_lea.smem %s0, 9
  %s19 = sld [smem:[%s18]]
  %s20 = scalar_lea.smem %s0, 10
  %s21 = sld [smem:[%s20]]
  %s22 = scalar_lea.smem %s0, 11
  %s23 = sld [smem:[%s22]]
  %s24 = scalar_lea.smem %s0, 12
  %s25 = sld [smem:[%s24]]
  %s26 = scalar_lea.smem %s0, 13
  %s27 = sld [smem:[%s26]]
  %s28 = scalar_lea.smem %s0, 14
  %s29 = sld [smem:[%s28]]
  %s30 = scalar_lea.smem %s0, 15
  %s31 = sld [smem:[%s30]]
  %s32 = scalar_lea.smem %s0, 16
  %s33 = sld [smem:[%s32]]
  %s34 = scalar_lea.smem %s0, 17
  %s35 = sld [smem:[%s34]]
  %s36 = scalar_lea.smem %s0, 18
  %s37 = sld [smem:[%s36]]
  %s38 = scalar_lea.smem %s0, 19
  %s39 = sld [smem:[%s38]]
  %s40 = scalar_lea.smem %s0, 20
  %s41 = sld [smem:[%s40]]
  %s42 = scalar_lea.smem %s0, 21
  %s43 = sld [smem:[%s42]]
  %s44 = scalar_lea.smem %s0, 22
  %s45 = sld [smem:[%s44]]
  %s46 = scalar_lea.smem %s0, 23
  %s47 = sld [smem:[%s46]]
  %s48 = scalar_lea.smem %s0, 24
  %s49 = sld [smem:[%s48]]
  %s50 = scalar_lea.smem %s0, 25
  %s51 = sld [smem:[%s50]]
  %s52 = scalar_lea.smem %s0, 26
  %s53 = sld [smem:[%s52]]
  %s54 = scalar_lea.smem %s0, 27
  %s55 = sld [smem:[%s54]]
  %s56 = scalar_lea.smem %s0, 28
  %s57 = sld [smem:[%s56]]
  %s58 = scalar_lea.smem %s0, 29
  %s59 = sld [smem:[%s58]]
  %s60 = scalar_lea.smem %s0, 30
  %s61 = sld [smem:[%s60]]
  %s62 = scalar_lea.smem %s0, 31
  %s63 = sld [smem:[%s62]]
  %s64 = scalar_lea.smem %s0, 32
  %s65 = sld [smem:[%s64]]
  %s66 = scalar_lea.smem %s0, 33
  %s67 = sld [smem:[%s66]]
  %s68 = scalar_lea.smem %s0, 34
  %s69 = sld [smem:[%s68]]
  %s70 = scalar_lea.smem %s0, 35
  %s71 = sld [smem:[%s70]]
  %s72 = scalar_lea.smem %s0, 36
  %s73 = sld [smem:[%s72]]
  %s74 = scalar_lea.smem %s0, 37
  %s75 = sld [smem:[%s74]]
  %s76 = scalar_lea.smem %s0, 38
  %s77 = sld [smem:[%s76]]
  %s78 = scalar_lea.smem %s0, 39
  %s79 = sld [smem:[%s78]]
  %s80 = scalar_lea.smem %s0, 40
  %s81 = sld [smem:[%s80]]
  %s82 = scalar_lea.smem %s0, 41
  %s83 = sld [smem:[%s82]]
  %s84 = scalar_lea.smem %s0, 42
  %s85 = sld [smem:[%s84]]
  %s86 = scalar_lea.smem %s0, 43
  %s87 = sld [smem:[%s86]]
  %s88 = scalar_lea.smem %s0, 44
  %s89 = sld [smem:[%s88]]
  %s90 = scalar_lea.smem %s0, 45
  %s91 = sld [smem:[%s90]]
  %s92 = scalar_lea.smem %s0, 46
  %s93 = sld [smem:[%s92]]
  %s94 = sld [smem:[#allocation0]]
  $region194: #{graphomic_forward.1} parent=0
    _
  %s96 = ssub.s32 1, %s94
  %s97 = scalar_select 0, %s96, %s94
  // Predicated region
  $region2: #{graphomic_forward.1} parent=0 // pred_check
    _
  $region3: #{graphomic_forward.1} parent=0 // pred_check_branch
    %99 = sbr.rel (0) target = $region5
  $region4: #{graphomic_forward.1} parent=0 // pred_region
    _
  $region5: #{graphomic_forward.1} parent=0 // pred_fallthru
    _
  // Predicated region
  $region6: #{graphomic_forward.1} parent=0 // pred_check
    _
  $region7: #{graphomic_forward.1} parent=0 // pred_check_branch
    %101 = sbr.rel (0) target = $region9
  $region8: #{graphomic_forward.1} parent=0 // pred_region
    _
  $region9: #{graphomic_forward.1} parent=0 // pred_fallthru
    _
  // Predicated region
  $region10: #{graphomic_forward.1} parent=0 // pred_check
    _
  $region11: #{graphomic_forward.1} parent=0 // pred_check_branch
    %103 = sbr.rel (0) target = $region13
  $region12: #{graphomic_forward.1} parent=0 // pred_region
    _
  $region13: #{graphomic_forward.1} parent=0 // pred_fallthru
    _
  // Predicated region
  $region14: #{graphomic_forward.1} parent=0 // pred_check
    _
  $region15: #{graphomic_forward.1} parent=0 // pred_check_branch
    %105 = sbr.rel (0) target = $region17
  $region16: #{graphomic_forward.1} parent=0 // pred_region
    _
  $region17: #{graphomic_forward.1} parent=0 // pred_fallthru
    _
  // Predicated region
  $region18: #{graphomic_forward.1} parent=0 // pred_check
    _
  $region19: #{graphomic_forward.1} parent=0 // pred_check_branch
    %107 = sbr.rel (0) target = $region21
  $region20: #{graphomic_forward.1} parent=0 // pred_region
    _
  $region21: #{graphomic_forward.1} parent=0 // pred_fallthru
    _
  // Predicated region
  $region22: #{graphomic_forward.1} parent=0 // pred_check
    _
  $region23: #{graphomic_forward.1} parent=0 // pred_check_branch
    %109 = sbr.rel (0) target = $region25
  $region24: #{graphomic_forward.1} parent=0 // pred_region
    _
  $region25: #{graphomic_forward.1} parent=0 // pred_fallthru
    _
  // Predicated region
  $region26: #{graphomic_forward.1} parent=0 // pred_check
    _
  $region27: #{graphomic_forward.1} parent=0 // pred_check_branch
    %111 = sbr.rel (0) target = $region29
  $region28: #{graphomic_forward.1} parent=0 // pred_region
    _
  $region29: #{graphomic_forward.1} parent=0 // pred_fallthru
    _
  // Predicated region
  $region30: #{graphomic_forward.1} parent=0 // pred_check
    _
  $region31: #{graphomic_forward.1} parent=0 // pred_check_branch
    %113 = sbr.rel (0) target = $region33
  $region32: #{graphomic_forward.1} parent=0 // pred_region
    _
  $region33: #{graphomic_forward.1} parent=0 // pred_fallthru
    _
  // Predicated region
  $region34: #{graphomic_forward.1} parent=0 // pred_check
    _
  $region35: #{graphomic_forward.1} parent=0 // pred_check_branch
    %115 = sbr.rel (0) target = $region37
  $region36: #{graphomic_forward.1} parent=0 // pred_region
    _
  $region37: #{graphomic_forward.1} parent=0 // pred_fallthru
    _
  // Predicated region
  $region38: #{graphomic_forward.1} parent=0 // pred_check
    _
  $region39: #{graphomic_forward.1} parent=0 // pred_check_branch
    %117 = sbr.rel (0) target = $region41
  $region40: #{graphomic_forward.1} parent=0 // pred_region
    _
  $region41: #{graphomic_forward.1} parent=0 // pred_fallthru
    _
  // Predicated region
  $region42: #{graphomic_forward.1} parent=0 // pred_check
    _
  $region43: #{graphomic_forward.1} parent=0 // pred_check_branch
    %119 = sbr.rel (0) target = $region45
  $region44: #{graphomic_forward.1} parent=0 // pred_region
    _
  $region45: #{graphomic_forward.1} parent=0 // pred_fallthru
    _
  // Predicated region
  $region46: #{graphomic_forward.1} parent=0 // pred_check
    _
  $region47: #{graphomic_forward.1} parent=0 // pred_check_branch
    %121 = sbr.rel (0) target = $region49
  $region48: #{graphomic_forward.1} parent=0 // pred_region
    _
  $region49: #{graphomic_forward.1} parent=0 // pred_fallthru
    _
  // Predicated region
  $region50: #{graphomic_forward.1} parent=0 // pred_check
    _
  $region51: #{graphomic_forward.1} parent=0 // pred_check_branch
    %123 = sbr.rel (0) target = $region53
  $region52: #{graphomic_forward.1} parent=0 // pred_region
    _
  $region53: #{graphomic_forward.1} parent=0 // pred_fallthru
    _
  // Predicated region
  $region54: #{graphomic_forward.1} parent=0 // pred_check
    _
  $region55: #{graphomic_forward.1} parent=0 // pred_check_branch
    %125 = sbr.rel (0) target = $region57
  $region56: #{graphomic_forward.1} parent=0 // pred_region
    _
  $region57: #{graphomic_forward.1} parent=0 // pred_fallthru
    _
  // Predicated region
  $region58: #{graphomic_forward.1} parent=0 // pred_check
    _
  $region59: #{graphomic_forward.1} parent=0 // pred_check_branch
    %127 = sbr.rel (0) target = $region61
  $region60: #{graphomic_forward.1} parent=0 // pred_region
    _
  $region61: #{graphomic_forward.1} parent=0 // pred_fallthru
    _
  // Predicated region
  $region62: #{graphomic_forward.1} parent=0 // pred_check
    _
  $region63: #{graphomic_forward.1} parent=0 // pred_check_branch
    %129 = sbr.rel (0) target = $region65
  $region64: #{graphomic_forward.1} parent=0 // pred_region
    _
  $region65: #{graphomic_forward.1} parent=0 // pred_fallthru
    _
  // Predicated region
  $region66: #{graphomic_forward.1} parent=0 // pred_check
    _
  $region67: #{graphomic_forward.1} parent=0 // pred_check_branch
    %131 = sbr.rel (0) target = $region69
  $region68: #{graphomic_forward.1} parent=0 // pred_region
    _
  $region69: #{graphomic_forward.1} parent=0 // pred_fallthru
    _
  // Predicated region
  $region70: #{graphomic_forward.1} parent=0 // pred_check
    _
  $region71: #{graphomic_forward.1} parent=0 // pred_check_branch
    %133 = sbr.rel (0) target = $region73
  $region72: #{graphomic_forward.1} parent=0 // pred_region
    _
  $region73: #{graphomic_forward.1} parent=0 // pred_fallthru
    _
  // Predicated region
  $region74: #{graphomic_forward.1} parent=0 // pred_check
    _
  $region75: #{graphomic_forward.1} parent=0 // pred_check_branch
    %135 = sbr.rel (0) target = $region77
  $region76: #{graphomic_forward.1} parent=0 // pred_region
    _
  $region77: #{graphomic_forward.1} parent=0 // pred_fallthru
    _
  // Predicated region
  $region78: #{graphomic_forward.1} parent=0 // pred_check
    _
  $region79: #{graphomic_forward.1} parent=0 // pred_check_branch
    %137 = sbr.rel (0) target = $region81
  $region80: #{graphomic_forward.1} parent=0 // pred_region
    _
  $region81: #{graphomic_forward.1} parent=0 // pred_fallthru
    _
  // Predicated region
  $region82: #{graphomic_forward.1} parent=0 // pred_check
    _
  $region83: #{graphomic_forward.1} parent=0 // pred_check_branch
    %139 = sbr.rel (0) target = $region85
  $region84: #{graphomic_forward.1} parent=0 // pred_region
    _
  $region85: #{graphomic_forward.1} parent=0 // pred_fallthru
    _
  // Predicated region
  $region86: #{graphomic_forward.1} parent=0 // pred_check
    _
  $region87: #{graphomic_forward.1} parent=0 // pred_check_branch
    %141 = sbr.rel (0) target = $region89
  $region88: #{graphomic_forward.1} parent=0 // pred_region
    _
  $region89: #{graphomic_forward.1} parent=0 // pred_fallthru
    _
  // Predicated region
  $region90: #{graphomic_forward.1} parent=0 // pred_check
    _
  $region91: #{graphomic_forward.1} parent=0 // pred_check_branch
    %143 = sbr.rel (0) target = $region93
  $region92: #{graphomic_forward.1} parent=0 // pred_region
    _
  $region93: #{graphomic_forward.1} parent=0 // pred_fallthru
    _
  // Predicated region
  $region94: #{graphomic_forward.1} parent=0 // pred_check
    _
  $region95: #{graphomic_forward.1} parent=0 // pred_check_branch
    %145 = sbr.rel (0) target = $region97
  $region96: #{graphomic_forward.1} parent=0 // pred_region
    _
  $region97: #{graphomic_forward.1} parent=0 // pred_fallthru
    _
  // Predicated region
  $region98: #{graphomic_forward.1} parent=0 // pred_check
    _
  $region99: #{graphomic_forward.1} parent=0 // pred_check_branch
    %147 = sbr.rel (0) target = $region101
  $region100: #{graphomic_forward.1} parent=0 // pred_region
    _
  $region101: #{graphomic_forward.1} parent=0 // pred_fallthru
    _
  // Predicated region
  $region102: #{graphomic_forward.1} parent=0 // pred_check
    _
  $region103: #{graphomic_forward.1} parent=0 // pred_check_branch
    %149 = sbr.rel (0) target = $region105
  $region104: #{graphomic_forward.1} parent=0 // pred_region
    _
  $region105: #{graphomic_forward.1} parent=0 // pred_fallthru
    _
  // Predicated region
  $region106: #{graphomic_forward.1} parent=0 // pred_check
    _
  $region107: #{graphomic_forward.1} parent=0 // pred_check_branch
    %151 = sbr.rel (0) target = $region109
  $region108: #{graphomic_forward.1} parent=0 // pred_region
    _
  $region109: #{graphomic_forward.1} parent=0 // pred_fallthru
    _
  // Predicated region
  $region110: #{graphomic_forward.1} parent=0 // pred_check
    _
  $region111: #{graphomic_forward.1} parent=0 // pred_check_branch
    %153 = sbr.rel (0) target = $region113
  $region112: #{graphomic_forward.1} parent=0 // pred_region
    _
  $region113: #{graphomic_forward.1} parent=0 // pred_fallthru
    _
  // Predicated region
  $region114: #{graphomic_forward.1} parent=0 // pred_check
    _
  $region115: #{graphomic_forward.1} parent=0 // pred_check_branch
    %155 = sbr.rel (0) target = $region117
  $region116: #{graphomic_forward.1} parent=0 // pred_region
    _
  $region117: #{graphomic_forward.1} parent=0 // pred_fallthru
    _
  // Predicated region
  $region118: #{graphomic_forward.1} parent=0 // pred_check
    _
  $region119: #{graphomic_forward.1} parent=0 // pred_check_branch
    %157 = sbr.rel (0) target = $region121
  $region120: #{graphomic_forward.1} parent=0 // pred_region
    _
  $region121: #{graphomic_forward.1} parent=0 // pred_fallthru
    _
  // Predicated region
  $region122: #{graphomic_forward.1} parent=0 // pred_check
    _
  $region123: #{graphomic_forward.1} parent=0 // pred_check_branch
    %159 = sbr.rel (0) target = $region125
  $region124: #{graphomic_forward.1} parent=0 // pred_region
    _
  $region125: #{graphomic_forward.1} parent=0 // pred_fallthru
    _
  // Predicated region
  $region126: #{graphomic_forward.1} parent=0 // pred_check
    _
  $region127: #{graphomic_forward.1} parent=0 // pred_check_branch
    %161 = sbr.rel (0) target = $region129
  $region128: #{graphomic_forward.1} parent=0 // pred_region
    _
  $region129: #{graphomic_forward.1} parent=0 // pred_fallthru
    _
  // Predicated region
  $region130: #{graphomic_forward.1} parent=0 // pred_check
    _
  $region131: #{graphomic_forward.1} parent=0 // pred_check_branch
    %163 = sbr.rel (0) target = $region133
  $region132: #{graphomic_forward.1} parent=0 // pred_region
    _
  $region133: #{graphomic_forward.1} parent=0 // pred_fallthru
    _
  // Predicated region
  $region134: #{graphomic_forward.1} parent=0 // pred_check
    _
  $region135: #{graphomic_forward.1} parent=0 // pred_check_branch
    %165 = sbr.rel (0) target = $region137
  $region136: #{graphomic_forward.1} parent=0 // pred_region
    _
  $region137: #{graphomic_forward.1} parent=0 // pred_fallthru
    _
  // Predicated region
  $region138: #{graphomic_forward.1} parent=0 // pred_check
    _
  $region139: #{graphomic_forward.1} parent=0 // pred_check_branch
    %167 = sbr.rel (0) target = $region141
  $region140: #{graphomic_forward.1} parent=0 // pred_region
    _
  $region141: #{graphomic_forward.1} parent=0 // pred_fallthru
    _
  // Predicated region
  $region142: #{graphomic_forward.1} parent=0 // pred_check
    _
  $region143: #{graphomic_forward.1} parent=0 // pred_check_branch
    %169 = sbr.rel (0) target = $region145
  $region144: #{graphomic_forward.1} parent=0 // pred_region
    _
  $region145: #{graphomic_forward.1} parent=0 // pred_fallthru
    _
  // Predicated region
  $region146: #{graphomic_forward.1} parent=0 // pred_check
    _
  $region147: #{graphomic_forward.1} parent=0 // pred_check_branch
    %171 = sbr.rel (0) target = $region149
  $region148: #{graphomic_forward.1} parent=0 // pred_region
    _
  $region149: #{graphomic_forward.1} parent=0 // pred_fallthru
    _
  // Predicated region
  $region150: #{graphomic_forward.1} parent=0 // pred_check
    _
  $region151: #{graphomic_forward.1} parent=0 // pred_check_branch
    %173 = sbr.rel (0) target = $region153
  $region152: #{graphomic_forward.1} parent=0 // pred_region
    _
  $region153: #{graphomic_forward.1} parent=0 // pred_fallthru
    _
  // Predicated region
  $region154: #{graphomic_forward.1} parent=0 // pred_check
    _
  $region155: #{graphomic_forward.1} parent=0 // pred_check_branch
    %175 = sbr.rel (0) target = $region157
  $region156: #{graphomic_forward.1} parent=0 // pred_region
    _
  $region157: #{graphomic_forward.1} parent=0 // pred_fallthru
    _
  // Predicated region
  $region158: #{graphomic_forward.1} parent=0 // pred_check
    _
  $region159: #{graphomic_forward.1} parent=0 // pred_check_branch
    %177 = sbr.rel (0) target = $region161
  $region160: #{graphomic_forward.1} parent=0 // pred_region
    _
  $region161: #{graphomic_forward.1} parent=0 // pred_fallthru
    _
  // Predicated region
  $region162: #{graphomic_forward.1} parent=0 // pred_check
    _
  $region163: #{graphomic_forward.1} parent=0 // pred_check_branch
    %179 = sbr.rel (0) target = $region165
  $region164: #{graphomic_forward.1} parent=0 // pred_region
    _
  $region165: #{graphomic_forward.1} parent=0 // pred_fallthru
    _
  // Predicated region
  $region166: #{graphomic_forward.1} parent=0 // pred_check
    _
  $region167: #{graphomic_forward.1} parent=0 // pred_check_branch
    %181 = sbr.rel (0) target = $region169
  $region168: #{graphomic_forward.1} parent=0 // pred_region
    _
  $region169: #{graphomic_forward.1} parent=0 // pred_fallthru
    _
  // Predicated region
  $region170: #{graphomic_forward.1} parent=0 // pred_check
    _
  $region171: #{graphomic_forward.1} parent=0 // pred_check_branch
    %183 = sbr.rel (0) target = $region173
  $region172: #{graphomic_forward.1} parent=0 // pred_region
    _
  $region173: #{graphomic_forward.1} parent=0 // pred_fallthru
    _
  // Predicated region
  $region174: #{graphomic_forward.1} parent=0 // pred_check
    _
  $region175: #{graphomic_forward.1} parent=0 // pred_check_branch
    %185 = sbr.rel (0) target = $region177
  $region176: #{graphomic_forward.1} parent=0 // pred_region
    _
  $region177: #{graphomic_forward.1} parent=0 // pred_fallthru
    _
  // Predicated region
  $region178: #{graphomic_forward.1} parent=0 // pred_check
    _
  $region179: #{graphomic_forward.1} parent=0 // pred_check_branch
    %187 = sbr.rel (0) target = $region181
  $region180: #{graphomic_forward.1} parent=0 // pred_region
    _
  $region181: #{graphomic_forward.1} parent=0 // pred_fallthru
    _
  // Predicated region
  $region182: #{graphomic_forward.1} parent=0 // pred_check
    _
  $region183: #{graphomic_forward.1} parent=0 // pred_check_branch
    %189 = sbr.rel (0) target = $region185
  $region184: #{graphomic_forward.1} parent=0 // pred_region
    _
  $region185: #{graphomic_forward.1} parent=0 // pred_fallthru
    _
  %v191 = vld [vmem:[%s3] sm:$0xff]
  %v192 = vld [vmem:[%s3 + $0x8] sm:$0xff]
  %v193 = vsub.f32 %v191, 1.0
  %v194 = vsub.f32 %v192, 1.0
  %v195 = vmul.f32 %v193, 1e+30
  %v196 = vmul.f32 %v194, 1e+30
  %vm197 = vcmask 130048
  %v198 = vsel %vm197, %v191, 0.0
  %199 = vadd.xlane.f32.xlu0 %v198
  %v200 = vpop.xlane.xlu0 %199
  %v201 = vsel %vm197, %v192, 0.0
  %202 = vadd.xlane.f32.xlu0 %v201
  %v203 = vpop.xlane.xlu0 %202
  %vm204 = vcmp.gt.f32.partialorder %v200, 0.5
  %vm205 = vcmp.gt.f32.partialorder %v203, 0.5
  %v206 = vld [vmem:[%s1] sm:$0xff]
  %v207 = vld [vmem:[%s1 + $0x8] sm:$0xff]
  %v208 = vld [vmem:[%s1 + $0x10] sm:$0xff]
  %v209 = vld [vmem:[%s1 + $0x18] sm:$0xff]
  %v210 = vld [vmem:[%s1 + $0x20] sm:$0xff]
  %v211 = vld [vmem:[%s1 + $0x28] sm:$0xff]
  %v212 = vld [vmem:[%s1 + $0x30] sm:$0xff]
  %v213 = vld [vmem:[%s1 + $0x38] sm:$0xff]
  %v214 = vld [vmem:[%s41] sm:$0xf]
  %v215 = vld [vmem:[%s41 + $0x4] sm:$0xf]
  %v216 = vld [vmem:[%s41 + $0x8] sm:$0xf]
  %v217 = vld [vmem:[%s41 + $0xc] sm:$0xf]
  %v218 = vld [vmem:[%s41 + $0x10] sm:$0xf]
  %v219 = vld [vmem:[%s41 + $0x14] sm:$0xf]
  %v220 = vld [vmem:[%s41 + $0x18] sm:$0xf]
  %v221 = vld [vmem:[%s41 + $0x1c] sm:$0xf]
  %v222 = vld [vmem:[%s41 + $0x20] sm:$0xf]
  %v223 = vld [vmem:[%s41 + $0x24] sm:$0xf]
  %v224 = vld [vmem:[%s41 + $0x28] sm:$0xf]
  %v225 = vld [vmem:[%s41 + $0x2c] sm:$0xf]
  %v226 = vld [vmem:[%s41 + $0x30] sm:$0xf]
  %v227 = vld [vmem:[%s41 + $0x34] sm:$0xf]
  %v228 = vld [vmem:[%s41 + $0x38] sm:$0xf]
  %v229 = vld [vmem:[%s41 + $0x3c] sm:$0xf]
  %v230 = vld [vmem:[%s41 + $0x40] sm:$0xf]
  %v231 = vld [vmem:[%s41 + $0x44] sm:$0xf]
  %v232 = vld [vmem:[%s41 + $0x48] sm:$0xf]
  %v233 = vld [vmem:[%s41 + $0x4c] sm:$0xf]
  %v234 = vld [vmem:[%s41 + $0x50] sm:$0xf]
  %v235 = vld [vmem:[%s41 + $0x54] sm:$0xf]
  %v236 = vld [vmem:[%s41 + $0x58] sm:$0xf]
  %v237 = vld [vmem:[%s41 + $0x5c] sm:$0xf]
  %v238 = vld [vmem:[%s41 + $0x60] sm:$0xf]
  %v239 = vld [vmem:[%s41 + $0x64] sm:$0xf]
  %v240 = vld [vmem:[%s41 + $0x68] sm:$0xf]
  %v241 = vld [vmem:[%s41 + $0x6c] sm:$0xf]
  %v242 = vld [vmem:[%s41 + $0x70] sm:$0xf]
  %v243 = vld [vmem:[%s41 + $0x74] sm:$0xf]
  %v244 = vld [vmem:[%s41 + $0x78] sm:$0xf]
  %v245 = vld [vmem:[%s41 + $0x7c] sm:$0xf]
  %v246 = vld [vmem:[%s41 + $0x80] sm:$0xf]
  %v247 = vld [vmem:[%s41 + $0x84] sm:$0xf]
  %v248 = vld [vmem:[%s41 + $0x88] sm:$0xf]
  %v249 = vld [vmem:[%s41 + $0x8c] sm:$0xf]
  %v250 = vld [vmem:[%s41 + $0x90] sm:$0xf]
  %v251 = vld [vmem:[%s41 + $0x94] sm:$0xf]
  %v252 = vld [vmem:[%s41 + $0x98] sm:$0xf]
  %v253 = vld [vmem:[%s41 + $0x9c] sm:$0xf]
  %v254 = vld [vmem:[%s41 + $0xa0] sm:$0xf]
  %v255 = vld [vmem:[%s41 + $0xa4] sm:$0xf]
  %v256 = vld [vmem:[%s41 + $0xa8] sm:$0xf]
  %v257 = vld [vmem:[%s41 + $0xac] sm:$0xf]
  %v258 = vld [vmem:[%s41 + $0xb0] sm:$0xf]
  %v259 = vld [vmem:[%s41 + $0xb4] sm:$0xf]
  %v260 = vld [vmem:[%s41 + $0xb8] sm:$0xf]
  %v261 = vld [vmem:[%s41 + $0xbc] sm:$0xf]
  %v262 = vld [vmem:[%s41 + $0xc0] sm:$0xf]
  %v263 = vld [vmem:[%s41 + $0xc4] sm:$0xf]
  %v264 = vld [vmem:[%s41 + $0xc8] sm:$0xf]
  %v265 = vld [vmem:[%s41 + $0xcc] sm:$0xf]
  %v266 = vld [vmem:[%s41 + $0xd0] sm:$0xf]
  %v267 = vld [vmem:[%s41 + $0xd4] sm:$0xf]
  %v268 = vld [vmem:[%s41 + $0xd8] sm:$0xf]
  %v269 = vld [vmem:[%s41 + $0xdc] sm:$0xf]
  %v270 = vld [vmem:[%s41 + $0xe0] sm:$0xf]
  %v271 = vld [vmem:[%s41 + $0xe4] sm:$0xf]
  %v272 = vld [vmem:[%s41 + $0xe8] sm:$0xf]
  %v273 = vld [vmem:[%s41 + $0xec] sm:$0xf]
  %v274 = vld [vmem:[%s41 + $0xf0] sm:$0xf]
  %v275 = vld [vmem:[%s41 + $0xf4] sm:$0xf]
  %v276 = vld [vmem:[%s41 + $0xf8] sm:$0xf]
  %v277 = vld [vmem:[%s41 + $0xfc] sm:$0xf]
  %v278 = vld [vmem:[%s41 + $0x100] sm:$0xf]
  %v279 = vld [vmem:[%s41 + $0x104] sm:$0xf]
  %v280 = vld [vmem:[%s41 + $0x108] sm:$0xf]
  %v281 = vld [vmem:[%s41 + $0x10c] sm:$0xf]
  %v282 = vld [vmem:[%s41 + $0x110] sm:$0xf]
  %v283 = vld [vmem:[%s41 + $0x114] sm:$0xf]
  %v284 = vld [vmem:[%s41 + $0x118] sm:$0xf]
  %v285 = vld [vmem:[%s41 + $0x11c] sm:$0xf]
  %v286 = vld [vmem:[%s41 + $0x120] sm:$0xf]
  %v287 = vld [vmem:[%s41 + $0x124] sm:$0xf]
  %v288 = vld [vmem:[%s41 + $0x128] sm:$0xf]
  %v289 = vld [vmem:[%s41 + $0x12c] sm:$0xf]
  %v290 = vld [vmem:[%s41 + $0x130] sm:$0xf]
  %v291 = vld [vmem:[%s41 + $0x134] sm:$0xf]
  %v292 = vld [vmem:[%s41 + $0x138] sm:$0xf]
  %v293 = vld [vmem:[%s41 + $0x13c] sm:$0xf]
  %v294 = vld [vmem:[%s41 + $0x140] sm:$0xf]
  %v295 = vld [vmem:[%s41 + $0x144] sm:$0xf]
  %v296 = vld [vmem:[%s41 + $0x148] sm:$0xf]
  %v297 = vld [vmem:[%s41 + $0x14c] sm:$0xf]
  %v298 = vld [vmem:[%s41 + $0x150] sm:$0xf]
  %v299 = vld [vmem:[%s41 + $0x154] sm:$0xf]
  %v300 = vld [vmem:[%s41 + $0x158] sm:$0xf]
  %v301 = vld [vmem:[%s41 + $0x15c] sm:$0xf]
  %v302 = vld [vmem:[%s41 + $0x160] sm:$0xf]
  %v303 = vld [vmem:[%s41 + $0x164] sm:$0xf]
  %v304 = vld [vmem:[%s41 + $0x168] sm:$0xf]
  %v305 = vld [vmem:[%s41 + $0x16c] sm:$0xf]
  %v306 = vld [vmem:[%s41 + $0x170] sm:$0xf]
  %v307 = vld [vmem:[%s41 + $0x174] sm:$0xf]
  %v308 = vld [vmem:[%s41 + $0x178] sm:$0xf]
  %v309 = vld [vmem:[%s41 + $0x17c] sm:$0xf]
  %v310 = vld [vmem:[%s41 + $0x180] sm:$0xf]
  %v311 = vld [vmem:[%s41 + $0x184] sm:$0xf]
  %v312 = vld [vmem:[%s41 + $0x188] sm:$0xf]
  %v313 = vld [vmem:[%s41 + $0x18c] sm:$0xf]
  %v314 = vld [vmem:[%s41 + $0x190] sm:$0xf]
  %v315 = vld [vmem:[%s41 + $0x194] sm:$0xf]
  %v316 = vld [vmem:[%s41 + $0x198] sm:$0xf]
  %v317 = vld [vmem:[%s41 + $0x19c] sm:$0xf]
  %v318 = vld [vmem:[%s41 + $0x1a0] sm:$0xf]
  %v319 = vld [vmem:[%s41 + $0x1a4] sm:$0xf]
  %v320 = vld [vmem:[%s41 + $0x1a8] sm:$0xf]
  %v321 = vld [vmem:[%s41 + $0x1ac] sm:$0xf]
  %v322 = vld [vmem:[%s41 + $0x1b0] sm:$0xf]
  %v323 = vld [vmem:[%s41 + $0x1b4] sm:$0xf]
  %v324 = vld [vmem:[%s41 + $0x1b8] sm:$0xf]
  %v325 = vld [vmem:[%s41 + $0x1bc] sm:$0xf]
  %v326 = vld [vmem:[%s41 + $0x1c0] sm:$0xf]
  %v327 = vld [vmem:[%s41 + $0x1c4] sm:$0xf]
  %v328 = vld [vmem:[%s41 + $0x1c8] sm:$0xf]
  %v329 = vld [vmem:[%s41 + $0x1cc] sm:$0xf]
  %v330 = vld [vmem:[%s41 + $0x1d0] sm:$0xf]
  %v331 = vld [vmem:[%s41 + $0x1d4] sm:$0xf]
  %v332 = vld [vmem:[%s41 + $0x1d8] sm:$0xf]
  %v333 = vld [vmem:[%s41 + $0x1dc] sm:$0xf]
  %v334 = vld [vmem:[%s41 + $0x1e0] sm:$0xf]
  %v335 = vld [vmem:[%s41 + $0x1e4] sm:$0xf]
  %v336 = vld [vmem:[%s41 + $0x1e8] sm:$0xf]
  %v337 = vld [vmem:[%s41 + $0x1ec] sm:$0xf]
  %v338 = vld [vmem:[%s41 + $0x1f0] sm:$0xf]
  %v339 = vld [vmem:[%s41 + $0x1f4] sm:$0xf]
  %v340 = vld [vmem:[%s41 + $0x1f8] sm:$0xf]
  %v341 = vld [vmem:[%s41 + $0x1fc] sm:$0xf]
  %v342 = vld [vmem:[%s39] sm:$0x1]
  %v344 = vlaneseq
  %v345 = vshrl.u32 %v344, 7
  %v346 = vsub.s32 0, %v345
  %v347 = vrot.slane %v342, %v346
  %v357 = vunpack.c.l.b16 %v206
  %v358 = vunpack.c.h.b16 %v206
  %v359 = vunpack.c.l.b16 %v207
  %v360 = vunpack.c.h.b16 %v207
  %v361 = vunpack.c.l.b16 %v208
  %v362 = vunpack.c.h.b16 %v208
  %v363 = vunpack.c.l.b16 %v209
  %v364 = vunpack.c.h.b16 %v209
  %v365 = vunpack.c.l.b16 %v210
  %v366 = vunpack.c.h.b16 %v210
  %v367 = vunpack.c.l.b16 %v211
  %v368 = vunpack.c.h.b16 %v211
  %v369 = vunpack.c.l.b16 %v212
  %v370 = vunpack.c.h.b16 %v212
  %v371 = vunpack.c.l.b16 %v213
  %v372 = vunpack.c.h.b16 %v213
  %v373 = vpack.c.b16 %v365, %v357
  %v374 = vpack.c.b16 %v366, %v358
  %v375 = vpack.c.b16 %v367, %v359
  %v376 = vpack.c.b16 %v368, %v360
  %v377 = vpack.c.b16 %v369, %v361
  %v378 = vpack.c.b16 %v370, %v362
  %v379 = vpack.c.b16 %v371, %v363
  %v380 = vpack.c.b16 %v372, %v364
  %v517 = vunpack.c.l.b16 %v214
  %v518 = vunpack.c.l.b16 %v215
  %v519 = vunpack.c.l.b16 %v216
  %v520 = vunpack.c.l.b16 %v217
  %v521 = vunpack.c.l.b16 %v218
  %v522 = vunpack.c.l.b16 %v219
  %v523 = vunpack.c.l.b16 %v220
  %v524 = vunpack.c.l.b16 %v221
  %v525 = vunpack.c.l.b16 %v222
  %v526 = vunpack.c.l.b16 %v223
  %v527 = vunpack.c.l.b16 %v224
  %v528 = vunpack.c.l.b16 %v225
  %v529 = vunpack.c.l.b16 %v226
  %v530 = vunpack.c.l.b16 %v227
  %v531 = vunpack.c.l.b16 %v228
  %v532 = vunpack.c.l.b16 %v229
  %v533 = vunpack.c.l.b16 %v230
  %v534 = vunpack.c.l.b16 %v231
  %v535 = vunpack.c.l.b16 %v232
  %v536 = vunpack.c.l.b16 %v233
  %v537 = vunpack.c.l.b16 %v234
  %v538 = vunpack.c.l.b16 %v235
  %v539 = vunpack.c.l.b16 %v236
  %v540 = vunpack.c.l.b16 %v237
  %v541 = vunpack.c.l.b16 %v238
  %v542 = vunpack.c.l.b16 %v239
  %v543 = vunpack.c.l.b16 %v240
  %v544 = vunpack.c.l.b16 %v241
  %v545 = vunpack.c.l.b16 %v242
  %v546 = vunpack.c.l.b16 %v243
  %v547 = vunpack.c.l.b16 %v244
  %v548 = vunpack.c.l.b16 %v245
  %v549 = vunpack.c.l.b16 %v246
  %v550 = vunpack.c.l.b16 %v247
  %v551 = vunpack.c.l.b16 %v248
  %v552 = vunpack.c.l.b16 %v249
  %v553 = vunpack.c.l.b16 %v250
  %v554 = vunpack.c.l.b16 %v251
  %v555 = vunpack.c.l.b16 %v252
  %v556 = vunpack.c.l.b16 %v253
  %v557 = vunpack.c.l.b16 %v254
  %v558 = vunpack.c.l.b16 %v255
  %v559 = vunpack.c.l.b16 %v256
  %v560 = vunpack.c.l.b16 %v257
  %v561 = vunpack.c.l.b16 %v258
  %v562 = vunpack.c.l.b16 %v259
  %v563 = vunpack.c.l.b16 %v260
  %v564 = vunpack.c.l.b16 %v261
  %v565 = vunpack.c.l.b16 %v262
  %v566 = vunpack.c.l.b16 %v263
  %v567 = vunpack.c.l.b16 %v264
  %v568 = vunpack.c.l.b16 %v265
  %v569 = vunpack.c.l.b16 %v266
  %v570 = vunpack.c.l.b16 %v267
  %v571 = vunpack.c.l.b16 %v268
  %v572 = vunpack.c.l.b16 %v269
  %v573 = vunpack.c.l.b16 %v270
  %v574 = vunpack.c.l.b16 %v271
  %v575 = vunpack.c.l.b16 %v272
  %v576 = vunpack.c.l.b16 %v273
  %v577 = vunpack.c.l.b16 %v274
  %v578 = vunpack.c.l.b16 %v275
  %v579 = vunpack.c.l.b16 %v276
  %v580 = vunpack.c.l.b16 %v277
  %v581 = vunpack.c.l.b16 %v278
  %v582 = vunpack.c.l.b16 %v279
  %v583 = vunpack.c.l.b16 %v280
  %v584 = vunpack.c.l.b16 %v281
  %v585 = vunpack.c.l.b16 %v282
  %v586 = vunpack.c.l.b16 %v283
  %v587 = vunpack.c.l.b16 %v284
  %v588 = vunpack.c.l.b16 %v285
  %v589 = vunpack.c.l.b16 %v286
  %v590 = vunpack.c.l.b16 %v287
  %v591 = vunpack.c.l.b16 %v288
  %v592 = vunpack.c.l.b16 %v289
  %v593 = vunpack.c.l.b16 %v290
  %v594 = vunpack.c.l.b16 %v291
  %v595 = vunpack.c.l.b16 %v292
  %v596 = vunpack.c.l.b16 %v293
  %v597 = vunpack.c.l.b16 %v294
  %v598 = vunpack.c.l.b16 %v295
  %v599 = vunpack.c.l.b16 %v296
  %v600 = vunpack.c.l.b16 %v297
  %v601 = vunpack.c.l.b16 %v298
  %v602 = vunpack.c.l.b16 %v299
  %v603 = vunpack.c.l.b16 %v300
  %v604 = vunpack.c.l.b16 %v301
  %v605 = vunpack.c.l.b16 %v302
  %v606 = vunpack.c.l.b16 %v303
  %v607 = vunpack.c.l.b16 %v304
  %v608 = vunpack.c.l.b16 %v305
  %v609 = vunpack.c.l.b16 %v306
  %v610 = vunpack.c.l.b16 %v307
  %v611 = vunpack.c.l.b16 %v308
  %v612 = vunpack.c.l.b16 %v309
  %v613 = vunpack.c.l.b16 %v310
  %v614 = vunpack.c.l.b16 %v311
  %v615 = vunpack.c.l.b16 %v312
  %v616 = vunpack.c.l.b16 %v313
  %v617 = vunpack.c.l.b16 %v314
  %v618 = vunpack.c.l.b16 %v315
  %v619 = vunpack.c.l.b16 %v316
  %v620 = vunpack.c.l.b16 %v317
  %v621 = vunpack.c.l.b16 %v318
  %v622 = vunpack.c.l.b16 %v319
  %v623 = vunpack.c.l.b16 %v320
  %v624 = vunpack.c.l.b16 %v321
  %v625 = vunpack.c.l.b16 %v322
  %v626 = vunpack.c.l.b16 %v323
  %v627 = vunpack.c.l.b16 %v324
  %v628 = vunpack.c.l.b16 %v325
  %v629 = vunpack.c.l.b16 %v326
  %v630 = vunpack.c.l.b16 %v327
  %v631 = vunpack.c.l.b16 %v328
  %v632 = vunpack.c.l.b16 %v329
  %v633 = vunpack.c.l.b16 %v330
  %v634 = vunpack.c.l.b16 %v331
  %v635 = vunpack.c.l.b16 %v332
  %v636 = vunpack.c.l.b16 %v333
  %v637 = vunpack.c.l.b16 %v334
  %v638 = vunpack.c.l.b16 %v335
  %v639 = vunpack.c.l.b16 %v336
  %v640 = vunpack.c.l.b16 %v337
  %v641 = vunpack.c.l.b16 %v338
  %v642 = vunpack.c.l.b16 %v339
  %v643 = vunpack.c.l.b16 %v340
  %v644 = vunpack.c.l.b16 %v341
  %v645 = vpack.c.b16 %v518, %v517
  %v646 = vpack.c.b16 %v520, %v519
  %v647 = vpack.c.b16 %v522, %v521
  %v648 = vpack.c.b16 %v524, %v523
  %v649 = vpack.c.b16 %v526, %v525
  %v650 = vpack.c.b16 %v528, %v527
  %v651 = vpack.c.b16 %v530, %v529
  %v652 = vpack.c.b16 %v532, %v531
  %v653 = vpack.c.b16 %v534, %v533
  %v654 = vpack.c.b16 %v536, %v535
  %v655 = vpack.c.b16 %v538, %v537
  %v656 = vpack.c.b16 %v540, %v539
  %v657 = vpack.c.b16 %v542, %v541
  %v658 = vpack.c.b16 %v544, %v543
  %v659 = vpack.c.b16 %v546, %v545
  %v660 = vpack.c.b16 %v548, %v547
  %v661 = vpack.c.b16 %v550, %v549
  %v662 = vpack.c.b16 %v552, %v551
  %v663 = vpack.c.b16 %v554, %v553
  %v664 = vpack.c.b16 %v556, %v555
  %v665 = vpack.c.b16 %v558, %v557
  %v666 = vpack.c.b16 %v560, %v559
  %v667 = vpack.c.b16 %v562, %v561
  %v668 = vpack.c.b16 %v564, %v563
  %v669 = vpack.c.b16 %v566, %v565
  %v670 = vpack.c.b16 %v568, %v567
  %v671 = vpack.c.b16 %v570, %v569
  %v672 = vpack.c.b16 %v572, %v571
  %v673 = vpack.c.b16 %v574, %v573
  %v674 = vpack.c.b16 %v576, %v575
  %v675 = vpack.c.b16 %v578, %v577
  %v676 = vpack.c.b16 %v580, %v579
  %v677 = vpack.c.b16 %v582, %v581
  %v678 = vpack.c.b16 %v584, %v583
  %v679 = vpack.c.b16 %v586, %v585
  %v680 = vpack.c.b16 %v588, %v587
  %v681 = vpack.c.b16 %v590, %v589
  %v682 = vpack.c.b16 %v592, %v591
  %v683 = vpack.c.b16 %v594, %v593
  %v684 = vpack.c.b16 %v596, %v595
  %v685 = vpack.c.b16 %v598, %v597
  %v686 = vpack.c.b16 %v600, %v599
  %v687 = vpack.c.b16 %v602, %v601
  %v688 = vpack.c.b16 %v604, %v603
  %v689 = vpack.c.b16 %v606, %v605
  %v690 = vpack.c.b16 %v608, %v607
  %v691 = vpack.c.b16 %v610, %v609
  %v692 = vpack.c.b16 %v612, %v611
  %v693 = vpack.c.b16 %v614, %v613
  %v694 = vpack.c.b16 %v616, %v615
  %v695 = vpack.c.b16 %v618, %v617
  %v696 = vpack.c.b16 %v620, %v619
  %v697 = vpack.c.b16 %v622, %v621
  %v698 = vpack.c.b16 %v624, %v623
  %v699 = vpack.c.b16 %v626, %v625
  %v700 = vpack.c.b16 %v628, %v627
  %v701 = vpack.c.b16 %v630, %v629
  %v702 = vpack.c.b16 %v632, %v631
  %v703 = vpack.c.b16 %v634, %v633
  %v704 = vpack.c.b16 %v636, %v635
  %v705 = vpack.c.b16 %v638, %v637
  %v706 = vpack.c.b16 %v640, %v639
  %v707 = vpack.c.b16 %v642, %v641
  %v708 = vpack.c.b16 %v644, %v643
  %773 = vmatprep.subr.bf16.mxu0 0
  %774 = vmatpush1.bf16.msra.mxu0 %v652
  %775 = vmatprep.subr.bf16.mxu0 0
  %776 = vmatpush1.bf16.msra.mxu0 %v651
  %777 = vmatprep.subr.bf16.mxu0 0
  %778 = vmatpush1.bf16.msra.mxu0 %v650
  %779 = vmatprep.subr.bf16.mxu0 0
  %780 = vmatpush1.bf16.msra.mxu0 %v649
  %781 = vmatprep.subr.bf16.mxu0 0
  %782 = vmatpush1.bf16.msra.mxu0 %v648
  %783 = vmatprep.subr.bf16.mxu0 0
  %784 = vmatpush1.bf16.msra.mxu0 %v647
  %785 = vmatprep.subr.bf16.mxu0 0
  %786 = vmatpush1.bf16.msra.mxu0 %v646
  %787 = vmatprep.subr.bf16.mxu0 0
  %788 = vmatpush1.bf16.msra.mxu0 %v645
  %789 = vmatprep.subr.bf16.mxu0 0
  %790 = vmatpush2.bf16.msra.mxu0 %v660
  %791 = vmatprep.subr.bf16.mxu0 0
  %792 = vmatpush2.bf16.msra.mxu0 %v659
  %793 = vmatprep.subr.bf16.mxu0 0
  %794 = vmatpush2.bf16.msra.mxu0 %v658
  %795 = vmatprep.subr.bf16.mxu0 0
  %796 = vmatpush2.bf16.msra.mxu0 %v657
  %797 = vmatprep.subr.bf16.mxu0 0
  %798 = vmatpush2.bf16.msra.mxu0 %v656
  %799 = vmatprep.subr.bf16.mxu0 0
  %800 = vmatpush2.bf16.msra.mxu0 %v655
  %801 = vmatprep.subr.bf16.mxu0 0
  %802 = vmatpush2.bf16.msra.mxu0 %v654
  %803 = vmatprep.subr.bf16.mxu0 0
  %804 = vmatpush2.bf16.msra.mxu0 %v653
  %805 = vmatprep.mubr.bf16.mxu0 %v374
  %806 = vmatmul.mubr.bf16.gmra.mxu0 %v373
  %v807 = vpop.f32.mrf.mxu0
  %v808 = vadd.f32 %v347, %v807
  %v809 = vpop.f32.mrf.mxu0
  %v810 = vpop.f32.mrf.mxu0
  %v811 = vadd.f32 %v347, %v810
  %v812 = vpop.f32.mrf.mxu0
  %813 = vdwg.mxu0
  %814 = vmatprep.subr.bf16.mxu0 0
  %815 = vmatpush1.bf16.msra.mxu0 %v668
  %816 = vmatprep.subr.bf16.mxu0 0
  %817 = vmatpush1.bf16.msra.mxu0 %v667
  %818 = vmatprep.subr.bf16.mxu0 0
  %819 = vmatpush1.bf16.msra.mxu0 %v666
  %820 = vmatprep.subr.bf16.mxu0 0
  %821 = vmatpush1.bf16.msra.mxu0 %v665
  %822 = vmatprep.subr.bf16.mxu0 0
  %823 = vmatpush1.bf16.msra.mxu0 %v664
  %824 = vmatprep.subr.bf16.mxu0 0
  %825 = vmatpush1.bf16.msra.mxu0 %v663
  %826 = vmatprep.subr.bf16.mxu0 0
  %827 = vmatpush1.bf16.msra.mxu0 %v662
  %828 = vmatprep.subr.bf16.mxu0 0
  %829 = vmatpush1.bf16.msra.mxu0 %v661
  %830 = vmatprep.subr.bf16.mxu0 0
  %831 = vmatpush2.bf16.msra.mxu0 %v676
  %832 = vmatprep.subr.bf16.mxu0 0
  %833 = vmatpush2.bf16.msra.mxu0 %v675
  %834 = vmatprep.subr.bf16.mxu0 0
  %835 = vmatpush2.bf16.msra.mxu0 %v674
  %836 = vmatprep.subr.bf16.mxu0 0
  %837 = vmatpush2.bf16.msra.mxu0 %v673
  %838 = vmatprep.subr.bf16.mxu0 0
  %839 = vmatpush2.bf16.msra.mxu0 %v672
  %840 = vmatprep.subr.bf16.mxu0 0
  %841 = vmatpush2.bf16.msra.mxu0 %v671
  %842 = vmatprep.subr.bf16.mxu0 0
  %843 = vmatpush2.bf16.msra.mxu0 %v670
  %844 = vmatprep.subr.bf16.mxu0 0
  %845 = vmatpush2.bf16.msra.mxu0 %v669
  %846 = vmatprep.mubr.bf16.mxu0 %v376
  %847 = vmatmul.mubr.bf16.gmra.mxu0 %v375
  %v848 = vpop.f32.mrf.mxu0
  %v849 = vadd.f32 %v808, %v848
  %v850 = vpop.f32.mrf.mxu0
  %v851 = vpop.f32.mrf.mxu0
  %v852 = vadd.f32 %v811, %v851
  %v853 = vpop.f32.mrf.mxu0
  %854 = vdwg.mxu0
  %855 = vmatprep.subr.bf16.mxu0 0
  %856 = vmatpush1.bf16.msra.mxu0 %v684
  %857 = vmatprep.subr.bf16.mxu0 0
  %858 = vmatpush1.bf16.msra.mxu0 %v683
  %859 = vmatprep.subr.bf16.mxu0 0
  %860 = vmatpush1.bf16.msra.mxu0 %v682
  %861 = vmatprep.subr.bf16.mxu0 0
  %862 = vmatpush1.bf16.msra.mxu0 %v681
  %863 = vmatprep.subr.bf16.mxu0 0
  %864 = vmatpush1.bf16.msra.mxu0 %v680
  %865 = vmatprep.subr.bf16.mxu0 0
  %866 = vmatpush1.bf16.msra.mxu0 %v679
  %867 = vmatprep.subr.bf16.mxu0 0
  %868 = vmatpush1.bf16.msra.mxu0 %v678
  %869 = vmatprep.subr.bf16.mxu0 0
  %870 = vmatpush1.bf16.msra.mxu0 %v677
  %871 = vmatprep.subr.bf16.mxu0 0
  %872 = vmatpush2.bf16.msra.mxu0 %v692
  %873 = vmatprep.subr.bf16.mxu0 0
  %874 = vmatpush2.bf16.msra.mxu0 %v691
  %875 = vmatprep.subr.bf16.mxu0 0
  %876 = vmatpush2.bf16.msra.mxu0 %v690
  %877 = vmatprep.subr.bf16.mxu0 0
  %878 = vmatpush2.bf16.msra.mxu0 %v689
  %879 = vmatprep.subr.bf16.mxu0 0
  %880 = vmatpush2.bf16.msra.mxu0 %v688
  %881 = vmatprep.subr.bf16.mxu0 0
  %882 = vmatpush2.bf16.msra.mxu0 %v687
  %883 = vmatprep.subr.bf16.mxu0 0
  %884 = vmatpush2.bf16.msra.mxu0 %v686
  %885 = vmatprep.subr.bf16.mxu0 0
  %886 = vmatpush2.bf16.msra.mxu0 %v685
  %887 = vmatprep.mubr.bf16.mxu0 %v378
  %888 = vmatmul.mubr.bf16.gmra.mxu0 %v377
  %v889 = vpop.f32.mrf.mxu0
  %v890 = vadd.f32 %v849, %v889
  %v891 = vpop.f32.mrf.mxu0
  %v892 = vpop.f32.mrf.mxu0
  %v893 = vadd.f32 %v852, %v892
  %v894 = vpop.f32.mrf.mxu0
  %895 = vdwg.mxu0
  %896 = vmatprep.subr.bf16.mxu0 0
  %897 = vmatpush1.bf16.msra.mxu0 %v700
  %898 = vmatprep.subr.bf16.mxu0 0
  %899 = vmatpush1.bf16.msra.mxu0 %v699
  %900 = vmatprep.subr.bf16.mxu0 0
  %901 = vmatpush1.bf16.msra.mxu0 %v698
  %902 = vmatprep.subr.bf16.mxu0 0
  %903 = vmatpush1.bf16.msra.mxu0 %v697
  %904 = vmatprep.subr.bf16.mxu0 0
  %905 = vmatpush1.bf16.msra.mxu0 %v696
  %906 = vmatprep.subr.bf16.mxu0 0
  %907 = vmatpush1.bf16.msra.mxu0 %v695
  %908 = vmatprep.subr.bf16.mxu0 0
  %909 = vmatpush1.bf16.msra.mxu0 %v694
  %910 = vmatprep.subr.bf16.mxu0 0
  %911 = vmatpush1.bf16.msra.mxu0 %v693
  %912 = vmatprep.subr.bf16.mxu0 0
  %913 = vmatpush2.bf16.msra.mxu0 %v708
  %914 = vmatprep.subr.bf16.mxu0 0
  %915 = vmatpush2.bf16.msra.mxu0 %v707
  %916 = vmatprep.subr.bf16.mxu0 0
  %917 = vmatpush2.bf16.msra.mxu0 %v706
  %918 = vmatprep.subr.bf16.mxu0 0
  %919 = vmatpush2.bf16.msra.mxu0 %v705
  %920 = vmatprep.subr.bf16.mxu0 0
  %921 = vmatpush2.bf16.msra.mxu0 %v704
  %922 = vmatprep.subr.bf16.mxu0 0
  %923 = vmatpush2.bf16.msra.mxu0 %v703
  %924 = vmatprep.subr.bf16.mxu0 0
  %925 = vmatpush2.bf16.msra.mxu0 %v702
  %926 = vmatprep.subr.bf16.mxu0 0
  %927 = vmatpush2.bf16.msra.mxu0 %v701
  %928 = vmatprep.mubr.bf16.mxu0 %v380
  %929 = vmatmul.mubr.bf16.gmra.mxu0 %v379
  %v930 = vpop.f32.mrf.mxu0
  %v931 = vadd.f32 %v890, %v930
  %v932 = vpop.f32.mrf.mxu0
  %v933 = vpop.f32.mrf.mxu0
  %v934 = vadd.f32 %v893, %v933
  %v935 = vpop.f32.mrf.mxu0
  %936 = vdwg.mxu0
  %v937 = vmul.f32 %v931, 0.5
  %v938 = vmul.f32 %v934, 0.5
  %v939 = vmul.f32 %v931, 0.70710677
  %v940 = vmul.f32 %v934, 0.70710677
  %v941 = verf.f32.pop %v939
  %v942 = verf.f32.pop %v940
  %v943 = vadd.f32 %v941, 1.0
  %v944 = vadd.f32 %v942, 1.0
  %v945 = vmul.f32 %v937, %v943
  %v946 = vmul.f32 %v938, %v944
  %v947 = vld [vmem:[%s57] sm:$0xff]
  %v948 = vld [vmem:[%s57 + $0x8] sm:$0xff]
  %v949 = vld [vmem:[%s57 + $0x10] sm:$0xff]
  %v950 = vld [vmem:[%s57 + $0x18] sm:$0xff]
  %v951 = vld [vmem:[%s57 + $0x20] sm:$0xff]
  %v952 = vld [vmem:[%s57 + $0x28] sm:$0xff]
  %v953 = vld [vmem:[%s57 + $0x30] sm:$0xff]
  %v954 = vld [vmem:[%s57 + $0x38] sm:$0xff]
  %v955 = vld [vmem:[%s49] sm:$0x1]
  %v957 = vlaneseq
  %v958 = vshrl.u32 %v957, 7
  %v959 = vsub.s32 0, %v958
  %v960 = vrot.slane %v955, %v959
  %vm962 = vcmask 523264
  %v964 = vsel %vm962, %v945, 0
  %v967 = vsel %vm962, %v946, 0
  %969 = vmatprep.subr.mxu0 0.0
  %970 = vmatpush1.msra.mxu0 0.0
  %971 = vmatprep.subr.mxu0 0.0
  %972 = vmatpush1.msra.mxu0 0.0
  %973 = vmatprep.subr.mxu0 0.0
  %974 = vmatpush1.msra.mxu0 0.0
  %975 = vmatprep.subr.mxu0 0.0
  %976 = vmatpush1.msra.mxu0 0.0
  %977 = vmatprep.subr.mxu0 0.0
  %978 = vmatpush1.msra.mxu0 0.0
  %979 = vmatprep.subr.mxu0 0.0
  %980 = vmatpush1.msra.mxu0 0.0
  %981 = vmatprep.subr.mxu0 0.0
  %982 = vmatpush1.msra.mxu0 0.0
  %983 = vmatprep.subr.mxu0 0.0
  %984 = vmatpush1.msra.mxu0 0.0
  %985 = vmatprep.subr.mxu0 0.0
  %986 = vmatpush1.msra.mxu0 %v954
  %987 = vmatprep.subr.mxu0 0.0
  %988 = vmatpush1.msra.mxu0 %v953
  %989 = vmatprep.subr.mxu0 0.0
  %990 = vmatpush1.msra.mxu0 %v952
  %991 = vmatprep.subr.mxu0 0.0
  %992 = vmatpush1.msra.mxu0 %v951
  %993 = vmatprep.subr.mxu0 0.0
  %994 = vmatpush1.msra.mxu0 %v950
  %995 = vmatprep.subr.mxu0 0.0
  %996 = vmatpush1.msra.mxu0 %v949
  %997 = vmatprep.subr.mxu0 0.0
  %998 = vmatpush1.msra.mxu0 %v948
  %999 = vmatprep.subr.mxu0 0.0
  %1000 = vmatpush1.msra.mxu0 %v947
  %1001 = vmatprep.subr.mxu0 0.0
  %1002 = vmatpush2.msra.mxu0 0.0
  %1003 = vmatprep.subr.mxu0 0.0
  %1004 = vmatpush2.msra.mxu0 0.0
  %1005 = vmatprep.subr.mxu0 0.0
  %1006 = vmatpush2.msra.mxu0 0.0
  %1007 = vmatprep.subr.mxu0 0.0
  %1008 = vmatpush2.msra.mxu0 0.0
  %1009 = vmatprep.subr.mxu0 0.0
  %1010 = vmatpush2.msra.mxu0 0.0
  %1011 = vmatprep.subr.mxu0 0.0
  %1012 = vmatpush2.msra.mxu0 0.0
  %1013 = vmatprep.subr.mxu0 0.0
  %1014 = vmatpush2.msra.mxu0 0.0
  %1015 = vmatprep.subr.mxu0 0.0
  %1016 = vmatpush2.msra.mxu0 0.0
  %1017 = vmatprep.subr.mxu0 0.0
  %1018 = vmatpush2.msra.mxu0 0.0
  %1019 = vmatprep.subr.mxu0 0.0
  %1020 = vmatpush2.msra.mxu0 0.0
  %1021 = vmatprep.subr.mxu0 0.0
  %1022 = vmatpush2.msra.mxu0 0.0
  %1023 = vmatprep.subr.mxu0 0.0
  %1024 = vmatpush2.msra.mxu0 0.0
  %1025 = vmatprep.subr.mxu0 0.0
  %1026 = vmatpush2.msra.mxu0 0.0
  %1027 = vmatprep.subr.mxu0 0.0
  %1028 = vmatpush2.msra.mxu0 0.0
  %1029 = vmatprep.subr.mxu0 0.0
  %1030 = vmatpush2.msra.mxu0 0.0
  %1031 = vmatprep.subr.mxu0 0.0
  %1032 = vmatpush2.msra.mxu0 0.0
  %1033 = vmatprep.mubr.f32.mxu0 0.0
  %1034 = vmatmul.mubr.f32.gmra.mxu0 %v964
  %v1035 = vpop.f32.mrf.mxu0
  %v1036 = vadd.f32 %v960, %v1035
  %v1037 = vpop.f32.mrf.mxu0
  %1038 = vmatprep.mubr.f32.mxu0 0.0
  %1039 = vmatmul.mubr.f32.gmra.mxu0 %v967
  %v1040 = vpop.f32.mrf.mxu0
  %v1041 = vadd.f32 %v960, %v1040
  %v1042 = vpop.f32.mrf.mxu0
  %1043 = vdwg.mxu0
  %v1044 = vmul.f32 %v1036, 0.5
  %v1045 = vmul.f32 %v1041, 0.5
  %v1046 = vmul.f32 %v1036, 0.70710677
  %v1047 = vmul.f32 %v1041, 0.70710677
  %v1048 = verf.f32.pop %v1046
  %v1049 = verf.f32.pop %v1047
  %v1050 = vadd.f32 %v1048, 1.0
  %v1051 = vadd.f32 %v1049, 1.0
  %v1052 = vmul.f32 %v1044, %v1050
  %v1053 = vmul.f32 %v1045, %v1051
  %v1054 = vld [vmem:[%s15] sm:$0xff]
  %v1055 = vld [vmem:[%s15 + $0x8] sm:$0xff]
  %v1056 = vld [vmem:[%s15 + $0x10] sm:$0xff]
  %v1057 = vld [vmem:[%s15 + $0x18] sm:$0xff]
  %v1058 = vld [vmem:[%s15 + $0x20] sm:$0xff]
  %v1059 = vld [vmem:[%s15 + $0x28] sm:$0xff]
  %v1060 = vld [vmem:[%s15 + $0x30] sm:$0xff]
  %v1061 = vld [vmem:[%s15 + $0x38] sm:$0xff]
  %v1062 = vld [vmem:[%s21] sm:$0xff]
  %v1063 = vld [vmem:[%s21 + $0x8] sm:$0xff]
  %v1064 = vld [vmem:[%s21 + $0x10] sm:$0xff]
  %v1065 = vld [vmem:[%s21 + $0x18] sm:$0xff]
  %v1066 = vld [vmem:[%s21 + $0x20] sm:$0xff]
  %v1067 = vld [vmem:[%s21 + $0x28] sm:$0xff]
  %v1068 = vld [vmem:[%s21 + $0x30] sm:$0xff]
  %v1069 = vld [vmem:[%s21 + $0x38] sm:$0xff]
  %1070 = vmatprep.subr.mxu0 0.0
  %1071 = vmatpush1.msra.mxu0 0.0
  %1072 = vmatprep.subr.mxu0 0.0
  %1073 = vmatpush1.msra.mxu0 0.0
  %1074 = vmatprep.subr.mxu0 0.0
  %1075 = vmatpush1.msra.mxu0 0.0
  %1076 = vmatprep.subr.mxu0 0.0
  %1077 = vmatpush1.msra.mxu0 0.0
  %1078 = vmatprep.subr.mxu0 0.0
  %1079 = vmatpush1.msra.mxu0 0.0
  %1080 = vmatprep.subr.mxu0 0.0
  %1081 = vmatpush1.msra.mxu0 0.0
  %1082 = vmatprep.subr.mxu0 0.0
  %1083 = vmatpush1.msra.mxu0 0.0
  %1084 = vmatprep.subr.mxu0 0.0
  %1085 = vmatpush1.msra.mxu0 0.0
  %1086 = vmatprep.subr.mxu0 0.0
  %1087 = vmatpush1.msra.mxu0 %v1069
  %1088 = vmatprep.subr.mxu0 0.0
  %1089 = vmatpush1.msra.mxu0 %v1068
  %1090 = vmatprep.subr.mxu0 0.0
  %1091 = vmatpush1.msra.mxu0 %v1067
  %1092 = vmatprep.subr.mxu0 0.0
  %1093 = vmatpush1.msra.mxu0 %v1066
  %1094 = vmatprep.subr.mxu0 0.0
  %1095 = vmatpush1.msra.mxu0 %v1065
  %1096 = vmatprep.subr.mxu0 0.0
  %1097 = vmatpush1.msra.mxu0 %v1064
  %1098 = vmatprep.subr.mxu0 0.0
  %1099 = vmatpush1.msra.mxu0 %v1063
  %1100 = vmatprep.subr.mxu0 0.0
  %1101 = vmatpush1.msra.mxu0 %v1062
  %1102 = vmatprep.subr.mxu0 0.0
  %1103 = vmatpush2.msra.mxu0 0.0
  %1104 = vmatprep.subr.mxu0 0.0
  %1105 = vmatpush2.msra.mxu0 0.0
  %1106 = vmatprep.subr.mxu0 0.0
  %1107 = vmatpush2.msra.mxu0 0.0
  %1108 = vmatprep.subr.mxu0 0.0
  %1109 = vmatpush2.msra.mxu0 0.0
  %1110 = vmatprep.subr.mxu0 0.0
  %1111 = vmatpush2.msra.mxu0 0.0
  %1112 = vmatprep.subr.mxu0 0.0
  %1113 = vmatpush2.msra.mxu0 0.0
  %1114 = vmatprep.subr.mxu0 0.0
  %1115 = vmatpush2.msra.mxu0 0.0
  %1116 = vmatprep.subr.mxu0 0.0
  %1117 = vmatpush2.msra.mxu0 0.0
  %1118 = vmatprep.subr.mxu0 0.0
  %1119 = vmatpush2.msra.mxu0 0.0
  %1120 = vmatprep.subr.mxu0 0.0
  %1121 = vmatpush2.msra.mxu0 0.0
  %1122 = vmatprep.subr.mxu0 0.0
  %1123 = vmatpush2.msra.mxu0 0.0
  %1124 = vmatprep.subr.mxu0 0.0
  %1125 = vmatpush2.msra.mxu0 0.0
  %1126 = vmatprep.subr.mxu0 0.0
  %1127 = vmatpush2.msra.mxu0 0.0
  %1128 = vmatprep.subr.mxu0 0.0
  %1129 = vmatpush2.msra.mxu0 0.0
  %1130 = vmatprep.subr.mxu0 0.0
  %1131 = vmatpush2.msra.mxu0 0.0
  %1132 = vmatprep.subr.mxu0 0.0
  %1133 = vmatpush2.msra.mxu0 0.0
  %1134 = vmatprep.mubr.f32.mxu0 0.0
  %1135 = vmatmul.mubr.f32.gmra.mxu0 %v964
  %v1136 = vpop.f32.mrf.mxu0
  %v1137 = vadd.f32 0.0, %v1136
  %v1138 = vpop.f32.mrf.mxu0
  %1139 = vmatprep.mubr.f32.mxu0 0.0
  %1140 = vmatmul.mubr.f32.gmra.mxu0 %v967
  %v1141 = vpop.f32.mrf.mxu0
  %v1142 = vadd.f32 0.0, %v1141
  %v1143 = vpop.f32.mrf.mxu0
  %1144 = vdwg.mxu0
  %v1145 = vlaneseq
  %v1146 = vshrl.u32 %v1145, 7
  %v1147 = vsub.s32 0, %v1146
  %v1148 = vrot.slane %v195, %v1147
  %1150 = vbcast.lane.b32.xlu0 %v1148, 256
  %v1151 = vpop.permute.xlu0 %1150
  %s1153 = sor.u32 256, 8
  %1154 = vbcast.lane.b32.xlu0 %v1148, %s1153
  %v1155 = vpop.permute.xlu0 %1154
  %v1156 = vlaneseq
  %v1157 = vshrl.u32 %v1156, 7
  %v1158 = vsub.s32 1, %v1157
  %v1159 = vrot.slane %v195, %v1158
  %1161 = vbcast.lane.b32.xlu0 %v1159, 256
  %v1162 = vpop.permute.xlu0 %1161
  %s1164 = sor.u32 256, 8
  %1165 = vbcast.lane.b32.xlu0 %v1159, %s1164
  %v1166 = vpop.permute.xlu0 %1165
  %v1167 = vlaneseq
  %v1168 = vshrl.u32 %v1167, 7
  %v1169 = vsub.s32 2, %v1168
  %v1170 = vrot.slane %v195, %v1169
  %1172 = vbcast.lane.b32.xlu0 %v1170, 256
  %v1173 = vpop.permute.xlu0 %1172
  %s1175 = sor.u32 256, 8
  %1176 = vbcast.lane.b32.xlu0 %v1170, %s1175
  %v1177 = vpop.permute.xlu0 %1176
  %v1178 = vlaneseq
  %v1179 = vshrl.u32 %v1178, 7
  %v1180 = vsub.s32 3, %v1179
  %v1181 = vrot.slane %v195, %v1180
  %1183 = vbcast.lane.b32.xlu0 %v1181, 256
  %v1184 = vpop.permute.xlu0 %1183
  %s1186 = sor.u32 256, 8
  %1187 = vbcast.lane.b32.xlu0 %v1181, %s1186
  %v1188 = vpop.permute.xlu0 %1187
  %v1189 = vlaneseq
  %v1190 = vshrl.u32 %v1189, 7
  %v1191 = vsub.s32 4, %v1190
  %v1192 = vrot.slane %v195, %v1191
  %1194 = vbcast.lane.b32.xlu0 %v1192, 256
  %v1195 = vpop.permute.xlu0 %1194
  %s1197 = sor.u32 256, 8
  %1198 = vbcast.lane.b32.xlu0 %v1192, %s1197
  %v1199 = vpop.permute.xlu0 %1198
  %v1200 = vlaneseq
  %v1201 = vshrl.u32 %v1200, 7
  %v1202 = vsub.s32 5, %v1201
  %v1203 = vrot.slane %v195, %v1202
  %1205 = vbcast.lane.b32.xlu0 %v1203, 256
  %v1206 = vpop.permute.xlu0 %1205
  %s1208 = sor.u32 256, 8
  %1209 = vbcast.lane.b32.xlu0 %v1203, %s1208
  %v1210 = vpop.permute.xlu0 %1209
  %v1211 = vlaneseq
  %v1212 = vshrl.u32 %v1211, 7
  %v1213 = vsub.s32 6, %v1212
  %v1214 = vrot.slane %v195, %v1213
  %1216 = vbcast.lane.b32.xlu0 %v1214, 256
  %v1217 = vpop.permute.xlu0 %1216
  %s1219 = sor.u32 256, 8
  %1220 = vbcast.lane.b32.xlu0 %v1214, %s1219
  %v1221 = vpop.permute.xlu0 %1220
  %v1222 = vlaneseq
  %v1223 = vshrl.u32 %v1222, 7
  %v1224 = vsub.s32 7, %v1223
  %v1225 = vrot.slane %v195, %v1224
  %1227 = vbcast.lane.b32.xlu0 %v1225, 256
  %v1228 = vpop.permute.xlu0 %1227
  %s1230 = sor.u32 256, 8
  %1231 = vbcast.lane.b32.xlu0 %v1225, %s1230
  %v1232 = vpop.permute.xlu0 %1231
  %v1233 = vlaneseq
  %v1234 = vshrl.u32 %v1233, 7
  %v1235 = vsub.s32 0, %v1234
  %v1236 = vrot.slane %v196, %v1235
  %1238 = vbcast.lane.b32.xlu0 %v1236, 256
  %v1239 = vpop.permute.xlu0 %1238
  %s1241 = sor.u32 256, 8
  %1242 = vbcast.lane.b32.xlu0 %v1236, %s1241
  %v1243 = vpop.permute.xlu0 %1242
  %v1244 = vlaneseq
  %v1245 = vshrl.u32 %v1244, 7
  %v1246 = vsub.s32 1, %v1245
  %v1247 = vrot.slane %v196, %v1246
  %1249 = vbcast.lane.b32.xlu0 %v1247, 256
  %v1250 = vpop.permute.xlu0 %1249
  %s1252 = sor.u32 256, 8
  %1253 = vbcast.lane.b32.xlu0 %v1247, %s1252
  %v1254 = vpop.permute.xlu0 %1253
  %v1255 = vlaneseq
  %v1256 = vshrl.u32 %v1255, 7
  %v1257 = vsub.s32 2, %v1256
  %v1258 = vrot.slane %v196, %v1257
  %1260 = vbcast.lane.b32.xlu0 %v1258, 256
  %v1261 = vpop.permute.xlu0 %1260
  %s1263 = sor.u32 256, 8
  %1264 = vbcast.lane.b32.xlu0 %v1258, %s1263
  %v1265 = vpop.permute.xlu0 %1264
  %v1266 = vlaneseq
  %v1267 = vshrl.u32 %v1266, 7
  %v1268 = vsub.s32 3, %v1267
  %v1269 = vrot.slane %v196, %v1268
  %1271 = vbcast.lane.b32.xlu0 %v1269, 256
  %v1272 = vpop.permute.xlu0 %1271
  %s1274 = sor.u32 256, 8
  %1275 = vbcast.lane.b32.xlu0 %v1269, %s1274
  %v1276 = vpop.permute.xlu0 %1275
  %v1277 = vlaneseq
  %v1278 = vshrl.u32 %v1277, 7
  %v1279 = vsub.s32 4, %v1278
  %v1280 = vrot.slane %v196, %v1279
  %1282 = vbcast.lane.b32.xlu0 %v1280, 256
  %v1283 = vpop.permute.xlu0 %1282
  %s1285 = sor.u32 256, 8
  %1286 = vbcast.lane.b32.xlu0 %v1280, %s1285
  %v1287 = vpop.permute.xlu0 %1286
  %v1288 = vlaneseq
  %v1289 = vshrl.u32 %v1288, 7
  %v1290 = vsub.s32 5, %v1289
  %v1291 = vrot.slane %v196, %v1290
  %1293 = vbcast.lane.b32.xlu0 %v1291, 256
  %v1294 = vpop.permute.xlu0 %1293
  %s1296 = sor.u32 256, 8
  %1297 = vbcast.lane.b32.xlu0 %v1291, %s1296
  %v1298 = vpop.permute.xlu0 %1297
  %v1299 = vlaneseq
  %v1300 = vshrl.u32 %v1299, 7
  %v1301 = vsub.s32 6, %v1300
  %v1302 = vrot.slane %v196, %v1301
  %1304 = vbcast.lane.b32.xlu0 %v1302, 256
  %v1305 = vpop.permute.xlu0 %1304
  %s1307 = sor.u32 256, 8
  %1308 = vbcast.lane.b32.xlu0 %v1302, %s1307
  %v1309 = vpop.permute.xlu0 %1308
  %v1310 = vlaneseq
  %v1311 = vshrl.u32 %v1310, 7
  %v1312 = vsub.s32 7, %v1311
  %v1313 = vrot.slane %v196, %v1312
  %1315 = vbcast.lane.b32.xlu0 %v1313, 256
  %v1316 = vpop.permute.xlu0 %1315
  %s1318 = sor.u32 256, 8
  %1319 = vbcast.lane.b32.xlu0 %v1313, %s1318
  %v1320 = vpop.permute.xlu0 %1319
  %v1321 = vadd.f32 %v1137, %v1151
  %v1322 = vadd.f32 %v1142, %v1155
  %v1323 = vadd.f32 %v1137, %v1162
  %v1324 = vadd.f32 %v1142, %v1166
  %v1325 = vadd.f32 %v1137, %v1173
  %v1326 = vadd.f32 %v1142, %v1177
  %v1327 = vadd.f32 %v1137, %v1184
  %v1328 = vadd.f32 %v1142, %v1188
  %v1329 = vadd.f32 %v1137, %v1195
  %v1330 = vadd.f32 %v1142, %v1199
  %v1331 = vadd.f32 %v1137, %v1206
  %v1332 = vadd.f32 %v1142, %v1210
  %v1333 = vadd.f32 %v1137, %v1217
  %v1334 = vadd.f32 %v1142, %v1221
  %v1335 = vadd.f32 %v1137, %v1228
  %v1336 = vadd.f32 %v1142, %v1232
  %v1337 = vadd.f32 %v1137, %v1239
  %v1338 = vadd.f32 %v1142, %v1243
  %v1339 = vadd.f32 %v1137, %v1250
  %v1340 = vadd.f32 %v1142, %v1254
  %v1341 = vadd.f32 %v1137, %v1261
  %v1342 = vadd.f32 %v1142, %v1265
  %v1343 = vadd.f32 %v1137, %v1272
  %v1344 = vadd.f32 %v1142, %v1276
  %v1345 = vadd.f32 %v1137, %v1283
  %v1346 = vadd.f32 %v1142, %v1287
  %v1347 = vadd.f32 %v1137, %v1294
  %v1348 = vadd.f32 %v1142, %v1298
  %v1349 = vadd.f32 %v1137, %v1305
  %v1350 = vadd.f32 %v1142, %v1309
  %v1351 = vadd.f32 %v1137, %v1316
  %v1352 = vadd.f32 %v1142, %v1320
  %vm1353 = vcmask 392192
  %v1354 = vsel %vm1353, %v1321, -inf
  %v1355 = vsel %vm1353, %v1322, -inf
  %v1356 = vmax.f32 %v1354, %v1355
  %v1357 = vrot.slane %v1356, 4
  %v1358 = vmax.f32 %v1356, %v1357
  %v1359 = vrot.slane %v1358, 2
  %v1360 = vmax.f32 %v1358, %v1359
  %v1361 = vrot.slane %v1360, 1
  %v1362 = vmax.f32 %v1360, %v1361
  %v1363 = vsel %vm1353, %v1323, -inf
  %v1364 = vsel %vm1353, %v1324, -inf
  %v1365 = vmax.f32 %v1363, %v1364
  %v1366 = vrot.slane %v1365, 4
  %v1367 = vmax.f32 %v1365, %v1366
  %v1368 = vrot.slane %v1367, 2
  %v1369 = vmax.f32 %v1367, %v1368
  %v1370 = vrot.slane %v1369, 1
  %v1371 = vmax.f32 %v1369, %v1370
  %v1372 = vsel %vm1353, %v1325, -inf
  %v1373 = vsel %vm1353, %v1326, -inf
  %v1374 = vmax.f32 %v1372, %v1373
  %v1375 = vrot.slane %v1374, 4
  %v1376 = vmax.f32 %v1374, %v1375
  %v1377 = vrot.slane %v1376, 2
  %v1378 = vmax.f32 %v1376, %v1377
  %v1379 = vrot.slane %v1378, 1
  %v1380 = vmax.f32 %v1378, %v1379
  %v1381 = vsel %vm1353, %v1327, -inf
  %v1382 = vsel %vm1353, %v1328, -inf
  %v1383 = vmax.f32 %v1381, %v1382
  %v1384 = vrot.slane %v1383, 4
  %v1385 = vmax.f32 %v1383, %v1384
  %v1386 = vrot.slane %v1385, 2
  %v1387 = vmax.f32 %v1385, %v1386
  %v1388 = vrot.slane %v1387, 1
  %v1389 = vmax.f32 %v1387, %v1388
  %v1390 = vsel %vm1353, %v1329, -inf
  %v1391 = vsel %vm1353, %v1330, -inf
  %v1392 = vmax.f32 %v1390, %v1391
  %v1393 = vrot.slane %v1392, 4
  %v1394 = vmax.f32 %v1392, %v1393
  %v1395 = vrot.slane %v1394, 2
  %v1396 = vmax.f32 %v1394, %v1395
  %v1397 = vrot.slane %v1396, 1
  %v1398 = vmax.f32 %v1396, %v1397
  %v1399 = vsel %vm1353, %v1331, -inf
  %v1400 = vsel %vm1353, %v1332, -inf
  %v1401 = vmax.f32 %v1399, %v1400
  %v1402 = vrot.slane %v1401, 4
  %v1403 = vmax.f32 %v1401, %v1402
  %v1404 = vrot.slane %v1403, 2
  %v1405 = vmax.f32 %v1403, %v1404
  %v1406 = vrot.slane %v1405, 1
  %v1407 = vmax.f32 %v1405, %v1406
  %v1408 = vsel %vm1353, %v1333, -inf
  %v1409 = vsel %vm1353, %v1334, -inf
  %v1410 = vmax.f32 %v1408, %v1409
  %v1411 = vrot.slane %v1410, 4
  %v1412 = vmax.f32 %v1410, %v1411
  %v1413 = vrot.slane %v1412, 2
  %v1414 = vmax.f32 %v1412, %v1413
  %v1415 = vrot.slane %v1414, 1
  %v1416 = vmax.f32 %v1414, %v1415
  %v1417 = vsel %vm1353, %v1335, -inf
  %v1418 = vsel %vm1353, %v1336, -inf
  %v1419 = vmax.f32 %v1417, %v1418
  %v1420 = vrot.slane %v1419, 4
  %v1421 = vmax.f32 %v1419, %v1420
  %v1422 = vrot.slane %v1421, 2
  %v1423 = vmax.f32 %v1421, %v1422
  %v1424 = vrot.slane %v1423, 1
  %v1425 = vmax.f32 %v1423, %v1424
  %v1426 = vsel %vm1353, %v1337, -inf
  %v1427 = vsel %vm1353, %v1338, -inf
  %v1428 = vmax.f32 %v1426, %v1427
  %v1429 = vrot.slane %v1428, 4
  %v1430 = vmax.f32 %v1428, %v1429
  %v1431 = vrot.slane %v1430, 2
  %v1432 = vmax.f32 %v1430, %v1431
  %v1433 = vrot.slane %v1432, 1
  %v1434 = vmax.f32 %v1432, %v1433
  %v1435 = vsel %vm1353, %v1339, -inf
  %v1436 = vsel %vm1353, %v1340, -inf
  %v1437 = vmax.f32 %v1435, %v1436
  %v1438 = vrot.slane %v1437, 4
  %v1439 = vmax.f32 %v1437, %v1438
  %v1440 = vrot.slane %v1439, 2
  %v1441 = vmax.f32 %v1439, %v1440
  %v1442 = vrot.slane %v1441, 1
  %v1443 = vmax.f32 %v1441, %v1442
  %v1444 = vsel %vm1353, %v1341, -inf
  %v1445 = vsel %vm1353, %v1342, -inf
  %v1446 = vmax.f32 %v1444, %v1445
  %v1447 = vrot.slane %v1446, 4
  %v1448 = vmax.f32 %v1446, %v1447
  %v1449 = vrot.slane %v1448, 2
  %v1450 = vmax.f32 %v1448, %v1449
  %v1451 = vrot.slane %v1450, 1
  %v1452 = vmax.f32 %v1450, %v1451
  %v1453 = vsel %vm1353, %v1343, -inf
  %v1454 = vsel %vm1353, %v1344, -inf
  %v1455 = vmax.f32 %v1453, %v1454
  %v1456 = vrot.slane %v1455, 4
  %v1457 = vmax.f32 %v1455, %v1456
  %v1458 = vrot.slane %v1457, 2
  %v1459 = vmax.f32 %v1457, %v1458
  %v1460 = vrot.slane %v1459, 1
  %v1461 = vmax.f32 %v1459, %v1460
  %v1462 = vsel %vm1353, %v1345, -inf
  %v1463 = vsel %vm1353, %v1346, -inf
  %v1464 = vmax.f32 %v1462, %v1463
  %v1465 = vrot.slane %v1464, 4
  %v1466 = vmax.f32 %v1464, %v1465
  %v1467 = vrot.slane %v1466, 2
  %v1468 = vmax.f32 %v1466, %v1467
  %v1469 = vrot.slane %v1468, 1
  %v1470 = vmax.f32 %v1468, %v1469
  %v1471 = vsel %vm1353, %v1347, -inf
  %v1472 = vsel %vm1353, %v1348, -inf
  %v1473 = vmax.f32 %v1471, %v1472
  %v1474 = vrot.slane %v1473, 4
  %v1475 = vmax.f32 %v1473, %v1474
  %v1476 = vrot.slane %v1475, 2
  %v1477 = vmax.f32 %v1475, %v1476
  %v1478 = vrot.slane %v1477, 1
  %v1479 = vmax.f32 %v1477, %v1478
  %v1480 = vsel %vm1353, %v1349, -inf
  %v1481 = vsel %vm1353, %v1350, -inf
  %v1482 = vmax.f32 %v1480, %v1481
  %v1483 = vrot.slane %v1482, 4
  %v1484 = vmax.f32 %v1482, %v1483
  %v1485 = vrot.slane %v1484, 2
  %v1486 = vmax.f32 %v1484, %v1485
  %v1487 = vrot.slane %v1486, 1
  %v1488 = vmax.f32 %v1486, %v1487
  %v1489 = vsel %vm1353, %v1351, -inf
  %v1490 = vsel %vm1353, %v1352, -inf
  %v1491 = vmax.f32 %v1489, %v1490
  %v1492 = vrot.slane %v1491, 4
  %v1493 = vmax.f32 %v1491, %v1492
  %v1494 = vrot.slane %v1493, 2
  %v1495 = vmax.f32 %v1493, %v1494
  %v1496 = vrot.slane %v1495, 1
  %v1497 = vmax.f32 %v1495, %v1496
  %v1498 = vmax.f32 %v1362, -1e+30
  %v1499 = vmax.f32 %v1371, -1e+30
  %v1500 = vmax.f32 %v1380, -1e+30
  %v1501 = vmax.f32 %v1389, -1e+30
  %v1502 = vmax.f32 %v1398, -1e+30
  %v1503 = vmax.f32 %v1407, -1e+30
  %v1504 = vmax.f32 %v1416, -1e+30
  %v1505 = vmax.f32 %v1425, -1e+30
  %v1506 = vmax.f32 %v1434, -1e+30
  %v1507 = vmax.f32 %v1443, -1e+30
  %v1508 = vmax.f32 %v1452, -1e+30
  %v1509 = vmax.f32 %v1461, -1e+30
  %v1510 = vmax.f32 %v1470, -1e+30
  %v1511 = vmax.f32 %v1479, -1e+30
  %v1512 = vmax.f32 %v1488, -1e+30
  %v1513 = vmax.f32 %v1497, -1e+30
  %vm1530 = vcmask 1041409
  %v1531 = vsel %vm1530, %v1499, %v1498
  %vm1532 = vcmask 1042434
  %v1533 = vsel %vm1532, %v1500, %v1531
  %vm1534 = vcmask 1043459
  %v1535 = vsel %vm1534, %v1501, %v1533
  %vm1536 = vcmask 1044484
  %v1537 = vsel %vm1536, %v1502, %v1535
  %vm1538 = vcmask 1045509
  %v1539 = vsel %vm1538, %v1503, %v1537
  %vm1540 = vcmask 1046534
  %v1541 = vsel %vm1540, %v1504, %v1539
  %vm1542 = vcmask 1047559
  %v1543 = vsel %vm1542, %v1505, %v1541
  %v1544 = vsel %vm1530, %v1507, %v1506
  %v1545 = vsel %vm1532, %v1508, %v1544
  %v1546 = vsel %vm1534, %v1509, %v1545
  %v1547 = vsel %vm1536, %v1510, %v1546
  %v1548 = vsel %vm1538, %v1511, %v1547
  %v1549 = vsel %vm1540, %v1512, %v1548
  %v1550 = vsel %vm1542, %v1513, %v1549
  %1553 = vmatprep.subr.mxu0 0.0
  %1554 = vmatpush1.msra.mxu0 0.0
  %1555 = vmatprep.subr.mxu0 0.0
  %1556 = vmatpush1.msra.mxu0 0.0
  %1557 = vmatprep.subr.mxu0 0.0
  %1558 = vmatpush1.msra.mxu0 0.0
  %1559 = vmatprep.subr.mxu0 0.0
  %1560 = vmatpush1.msra.mxu0 0.0
  %1561 = vmatprep.subr.mxu0 0.0
  %1562 = vmatpush1.msra.mxu0 0.0
  %1563 = vmatprep.subr.mxu0 0.0
  %1564 = vmatpush1.msra.mxu0 0.0
  %1565 = vmatprep.subr.mxu0 0.0
  %1566 = vmatpush1.msra.mxu0 0.0
  %1567 = vmatprep.subr.mxu0 0.0
  %1568 = vmatpush1.msra.mxu0 0.0
  %1569 = vmatprep.subr.mxu0 0.0
  %1570 = vmatpush1.msra.mxu0 %v1061
  %1571 = vmatprep.subr.mxu0 0.0
  %1572 = vmatpush1.msra.mxu0 %v1060
  %1573 = vmatprep.subr.mxu0 0.0
  %1574 = vmatpush1.msra.mxu0 %v1059
  %1575 = vmatprep.subr.mxu0 0.0
  %1576 = vmatpush1.msra.mxu0 %v1058
  %1577 = vmatprep.subr.mxu0 0.0
  %1578 = vmatpush1.msra.mxu0 %v1057
  %1579 = vmatprep.subr.mxu0 0.0
  %1580 = vmatpush1.msra.mxu0 %v1056
  %1581 = vmatprep.subr.mxu0 0.0
  %1582 = vmatpush1.msra.mxu0 %v1055
  %1583 = vmatprep.subr.mxu0 0.0
  %1584 = vmatpush1.msra.mxu0 %v1054
  %1585 = vmatprep.subr.mxu0 0.0
  %1586 = vmatpush2.msra.mxu0 0.0
  %1587 = vmatprep.subr.mxu0 0.0
  %1588 = vmatpush2.msra.mxu0 0.0
  %1589 = vmatprep.subr.mxu0 0.0
  %1590 = vmatpush2.msra.mxu0 0.0
  %1591 = vmatprep.subr.mxu0 0.0
  %1592 = vmatpush2.msra.mxu0 0.0
  %1593 = vmatprep.subr.mxu0 0.0
  %1594 = vmatpush2.msra.mxu0 0.0
  %1595 = vmatprep.subr.mxu0 0.0
  %1596 = vmatpush2.msra.mxu0 0.0
  %1597 = vmatprep.subr.mxu0 0.0
  %1598 = vmatpush2.msra.mxu0 0.0
  %1599 = vmatprep.subr.mxu0 0.0
  %1600 = vmatpush2.msra.mxu0 0.0
  %1601 = vmatprep.subr.mxu0 0.0
  %1602 = vmatpush2.msra.mxu0 0.0
  %1603 = vmatprep.subr.mxu0 0.0
  %1604 = vmatpush2.msra.mxu0 0.0
  %1605 = vmatprep.subr.mxu0 0.0
  %1606 = vmatpush2.msra.mxu0 0.0
  %1607 = vmatprep.subr.mxu0 0.0
  %1608 = vmatpush2.msra.mxu0 0.0
  %1609 = vmatprep.subr.mxu0 0.0
  %1610 = vmatpush2.msra.mxu0 0.0
  %1611 = vmatprep.subr.mxu0 0.0
  %1612 = vmatpush2.msra.mxu0 0.0
  %1613 = vmatprep.subr.mxu0 0.0
  %1614 = vmatpush2.msra.mxu0 0.0
  %1615 = vmatprep.subr.mxu0 0.0
  %1616 = vmatpush2.msra.mxu0 0.0
  %1617 = vmatprep.mubr.f32.mxu0 0.0
  %1618 = vmatmul.mubr.f32.gmra.mxu0 %v964
  %v1619 = vpop.f32.mrf.mxu0
  %v1620 = vadd.f32 %v1543, %v1619
  %v1621 = vpop.f32.mrf.mxu0
  %1622 = vmatprep.mubr.f32.mxu0 0.0
  %1623 = vmatmul.mubr.f32.gmra.mxu0 %v967
  %v1624 = vpop.f32.mrf.mxu0
  %v1625 = vadd.f32 %v1550, %v1624
  %v1626 = vpop.f32.mrf.mxu0
  %1627 = vdwg.mxu0
  %v1628 = vld [vmem:[%s9] sm:$0x1]
  %v1630 = vlaneseq
  %v1631 = vshrl.u32 %v1630, 7
  %v1632 = vsub.s32 0, %v1631
  %v1633 = vrot.slane %v1628, %v1632
  %v1635 = vadd.f32 %v1620, %v1633
  %v1636 = vadd.f32 %v1625, %v1633
  %v1637 = vsel %vm204, 1, 0
  %v1638 = vsel %vm205, 1, 0
  %vm1639 = vcmp.eq.s32.totalorder %v1637, 1
  %vm1640 = vcmp.eq.s32.totalorder %v1638, 1
  %v1641 = vsel %vm1639, %v1635, 0.0
  %v1642 = vsel %vm1640, %v1636, 0.0
  %v1643 = vld [vmem:[%s59] sm:$0xff]
  %v1644 = vld [vmem:[%s59 + $0x8] sm:$0xff]
  %v1645 = vld [vmem:[%s59 + $0x10] sm:$0xff]
  %v1646 = vld [vmem:[%s59 + $0x18] sm:$0xff]
  %v1647 = vld [vmem:[%s59 + $0x20] sm:$0xff]
  %v1648 = vld [vmem:[%s59 + $0x28] sm:$0xff]
  %v1650 = vsel %vm1353, %v1641, 0
  %v1653 = vsel %vm1353, %v1642, 0
  %1655 = vmatprep.subr.mxu0 0.0
  %1656 = vmatpush1.msra.mxu0 0.0
  %1657 = vmatprep.subr.mxu0 0.0
  %1658 = vmatpush1.msra.mxu0 0.0
  %1659 = vmatprep.subr.mxu0 0.0
  %1660 = vmatpush1.msra.mxu0 0.0
  %1661 = vmatprep.subr.mxu0 0.0
  %1662 = vmatpush1.msra.mxu0 0.0
  %1663 = vmatprep.subr.mxu0 0.0
  %1664 = vmatpush1.msra.mxu0 0.0
  %1665 = vmatprep.subr.mxu0 0.0
  %1666 = vmatpush1.msra.mxu0 0.0
  %1667 = vmatprep.subr.mxu0 0.0
  %1668 = vmatpush1.msra.mxu0 0.0
  %1669 = vmatprep.subr.mxu0 0.0
  %1670 = vmatpush1.msra.mxu0 0.0
  %1671 = vmatprep.subr.mxu0 0.0
  %1672 = vmatpush1.msra.mxu0 0.0
  %1673 = vmatprep.subr.mxu0 0.0
  %1674 = vmatpush1.msra.mxu0 0.0
  %1675 = vmatprep.subr.mxu0 0.0
  %1676 = vmatpush1.msra.mxu0 %v1648
  %1677 = vmatprep.subr.mxu0 0.0
  %1678 = vmatpush1.msra.mxu0 %v1647
  %1679 = vmatprep.subr.mxu0 0.0
  %1680 = vmatpush1.msra.mxu0 %v1646
  %1681 = vmatprep.subr.mxu0 0.0
  %1682 = vmatpush1.msra.mxu0 %v1645
  %1683 = vmatprep.subr.mxu0 0.0
  %1684 = vmatpush1.msra.mxu0 %v1644
  %1685 = vmatprep.subr.mxu0 0.0
  %1686 = vmatpush1.msra.mxu0 %v1643
  %1687 = vmatprep.subr.mxu0 0.0
  %1688 = vmatpush2.msra.mxu0 0.0
  %1689 = vmatprep.subr.mxu0 0.0
  %1690 = vmatpush2.msra.mxu0 0.0
  %1691 = vmatprep.subr.mxu0 0.0
  %1692 = vmatpush2.msra.mxu0 0.0
  %1693 = vmatprep.subr.mxu0 0.0
  %1694 = vmatpush2.msra.mxu0 0.0
  %1695 = vmatprep.subr.mxu0 0.0
  %1696 = vmatpush2.msra.mxu0 0.0
  %1697 = vmatprep.subr.mxu0 0.0
  %1698 = vmatpush2.msra.mxu0 0.0
  %1699 = vmatprep.subr.mxu0 0.0
  %1700 = vmatpush2.msra.mxu0 0.0
  %1701 = vmatprep.subr.mxu0 0.0
  %1702 = vmatpush2.msra.mxu0 0.0
  %1703 = vmatprep.subr.mxu0 0.0
  %1704 = vmatpush2.msra.mxu0 0.0
  %1705 = vmatprep.subr.mxu0 0.0
  %1706 = vmatpush2.msra.mxu0 0.0
  %1707 = vmatprep.subr.mxu0 0.0
  %1708 = vmatpush2.msra.mxu0 0.0
  %1709 = vmatprep.subr.mxu0 0.0
  %1710 = vmatpush2.msra.mxu0 0.0
  %1711 = vmatprep.subr.mxu0 0.0
  %1712 = vmatpush2.msra.mxu0 0.0
  %1713 = vmatprep.subr.mxu0 0.0
  %1714 = vmatpush2.msra.mxu0 0.0
  %1715 = vmatprep.subr.mxu0 0.0
  %1716 = vmatpush2.msra.mxu0 0.0
  %1717 = vmatprep.subr.mxu0 0.0
  %1718 = vmatpush2.msra.mxu0 0.0
  %1719 = vmatprep.mubr.f32.mxu0 0.0
  %1720 = vmatmul.mubr.f32.gmra.mxu0 %v1650
  %v1721 = vpop.f32.mrf.mxu0
  %v1722 = vadd.f32 0.0, %v1721
  %v1723 = vpop.f32.mrf.mxu0
  %1724 = vmatprep.mubr.f32.mxu0 0.0
  %1725 = vmatmul.mubr.f32.gmra.mxu0 %v1653
  %v1726 = vpop.f32.mrf.mxu0
  %v1727 = vadd.f32 0.0, %v1726
  %v1728 = vpop.f32.mrf.mxu0
  %1729 = vdwg.mxu0
  %v1730 = vadd.f32 %v1052, %v1722
  %v1731 = vadd.f32 %v1053, %v1727
  %v1732 = vld [vmem:[%s51] sm:$0x1]
  %v1734 = vlaneseq
  %v1735 = vshrl.u32 %v1734, 7
  %v1736 = vsub.s32 0, %v1735
  %v1737 = vrot.slane %v1732, %v1736
  %v1739 = vadd.f32 %v1730, %v1737
  %v1740 = vadd.f32 %v1731, %v1737
  %v1741 = vld [vmem:[%s17] sm:$0xff]
  %v1742 = vld [vmem:[%s17 + $0x8] sm:$0xff]
  %v1743 = vld [vmem:[%s17 + $0x10] sm:$0xff]
  %v1744 = vld [vmem:[%s17 + $0x18] sm:$0xff]
  %v1745 = vld [vmem:[%s17 + $0x20] sm:$0xff]
  %v1746 = vld [vmem:[%s17 + $0x28] sm:$0xff]
  %v1747 = vld [vmem:[%s23] sm:$0xff]
  %v1748 = vld [vmem:[%s23 + $0x8] sm:$0xff]
  %v1749 = vld [vmem:[%s23 + $0x10] sm:$0xff]
  %v1750 = vld [vmem:[%s23 + $0x18] sm:$0xff]
  %v1751 = vld [vmem:[%s23 + $0x20] sm:$0xff]
  %v1752 = vld [vmem:[%s23 + $0x28] sm:$0xff]
  %1753 = vmatprep.subr.mxu0 0.0
  %1754 = vmatpush1.msra.mxu0 0.0
  %1755 = vmatprep.subr.mxu0 0.0
  %1756 = vmatpush1.msra.mxu0 0.0
  %1757 = vmatprep.subr.mxu0 0.0
  %1758 = vmatpush1.msra.mxu0 0.0
  %1759 = vmatprep.subr.mxu0 0.0
  %1760 = vmatpush1.msra.mxu0 0.0
  %1761 = vmatprep.subr.mxu0 0.0
  %1762 = vmatpush1.msra.mxu0 0.0
  %1763 = vmatprep.subr.mxu0 0.0
  %1764 = vmatpush1.msra.mxu0 0.0
  %1765 = vmatprep.subr.mxu0 0.0
  %1766 = vmatpush1.msra.mxu0 0.0
  %1767 = vmatprep.subr.mxu0 0.0
  %1768 = vmatpush1.msra.mxu0 0.0
  %1769 = vmatprep.subr.mxu0 0.0
  %1770 = vmatpush1.msra.mxu0 0.0
  %1771 = vmatprep.subr.mxu0 0.0
  %1772 = vmatpush1.msra.mxu0 0.0
  %1773 = vmatprep.subr.mxu0 0.0
  %1774 = vmatpush1.msra.mxu0 %v1752
  %1775 = vmatprep.subr.mxu0 0.0
  %1776 = vmatpush1.msra.mxu0 %v1751
  %1777 = vmatprep.subr.mxu0 0.0
  %1778 = vmatpush1.msra.mxu0 %v1750
  %1779 = vmatprep.subr.mxu0 0.0
  %1780 = vmatpush1.msra.mxu0 %v1749
  %1781 = vmatprep.subr.mxu0 0.0
  %1782 = vmatpush1.msra.mxu0 %v1748
  %1783 = vmatprep.subr.mxu0 0.0
  %1784 = vmatpush1.msra.mxu0 %v1747
  %1785 = vmatprep.subr.mxu0 0.0
  %1786 = vmatpush2.msra.mxu0 0.0
  %1787 = vmatprep.subr.mxu0 0.0
  %1788 = vmatpush2.msra.mxu0 0.0
  %1789 = vmatprep.subr.mxu0 0.0
  %1790 = vmatpush2.msra.mxu0 0.0
  %1791 = vmatprep.subr.mxu0 0.0
  %1792 = vmatpush2.msra.mxu0 0.0
  %1793 = vmatprep.subr.mxu0 0.0
  %1794 = vmatpush2.msra.mxu0 0.0
  %1795 = vmatprep.subr.mxu0 0.0
  %1796 = vmatpush2.msra.mxu0 0.0
  %1797 = vmatprep.subr.mxu0 0.0
  %1798 = vmatpush2.msra.mxu0 0.0
  %1799 = vmatprep.subr.mxu0 0.0
  %1800 = vmatpush2.msra.mxu0 0.0
  %1801 = vmatprep.subr.mxu0 0.0
  %1802 = vmatpush2.msra.mxu0 0.0
  %1803 = vmatprep.subr.mxu0 0.0
  %1804 = vmatpush2.msra.mxu0 0.0
  %1805 = vmatprep.subr.mxu0 0.0
  %1806 = vmatpush2.msra.mxu0 0.0
  %1807 = vmatprep.subr.mxu0 0.0
  %1808 = vmatpush2.msra.mxu0 0.0
  %1809 = vmatprep.subr.mxu0 0.0
  %1810 = vmatpush2.msra.mxu0 0.0
  %1811 = vmatprep.subr.mxu0 0.0
  %1812 = vmatpush2.msra.mxu0 0.0
  %1813 = vmatprep.subr.mxu0 0.0
  %1814 = vmatpush2.msra.mxu0 0.0
  %1815 = vmatprep.subr.mxu0 0.0
  %1816 = vmatpush2.msra.mxu0 0.0
  %1817 = vmatprep.mubr.f32.mxu0 0.0
  %1818 = vmatmul.mubr.f32.gmra.mxu0 %v1650
  %v1819 = vpop.f32.mrf.mxu0
  %v1820 = vadd.f32 0.0, %v1819
  %v1821 = vpop.f32.mrf.mxu0
  %1822 = vmatprep.mubr.f32.mxu0 0.0
  %1823 = vmatmul.mubr.f32.gmra.mxu0 %v1653
  %v1824 = vpop.f32.mrf.mxu0
  %v1825 = vadd.f32 0.0, %v1824
  %v1826 = vpop.f32.mrf.mxu0
  %1827 = vdwg.mxu0
  %v1828 = vadd.f32 %v1820, %v1151
  %v1829 = vadd.f32 %v1825, %v1155
  %v1830 = vadd.f32 %v1820, %v1162
  %v1831 = vadd.f32 %v1825, %v1166
  %v1832 = vadd.f32 %v1820, %v1173
  %v1833 = vadd.f32 %v1825, %v1177
  %v1834 = vadd.f32 %v1820, %v1184
  %v1835 = vadd.f32 %v1825, %v1188
  %v1836 = vadd.f32 %v1820, %v1195
  %v1837 = vadd.f32 %v1825, %v1199
  %v1838 = vadd.f32 %v1820, %v1206
  %v1839 = vadd.f32 %v1825, %v1210
  %v1840 = vadd.f32 %v1820, %v1217
  %v1841 = vadd.f32 %v1825, %v1221
  %v1842 = vadd.f32 %v1820, %v1228
  %v1843 = vadd.f32 %v1825, %v1232
  %v1844 = vadd.f32 %v1820, %v1239
  %v1845 = vadd.f32 %v1825, %v1243
  %v1846 = vadd.f32 %v1820, %v1250
  %v1847 = vadd.f32 %v1825, %v1254
  %v1848 = vadd.f32 %v1820, %v1261
  %v1849 = vadd.f32 %v1825, %v1265
  %v1850 = vadd.f32 %v1820, %v1272
  %v1851 = vadd.f32 %v1825, %v1276
  %v1852 = vadd.f32 %v1820, %v1283
  %v1853 = vadd.f32 %v1825, %v1287
  %v1854 = vadd.f32 %v1820, %v1294
  %v1855 = vadd.f32 %v1825, %v1298
  %v1856 = vadd.f32 %v1820, %v1305
  %v1857 = vadd.f32 %v1825, %v1309
  %v1858 = vadd.f32 %v1820, %v1316
  %v1859 = vadd.f32 %v1825, %v1320
  %vm1860 = vcmask 261120
  %v1861 = vsel %vm1860, %v1828, -inf
  %v1862 = vsel %vm1860, %v1829, -inf
  %v1863 = vmax.f32 %v1861, %v1862
  %v1864 = vrot.slane %v1863, 4
  %v1865 = vmax.f32 %v1863, %v1864
  %v1866 = vrot.slane %v1865, 2
  %v1867 = vmax.f32 %v1865, %v1866
  %v1868 = vrot.slane %v1867, 1
  %v1869 = vmax.f32 %v1867, %v1868
  %v1870 = vsel %vm1860, %v1830, -inf
  %v1871 = vsel %vm1860, %v1831, -inf
  %v1872 = vmax.f32 %v1870, %v1871
  %v1873 = vrot.slane %v1872, 4
  %v1874 = vmax.f32 %v1872, %v1873
  %v1875 = vrot.slane %v1874, 2
  %v1876 = vmax.f32 %v1874, %v1875
  %v1877 = vrot.slane %v1876, 1
  %v1878 = vmax.f32 %v1876, %v1877
  %v1879 = vsel %vm1860, %v1832, -inf
  %v1880 = vsel %vm1860, %v1833, -inf
  %v1881 = vmax.f32 %v1879, %v1880
  %v1882 = vrot.slane %v1881, 4
  %v1883 = vmax.f32 %v1881, %v1882
  %v1884 = vrot.slane %v1883, 2
  %v1885 = vmax.f32 %v1883, %v1884
  %v1886 = vrot.slane %v1885, 1
  %v1887 = vmax.f32 %v1885, %v1886
  %v1888 = vsel %vm1860, %v1834, -inf
  %v1889 = vsel %vm1860, %v1835, -inf
  %v1890 = vmax.f32 %v1888, %v1889
  %v1891 = vrot.slane %v1890, 4
  %v1892 = vmax.f32 %v1890, %v1891
  %v1893 = vrot.slane %v1892, 2
  %v1894 = vmax.f32 %v1892, %v1893
  %v1895 = vrot.slane %v1894, 1
  %v1896 = vmax.f32 %v1894, %v1895
  %v1897 = vsel %vm1860, %v1836, -inf
  %v1898 = vsel %vm1860, %v1837, -inf
  %v1899 = vmax.f32 %v1897, %v1898
  %v1900 = vrot.slane %v1899, 4
  %v1901 = vmax.f32 %v1899, %v1900
  %v1902 = vrot.slane %v1901, 2
  %v1903 = vmax.f32 %v1901, %v1902
  %v1904 = vrot.slane %v1903, 1
  %v1905 = vmax.f32 %v1903, %v1904
  %v1906 = vsel %vm1860, %v1838, -inf
  %v1907 = vsel %vm1860, %v1839, -inf
  %v1908 = vmax.f32 %v1906, %v1907
  %v1909 = vrot.slane %v1908, 4
  %v1910 = vmax.f32 %v1908, %v1909
  %v1911 = vrot.slane %v1910, 2
  %v1912 = vmax.f32 %v1910, %v1911
  %v1913 = vrot.slane %v1912, 1
  %v1914 = vmax.f32 %v1912, %v1913
  %v1915 = vsel %vm1860, %v1840, -inf
  %v1916 = vsel %vm1860, %v1841, -inf
  %v1917 = vmax.f32 %v1915, %v1916
  %v1918 = vrot.slane %v1917, 4
  %v1919 = vmax.f32 %v1917, %v1918
  %v1920 = vrot.slane %v1919, 2
  %v1921 = vmax.f32 %v1919, %v1920
  %v1922 = vrot.slane %v1921, 1
  %v1923 = vmax.f32 %v1921, %v1922
  %v1924 = vsel %vm1860, %v1842, -inf
  %v1925 = vsel %vm1860, %v1843, -inf
  %v1926 = vmax.f32 %v1924, %v1925
  %v1927 = vrot.slane %v1926, 4
  %v1928 = vmax.f32 %v1926, %v1927
  %v1929 = vrot.slane %v1928, 2
  %v1930 = vmax.f32 %v1928, %v1929
  %v1931 = vrot.slane %v1930, 1
  %v1932 = vmax.f32 %v1930, %v1931
  %v1933 = vsel %vm1860, %v1844, -inf
  %v1934 = vsel %vm1860, %v1845, -inf
  %v1935 = vmax.f32 %v1933, %v1934
  %v1936 = vrot.slane %v1935, 4
  %v1937 = vmax.f32 %v1935, %v1936
  %v1938 = vrot.slane %v1937, 2
  %v1939 = vmax.f32 %v1937, %v1938
  %v1940 = vrot.slane %v1939, 1
  %v1941 = vmax.f32 %v1939, %v1940
  %v1942 = vsel %vm1860, %v1846, -inf
  %v1943 = vsel %vm1860, %v1847, -inf
  %v1944 = vmax.f32 %v1942, %v1943
  %v1945 = vrot.slane %v1944, 4
  %v1946 = vmax.f32 %v1944, %v1945
  %v1947 = vrot.slane %v1946, 2
  %v1948 = vmax.f32 %v1946, %v1947
  %v1949 = vrot.slane %v1948, 1
  %v1950 = vmax.f32 %v1948, %v1949
  %v1951 = vsel %vm1860, %v1848, -inf
  %v1952 = vsel %vm1860, %v1849, -inf
  %v1953 = vmax.f32 %v1951, %v1952
  %v1954 = vrot.slane %v1953, 4
  %v1955 = vmax.f32 %v1953, %v1954
  %v1956 = vrot.slane %v1955, 2
  %v1957 = vmax.f32 %v1955, %v1956
  %v1958 = vrot.slane %v1957, 1
  %v1959 = vmax.f32 %v1957, %v1958
  %v1960 = vsel %vm1860, %v1850, -inf
  %v1961 = vsel %vm1860, %v1851, -inf
  %v1962 = vmax.f32 %v1960, %v1961
  %v1963 = vrot.slane %v1962, 4
  %v1964 = vmax.f32 %v1962, %v1963
  %v1965 = vrot.slane %v1964, 2
  %v1966 = vmax.f32 %v1964, %v1965
  %v1967 = vrot.slane %v1966, 1
  %v1968 = vmax.f32 %v1966, %v1967
  %v1969 = vsel %vm1860, %v1852, -inf
  %v1970 = vsel %vm1860, %v1853, -inf
  %v1971 = vmax.f32 %v1969, %v1970
  %v1972 = vrot.slane %v1971, 4
  %v1973 = vmax.f32 %v1971, %v1972
  %v1974 = vrot.slane %v1973, 2
  %v1975 = vmax.f32 %v1973, %v1974
  %v1976 = vrot.slane %v1975, 1
  %v1977 = vmax.f32 %v1975, %v1976
  %v1978 = vsel %vm1860, %v1854, -inf
  %v1979 = vsel %vm1860, %v1855, -inf
  %v1980 = vmax.f32 %v1978, %v1979
  %v1981 = vrot.slane %v1980, 4
  %v1982 = vmax.f32 %v1980, %v1981
  %v1983 = vrot.slane %v1982, 2
  %v1984 = vmax.f32 %v1982, %v1983
  %v1985 = vrot.slane %v1984, 1
  %v1986 = vmax.f32 %v1984, %v1985
  %v1987 = vsel %vm1860, %v1856, -inf
  %v1988 = vsel %vm1860, %v1857, -inf
  %v1989 = vmax.f32 %v1987, %v1988
  %v1990 = vrot.slane %v1989, 4
  %v1991 = vmax.f32 %v1989, %v1990
  %v1992 = vrot.slane %v1991, 2
  %v1993 = vmax.f32 %v1991, %v1992
  %v1994 = vrot.slane %v1993, 1
  %v1995 = vmax.f32 %v1993, %v1994
  %v1996 = vsel %vm1860, %v1858, -inf
  %v1997 = vsel %vm1860, %v1859, -inf
  %v1998 = vmax.f32 %v1996, %v1997
  %v1999 = vrot.slane %v1998, 4
  %v2000 = vmax.f32 %v1998, %v1999
  %v2001 = vrot.slane %v2000, 2
  %v2002 = vmax.f32 %v2000, %v2001
  %v2003 = vrot.slane %v2002, 1
  %v2004 = vmax.f32 %v2002, %v2003
  %v2005 = vmax.f32 %v1869, -1e+30
  %v2006 = vmax.f32 %v1878, -1e+30
  %v2007 = vmax.f32 %v1887, -1e+30
  %v2008 = vmax.f32 %v1896, -1e+30
  %v2009 = vmax.f32 %v1905, -1e+30
  %v2010 = vmax.f32 %v1914, -1e+30
  %v2011 = vmax.f32 %v1923, -1e+30
  %v2012 = vmax.f32 %v1932, -1e+30
  %v2013 = vmax.f32 %v1941, -1e+30
  %v2014 = vmax.f32 %v1950, -1e+30
  %v2015 = vmax.f32 %v1959, -1e+30
  %v2016 = vmax.f32 %v1968, -1e+30
  %v2017 = vmax.f32 %v1977, -1e+30
  %v2018 = vmax.f32 %v1986, -1e+30
  %v2019 = vmax.f32 %v1995, -1e+30
  %v2020 = vmax.f32 %v2004, -1e+30
  %v2037 = vsel %vm1530, %v2006, %v2005
  %v2038 = vsel %vm1532, %v2007, %v2037
  %v2039 = vsel %vm1534, %v2008, %v2038
  %v2040 = vsel %vm1536, %v2009, %v2039
  %v2041 = vsel %vm1538, %v2010, %v2040
  %v2042 = vsel %vm1540, %v2011, %v2041
  %v2043 = vsel %vm1542, %v2012, %v2042
  %v2044 = vsel %vm1530, %v2014, %v2013
  %v2045 = vsel %vm1532, %v2015, %v2044
  %v2046 = vsel %vm1534, %v2016, %v2045
  %v2047 = vsel %vm1536, %v2017, %v2046
  %v2048 = vsel %vm1538, %v2018, %v2047
  %v2049 = vsel %vm1540, %v2019, %v2048
  %v2050 = vsel %vm1542, %v2020, %v2049
  %2053 = vmatprep.subr.mxu0 0.0
  %2054 = vmatpush1.msra.mxu0 0.0
  %2055 = vmatprep.subr.mxu0 0.0
  %2056 = vmatpush1.msra.mxu0 0.0
  %2057 = vmatprep.subr.mxu0 0.0
  %2058 = vmatpush1.msra.mxu0 0.0
  %2059 = vmatprep.subr.mxu0 0.0
  %2060 = vmatpush1.msra.mxu0 0.0
  %2061 = vmatprep.subr.mxu0 0.0
  %2062 = vmatpush1.msra.mxu0 0.0
  %2063 = vmatprep.subr.mxu0 0.0
  %2064 = vmatpush1.msra.mxu0 0.0
  %2065 = vmatprep.subr.mxu0 0.0
  %2066 = vmatpush1.msra.mxu0 0.0
  %2067 = vmatprep.subr.mxu0 0.0
  %2068 = vmatpush1.msra.mxu0 0.0
  %2069 = vmatprep.subr.mxu0 0.0
  %2070 = vmatpush1.msra.mxu0 0.0
  %2071 = vmatprep.subr.mxu0 0.0
  %2072 = vmatpush1.msra.mxu0 0.0
  %2073 = vmatprep.subr.mxu0 0.0
  %2074 = vmatpush1.msra.mxu0 %v1746
  %2075 = vmatprep.subr.mxu0 0.0
  %2076 = vmatpush1.msra.mxu0 %v1745
  %2077 = vmatprep.subr.mxu0 0.0
  %2078 = vmatpush1.msra.mxu0 %v1744
  %2079 = vmatprep.subr.mxu0 0.0
  %2080 = vmatpush1.msra.mxu0 %v1743
  %2081 = vmatprep.subr.mxu0 0.0
  %2082 = vmatpush1.msra.mxu0 %v1742
  %2083 = vmatprep.subr.mxu0 0.0
  %2084 = vmatpush1.msra.mxu0 %v1741
  %2085 = vmatprep.subr.mxu0 0.0
  %2086 = vmatpush2.msra.mxu0 0.0
  %2087 = vmatprep.subr.mxu0 0.0
  %2088 = vmatpush2.msra.mxu0 0.0
  %2089 = vmatprep.subr.mxu0 0.0
  %2090 = vmatpush2.msra.mxu0 0.0
  %2091 = vmatprep.subr.mxu0 0.0
  %2092 = vmatpush2.msra.mxu0 0.0
  %2093 = vmatprep.subr.mxu0 0.0
  %2094 = vmatpush2.msra.mxu0 0.0
  %2095 = vmatprep.subr.mxu0 0.0
  %2096 = vmatpush2.msra.mxu0 0.0
  %2097 = vmatprep.subr.mxu0 0.0
  %2098 = vmatpush2.msra.mxu0 0.0
  %2099 = vmatprep.subr.mxu0 0.0
  %2100 = vmatpush2.msra.mxu0 0.0
  %2101 = vmatprep.subr.mxu0 0.0
  %2102 = vmatpush2.msra.mxu0 0.0
  %2103 = vmatprep.subr.mxu0 0.0
  %2104 = vmatpush2.msra.mxu0 0.0
  %2105 = vmatprep.subr.mxu0 0.0
  %2106 = vmatpush2.msra.mxu0 0.0
  %2107 = vmatprep.subr.mxu0 0.0
  %2108 = vmatpush2.msra.mxu0 0.0
  %2109 = vmatprep.subr.mxu0 0.0
  %2110 = vmatpush2.msra.mxu0 0.0
  %2111 = vmatprep.subr.mxu0 0.0
  %2112 = vmatpush2.msra.mxu0 0.0
  %2113 = vmatprep.subr.mxu0 0.0
  %2114 = vmatpush2.msra.mxu0 0.0
  %2115 = vmatprep.subr.mxu0 0.0
  %2116 = vmatpush2.msra.mxu0 0.0
  %2117 = vmatprep.mubr.f32.mxu0 0.0
  %2118 = vmatmul.mubr.f32.gmra.mxu0 %v1650
  %v2119 = vpop.f32.mrf.mxu0
  %v2120 = vadd.f32 %v2043, %v2119
  %v2121 = vpop.f32.mrf.mxu0
  %2122 = vmatprep.mubr.f32.mxu0 0.0
  %2123 = vmatmul.mubr.f32.gmra.mxu0 %v1653
  %v2124 = vpop.f32.mrf.mxu0
  %v2125 = vadd.f32 %v2050, %v2124
  %v2126 = vpop.f32.mrf.mxu0
  %2127 = vdwg.mxu0
  %v2128 = vld [vmem:[%s11] sm:$0x1]
  %v2130 = vlaneseq
  %v2131 = vshrl.u32 %v2130, 7
  %v2132 = vsub.s32 0, %v2131
  %v2133 = vrot.slane %v2128, %v2132
  %v2135 = vadd.f32 %v2120, %v2133
  %v2136 = vadd.f32 %v2125, %v2133
  %v2137 = vsel %vm1639, %v2135, 0.0
  %v2138 = vsel %vm1640, %v2136, 0.0
  %v2139 = vld [vmem:[%s61] sm:$0xff]
  %v2140 = vld [vmem:[%s61 + $0x8] sm:$0xff]
  %v2141 = vld [vmem:[%s61 + $0x10] sm:$0xff]
  %v2142 = vld [vmem:[%s61 + $0x18] sm:$0xff]
  %v2144 = vsel %vm1860, %v2137, 0
  %v2147 = vsel %vm1860, %v2138, 0
  %2149 = vmatprep.subr.mxu0 0.0
  %2150 = vmatpush1.msra.mxu0 0.0
  %2151 = vmatprep.subr.mxu0 0.0
  %2152 = vmatpush1.msra.mxu0 0.0
  %2153 = vmatprep.subr.mxu0 0.0
  %2154 = vmatpush1.msra.mxu0 0.0
  %2155 = vmatprep.subr.mxu0 0.0
  %2156 = vmatpush1.msra.mxu0 0.0
  %2157 = vmatprep.subr.mxu0 0.0
  %2158 = vmatpush1.msra.mxu0 0.0
  %2159 = vmatprep.subr.mxu0 0.0
  %2160 = vmatpush1.msra.mxu0 0.0
  %2161 = vmatprep.subr.mxu0 0.0
  %2162 = vmatpush1.msra.mxu0 0.0
  %2163 = vmatprep.subr.mxu0 0.0
  %2164 = vmatpush1.msra.mxu0 0.0
  %2165 = vmatprep.subr.mxu0 0.0
  %2166 = vmatpush1.msra.mxu0 0.0
  %2167 = vmatprep.subr.mxu0 0.0
  %2168 = vmatpush1.msra.mxu0 0.0
  %2169 = vmatprep.subr.mxu0 0.0
  %2170 = vmatpush1.msra.mxu0 0.0
  %2171 = vmatprep.subr.mxu0 0.0
  %2172 = vmatpush1.msra.mxu0 0.0
  %2173 = vmatprep.subr.mxu0 0.0
  %2174 = vmatpush1.msra.mxu0 %v2142
  %2175 = vmatprep.subr.mxu0 0.0
  %2176 = vmatpush1.msra.mxu0 %v2141
  %2177 = vmatprep.subr.mxu0 0.0
  %2178 = vmatpush1.msra.mxu0 %v2140
  %2179 = vmatprep.subr.mxu0 0.0
  %2180 = vmatpush1.msra.mxu0 %v2139
  %2181 = vmatprep.subr.mxu0 0.0
  %2182 = vmatpush2.msra.mxu0 0.0
  %2183 = vmatprep.subr.mxu0 0.0
  %2184 = vmatpush2.msra.mxu0 0.0
  %2185 = vmatprep.subr.mxu0 0.0
  %2186 = vmatpush2.msra.mxu0 0.0
  %2187 = vmatprep.subr.mxu0 0.0
  %2188 = vmatpush2.msra.mxu0 0.0
  %2189 = vmatprep.subr.mxu0 0.0
  %2190 = vmatpush2.msra.mxu0 0.0
  %2191 = vmatprep.subr.mxu0 0.0
  %2192 = vmatpush2.msra.mxu0 0.0
  %2193 = vmatprep.subr.mxu0 0.0
  %2194 = vmatpush2.msra.mxu0 0.0
  %2195 = vmatprep.subr.mxu0 0.0
  %2196 = vmatpush2.msra.mxu0 0.0
  %2197 = vmatprep.subr.mxu0 0.0
  %2198 = vmatpush2.msra.mxu0 0.0
  %2199 = vmatprep.subr.mxu0 0.0
  %2200 = vmatpush2.msra.mxu0 0.0
  %2201 = vmatprep.subr.mxu0 0.0
  %2202 = vmatpush2.msra.mxu0 0.0
  %2203 = vmatprep.subr.mxu0 0.0
  %2204 = vmatpush2.msra.mxu0 0.0
  %2205 = vmatprep.subr.mxu0 0.0
  %2206 = vmatpush2.msra.mxu0 0.0
  %2207 = vmatprep.subr.mxu0 0.0
  %2208 = vmatpush2.msra.mxu0 0.0
  %2209 = vmatprep.subr.mxu0 0.0
  %2210 = vmatpush2.msra.mxu0 0.0
  %2211 = vmatprep.subr.mxu0 0.0
  %2212 = vmatpush2.msra.mxu0 0.0
  %2213 = vmatprep.mubr.f32.mxu0 0.0
  %2214 = vmatmul.mubr.f32.gmra.mxu0 %v2144
  %v2215 = vpop.f32.mrf.mxu0
  %v2216 = vadd.f32 0.0, %v2215
  %v2217 = vpop.f32.mrf.mxu0
  %2218 = vmatprep.mubr.f32.mxu0 0.0
  %2219 = vmatmul.mubr.f32.gmra.mxu0 %v2147
  %v2220 = vpop.f32.mrf.mxu0
  %v2221 = vadd.f32 0.0, %v2220
  %v2222 = vpop.f32.mrf.mxu0
  %2223 = vdwg.mxu0
  %v2224 = vadd.f32 %v1739, %v2216
  %v2225 = vadd.f32 %v1740, %v2221
  %v2226 = vld [vmem:[%s53] sm:$0x1]
  %v2228 = vlaneseq
  %v2229 = vshrl.u32 %v2228, 7
  %v2230 = vsub.s32 0, %v2229
  %v2231 = vrot.slane %v2226, %v2230
  %v2233 = vadd.f32 %v2224, %v2231
  %v2234 = vadd.f32 %v2225, %v2231
  %v2235 = vld [vmem:[%s19] sm:$0xff]
  %v2236 = vld [vmem:[%s19 + $0x8] sm:$0xff]
  %v2237 = vld [vmem:[%s19 + $0x10] sm:$0xff]
  %v2238 = vld [vmem:[%s19 + $0x18] sm:$0xff]
  %v2239 = vld [vmem:[%s25] sm:$0xff]
  %v2240 = vld [vmem:[%s25 + $0x8] sm:$0xff]
  %v2241 = vld [vmem:[%s25 + $0x10] sm:$0xff]
  %v2242 = vld [vmem:[%s25 + $0x18] sm:$0xff]
  %2243 = vmatprep.subr.mxu0 0.0
  %2244 = vmatpush1.msra.mxu0 0.0
  %2245 = vmatprep.subr.mxu0 0.0
  %2246 = vmatpush1.msra.mxu0 0.0
  %2247 = vmatprep.subr.mxu0 0.0
  %2248 = vmatpush1.msra.mxu0 0.0
  %2249 = vmatprep.subr.mxu0 0.0
  %2250 = vmatpush1.msra.mxu0 0.0
  %2251 = vmatprep.subr.mxu0 0.0
  %2252 = vmatpush1.msra.mxu0 0.0
  %2253 = vmatprep.subr.mxu0 0.0
  %2254 = vmatpush1.msra.mxu0 0.0
  %2255 = vmatprep.subr.mxu0 0.0
  %2256 = vmatpush1.msra.mxu0 0.0
  %2257 = vmatprep.subr.mxu0 0.0
  %2258 = vmatpush1.msra.mxu0 0.0
  %2259 = vmatprep.subr.mxu0 0.0
  %2260 = vmatpush1.msra.mxu0 0.0
  %2261 = vmatprep.subr.mxu0 0.0
  %2262 = vmatpush1.msra.mxu0 0.0
  %2263 = vmatprep.subr.mxu0 0.0
  %2264 = vmatpush1.msra.mxu0 0.0
  %2265 = vmatprep.subr.mxu0 0.0
  %2266 = vmatpush1.msra.mxu0 0.0
  %2267 = vmatprep.subr.mxu0 0.0
  %2268 = vmatpush1.msra.mxu0 %v2242
  %2269 = vmatprep.subr.mxu0 0.0
  %2270 = vmatpush1.msra.mxu0 %v2241
  %2271 = vmatprep.subr.mxu0 0.0
  %2272 = vmatpush1.msra.mxu0 %v2240
  %2273 = vmatprep.subr.mxu0 0.0
  %2274 = vmatpush1.msra.mxu0 %v2239
  %2275 = vmatprep.subr.mxu0 0.0
  %2276 = vmatpush2.msra.mxu0 0.0
  %2277 = vmatprep.subr.mxu0 0.0
  %2278 = vmatpush2.msra.mxu0 0.0
  %2279 = vmatprep.subr.mxu0 0.0
  %2280 = vmatpush2.msra.mxu0 0.0
  %2281 = vmatprep.subr.mxu0 0.0
  %2282 = vmatpush2.msra.mxu0 0.0
  %2283 = vmatprep.subr.mxu0 0.0
  %2284 = vmatpush2.msra.mxu0 0.0
  %2285 = vmatprep.subr.mxu0 0.0
  %2286 = vmatpush2.msra.mxu0 0.0
  %2287 = vmatprep.subr.mxu0 0.0
  %2288 = vmatpush2.msra.mxu0 0.0
  %2289 = vmatprep.subr.mxu0 0.0
  %2290 = vmatpush2.msra.mxu0 0.0
  %2291 = vmatprep.subr.mxu0 0.0
  %2292 = vmatpush2.msra.mxu0 0.0
  %2293 = vmatprep.subr.mxu0 0.0
  %2294 = vmatpush2.msra.mxu0 0.0
  %2295 = vmatprep.subr.mxu0 0.0
  %2296 = vmatpush2.msra.mxu0 0.0
  %2297 = vmatprep.subr.mxu0 0.0
  %2298 = vmatpush2.msra.mxu0 0.0
  %2299 = vmatprep.subr.mxu0 0.0
  %2300 = vmatpush2.msra.mxu0 0.0
  %2301 = vmatprep.subr.mxu0 0.0
  %2302 = vmatpush2.msra.mxu0 0.0
  %2303 = vmatprep.subr.mxu0 0.0
  %2304 = vmatpush2.msra.mxu0 0.0
  %2305 = vmatprep.subr.mxu0 0.0
  %2306 = vmatpush2.msra.mxu0 0.0
  %2307 = vmatprep.mubr.f32.mxu0 0.0
  %2308 = vmatmul.mubr.f32.gmra.mxu0 %v2144
  %v2309 = vpop.f32.mrf.mxu0
  %v2310 = vadd.f32 0.0, %v2309
  %v2311 = vpop.f32.mrf.mxu0
  %2312 = vmatprep.mubr.f32.mxu0 0.0
  %2313 = vmatmul.mubr.f32.gmra.mxu0 %v2147
  %v2314 = vpop.f32.mrf.mxu0
  %v2315 = vadd.f32 0.0, %v2314
  %v2316 = vpop.f32.mrf.mxu0
  %2317 = vdwg.mxu0
  %v2318 = vadd.f32 %v2310, %v1151
  %v2319 = vadd.f32 %v2315, %v1155
  %v2320 = vadd.f32 %v2310, %v1162
  %v2321 = vadd.f32 %v2315, %v1166
  %v2322 = vadd.f32 %v2310, %v1173
  %v2323 = vadd.f32 %v2315, %v1177
  %v2324 = vadd.f32 %v2310, %v1184
  %v2325 = vadd.f32 %v2315, %v1188
  %v2326 = vadd.f32 %v2310, %v1195
  %v2327 = vadd.f32 %v2315, %v1199
  %v2328 = vadd.f32 %v2310, %v1206
  %v2329 = vadd.f32 %v2315, %v1210
  %v2330 = vadd.f32 %v2310, %v1217
  %v2331 = vadd.f32 %v2315, %v1221
  %v2332 = vadd.f32 %v2310, %v1228
  %v2333 = vadd.f32 %v2315, %v1232
  %v2334 = vadd.f32 %v2310, %v1239
  %v2335 = vadd.f32 %v2315, %v1243
  %v2336 = vadd.f32 %v2310, %v1250
  %v2337 = vadd.f32 %v2315, %v1254
  %v2338 = vadd.f32 %v2310, %v1261
  %v2339 = vadd.f32 %v2315, %v1265
  %v2340 = vadd.f32 %v2310, %v1272
  %v2341 = vadd.f32 %v2315, %v1276
  %v2342 = vadd.f32 %v2310, %v1283
  %v2343 = vadd.f32 %v2315, %v1287
  %v2344 = vadd.f32 %v2310, %v1294
  %v2345 = vadd.f32 %v2315, %v1298
  %v2346 = vadd.f32 %v2310, %v1305
  %v2347 = vadd.f32 %v2315, %v1309
  %v2348 = vadd.f32 %v2310, %v1316
  %v2349 = vadd.f32 %v2315, %v1320
  %v2350 = vsel %vm1860, %v2318, -inf
  %v2351 = vsel %vm1860, %v2319, -inf
  %v2352 = vmax.f32 %v2350, %v2351
  %v2353 = vrot.slane %v2352, 4
  %v2354 = vmax.f32 %v2352, %v2353
  %v2355 = vrot.slane %v2354, 2
  %v2356 = vmax.f32 %v2354, %v2355
  %v2357 = vrot.slane %v2356, 1
  %v2358 = vmax.f32 %v2356, %v2357
  %v2359 = vsel %vm1860, %v2320, -inf
  %v2360 = vsel %vm1860, %v2321, -inf
  %v2361 = vmax.f32 %v2359, %v2360
  %v2362 = vrot.slane %v2361, 4
  %v2363 = vmax.f32 %v2361, %v2362
  %v2364 = vrot.slane %v2363, 2
  %v2365 = vmax.f32 %v2363, %v2364
  %v2366 = vrot.slane %v2365, 1
  %v2367 = vmax.f32 %v2365, %v2366
  %v2368 = vsel %vm1860, %v2322, -inf
  %v2369 = vsel %vm1860, %v2323, -inf
  %v2370 = vmax.f32 %v2368, %v2369
  %v2371 = vrot.slane %v2370, 4
  %v2372 = vmax.f32 %v2370, %v2371
  %v2373 = vrot.slane %v2372, 2
  %v2374 = vmax.f32 %v2372, %v2373
  %v2375 = vrot.slane %v2374, 1
  %v2376 = vmax.f32 %v2374, %v2375
  %v2377 = vsel %vm1860, %v2324, -inf
  %v2378 = vsel %vm1860, %v2325, -inf
  %v2379 = vmax.f32 %v2377, %v2378
  %v2380 = vrot.slane %v2379, 4
  %v2381 = vmax.f32 %v2379, %v2380
  %v2382 = vrot.slane %v2381, 2
  %v2383 = vmax.f32 %v2381, %v2382
  %v2384 = vrot.slane %v2383, 1
  %v2385 = vmax.f32 %v2383, %v2384
  %v2386 = vsel %vm1860, %v2326, -inf
  %v2387 = vsel %vm1860, %v2327, -inf
  %v2388 = vmax.f32 %v2386, %v2387
  %v2389 = vrot.slane %v2388, 4
  %v2390 = vmax.f32 %v2388, %v2389
  %v2391 = vrot.slane %v2390, 2
  %v2392 = vmax.f32 %v2390, %v2391
  %v2393 = vrot.slane %v2392, 1
  %v2394 = vmax.f32 %v2392, %v2393
  %v2395 = vsel %vm1860, %v2328, -inf
  %v2396 = vsel %vm1860, %v2329, -inf
  %v2397 = vmax.f32 %v2395, %v2396
  %v2398 = vrot.slane %v2397, 4
  %v2399 = vmax.f32 %v2397, %v2398
  %v2400 = vrot.slane %v2399, 2
  %v2401 = vmax.f32 %v2399, %v2400
  %v2402 = vrot.slane %v2401, 1
  %v2403 = vmax.f32 %v2401, %v2402
  %v2404 = vsel %vm1860, %v2330, -inf
  %v2405 = vsel %vm1860, %v2331, -inf
  %v2406 = vmax.f32 %v2404, %v2405
  %v2407 = vrot.slane %v2406, 4
  %v2408 = vmax.f32 %v2406, %v2407
  %v2409 = vrot.slane %v2408, 2
  %v2410 = vmax.f32 %v2408, %v2409
  %v2411 = vrot.slane %v2410, 1
  %v2412 = vmax.f32 %v2410, %v2411
  %v2413 = vsel %vm1860, %v2332, -inf
  %v2414 = vsel %vm1860, %v2333, -inf
  %v2415 = vmax.f32 %v2413, %v2414
  %v2416 = vrot.slane %v2415, 4
  %v2417 = vmax.f32 %v2415, %v2416
  %v2418 = vrot.slane %v2417, 2
  %v2419 = vmax.f32 %v2417, %v2418
  %v2420 = vrot.slane %v2419, 1
  %v2421 = vmax.f32 %v2419, %v2420
  %v2422 = vsel %vm1860, %v2334, -inf
  %v2423 = vsel %vm1860, %v2335, -inf
  %v2424 = vmax.f32 %v2422, %v2423
  %v2425 = vrot.slane %v2424, 4
  %v2426 = vmax.f32 %v2424, %v2425
  %v2427 = vrot.slane %v2426, 2
  %v2428 = vmax.f32 %v2426, %v2427
  %v2429 = vrot.slane %v2428, 1
  %v2430 = vmax.f32 %v2428, %v2429
  %v2431 = vsel %vm1860, %v2336, -inf
  %v2432 = vsel %vm1860, %v2337, -inf
  %v2433 = vmax.f32 %v2431, %v2432
  %v2434 = vrot.slane %v2433, 4
  %v2435 = vmax.f32 %v2433, %v2434
  %v2436 = vrot.slane %v2435, 2
  %v2437 = vmax.f32 %v2435, %v2436
  %v2438 = vrot.slane %v2437, 1
  %v2439 = vmax.f32 %v2437, %v2438
  %v2440 = vsel %vm1860, %v2338, -inf
  %v2441 = vsel %vm1860, %v2339, -inf
  %v2442 = vmax.f32 %v2440, %v2441
  %v2443 = vrot.slane %v2442, 4
  %v2444 = vmax.f32 %v2442, %v2443
  %v2445 = vrot.slane %v2444, 2
  %v2446 = vmax.f32 %v2444, %v2445
  %v2447 = vrot.slane %v2446, 1
  %v2448 = vmax.f32 %v2446, %v2447
  %v2449 = vsel %vm1860, %v2340, -inf
  %v2450 = vsel %vm1860, %v2341, -inf
  %v2451 = vmax.f32 %v2449, %v2450
  %v2452 = vrot.slane %v2451, 4
  %v2453 = vmax.f32 %v2451, %v2452
  %v2454 = vrot.slane %v2453, 2
  %v2455 = vmax.f32 %v2453, %v2454
  %v2456 = vrot.slane %v2455, 1
  %v2457 = vmax.f32 %v2455, %v2456
  %v2458 = vsel %vm1860, %v2342, -inf
  %v2459 = vsel %vm1860, %v2343, -inf
  %v2460 = vmax.f32 %v2458, %v2459
  %v2461 = vrot.slane %v2460, 4
  %v2462 = vmax.f32 %v2460, %v2461
  %v2463 = vrot.slane %v2462, 2
  %v2464 = vmax.f32 %v2462, %v2463
  %v2465 = vrot.slane %v2464, 1
  %v2466 = vmax.f32 %v2464, %v2465
  %v2467 = vsel %vm1860, %v2344, -inf
  %v2468 = vsel %vm1860, %v2345, -inf
  %v2469 = vmax.f32 %v2467, %v2468
  %v2470 = vrot.slane %v2469, 4
  %v2471 = vmax.f32 %v2469, %v2470
  %v2472 = vrot.slane %v2471, 2
  %v2473 = vmax.f32 %v2471, %v2472
  %v2474 = vrot.slane %v2473, 1
  %v2475 = vmax.f32 %v2473, %v2474
  %v2476 = vsel %vm1860, %v2346, -inf
  %v2477 = vsel %vm1860, %v2347, -inf
  %v2478 = vmax.f32 %v2476, %v2477
  %v2479 = vrot.slane %v2478, 4
  %v2480 = vmax.f32 %v2478, %v2479
  %v2481 = vrot.slane %v2480, 2
  %v2482 = vmax.f32 %v2480, %v2481
  %v2483 = vrot.slane %v2482, 1
  %v2484 = vmax.f32 %v2482, %v2483
  %v2485 = vsel %vm1860, %v2348, -inf
  %v2486 = vsel %vm1860, %v2349, -inf
  %v2487 = vmax.f32 %v2485, %v2486
  %v2488 = vrot.slane %v2487, 4
  %v2489 = vmax.f32 %v2487, %v2488
  %v2490 = vrot.slane %v2489, 2
  %v2491 = vmax.f32 %v2489, %v2490
  %v2492 = vrot.slane %v2491, 1
  %v2493 = vmax.f32 %v2491, %v2492
  %v2494 = vmax.f32 %v2358, -1e+30
  %v2495 = vmax.f32 %v2367, -1e+30
  %v2496 = vmax.f32 %v2376, -1e+30
  %v2497 = vmax.f32 %v2385, -1e+30
  %v2498 = vmax.f32 %v2394, -1e+30
  %v2499 = vmax.f32 %v2403, -1e+30
  %v2500 = vmax.f32 %v2412, -1e+30
  %v2501 = vmax.f32 %v2421, -1e+30
  %v2502 = vmax.f32 %v2430, -1e+30
  %v2503 = vmax.f32 %v2439, -1e+30
  %v2504 = vmax.f32 %v2448, -1e+30
  %v2505 = vmax.f32 %v2457, -1e+30
  %v2506 = vmax.f32 %v2466, -1e+30
  %v2507 = vmax.f32 %v2475, -1e+30
  %v2508 = vmax.f32 %v2484, -1e+30
  %v2509 = vmax.f32 %v2493, -1e+30
  %v2526 = vsel %vm1530, %v2495, %v2494
  %v2527 = vsel %vm1532, %v2496, %v2526
  %v2528 = vsel %vm1534, %v2497, %v2527
  %v2529 = vsel %vm1536, %v2498, %v2528
  %v2530 = vsel %vm1538, %v2499, %v2529
  %v2531 = vsel %vm1540, %v2500, %v2530
  %v2532 = vsel %vm1542, %v2501, %v2531
  %v2533 = vsel %vm1530, %v2503, %v2502
  %v2534 = vsel %vm1532, %v2504, %v2533
  %v2535 = vsel %vm1534, %v2505, %v2534
  %v2536 = vsel %vm1536, %v2506, %v2535
  %v2537 = vsel %vm1538, %v2507, %v2536
  %v2538 = vsel %vm1540, %v2508, %v2537
  %v2539 = vsel %vm1542, %v2509, %v2538
  %2542 = vmatprep.subr.mxu0 0.0
  %2543 = vmatpush1.msra.mxu0 0.0
  %2544 = vmatprep.subr.mxu0 0.0
  %2545 = vmatpush1.msra.mxu0 0.0
  %2546 = vmatprep.subr.mxu0 0.0
  %2547 = vmatpush1.msra.mxu0 0.0
  %2548 = vmatprep.subr.mxu0 0.0
  %2549 = vmatpush1.msra.mxu0 0.0
  %2550 = vmatprep.subr.mxu0 0.0
  %2551 = vmatpush1.msra.mxu0 0.0
  %2552 = vmatprep.subr.mxu0 0.0
  %2553 = vmatpush1.msra.mxu0 0.0
  %2554 = vmatprep.subr.mxu0 0.0
  %2555 = vmatpush1.msra.mxu0 0.0
  %2556 = vmatprep.subr.mxu0 0.0
  %2557 = vmatpush1.msra.mxu0 0.0
  %2558 = vmatprep.subr.mxu0 0.0
  %2559 = vmatpush1.msra.mxu0 0.0
  %2560 = vmatprep.subr.mxu0 0.0
  %2561 = vmatpush1.msra.mxu0 0.0
  %2562 = vmatprep.subr.mxu0 0.0
  %2563 = vmatpush1.msra.mxu0 0.0
  %2564 = vmatprep.subr.mxu0 0.0
  %2565 = vmatpush1.msra.mxu0 0.0
  %2566 = vmatprep.subr.mxu0 0.0
  %2567 = vmatpush1.msra.mxu0 %v2238
  %2568 = vmatprep.subr.mxu0 0.0
  %2569 = vmatpush1.msra.mxu0 %v2237
  %2570 = vmatprep.subr.mxu0 0.0
  %2571 = vmatpush1.msra.mxu0 %v2236
  %2572 = vmatprep.subr.mxu0 0.0
  %2573 = vmatpush1.msra.mxu0 %v2235
  %2574 = vmatprep.subr.mxu0 0.0
  %2575 = vmatpush2.msra.mxu0 0.0
  %2576 = vmatprep.subr.mxu0 0.0
  %2577 = vmatpush2.msra.mxu0 0.0
  %2578 = vmatprep.subr.mxu0 0.0
  %2579 = vmatpush2.msra.mxu0 0.0
  %2580 = vmatprep.subr.mxu0 0.0
  %2581 = vmatpush2.msra.mxu0 0.0
  %2582 = vmatprep.subr.mxu0 0.0
  %2583 = vmatpush2.msra.mxu0 0.0
  %2584 = vmatprep.subr.mxu0 0.0
  %2585 = vmatpush2.msra.mxu0 0.0
  %2586 = vmatprep.subr.mxu0 0.0
  %2587 = vmatpush2.msra.mxu0 0.0
  %2588 = vmatprep.subr.mxu0 0.0
  %2589 = vmatpush2.msra.mxu0 0.0
  %2590 = vmatprep.subr.mxu0 0.0
  %2591 = vmatpush2.msra.mxu0 0.0
  %2592 = vmatprep.subr.mxu0 0.0
  %2593 = vmatpush2.msra.mxu0 0.0
  %2594 = vmatprep.subr.mxu0 0.0
  %2595 = vmatpush2.msra.mxu0 0.0
  %2596 = vmatprep.subr.mxu0 0.0
  %2597 = vmatpush2.msra.mxu0 0.0
  %2598 = vmatprep.subr.mxu0 0.0
  %2599 = vmatpush2.msra.mxu0 0.0
  %2600 = vmatprep.subr.mxu0 0.0
  %2601 = vmatpush2.msra.mxu0 0.0
  %2602 = vmatprep.subr.mxu0 0.0
  %2603 = vmatpush2.msra.mxu0 0.0
  %2604 = vmatprep.subr.mxu0 0.0
  %2605 = vmatpush2.msra.mxu0 0.0
  %2606 = vmatprep.mubr.f32.mxu0 0.0
  %2607 = vmatmul.mubr.f32.gmra.mxu0 %v2144
  %v2608 = vpop.f32.mrf.mxu0
  %v2609 = vadd.f32 %v2532, %v2608
  %v2610 = vpop.f32.mrf.mxu0
  %2611 = vmatprep.mubr.f32.mxu0 0.0
  %2612 = vmatmul.mubr.f32.gmra.mxu0 %v2147
  %v2613 = vpop.f32.mrf.mxu0
  %v2614 = vadd.f32 %v2539, %v2613
  %v2615 = vpop.f32.mrf.mxu0
  %2616 = vdwg.mxu0
  %v2617 = vld [vmem:[%s13] sm:$0x1]
  %v2619 = vlaneseq
  %v2620 = vshrl.u32 %v2619, 7
  %v2621 = vsub.s32 0, %v2620
  %v2622 = vrot.slane %v2617, %v2621
  %v2624 = vadd.f32 %v2609, %v2622
  %v2625 = vadd.f32 %v2614, %v2622
  %v2626 = vsel %vm1639, %v2624, 0.0
  %v2627 = vsel %vm1640, %v2625, 0.0
  %v2628 = vld [vmem:[%s63] sm:$0xff]
  %v2629 = vld [vmem:[%s63 + $0x8] sm:$0xff]
  %v2630 = vld [vmem:[%s63 + $0x10] sm:$0xff]
  %v2631 = vld [vmem:[%s63 + $0x18] sm:$0xff]
  %v2633 = vsel %vm1860, %v2626, 0
  %v2636 = vsel %vm1860, %v2627, 0
  %2638 = vmatprep.subr.mxu0 0.0
  %2639 = vmatpush1.msra.mxu0 0.0
  %2640 = vmatprep.subr.mxu0 0.0
  %2641 = vmatpush1.msra.mxu0 0.0
  %2642 = vmatprep.subr.mxu0 0.0
  %2643 = vmatpush1.msra.mxu0 0.0
  %2644 = vmatprep.subr.mxu0 0.0
  %2645 = vmatpush1.msra.mxu0 0.0
  %2646 = vmatprep.subr.mxu0 0.0
  %2647 = vmatpush1.msra.mxu0 0.0
  %2648 = vmatprep.subr.mxu0 0.0
  %2649 = vmatpush1.msra.mxu0 0.0
  %2650 = vmatprep.subr.mxu0 0.0
  %2651 = vmatpush1.msra.mxu0 0.0
  %2652 = vmatprep.subr.mxu0 0.0
  %2653 = vmatpush1.msra.mxu0 0.0
  %2654 = vmatprep.subr.mxu0 0.0
  %2655 = vmatpush1.msra.mxu0 0.0
  %2656 = vmatprep.subr.mxu0 0.0
  %2657 = vmatpush1.msra.mxu0 0.0
  %2658 = vmatprep.subr.mxu0 0.0
  %2659 = vmatpush1.msra.mxu0 0.0
  %2660 = vmatprep.subr.mxu0 0.0
  %2661 = vmatpush1.msra.mxu0 0.0
  %2662 = vmatprep.subr.mxu0 0.0
  %2663 = vmatpush1.msra.mxu0 %v2631
  %2664 = vmatprep.subr.mxu0 0.0
  %2665 = vmatpush1.msra.mxu0 %v2630
  %2666 = vmatprep.subr.mxu0 0.0
  %2667 = vmatpush1.msra.mxu0 %v2629
  %2668 = vmatprep.subr.mxu0 0.0
  %2669 = vmatpush1.msra.mxu0 %v2628
  %2670 = vmatprep.subr.mxu0 0.0
  %2671 = vmatpush2.msra.mxu0 0.0
  %2672 = vmatprep.subr.mxu0 0.0
  %2673 = vmatpush2.msra.mxu0 0.0
  %2674 = vmatprep.subr.mxu0 0.0
  %2675 = vmatpush2.msra.mxu0 0.0
  %2676 = vmatprep.subr.mxu0 0.0
  %2677 = vmatpush2.msra.mxu0 0.0
  %2678 = vmatprep.subr.mxu0 0.0
  %2679 = vmatpush2.msra.mxu0 0.0
  %2680 = vmatprep.subr.mxu0 0.0
  %2681 = vmatpush2.msra.mxu0 0.0
  %2682 = vmatprep.subr.mxu0 0.0
  %2683 = vmatpush2.msra.mxu0 0.0
  %2684 = vmatprep.subr.mxu0 0.0
  %2685 = vmatpush2.msra.mxu0 0.0
  %2686 = vmatprep.subr.mxu0 0.0
  %2687 = vmatpush2.msra.mxu0 0.0
  %2688 = vmatprep.subr.mxu0 0.0
  %2689 = vmatpush2.msra.mxu0 0.0
  %2690 = vmatprep.subr.mxu0 0.0
  %2691 = vmatpush2.msra.mxu0 0.0
  %2692 = vmatprep.subr.mxu0 0.0
  %2693 = vmatpush2.msra.mxu0 0.0
  %2694 = vmatprep.subr.mxu0 0.0
  %2695 = vmatpush2.msra.mxu0 0.0
  %2696 = vmatprep.subr.mxu0 0.0
  %2697 = vmatpush2.msra.mxu0 0.0
  %2698 = vmatprep.subr.mxu0 0.0
  %2699 = vmatpush2.msra.mxu0 0.0
  %2700 = vmatprep.subr.mxu0 0.0
  %2701 = vmatpush2.msra.mxu0 0.0
  %2702 = vmatprep.mubr.f32.mxu0 0.0
  %2703 = vmatmul.mubr.f32.gmra.mxu0 %v2633
  %v2704 = vpop.f32.mrf.mxu0
  %v2705 = vadd.f32 0.0, %v2704
  %v2706 = vpop.f32.mrf.mxu0
  %2707 = vmatprep.mubr.f32.mxu0 0.0
  %2708 = vmatmul.mubr.f32.gmra.mxu0 %v2636
  %v2709 = vpop.f32.mrf.mxu0
  %v2710 = vadd.f32 0.0, %v2709
  %v2711 = vpop.f32.mrf.mxu0
  %2712 = vdwg.mxu0
  %v2713 = vadd.f32 %v2233, %v2705
  %v2714 = vadd.f32 %v2234, %v2710
  %v2715 = vld [vmem:[%s55] sm:$0x1]
  %v2717 = vlaneseq
  %v2718 = vshrl.u32 %v2717, 7
  %v2719 = vsub.s32 0, %v2718
  %v2720 = vrot.slane %v2715, %v2719
  %v2722 = vadd.f32 %v2713, %v2720
  %v2723 = vadd.f32 %v2714, %v2720
  %v2724 = vld [vmem:[%s5] sm:$0x3]
  %v2726 = vsel %vm197, %v2724, 0
  %2728 = vmatprep.subr.mxu0 0.0
  %2729 = vmatpush1.msra.mxu0 0.0
  %2730 = vmatprep.subr.mxu0 0.0
  %2731 = vmatpush1.msra.mxu0 0.0
  %2732 = vmatprep.subr.mxu0 0.0
  %2733 = vmatpush1.msra.mxu0 0.0
  %2734 = vmatprep.subr.mxu0 0.0
  %2735 = vmatpush1.msra.mxu0 0.0
  %2736 = vmatprep.subr.mxu0 0.0
  %2737 = vmatpush1.msra.mxu0 0.0
  %2738 = vmatprep.subr.mxu0 0.0
  %2739 = vmatpush1.msra.mxu0 0.0
  %2740 = vmatprep.subr.mxu0 0.0
  %2741 = vmatpush1.msra.mxu0 0.0
  %2742 = vmatprep.subr.mxu0 0.0
  %2743 = vmatpush1.msra.mxu0 0.0
  %2744 = vmatprep.subr.mxu0 0.0
  %2745 = vmatpush1.msra.mxu0 0.0
  %2746 = vmatprep.subr.mxu0 0.0
  %2747 = vmatpush1.msra.mxu0 0.0
  %2748 = vmatprep.subr.mxu0 0.0
  %2749 = vmatpush1.msra.mxu0 0.0
  %2750 = vmatprep.subr.mxu0 0.0
  %2751 = vmatpush1.msra.mxu0 0.0
  %2752 = vmatprep.subr.mxu0 0.0
  %2753 = vmatpush1.msra.mxu0 0.0
  %2754 = vmatprep.subr.mxu0 0.0
  %2755 = vmatpush1.msra.mxu0 0.0
  %2756 = vmatprep.subr.mxu0 0.0
  %2757 = vmatpush1.msra.mxu0 %v2723
  %2758 = vmatprep.subr.mxu0 0.0
  %2759 = vmatpush1.msra.mxu0 %v2722
  %2760 = vmatprep.subr.mxu0 0.0
  %2761 = vmatpush2.msra.mxu0 0.0
  %2762 = vmatprep.subr.mxu0 0.0
  %2763 = vmatpush2.msra.mxu0 0.0
  %2764 = vmatprep.subr.mxu0 0.0
  %2765 = vmatpush2.msra.mxu0 0.0
  %2766 = vmatprep.subr.mxu0 0.0
  %2767 = vmatpush2.msra.mxu0 0.0
  %2768 = vmatprep.subr.mxu0 0.0
  %2769 = vmatpush2.msra.mxu0 0.0
  %2770 = vmatprep.subr.mxu0 0.0
  %2771 = vmatpush2.msra.mxu0 0.0
  %2772 = vmatprep.subr.mxu0 0.0
  %2773 = vmatpush2.msra.mxu0 0.0
  %2774 = vmatprep.subr.mxu0 0.0
  %2775 = vmatpush2.msra.mxu0 0.0
  %2776 = vmatprep.subr.mxu0 0.0
  %2777 = vmatpush2.msra.mxu0 0.0
  %2778 = vmatprep.subr.mxu0 0.0
  %2779 = vmatpush2.msra.mxu0 0.0
  %2780 = vmatprep.subr.mxu0 0.0
  %2781 = vmatpush2.msra.mxu0 0.0
  %2782 = vmatprep.subr.mxu0 0.0
  %2783 = vmatpush2.msra.mxu0 0.0
  %2784 = vmatprep.subr.mxu0 0.0
  %2785 = vmatpush2.msra.mxu0 0.0
  %2786 = vmatprep.subr.mxu0 0.0
  %2787 = vmatpush2.msra.mxu0 0.0
  %2788 = vmatprep.subr.mxu0 0.0
  %2789 = vmatpush2.msra.mxu0 0.0
  %2790 = vmatprep.subr.mxu0 0.0
  %2791 = vmatpush2.msra.mxu0 0.0
  %2792 = vmatprep.mubr.f32.mxu0 0.0
  %2793 = vmatmul.mubr.f32.gmra.mxu0 %v2726
  %v2794 = vpop.f32.mrf.mxu0
  %v2795 = vadd.f32 0.0, %v2794
  %v2796 = vpop.f32.mrf.mxu0
  %2797 = vdwg.mxu0
  %v2798 = vld [vmem:[%s7] sm:$0x3]
  %v2799 = vld [vmem:[%s77] sm:$0xff]
  %v2800 = vld [vmem:[%s77 + $0x8] sm:$0xff]
  %v2801 = vld [vmem:[%s77 + $0x10] sm:$0xff]
  %v2802 = vld [vmem:[%s77 + $0x18] sm:$0xff]
  %v2803 = vld [vmem:[%s77 + $0x20] sm:$0xff]
  %v2804 = vld [vmem:[%s77 + $0x28] sm:$0xff]
  %v2805 = vld [vmem:[%s77 + $0x30] sm:$0xff]
  %v2806 = vld [vmem:[%s77 + $0x38] sm:$0xff]
  %v2807 = vld [vmem:[%s77 + $0x40] sm:$0xff]
  %v2808 = vld [vmem:[%s77 + $0x48] sm:$0xff]
  %v2809 = vld [vmem:[%s77 + $0x50] sm:$0xff]
  %v2810 = vld [vmem:[%s77 + $0x58] sm:$0x7f]
  %v2811 = vld [vmem:[%s69] sm:$0x1]
  %v2813 = vlaneseq
  %v2814 = vshrl.u32 %v2813, 7
  %v2815 = vsub.s32 0, %v2814
  %v2816 = vrot.slane %v2811, %v2815
  %vm2818 = vcmask 777216
  %v2820 = vsel %vm2818, %v2798, 0
  %vm2822 = vcmask 1046528
  %v2824 = vsel %vm2822, %v2810, 0
  %2826 = vmatprep.subr.mxu0 0.0
  %2827 = vmatpush1.msra.mxu0 0.0
  %2828 = vmatprep.subr.mxu0 0.0
  %2829 = vmatpush1.msra.mxu0 0.0
  %2830 = vmatprep.subr.mxu0 0.0
  %2831 = vmatpush1.msra.mxu0 0.0
  %2832 = vmatprep.subr.mxu0 0.0
  %2833 = vmatpush1.msra.mxu0 0.0
  %2834 = vmatprep.subr.mxu0 0.0
  %2835 = vmatpush1.msra.mxu0 %v2824
  %2836 = vmatprep.subr.mxu0 0.0
  %2837 = vmatpush1.msra.mxu0 %v2809
  %2838 = vmatprep.subr.mxu0 0.0
  %2839 = vmatpush1.msra.mxu0 %v2808
  %2840 = vmatprep.subr.mxu0 0.0
  %2841 = vmatpush1.msra.mxu0 %v2807
  %2842 = vmatprep.subr.mxu0 0.0
  %2843 = vmatpush1.msra.mxu0 %v2806
  %2844 = vmatprep.subr.mxu0 0.0
  %2845 = vmatpush1.msra.mxu0 %v2805
  %2846 = vmatprep.subr.mxu0 0.0
  %2847 = vmatpush1.msra.mxu0 %v2804
  %2848 = vmatprep.subr.mxu0 0.0
  %2849 = vmatpush1.msra.mxu0 %v2803
  %2850 = vmatprep.subr.mxu0 0.0
  %2851 = vmatpush1.msra.mxu0 %v2802
  %2852 = vmatprep.subr.mxu0 0.0
  %2853 = vmatpush1.msra.mxu0 %v2801
  %2854 = vmatprep.subr.mxu0 0.0
  %2855 = vmatpush1.msra.mxu0 %v2800
  %2856 = vmatprep.subr.mxu0 0.0
  %2857 = vmatpush1.msra.mxu0 %v2799
  %2858 = vmatprep.subr.mxu0 0.0
  %2859 = vmatpush2.msra.mxu0 0.0
  %2860 = vmatprep.subr.mxu0 0.0
  %2861 = vmatpush2.msra.mxu0 0.0
  %2862 = vmatprep.subr.mxu0 0.0
  %2863 = vmatpush2.msra.mxu0 0.0
  %2864 = vmatprep.subr.mxu0 0.0
  %2865 = vmatpush2.msra.mxu0 0.0
  %2866 = vmatprep.subr.mxu0 0.0
  %2867 = vmatpush2.msra.mxu0 0.0
  %2868 = vmatprep.subr.mxu0 0.0
  %2869 = vmatpush2.msra.mxu0 0.0
  %2870 = vmatprep.subr.mxu0 0.0
  %2871 = vmatpush2.msra.mxu0 0.0
  %2872 = vmatprep.subr.mxu0 0.0
  %2873 = vmatpush2.msra.mxu0 0.0
  %2874 = vmatprep.subr.mxu0 0.0
  %2875 = vmatpush2.msra.mxu0 0.0
  %2876 = vmatprep.subr.mxu0 0.0
  %2877 = vmatpush2.msra.mxu0 0.0
  %2878 = vmatprep.subr.mxu0 0.0
  %2879 = vmatpush2.msra.mxu0 0.0
  %2880 = vmatprep.subr.mxu0 0.0
  %2881 = vmatpush2.msra.mxu0 0.0
  %2882 = vmatprep.subr.mxu0 0.0
  %2883 = vmatpush2.msra.mxu0 0.0
  %2884 = vmatprep.subr.mxu0 0.0
  %2885 = vmatpush2.msra.mxu0 0.0
  %2886 = vmatprep.subr.mxu0 0.0
  %2887 = vmatpush2.msra.mxu0 0.0
  %2888 = vmatprep.subr.mxu0 0.0
  %2889 = vmatpush2.msra.mxu0 0.0
  %2890 = vmatprep.mubr.f32.mxu0 0.0
  %2891 = vmatmul.mubr.f32.gmra.mxu0 %v2820
  %v2892 = vpop.f32.mrf.mxu0
  %v2893 = vadd.f32 %v2816, %v2892
  %v2894 = vpop.f32.mrf.mxu0
  %2895 = vdwg.mxu0
  %vm2896 = vcmp.gt.f32.partialorder %v2893, 0.0
  %v2897 = vmin.f32 %v2893, 0.0
  %v2898 = vmul.f32 %v2897, 1.442695
  %v2899 = vpow.pop %v2898
  %v2900 = vsub.f32 %v2899, 1.0
  %v2901 = vsel %vm2896, %v2893, %v2900
  %v2902 = vld [vmem:[%s79] sm:$0xff]
  %v2903 = vld [vmem:[%s79 + $0x8] sm:$0xff]
  %v2904 = vld [vmem:[%s79 + $0x10] sm:$0xff]
  %v2905 = vld [vmem:[%s79 + $0x18] sm:$0xff]
  %v2906 = vld [vmem:[%s79 + $0x20] sm:$0xff]
  %v2907 = vld [vmem:[%s79 + $0x28] sm:$0xff]
  %v2908 = vld [vmem:[%s79 + $0x30] sm:$0xff]
  %v2909 = vld [vmem:[%s79 + $0x38] sm:$0xff]
  %v2910 = vld [vmem:[%s71] sm:$0x1]
  %v2912 = vlaneseq
  %v2913 = vshrl.u32 %v2912, 7
  %v2914 = vsub.s32 0, %v2913
  %v2915 = vrot.slane %v2910, %v2914
  %v2918 = vsel %vm962, %v2901, 0
  %2920 = vmatprep.subr.mxu0 0.0
  %2921 = vmatpush1.msra.mxu0 0.0
  %2922 = vmatprep.subr.mxu0 0.0
  %2923 = vmatpush1.msra.mxu0 0.0
  %2924 = vmatprep.subr.mxu0 0.0
  %2925 = vmatpush1.msra.mxu0 0.0
  %2926 = vmatprep.subr.mxu0 0.0
  %2927 = vmatpush1.msra.mxu0 0.0
  %2928 = vmatprep.subr.mxu0 0.0
  %2929 = vmatpush1.msra.mxu0 0.0
  %2930 = vmatprep.subr.mxu0 0.0
  %2931 = vmatpush1.msra.mxu0 0.0
  %2932 = vmatprep.subr.mxu0 0.0
  %2933 = vmatpush1.msra.mxu0 0.0
  %2934 = vmatprep.subr.mxu0 0.0
  %2935 = vmatpush1.msra.mxu0 0.0
  %2936 = vmatprep.subr.mxu0 0.0
  %2937 = vmatpush1.msra.mxu0 %v2909
  %2938 = vmatprep.subr.mxu0 0.0
  %2939 = vmatpush1.msra.mxu0 %v2908
  %2940 = vmatprep.subr.mxu0 0.0
  %2941 = vmatpush1.msra.mxu0 %v2907
  %2942 = vmatprep.subr.mxu0 0.0
  %2943 = vmatpush1.msra.mxu0 %v2906
  %2944 = vmatprep.subr.mxu0 0.0
  %2945 = vmatpush1.msra.mxu0 %v2905
  %2946 = vmatprep.subr.mxu0 0.0
  %2947 = vmatpush1.msra.mxu0 %v2904
  %2948 = vmatprep.subr.mxu0 0.0
  %2949 = vmatpush1.msra.mxu0 %v2903
  %2950 = vmatprep.subr.mxu0 0.0
  %2951 = vmatpush1.msra.mxu0 %v2902
  %2952 = vmatprep.subr.mxu0 0.0
  %2953 = vmatpush2.msra.mxu0 0.0
  %2954 = vmatprep.subr.mxu0 0.0
  %2955 = vmatpush2.msra.mxu0 0.0
  %2956 = vmatprep.subr.mxu0 0.0
  %2957 = vmatpush2.msra.mxu0 0.0
  %2958 = vmatprep.subr.mxu0 0.0
  %2959 = vmatpush2.msra.mxu0 0.0
  %2960 = vmatprep.subr.mxu0 0.0
  %2961 = vmatpush2.msra.mxu0 0.0
  %2962 = vmatprep.subr.mxu0 0.0
  %2963 = vmatpush2.msra.mxu0 0.0
  %2964 = vmatprep.subr.mxu0 0.0
  %2965 = vmatpush2.msra.mxu0 0.0
  %2966 = vmatprep.subr.mxu0 0.0
  %2967 = vmatpush2.msra.mxu0 0.0
  %2968 = vmatprep.subr.mxu0 0.0
  %2969 = vmatpush2.msra.mxu0 0.0
  %2970 = vmatprep.subr.mxu0 0.0
  %2971 = vmatpush2.msra.mxu0 0.0
  %2972 = vmatprep.subr.mxu0 0.0
  %2973 = vmatpush2.msra.mxu0 0.0
  %2974 = vmatprep.subr.mxu0 0.0
  %2975 = vmatpush2.msra.mxu0 0.0
  %2976 = vmatprep.subr.mxu0 0.0
  %2977 = vmatpush2.msra.mxu0 0.0
  %2978 = vmatprep.subr.mxu0 0.0
  %2979 = vmatpush2.msra.mxu0 0.0
  %2980 = vmatprep.subr.mxu0 0.0
  %2981 = vmatpush2.msra.mxu0 0.0
  %2982 = vmatprep.subr.mxu0 0.0
  %2983 = vmatpush2.msra.mxu0 0.0
  %2984 = vmatprep.mubr.f32.mxu0 0.0
  %2985 = vmatmul.mubr.f32.gmra.mxu0 %v2918
  %v2986 = vpop.f32.mrf.mxu0
  %v2987 = vadd.f32 %v2915, %v2986
  %v2988 = vpop.f32.mrf.mxu0
  %2989 = vdwg.mxu0
  %vm2990 = vcmp.gt.f32.partialorder %v2987, 0.0
  %v2991 = vmin.f32 %v2987, 0.0
  %v2992 = vmul.f32 %v2991, 1.442695
  %v2993 = vpow.pop %v2992
  %v2994 = vsub.f32 %v2993, 1.0
  %v2995 = vsel %vm2990, %v2987, %v2994
  %v2996 = vld [vmem:[%s81] sm:$0xff]
  %v2997 = vld [vmem:[%s81 + $0x8] sm:$0xff]
  %v2998 = vld [vmem:[%s81 + $0x10] sm:$0xff]
  %v2999 = vld [vmem:[%s81 + $0x18] sm:$0xff]
  %v3000 = vld [vmem:[%s81 + $0x20] sm:$0xff]
  %v3001 = vld [vmem:[%s81 + $0x28] sm:$0xff]
  %v3002 = vld [vmem:[%s73] sm:$0x1]
  %v3004 = vlaneseq
  %v3005 = vshrl.u32 %v3004, 7
  %v3006 = vsub.s32 0, %v3005
  %v3007 = vrot.slane %v3002, %v3006
  %v3010 = vsel %vm1353, %v2995, 0
  %3012 = vmatprep.subr.mxu0 0.0
  %3013 = vmatpush1.msra.mxu0 0.0
  %3014 = vmatprep.subr.mxu0 0.0
  %3015 = vmatpush1.msra.mxu0 0.0
  %3016 = vmatprep.subr.mxu0 0.0
  %3017 = vmatpush1.msra.mxu0 0.0
  %3018 = vmatprep.subr.mxu0 0.0
  %3019 = vmatpush1.msra.mxu0 0.0
  %3020 = vmatprep.subr.mxu0 0.0
  %3021 = vmatpush1.msra.mxu0 0.0
  %3022 = vmatprep.subr.mxu0 0.0
  %3023 = vmatpush1.msra.mxu0 0.0
  %3024 = vmatprep.subr.mxu0 0.0
  %3025 = vmatpush1.msra.mxu0 0.0
  %3026 = vmatprep.subr.mxu0 0.0
  %3027 = vmatpush1.msra.mxu0 0.0
  %3028 = vmatprep.subr.mxu0 0.0
  %3029 = vmatpush1.msra.mxu0 0.0
  %3030 = vmatprep.subr.mxu0 0.0
  %3031 = vmatpush1.msra.mxu0 0.0
  %3032 = vmatprep.subr.mxu0 0.0
  %3033 = vmatpush1.msra.mxu0 %v3001
  %3034 = vmatprep.subr.mxu0 0.0
  %3035 = vmatpush1.msra.mxu0 %v3000
  %3036 = vmatprep.subr.mxu0 0.0
  %3037 = vmatpush1.msra.mxu0 %v2999
  %3038 = vmatprep.subr.mxu0 0.0
  %3039 = vmatpush1.msra.mxu0 %v2998
  %3040 = vmatprep.subr.mxu0 0.0
  %3041 = vmatpush1.msra.mxu0 %v2997
  %3042 = vmatprep.subr.mxu0 0.0
  %3043 = vmatpush1.msra.mxu0 %v2996
  %3044 = vmatprep.subr.mxu0 0.0
  %3045 = vmatpush2.msra.mxu0 0.0
  %3046 = vmatprep.subr.mxu0 0.0
  %3047 = vmatpush2.msra.mxu0 0.0
  %3048 = vmatprep.subr.mxu0 0.0
  %3049 = vmatpush2.msra.mxu0 0.0
  %3050 = vmatprep.subr.mxu0 0.0
  %3051 = vmatpush2.msra.mxu0 0.0
  %3052 = vmatprep.subr.mxu0 0.0
  %3053 = vmatpush2.msra.mxu0 0.0
  %3054 = vmatprep.subr.mxu0 0.0
  %3055 = vmatpush2.msra.mxu0 0.0
  %3056 = vmatprep.subr.mxu0 0.0
  %3057 = vmatpush2.msra.mxu0 0.0
  %3058 = vmatprep.subr.mxu0 0.0
  %3059 = vmatpush2.msra.mxu0 0.0
  %3060 = vmatprep.subr.mxu0 0.0
  %3061 = vmatpush2.msra.mxu0 0.0
  %3062 = vmatprep.subr.mxu0 0.0
  %3063 = vmatpush2.msra.mxu0 0.0
  %3064 = vmatprep.subr.mxu0 0.0
  %3065 = vmatpush2.msra.mxu0 0.0
  %3066 = vmatprep.subr.mxu0 0.0
  %3067 = vmatpush2.msra.mxu0 0.0
  %3068 = vmatprep.subr.mxu0 0.0
  %3069 = vmatpush2.msra.mxu0 0.0
  %3070 = vmatprep.subr.mxu0 0.0
  %3071 = vmatpush2.msra.mxu0 0.0
  %3072 = vmatprep.subr.mxu0 0.0
  %3073 = vmatpush2.msra.mxu0 0.0
  %3074 = vmatprep.subr.mxu0 0.0
  %3075 = vmatpush2.msra.mxu0 0.0
  %3076 = vmatprep.mubr.f32.mxu0 0.0
  %3077 = vmatmul.mubr.f32.gmra.mxu0 %v3010
  %v3078 = vpop.f32.mrf.mxu0
  %v3079 = vadd.f32 %v3007, %v3078
  %v3080 = vpop.f32.mrf.mxu0
  %3081 = vdwg.mxu0
  %vm3082 = vcmp.gt.f32.partialorder %v3079, 0.0
  %v3083 = vmin.f32 %v3079, 0.0
  %v3084 = vmul.f32 %v3083, 1.442695
  %v3085 = vpow.pop %v3084
  %v3086 = vsub.f32 %v3085, 1.0
  %v3087 = vsel %vm3082, %v3079, %v3086
  %v3088 = vld [vmem:[%s83] sm:$0xff]
  %v3089 = vld [vmem:[%s83 + $0x8] sm:$0xff]
  %v3090 = vld [vmem:[%s83 + $0x10] sm:$0xff]
  %v3091 = vld [vmem:[%s83 + $0x18] sm:$0xff]
  %v3092 = vld [vmem:[%s75] sm:$0x1]
  %v3094 = vlaneseq
  %v3095 = vshrl.u32 %v3094, 7
  %v3096 = vsub.s32 0, %v3095
  %v3097 = vrot.slane %v3092, %v3096
  %v3100 = vsel %vm1860, %v3087, 0
  %3102 = vmatprep.subr.mxu0 0.0
  %3103 = vmatpush1.msra.mxu0 0.0
  %3104 = vmatprep.subr.mxu0 0.0
  %3105 = vmatpush1.msra.mxu0 0.0
  %3106 = vmatprep.subr.mxu0 0.0
  %3107 = vmatpush1.msra.mxu0 0.0
  %3108 = vmatprep.subr.mxu0 0.0
  %3109 = vmatpush1.msra.mxu0 0.0
  %3110 = vmatprep.subr.mxu0 0.0
  %3111 = vmatpush1.msra.mxu0 0.0
  %3112 = vmatprep.subr.mxu0 0.0
  %3113 = vmatpush1.msra.mxu0 0.0
  %3114 = vmatprep.subr.mxu0 0.0
  %3115 = vmatpush1.msra.mxu0 0.0
  %3116 = vmatprep.subr.mxu0 0.0
  %3117 = vmatpush1.msra.mxu0 0.0
  %3118 = vmatprep.subr.mxu0 0.0
  %3119 = vmatpush1.msra.mxu0 0.0
  %3120 = vmatprep.subr.mxu0 0.0
  %3121 = vmatpush1.msra.mxu0 0.0
  %3122 = vmatprep.subr.mxu0 0.0
  %3123 = vmatpush1.msra.mxu0 0.0
  %3124 = vmatprep.subr.mxu0 0.0
  %3125 = vmatpush1.msra.mxu0 0.0
  %3126 = vmatprep.subr.mxu0 0.0
  %3127 = vmatpush1.msra.mxu0 %v3091
  %3128 = vmatprep.subr.mxu0 0.0
  %3129 = vmatpush1.msra.mxu0 %v3090
  %3130 = vmatprep.subr.mxu0 0.0
  %3131 = vmatpush1.msra.mxu0 %v3089
  %3132 = vmatprep.subr.mxu0 0.0
  %3133 = vmatpush1.msra.mxu0 %v3088
  %3134 = vmatprep.subr.mxu0 0.0
  %3135 = vmatpush2.msra.mxu0 0.0
  %3136 = vmatprep.subr.mxu0 0.0
  %3137 = vmatpush2.msra.mxu0 0.0
  %3138 = vmatprep.subr.mxu0 0.0
  %3139 = vmatpush2.msra.mxu0 0.0
  %3140 = vmatprep.subr.mxu0 0.0
  %3141 = vmatpush2.msra.mxu0 0.0
  %3142 = vmatprep.subr.mxu0 0.0
  %3143 = vmatpush2.msra.mxu0 0.0
  %3144 = vmatprep.subr.mxu0 0.0
  %3145 = vmatpush2.msra.mxu0 0.0
  %3146 = vmatprep.subr.mxu0 0.0
  %3147 = vmatpush2.msra.mxu0 0.0
  %3148 = vmatprep.subr.mxu0 0.0
  %3149 = vmatpush2.msra.mxu0 0.0
  %3150 = vmatprep.subr.mxu0 0.0
  %3151 = vmatpush2.msra.mxu0 0.0
  %3152 = vmatprep.subr.mxu0 0.0
  %3153 = vmatpush2.msra.mxu0 0.0
  %3154 = vmatprep.subr.mxu0 0.0
  %3155 = vmatpush2.msra.mxu0 0.0
  %3156 = vmatprep.subr.mxu0 0.0
  %3157 = vmatpush2.msra.mxu0 0.0
  %3158 = vmatprep.subr.mxu0 0.0
  %3159 = vmatpush2.msra.mxu0 0.0
  %3160 = vmatprep.subr.mxu0 0.0
  %3161 = vmatpush2.msra.mxu0 0.0
  %3162 = vmatprep.subr.mxu0 0.0
  %3163 = vmatpush2.msra.mxu0 0.0
  %3164 = vmatprep.subr.mxu0 0.0
  %3165 = vmatpush2.msra.mxu0 0.0
  %3166 = vmatprep.mubr.f32.mxu0 0.0
  %3167 = vmatmul.mubr.f32.gmra.mxu0 %v3100
  %v3168 = vpop.f32.mrf.mxu0
  %v3169 = vadd.f32 %v3097, %v3168
  %v3170 = vpop.f32.mrf.mxu0
  %3171 = vdwg.mxu0
  %vm3172 = vcmp.gt.f32.partialorder %v3169, 0.0
  %v3173 = vmin.f32 %v3169, 0.0
  %v3174 = vmul.f32 %v3173, 1.442695
  %v3175 = vpow.pop %v3174
  %v3176 = vsub.f32 %v3175, 1.0
  %v3177 = vsel %vm3172, %v3169, %v3176
  %v3178 = vlaneseq
  %v3179 = vshrl.u32 %v3178, 7
  %v3180 = vadd.s32 %v3179, 8
  %v3181 = vadd.s32 %v3179, 16
  %v3182 = vadd.s32 %v3179, 24
  %v3183 = vlaneseq
  %v3184 = vand.u32 %v3183, 127
  %v3185 = vadd.s32 %v3184, 128
  %v3186 = vadd.s32 %v3184, 256
  %v3187 = vadd.s32 %v3184, 384
  %v3188 = vadd.s32 %v3184, 512
  %v3189 = vadd.s32 %v3184, 640
  %v3190 = vadd.s32 %v3184, 768
  %v3191 = vadd.s32 %v3184, 896
  %v3192 = vmul.u32 %v3179, 32
  %v3193 = vmul.u32 %v3180, 32
  %v3194 = vmul.u32 %v3181, 32
  %v3195 = vmul.u32 %v3182, 32
  %v3196 = vsub.s32 %v3184, %v3192
  %v3197 = vsub.s32 %v3185, %v3192
  %v3198 = vsub.s32 %v3186, %v3192
  %v3199 = vsub.s32 %v3187, %v3192
  %v3200 = vsub.s32 %v3188, %v3192
  %v3201 = vsub.s32 %v3189, %v3192
  %v3202 = vsub.s32 %v3190, %v3192
  %v3203 = vsub.s32 %v3191, %v3192
  %v3204 = vsub.s32 %v3184, %v3193
  %v3205 = vsub.s32 %v3185, %v3193
  %v3206 = vsub.s32 %v3186, %v3193
  %v3207 = vsub.s32 %v3187, %v3193
  %v3208 = vsub.s32 %v3188, %v3193
  %v3209 = vsub.s32 %v3189, %v3193
  %v3210 = vsub.s32 %v3190, %v3193
  %v3211 = vsub.s32 %v3191, %v3193
  %v3212 = vsub.s32 %v3184, %v3194
  %v3213 = vsub.s32 %v3185, %v3194
  %v3214 = vsub.s32 %v3186, %v3194
  %v3215 = vsub.s32 %v3187, %v3194
  %v3216 = vsub.s32 %v3188, %v3194
  %v3217 = vsub.s32 %v3189, %v3194
  %v3218 = vsub.s32 %v3190, %v3194
  %v3219 = vsub.s32 %v3191, %v3194
  %v3220 = vsub.s32 %v3184, %v3195
  %v3221 = vsub.s32 %v3185, %v3195
  %v3222 = vsub.s32 %v3186, %v3195
  %v3223 = vsub.s32 %v3187, %v3195
  %v3224 = vsub.s32 %v3188, %v3195
  %v3225 = vsub.s32 %v3189, %v3195
  %v3226 = vsub.s32 %v3190, %v3195
  %v3227 = vsub.s32 %v3191, %v3195
  %vm3228 = vcmp.ge.s32.totalorder %v3196, 0
  %vm3229 = vcmp.ge.s32.totalorder %v3197, 0
  %vm3230 = vcmp.ge.s32.totalorder %v3198, 0
  %vm3231 = vcmp.ge.s32.totalorder %v3199, 0
  %vm3232 = vcmp.ge.s32.totalorder %v3200, 0
  %vm3233 = vcmp.ge.s32.totalorder %v3201, 0
  %vm3234 = vcmp.ge.s32.totalorder %v3202, 0
  %vm3235 = vcmp.ge.s32.totalorder %v3203, 0
  %vm3236 = vcmp.ge.s32.totalorder %v3204, 0
  %vm3237 = vcmp.ge.s32.totalorder %v3205, 0
  %vm3238 = vcmp.ge.s32.totalorder %v3206, 0
  %vm3239 = vcmp.ge.s32.totalorder %v3207, 0
  %vm3240 = vcmp.ge.s32.totalorder %v3208, 0
  %vm3241 = vcmp.ge.s32.totalorder %v3209, 0
  %vm3242 = vcmp.ge.s32.totalorder %v3210, 0
  %vm3243 = vcmp.ge.s32.totalorder %v3211, 0
  %vm3244 = vcmp.ge.s32.totalorder %v3212, 0
  %vm3245 = vcmp.ge.s32.totalorder %v3213, 0
  %vm3246 = vcmp.ge.s32.totalorder %v3214, 0
  %vm3247 = vcmp.ge.s32.totalorder %v3215, 0
  %vm3248 = vcmp.ge.s32.totalorder %v3216, 0
  %vm3249 = vcmp.ge.s32.totalorder %v3217, 0
  %vm3250 = vcmp.ge.s32.totalorder %v3218, 0
  %vm3251 = vcmp.ge.s32.totalorder %v3219, 0
  %vm3252 = vcmp.ge.s32.totalorder %v3220, 0
  %vm3253 = vcmp.ge.s32.totalorder %v3221, 0
  %vm3254 = vcmp.ge.s32.totalorder %v3222, 0
  %vm3255 = vcmp.ge.s32.totalorder %v3223, 0
  %vm3256 = vcmp.ge.s32.totalorder %v3224, 0
  %vm3257 = vcmp.ge.s32.totalorder %v3225, 0
  %vm3258 = vcmp.ge.s32.totalorder %v3226, 0
  %vm3259 = vcmp.ge.s32.totalorder %v3227, 0
  %vm3260 = vcmp.lt.s32.totalorder %v3196, 32
  %vm3261 = vcmp.lt.s32.totalorder %v3197, 32
  %vm3262 = vcmp.lt.s32.totalorder %v3198, 32
  %vm3263 = vcmp.lt.s32.totalorder %v3199, 32
  %vm3264 = vcmp.lt.s32.totalorder %v3200, 32
  %vm3265 = vcmp.lt.s32.totalorder %v3201, 32
  %vm3266 = vcmp.lt.s32.totalorder %v3202, 32
  %vm3267 = vcmp.lt.s32.totalorder %v3203, 32
  %vm3268 = vcmp.lt.s32.totalorder %v3204, 32
  %vm3269 = vcmp.lt.s32.totalorder %v3205, 32
  %vm3270 = vcmp.lt.s32.totalorder %v3206, 32
  %vm3271 = vcmp.lt.s32.totalorder %v3207, 32
  %vm3272 = vcmp.lt.s32.totalorder %v3208, 32
  %vm3273 = vcmp.lt.s32.totalorder %v3209, 32
  %vm3274 = vcmp.lt.s32.totalorder %v3210, 32
  %vm3275 = vcmp.lt.s32.totalorder %v3211, 32
  %vm3276 = vcmp.lt.s32.totalorder %v3212, 32
  %vm3277 = vcmp.lt.s32.totalorder %v3213, 32
  %vm3278 = vcmp.lt.s32.totalorder %v3214, 32
  %vm3279 = vcmp.lt.s32.totalorder %v3215, 32
  %vm3280 = vcmp.lt.s32.totalorder %v3216, 32
  %vm3281 = vcmp.lt.s32.totalorder %v3217, 32
  %vm3282 = vcmp.lt.s32.totalorder %v3218, 32
  %vm3283 = vcmp.lt.s32.totalorder %v3219, 32
  %vm3284 = vcmp.lt.s32.totalorder %v3220, 32
  %vm3285 = vcmp.lt.s32.totalorder %v3221, 32
  %vm3286 = vcmp.lt.s32.totalorder %v3222, 32
  %vm3287 = vcmp.lt.s32.totalorder %v3223, 32
  %vm3288 = vcmp.lt.s32.totalorder %v3224, 32
  %vm3289 = vcmp.lt.s32.totalorder %v3225, 32
  %vm3290 = vcmp.lt.s32.totalorder %v3226, 32
  %vm3291 = vcmp.lt.s32.totalorder %v3227, 32
  %vm3292 = vmand %vm3228, %vm3260
  %vm3293 = vmand %vm3229, %vm3261
  %vm3294 = vmand %vm3230, %vm3262
  %vm3295 = vmand %vm3231, %vm3263
  %vm3296 = vmand %vm3232, %vm3264
  %vm3297 = vmand %vm3233, %vm3265
  %vm3298 = vmand %vm3234, %vm3266
  %vm3299 = vmand %vm3235, %vm3267
  %vm3300 = vmand %vm3236, %vm3268
  %vm3301 = vmand %vm3237, %vm3269
  %vm3302 = vmand %vm3238, %vm3270
  %vm3303 = vmand %vm3239, %vm3271
  %vm3304 = vmand %vm3240, %vm3272
  %vm3305 = vmand %vm3241, %vm3273
  %vm3306 = vmand %vm3242, %vm3274
  %vm3307 = vmand %vm3243, %vm3275
  %vm3308 = vmand %vm3244, %vm3276
  %vm3309 = vmand %vm3245, %vm3277
  %vm3310 = vmand %vm3246, %vm3278
  %vm3311 = vmand %vm3247, %vm3279
  %vm3312 = vmand %vm3248, %vm3280
  %vm3313 = vmand %vm3249, %vm3281
  %vm3314 = vmand %vm3250, %vm3282
  %vm3315 = vmand %vm3251, %vm3283
  %vm3316 = vmand %vm3252, %vm3284
  %vm3317 = vmand %vm3253, %vm3285
  %vm3318 = vmand %vm3254, %vm3286
  %vm3319 = vmand %vm3255, %vm3287
  %vm3320 = vmand %vm3256, %vm3288
  %vm3321 = vmand %vm3257, %vm3289
  %vm3322 = vmand %vm3258, %vm3290
  %vm3323 = vmand %vm3259, %vm3291
  %v3324 = vsel %vm3292, 1, 0
  %v3325 = vsel %vm3293, 1, 0
  %v3326 = vsel %vm3294, 1, 0
  %v3327 = vsel %vm3295, 1, 0
  %v3328 = vsel %vm3296, 1, 0
  %v3329 = vsel %vm3297, 1, 0
  %v3330 = vsel %vm3298, 1, 0
  %v3331 = vsel %vm3299, 1, 0
  %v3332 = vsel %vm3300, 1, 0
  %v3333 = vsel %vm3301, 1, 0
  %v3334 = vsel %vm3302, 1, 0
  %v3335 = vsel %vm3303, 1, 0
  %v3336 = vsel %vm3304, 1, 0
  %v3337 = vsel %vm3305, 1, 0
  %v3338 = vsel %vm3306, 1, 0
  %v3339 = vsel %vm3307, 1, 0
  %v3340 = vsel %vm3308, 1, 0
  %v3341 = vsel %vm3309, 1, 0
  %v3342 = vsel %vm3310, 1, 0
  %v3343 = vsel %vm3311, 1, 0
  %v3344 = vsel %vm3312, 1, 0
  %v3345 = vsel %vm3313, 1, 0
  %v3346 = vsel %vm3314, 1, 0
  %v3347 = vsel %vm3315, 1, 0
  %v3348 = vsel %vm3316, 1, 0
  %v3349 = vsel %vm3317, 1, 0
  %v3350 = vsel %vm3318, 1, 0
  %v3351 = vsel %vm3319, 1, 0
  %v3352 = vsel %vm3320, 1, 0
  %v3353 = vsel %vm3321, 1, 0
  %v3354 = vsel %vm3322, 1, 0
  %v3355 = vsel %vm3323, 1, 0
  %v3356 = vcvt.s32.f32 %v3324
  %v3357 = vcvt.s32.f32 %v3325
  %v3358 = vcvt.s32.f32 %v3326
  %v3359 = vcvt.s32.f32 %v3327
  %v3360 = vcvt.s32.f32 %v3328
  %v3361 = vcvt.s32.f32 %v3329
  %v3362 = vcvt.s32.f32 %v3330
  %v3363 = vcvt.s32.f32 %v3331
  %v3364 = vcvt.s32.f32 %v3332
  %v3365 = vcvt.s32.f32 %v3333
  %v3366 = vcvt.s32.f32 %v3334
  %v3367 = vcvt.s32.f32 %v3335
  %v3368 = vcvt.s32.f32 %v3336
  %v3369 = vcvt.s32.f32 %v3337
  %v3370 = vcvt.s32.f32 %v3338
  %v3371 = vcvt.s32.f32 %v3339
  %v3372 = vcvt.s32.f32 %v3340
  %v3373 = vcvt.s32.f32 %v3341
  %v3374 = vcvt.s32.f32 %v3342
  %v3375 = vcvt.s32.f32 %v3343
  %v3376 = vcvt.s32.f32 %v3344
  %v3377 = vcvt.s32.f32 %v3345
  %v3378 = vcvt.s32.f32 %v3346
  %v3379 = vcvt.s32.f32 %v3347
  %v3380 = vcvt.s32.f32 %v3348
  %v3381 = vcvt.s32.f32 %v3349
  %v3382 = vcvt.s32.f32 %v3350
  %v3383 = vcvt.s32.f32 %v3351
  %v3384 = vcvt.s32.f32 %v3352
  %v3385 = vcvt.s32.f32 %v3353
  %v3386 = vcvt.s32.f32 %v3354
  %v3387 = vcvt.s32.f32 %v3355
  %v3388 = vand.u32 %v3184, 31
  %v3389 = vand.u32 %v3185, 31
  %v3390 = vand.u32 %v3186, 31
  %v3391 = vand.u32 %v3187, 31
  %v3392 = vand.u32 %v3188, 31
  %v3393 = vand.u32 %v3189, 31
  %v3394 = vand.u32 %v3190, 31
  %v3395 = vand.u32 %v3191, 31
  %vm3396 = vcmp.eq.s32.totalorder %v3388, %v3179
  %vm3397 = vcmp.eq.s32.totalorder %v3389, %v3179
  %vm3398 = vcmp.eq.s32.totalorder %v3390, %v3179
  %vm3399 = vcmp.eq.s32.totalorder %v3391, %v3179
  %vm3400 = vcmp.eq.s32.totalorder %v3392, %v3179
  %vm3401 = vcmp.eq.s32.totalorder %v3393, %v3179
  %vm3402 = vcmp.eq.s32.totalorder %v3394, %v3179
  %vm3403 = vcmp.eq.s32.totalorder %v3395, %v3179
  %vm3404 = vcmp.eq.s32.totalorder %v3388, %v3180
  %vm3405 = vcmp.eq.s32.totalorder %v3389, %v3180
  %vm3406 = vcmp.eq.s32.totalorder %v3390, %v3180
  %vm3407 = vcmp.eq.s32.totalorder %v3391, %v3180
  %vm3408 = vcmp.eq.s32.totalorder %v3392, %v3180
  %vm3409 = vcmp.eq.s32.totalorder %v3393, %v3180
  %vm3410 = vcmp.eq.s32.totalorder %v3394, %v3180
  %vm3411 = vcmp.eq.s32.totalorder %v3395, %v3180
  %vm3412 = vcmp.eq.s32.totalorder %v3388, %v3181
  %vm3413 = vcmp.eq.s32.totalorder %v3389, %v3181
  %vm3414 = vcmp.eq.s32.totalorder %v3390, %v3181
  %vm3415 = vcmp.eq.s32.totalorder %v3391, %v3181
  %vm3416 = vcmp.eq.s32.totalorder %v3392, %v3181
  %vm3417 = vcmp.eq.s32.totalorder %v3393, %v3181
  %vm3418 = vcmp.eq.s32.totalorder %v3394, %v3181
  %vm3419 = vcmp.eq.s32.totalorder %v3395, %v3181
  %vm3420 = vcmp.eq.s32.totalorder %v3388, %v3182
  %vm3421 = vcmp.eq.s32.totalorder %v3389, %v3182
  %vm3422 = vcmp.eq.s32.totalorder %v3390, %v3182
  %vm3423 = vcmp.eq.s32.totalorder %v3391, %v3182
  %vm3424 = vcmp.eq.s32.totalorder %v3392, %v3182
  %vm3425 = vcmp.eq.s32.totalorder %v3393, %v3182
  %vm3426 = vcmp.eq.s32.totalorder %v3394, %v3182
  %vm3427 = vcmp.eq.s32.totalorder %v3395, %v3182
  %v3428 = vsel %vm3396, 1, 0
  %v3429 = vsel %vm3397, 1, 0
  %v3430 = vsel %vm3398, 1, 0
  %v3431 = vsel %vm3399, 1, 0
  %v3432 = vsel %vm3400, 1, 0
  %v3433 = vsel %vm3401, 1, 0
  %v3434 = vsel %vm3402, 1, 0
  %v3435 = vsel %vm3403, 1, 0
  %v3436 = vsel %vm3404, 1, 0
  %v3437 = vsel %vm3405, 1, 0
  %v3438 = vsel %vm3406, 1, 0
  %v3439 = vsel %vm3407, 1, 0
  %v3440 = vsel %vm3408, 1, 0
  %v3441 = vsel %vm3409, 1, 0
  %v3442 = vsel %vm3410, 1, 0
  %v3443 = vsel %vm3411, 1, 0
  %v3444 = vsel %vm3412, 1, 0
  %v3445 = vsel %vm3413, 1, 0
  %v3446 = vsel %vm3414, 1, 0
  %v3447 = vsel %vm3415, 1, 0
  %v3448 = vsel %vm3416, 1, 0
  %v3449 = vsel %vm3417, 1, 0
  %v3450 = vsel %vm3418, 1, 0
  %v3451 = vsel %vm3419, 1, 0
  %v3452 = vsel %vm3420, 1, 0
  %v3453 = vsel %vm3421, 1, 0
  %v3454 = vsel %vm3422, 1, 0
  %v3455 = vsel %vm3423, 1, 0
  %v3456 = vsel %vm3424, 1, 0
  %v3457 = vsel %vm3425, 1, 0
  %v3458 = vsel %vm3426, 1, 0
  %v3459 = vsel %vm3427, 1, 0
  %v3460 = vcvt.s32.f32 %v3428
  %v3461 = vcvt.s32.f32 %v3429
  %v3462 = vcvt.s32.f32 %v3430
  %v3463 = vcvt.s32.f32 %v3431
  %v3464 = vcvt.s32.f32 %v3432
  %v3465 = vcvt.s32.f32 %v3433
  %v3466 = vcvt.s32.f32 %v3434
  %v3467 = vcvt.s32.f32 %v3435
  %v3468 = vcvt.s32.f32 %v3436
  %v3469 = vcvt.s32.f32 %v3437
  %v3470 = vcvt.s32.f32 %v3438
  %v3471 = vcvt.s32.f32 %v3439
  %v3472 = vcvt.s32.f32 %v3440
  %v3473 = vcvt.s32.f32 %v3441
  %v3474 = vcvt.s32.f32 %v3442
  %v3475 = vcvt.s32.f32 %v3443
  %v3476 = vcvt.s32.f32 %v3444
  %v3477 = vcvt.s32.f32 %v3445
  %v3478 = vcvt.s32.f32 %v3446
  %v3479 = vcvt.s32.f32 %v3447
  %v3480 = vcvt.s32.f32 %v3448
  %v3481 = vcvt.s32.f32 %v3449
  %v3482 = vcvt.s32.f32 %v3450
  %v3483 = vcvt.s32.f32 %v3451
  %v3484 = vcvt.s32.f32 %v3452
  %v3485 = vcvt.s32.f32 %v3453
  %v3486 = vcvt.s32.f32 %v3454
  %v3487 = vcvt.s32.f32 %v3455
  %v3488 = vcvt.s32.f32 %v3456
  %v3489 = vcvt.s32.f32 %v3457
  %v3490 = vcvt.s32.f32 %v3458
  %v3491 = vcvt.s32.f32 %v3459
  %v3493 = vsel %vm1860, %v2795, 0
  %3495 = vmatprep.subr.mxu0 0.0
  %3496 = vmatpush1.msra.mxu0 0.0
  %3497 = vmatprep.subr.mxu0 0.0
  %3498 = vmatpush1.msra.mxu0 0.0
  %3499 = vmatprep.subr.mxu0 0.0
  %3500 = vmatpush1.msra.mxu0 0.0
  %3501 = vmatprep.subr.mxu0 0.0
  %3502 = vmatpush1.msra.mxu0 0.0
  %3503 = vmatprep.subr.mxu0 0.0
  %3504 = vmatpush1.msra.mxu0 0.0
  %3505 = vmatprep.subr.mxu0 0.0
  %3506 = vmatpush1.msra.mxu0 0.0
  %3507 = vmatprep.subr.mxu0 0.0
  %3508 = vmatpush1.msra.mxu0 0.0
  %3509 = vmatprep.subr.mxu0 0.0
  %3510 = vmatpush1.msra.mxu0 0.0
  %3511 = vmatprep.subr.mxu0 0.0
  %3512 = vmatpush1.msra.mxu0 0.0
  %3513 = vmatprep.subr.mxu0 0.0
  %3514 = vmatpush1.msra.mxu0 0.0
  %3515 = vmatprep.subr.mxu0 0.0
  %3516 = vmatpush1.msra.mxu0 0.0
  %3517 = vmatprep.subr.mxu0 0.0
  %3518 = vmatpush1.msra.mxu0 0.0
  %3519 = vmatprep.subr.mxu0 %v3381
  %3520 = vmatpush1.msra.mxu0 %v3380
  %3521 = vmatprep.subr.mxu0 %v3373
  %3522 = vmatpush1.msra.mxu0 %v3372
  %3523 = vmatprep.subr.mxu0 %v3365
  %3524 = vmatpush1.msra.mxu0 %v3364
  %3525 = vmatprep.subr.mxu0 %v3357
  %3526 = vmatpush1.msra.mxu0 %v3356
  %3527 = vmatprep.subr.mxu0 0.0
  %3528 = vmatpush2.msra.mxu0 0.0
  %3529 = vmatprep.subr.mxu0 0.0
  %3530 = vmatpush2.msra.mxu0 0.0
  %3531 = vmatprep.subr.mxu0 0.0
  %3532 = vmatpush2.msra.mxu0 0.0
  %3533 = vmatprep.subr.mxu0 0.0
  %3534 = vmatpush2.msra.mxu0 0.0
  %3535 = vmatprep.subr.mxu0 0.0
  %3536 = vmatpush2.msra.mxu0 0.0
  %3537 = vmatprep.subr.mxu0 0.0
  %3538 = vmatpush2.msra.mxu0 0.0
  %3539 = vmatprep.subr.mxu0 0.0
  %3540 = vmatpush2.msra.mxu0 0.0
  %3541 = vmatprep.subr.mxu0 0.0
  %3542 = vmatpush2.msra.mxu0 0.0
  %3543 = vmatprep.subr.mxu0 0.0
  %3544 = vmatpush2.msra.mxu0 0.0
  %3545 = vmatprep.subr.mxu0 0.0
  %3546 = vmatpush2.msra.mxu0 0.0
  %3547 = vmatprep.subr.mxu0 0.0
  %3548 = vmatpush2.msra.mxu0 0.0
  %3549 = vmatprep.subr.mxu0 0.0
  %3550 = vmatpush2.msra.mxu0 0.0
  %3551 = vmatprep.subr.mxu0 0.0
  %3552 = vmatpush2.msra.mxu0 0.0
  %3553 = vmatprep.subr.mxu0 0.0
  %3554 = vmatpush2.msra.mxu0 0.0
  %3555 = vmatprep.subr.mxu0 0.0
  %3556 = vmatpush2.msra.mxu0 0.0
  %3557 = vmatprep.subr.mxu0 0.0
  %3558 = vmatpush2.msra.mxu0 0.0
  %3559 = vmatprep.mubr.f32.mxu0 0.0
  %3560 = vmatmul.mubr.f32.gmra.mxu0 %v3493
  %v3561 = vpop.f32.mrf.mxu0
  %v3562 = vadd.f32 0.0, %v3561
  %v3563 = vpop.f32.mrf.mxu0
  %v3564 = vadd.f32 0.0, %v3563
  %3565 = vdwg.mxu0
  %3566 = vmatprep.subr.mxu0 0.0
  %3567 = vmatpush1.msra.mxu0 0.0
  %3568 = vmatprep.subr.mxu0 0.0
  %3569 = vmatpush1.msra.mxu0 0.0
  %3570 = vmatprep.subr.mxu0 0.0
  %3571 = vmatpush1.msra.mxu0 0.0
  %3572 = vmatprep.subr.mxu0 0.0
  %3573 = vmatpush1.msra.mxu0 0.0
  %3574 = vmatprep.subr.mxu0 0.0
  %3575 = vmatpush1.msra.mxu0 0.0
  %3576 = vmatprep.subr.mxu0 0.0
  %3577 = vmatpush1.msra.mxu0 0.0
  %3578 = vmatprep.subr.mxu0 0.0
  %3579 = vmatpush1.msra.mxu0 0.0
  %3580 = vmatprep.subr.mxu0 0.0
  %3581 = vmatpush1.msra.mxu0 0.0
  %3582 = vmatprep.subr.mxu0 0.0
  %3583 = vmatpush1.msra.mxu0 0.0
  %3584 = vmatprep.subr.mxu0 0.0
  %3585 = vmatpush1.msra.mxu0 0.0
  %3586 = vmatprep.subr.mxu0 0.0
  %3587 = vmatpush1.msra.mxu0 0.0
  %3588 = vmatprep.subr.mxu0 0.0
  %3589 = vmatpush1.msra.mxu0 0.0
  %3590 = vmatprep.subr.mxu0 %v3383
  %3591 = vmatpush1.msra.mxu0 %v3382
  %3592 = vmatprep.subr.mxu0 %v3375
  %3593 = vmatpush1.msra.mxu0 %v3374
  %3594 = vmatprep.subr.mxu0 %v3367
  %3595 = vmatpush1.msra.mxu0 %v3366
  %3596 = vmatprep.subr.mxu0 %v3359
  %3597 = vmatpush1.msra.mxu0 %v3358
  %3598 = vmatprep.subr.mxu0 0.0
  %3599 = vmatpush2.msra.mxu0 0.0
  %3600 = vmatprep.subr.mxu0 0.0
  %3601 = vmatpush2.msra.mxu0 0.0
  %3602 = vmatprep.subr.mxu0 0.0
  %3603 = vmatpush2.msra.mxu0 0.0
  %3604 = vmatprep.subr.mxu0 0.0
  %3605 = vmatpush2.msra.mxu0 0.0
  %3606 = vmatprep.subr.mxu0 0.0
  %3607 = vmatpush2.msra.mxu0 0.0
  %3608 = vmatprep.subr.mxu0 0.0
  %3609 = vmatpush2.msra.mxu0 0.0
  %3610 = vmatprep.subr.mxu0 0.0
  %3611 = vmatpush2.msra.mxu0 0.0
  %3612 = vmatprep.subr.mxu0 0.0
  %3613 = vmatpush2.msra.mxu0 0.0
  %3614 = vmatprep.subr.mxu0 0.0
  %3615 = vmatpush2.msra.mxu0 0.0
  %3616 = vmatprep.subr.mxu0 0.0
  %3617 = vmatpush2.msra.mxu0 0.0
  %3618 = vmatprep.subr.mxu0 0.0
  %3619 = vmatpush2.msra.mxu0 0.0
  %3620 = vmatprep.subr.mxu0 0.0
  %3621 = vmatpush2.msra.mxu0 0.0
  %3622 = vmatprep.subr.mxu0 0.0
  %3623 = vmatpush2.msra.mxu0 0.0
  %3624 = vmatprep.subr.mxu0 0.0
  %3625 = vmatpush2.msra.mxu0 0.0
  %3626 = vmatprep.subr.mxu0 0.0
  %3627 = vmatpush2.msra.mxu0 0.0
  %3628 = vmatprep.subr.mxu0 0.0
  %3629 = vmatpush2.msra.mxu0 0.0
  %3630 = vmatprep.mubr.f32.mxu0 0.0
  %3631 = vmatmul.mubr.f32.gmra.mxu0 %v3493
  %v3632 = vpop.f32.mrf.mxu0
  %v3633 = vadd.f32 0.0, %v3632
  %v3634 = vpop.f32.mrf.mxu0
  %v3635 = vadd.f32 0.0, %v3634
  %3636 = vdwg.mxu0
  %3637 = vmatprep.subr.mxu0 0.0
  %3638 = vmatpush1.msra.mxu0 0.0
  %3639 = vmatprep.subr.mxu0 0.0
  %3640 = vmatpush1.msra.mxu0 0.0
  %3641 = vmatprep.subr.mxu0 0.0
  %3642 = vmatpush1.msra.mxu0 0.0
  %3643 = vmatprep.subr.mxu0 0.0
  %3644 = vmatpush1.msra.mxu0 0.0
  %3645 = vmatprep.subr.mxu0 0.0
  %3646 = vmatpush1.msra.mxu0 0.0
  %3647 = vmatprep.subr.mxu0 0.0
  %3648 = vmatpush1.msra.mxu0 0.0
  %3649 = vmatprep.subr.mxu0 0.0
  %3650 = vmatpush1.msra.mxu0 0.0
  %3651 = vmatprep.subr.mxu0 0.0
  %3652 = vmatpush1.msra.mxu0 0.0
  %3653 = vmatprep.subr.mxu0 0.0
  %3654 = vmatpush1.msra.mxu0 0.0
  %3655 = vmatprep.subr.mxu0 0.0
  %3656 = vmatpush1.msra.mxu0 0.0
  %3657 = vmatprep.subr.mxu0 0.0
  %3658 = vmatpush1.msra.mxu0 0.0
  %3659 = vmatprep.subr.mxu0 0.0
  %3660 = vmatpush1.msra.mxu0 0.0
  %3661 = vmatprep.subr.mxu0 %v3385
  %3662 = vmatpush1.msra.mxu0 %v3384
  %3663 = vmatprep.subr.mxu0 %v3377
  %3664 = vmatpush1.msra.mxu0 %v3376
  %3665 = vmatprep.subr.mxu0 %v3369
  %3666 = vmatpush1.msra.mxu0 %v3368
  %3667 = vmatprep.subr.mxu0 %v3361
  %3668 = vmatpush1.msra.mxu0 %v3360
  %3669 = vmatprep.subr.mxu0 0.0
  %3670 = vmatpush2.msra.mxu0 0.0
  %3671 = vmatprep.subr.mxu0 0.0
  %3672 = vmatpush2.msra.mxu0 0.0
  %3673 = vmatprep.subr.mxu0 0.0
  %3674 = vmatpush2.msra.mxu0 0.0
  %3675 = vmatprep.subr.mxu0 0.0
  %3676 = vmatpush2.msra.mxu0 0.0
  %3677 = vmatprep.subr.mxu0 0.0
  %3678 = vmatpush2.msra.mxu0 0.0
  %3679 = vmatprep.subr.mxu0 0.0
  %3680 = vmatpush2.msra.mxu0 0.0
  %3681 = vmatprep.subr.mxu0 0.0
  %3682 = vmatpush2.msra.mxu0 0.0
  %3683 = vmatprep.subr.mxu0 0.0
  %3684 = vmatpush2.msra.mxu0 0.0
  %3685 = vmatprep.subr.mxu0 0.0
  %3686 = vmatpush2.msra.mxu0 0.0
  %3687 = vmatprep.subr.mxu0 0.0
  %3688 = vmatpush2.msra.mxu0 0.0
  %3689 = vmatprep.subr.mxu0 0.0
  %3690 = vmatpush2.msra.mxu0 0.0
  %3691 = vmatprep.subr.mxu0 0.0
  %3692 = vmatpush2.msra.mxu0 0.0
  %3693 = vmatprep.subr.mxu0 0.0
  %3694 = vmatpush2.msra.mxu0 0.0
  %3695 = vmatprep.subr.mxu0 0.0
  %3696 = vmatpush2.msra.mxu0 0.0
  %3697 = vmatprep.subr.mxu0 0.0
  %3698 = vmatpush2.msra.mxu0 0.0
  %3699 = vmatprep.subr.mxu0 0.0
  %3700 = vmatpush2.msra.mxu0 0.0
  %3701 = vmatprep.mubr.f32.mxu0 0.0
  %3702 = vmatmul.mubr.f32.gmra.mxu0 %v3493
  %v3703 = vpop.f32.mrf.mxu0
  %v3704 = vadd.f32 0.0, %v3703
  %v3705 = vpop.f32.mrf.mxu0
  %v3706 = vadd.f32 0.0, %v3705
  %3707 = vdwg.mxu0
  %3708 = vmatprep.subr.mxu0 0.0
  %3709 = vmatpush1.msra.mxu0 0.0
  %3710 = vmatprep.subr.mxu0 0.0
  %3711 = vmatpush1.msra.mxu0 0.0
  %3712 = vmatprep.subr.mxu0 0.0
  %3713 = vmatpush1.msra.mxu0 0.0
  %3714 = vmatprep.subr.mxu0 0.0
  %3715 = vmatpush1.msra.mxu0 0.0
  %3716 = vmatprep.subr.mxu0 0.0
  %3717 = vmatpush1.msra.mxu0 0.0
  %3718 = vmatprep.subr.mxu0 0.0
  %3719 = vmatpush1.msra.mxu0 0.0
  %3720 = vmatprep.subr.mxu0 0.0
  %3721 = vmatpush1.msra.mxu0 0.0
  %3722 = vmatprep.subr.mxu0 0.0
  %3723 = vmatpush1.msra.mxu0 0.0
  %3724 = vmatprep.subr.mxu0 0.0
  %3725 = vmatpush1.msra.mxu0 0.0
  %3726 = vmatprep.subr.mxu0 0.0
  %3727 = vmatpush1.msra.mxu0 0.0
  %3728 = vmatprep.subr.mxu0 0.0
  %3729 = vmatpush1.msra.mxu0 0.0
  %3730 = vmatprep.subr.mxu0 0.0
  %3731 = vmatpush1.msra.mxu0 0.0
  %3732 = vmatprep.subr.mxu0 %v3387
  %3733 = vmatpush1.msra.mxu0 %v3386
  %3734 = vmatprep.subr.mxu0 %v3379
  %3735 = vmatpush1.msra.mxu0 %v3378
  %3736 = vmatprep.subr.mxu0 %v3371
  %3737 = vmatpush1.msra.mxu0 %v3370
  %3738 = vmatprep.subr.mxu0 %v3363
  %3739 = vmatpush1.msra.mxu0 %v3362
  %3740 = vmatprep.subr.mxu0 0.0
  %3741 = vmatpush2.msra.mxu0 0.0
  %3742 = vmatprep.subr.mxu0 0.0
  %3743 = vmatpush2.msra.mxu0 0.0
  %3744 = vmatprep.subr.mxu0 0.0
  %3745 = vmatpush2.msra.mxu0 0.0
  %3746 = vmatprep.subr.mxu0 0.0
  %3747 = vmatpush2.msra.mxu0 0.0
  %3748 = vmatprep.subr.mxu0 0.0
  %3749 = vmatpush2.msra.mxu0 0.0
  %3750 = vmatprep.subr.mxu0 0.0
  %3751 = vmatpush2.msra.mxu0 0.0
  %3752 = vmatprep.subr.mxu0 0.0
  %3753 = vmatpush2.msra.mxu0 0.0
  %3754 = vmatprep.subr.mxu0 0.0
  %3755 = vmatpush2.msra.mxu0 0.0
  %3756 = vmatprep.subr.mxu0 0.0
  %3757 = vmatpush2.msra.mxu0 0.0
  %3758 = vmatprep.subr.mxu0 0.0
  %3759 = vmatpush2.msra.mxu0 0.0
  %3760 = vmatprep.subr.mxu0 0.0
  %3761 = vmatpush2.msra.mxu0 0.0
  %3762 = vmatprep.subr.mxu0 0.0
  %3763 = vmatpush2.msra.mxu0 0.0
  %3764 = vmatprep.subr.mxu0 0.0
  %3765 = vmatpush2.msra.mxu0 0.0
  %3766 = vmatprep.subr.mxu0 0.0
  %3767 = vmatpush2.msra.mxu0 0.0
  %3768 = vmatprep.subr.mxu0 0.0
  %3769 = vmatpush2.msra.mxu0 0.0
  %3770 = vmatprep.subr.mxu0 0.0
  %3771 = vmatpush2.msra.mxu0 0.0
  %3772 = vmatprep.mubr.f32.mxu0 0.0
  %3773 = vmatmul.mubr.f32.gmra.mxu0 %v3493
  %v3774 = vpop.f32.mrf.mxu0
  %v3775 = vadd.f32 0.0, %v3774
  %v3776 = vpop.f32.mrf.mxu0
  %v3777 = vadd.f32 0.0, %v3776
  %3778 = vdwg.mxu0
  %v3780 = vsel %vm1860, %v3177, 0
  %3782 = vmatprep.subr.mxu0 0.0
  %3783 = vmatpush1.msra.mxu0 0.0
  %3784 = vmatprep.subr.mxu0 0.0
  %3785 = vmatpush1.msra.mxu0 0.0
  %3786 = vmatprep.subr.mxu0 0.0
  %3787 = vmatpush1.msra.mxu0 0.0
  %3788 = vmatprep.subr.mxu0 0.0
  %3789 = vmatpush1.msra.mxu0 0.0
  %3790 = vmatprep.subr.mxu0 0.0
  %3791 = vmatpush1.msra.mxu0 0.0
  %3792 = vmatprep.subr.mxu0 0.0
  %3793 = vmatpush1.msra.mxu0 0.0
  %3794 = vmatprep.subr.mxu0 0.0
  %3795 = vmatpush1.msra.mxu0 0.0
  %3796 = vmatprep.subr.mxu0 0.0
  %3797 = vmatpush1.msra.mxu0 0.0
  %3798 = vmatprep.subr.mxu0 0.0
  %3799 = vmatpush1.msra.mxu0 0.0
  %3800 = vmatprep.subr.mxu0 0.0
  %3801 = vmatpush1.msra.mxu0 0.0
  %3802 = vmatprep.subr.mxu0 0.0
  %3803 = vmatpush1.msra.mxu0 0.0
  %3804 = vmatprep.subr.mxu0 0.0
  %3805 = vmatpush1.msra.mxu0 0.0
  %3806 = vmatprep.subr.mxu0 %v3485
  %3807 = vmatpush1.msra.mxu0 %v3484
  %3808 = vmatprep.subr.mxu0 %v3477
  %3809 = vmatpush1.msra.mxu0 %v3476
  %3810 = vmatprep.subr.mxu0 %v3469
  %3811 = vmatpush1.msra.mxu0 %v3468
  %3812 = vmatprep.subr.mxu0 %v3461
  %3813 = vmatpush1.msra.mxu0 %v3460
  %3814 = vmatprep.subr.mxu0 0.0
  %3815 = vmatpush2.msra.mxu0 0.0
  %3816 = vmatprep.subr.mxu0 0.0
  %3817 = vmatpush2.msra.mxu0 0.0
  %3818 = vmatprep.subr.mxu0 0.0
  %3819 = vmatpush2.msra.mxu0 0.0
  %3820 = vmatprep.subr.mxu0 0.0
  %3821 = vmatpush2.msra.mxu0 0.0
  %3822 = vmatprep.subr.mxu0 0.0
  %3823 = vmatpush2.msra.mxu0 0.0
  %3824 = vmatprep.subr.mxu0 0.0
  %3825 = vmatpush2.msra.mxu0 0.0
  %3826 = vmatprep.subr.mxu0 0.0
  %3827 = vmatpush2.msra.mxu0 0.0
  %3828 = vmatprep.subr.mxu0 0.0
  %3829 = vmatpush2.msra.mxu0 0.0
  %3830 = vmatprep.subr.mxu0 0.0
  %3831 = vmatpush2.msra.mxu0 0.0
  %3832 = vmatprep.subr.mxu0 0.0
  %3833 = vmatpush2.msra.mxu0 0.0
  %3834 = vmatprep.subr.mxu0 0.0
  %3835 = vmatpush2.msra.mxu0 0.0
  %3836 = vmatprep.subr.mxu0 0.0
  %3837 = vmatpush2.msra.mxu0 0.0
  %3838 = vmatprep.subr.mxu0 0.0
  %3839 = vmatpush2.msra.mxu0 0.0
  %3840 = vmatprep.subr.mxu0 0.0
  %3841 = vmatpush2.msra.mxu0 0.0
  %3842 = vmatprep.subr.mxu0 0.0
  %3843 = vmatpush2.msra.mxu0 0.0
  %3844 = vmatprep.subr.mxu0 0.0
  %3845 = vmatpush2.msra.mxu0 0.0
  %3846 = vmatprep.mubr.f32.mxu0 0.0
  %3847 = vmatmul.mubr.f32.gmra.mxu0 %v3780
  %v3848 = vpop.f32.mrf.mxu0
  %v3849 = vadd.f32 0.0, %v3848
  %v3850 = vpop.f32.mrf.mxu0
  %v3851 = vadd.f32 0.0, %v3850
  %3852 = vdwg.mxu0
  %3853 = vmatprep.subr.mxu0 0.0
  %3854 = vmatpush1.msra.mxu0 0.0
  %3855 = vmatprep.subr.mxu0 0.0
  %3856 = vmatpush1.msra.mxu0 0.0
  %3857 = vmatprep.subr.mxu0 0.0
  %3858 = vmatpush1.msra.mxu0 0.0
  %3859 = vmatprep.subr.mxu0 0.0
  %3860 = vmatpush1.msra.mxu0 0.0
  %3861 = vmatprep.subr.mxu0 0.0
  %3862 = vmatpush1.msra.mxu0 0.0
  %3863 = vmatprep.subr.mxu0 0.0
  %3864 = vmatpush1.msra.mxu0 0.0
  %3865 = vmatprep.subr.mxu0 0.0
  %3866 = vmatpush1.msra.mxu0 0.0
  %3867 = vmatprep.subr.mxu0 0.0
  %3868 = vmatpush1.msra.mxu0 0.0
  %3869 = vmatprep.subr.mxu0 0.0
  %3870 = vmatpush1.msra.mxu0 0.0
  %3871 = vmatprep.subr.mxu0 0.0
  %3872 = vmatpush1.msra.mxu0 0.0
  %3873 = vmatprep.subr.mxu0 0.0
  %3874 = vmatpush1.msra.mxu0 0.0
  %3875 = vmatprep.subr.mxu0 0.0
  %3876 = vmatpush1.msra.mxu0 0.0
  %3877 = vmatprep.subr.mxu0 %v3487
  %3878 = vmatpush1.msra.mxu0 %v3486
  %3879 = vmatprep.subr.mxu0 %v3479
  %3880 = vmatpush1.msra.mxu0 %v3478
  %3881 = vmatprep.subr.mxu0 %v3471
  %3882 = vmatpush1.msra.mxu0 %v3470
  %3883 = vmatprep.subr.mxu0 %v3463
  %3884 = vmatpush1.msra.mxu0 %v3462
  %3885 = vmatprep.subr.mxu0 0.0
  %3886 = vmatpush2.msra.mxu0 0.0
  %3887 = vmatprep.subr.mxu0 0.0
  %3888 = vmatpush2.msra.mxu0 0.0
  %3889 = vmatprep.subr.mxu0 0.0
  %3890 = vmatpush2.msra.mxu0 0.0
  %3891 = vmatprep.subr.mxu0 0.0
  %3892 = vmatpush2.msra.mxu0 0.0
  %3893 = vmatprep.subr.mxu0 0.0
  %3894 = vmatpush2.msra.mxu0 0.0
  %3895 = vmatprep.subr.mxu0 0.0
  %3896 = vmatpush2.msra.mxu0 0.0
  %3897 = vmatprep.subr.mxu0 0.0
  %3898 = vmatpush2.msra.mxu0 0.0
  %3899 = vmatprep.subr.mxu0 0.0
  %3900 = vmatpush2.msra.mxu0 0.0
  %3901 = vmatprep.subr.mxu0 0.0
  %3902 = vmatpush2.msra.mxu0 0.0
  %3903 = vmatprep.subr.mxu0 0.0
  %3904 = vmatpush2.msra.mxu0 0.0
  %3905 = vmatprep.subr.mxu0 0.0
  %3906 = vmatpush2.msra.mxu0 0.0
  %3907 = vmatprep.subr.mxu0 0.0
  %3908 = vmatpush2.msra.mxu0 0.0
  %3909 = vmatprep.subr.mxu0 0.0
  %3910 = vmatpush2.msra.mxu0 0.0
  %3911 = vmatprep.subr.mxu0 0.0
  %3912 = vmatpush2.msra.mxu0 0.0
  %3913 = vmatprep.subr.mxu0 0.0
  %3914 = vmatpush2.msra.mxu0 0.0
  %3915 = vmatprep.subr.mxu0 0.0
  %3916 = vmatpush2.msra.mxu0 0.0
  %3917 = vmatprep.mubr.f32.mxu0 0.0
  %3918 = vmatmul.mubr.f32.gmra.mxu0 %v3780
  %v3919 = vpop.f32.mrf.mxu0
  %v3920 = vadd.f32 0.0, %v3919
  %v3921 = vpop.f32.mrf.mxu0
  %v3922 = vadd.f32 0.0, %v3921
  %3923 = vdwg.mxu0
  %3924 = vmatprep.subr.mxu0 0.0
  %3925 = vmatpush1.msra.mxu0 0.0
  %3926 = vmatprep.subr.mxu0 0.0
  %3927 = vmatpush1.msra.mxu0 0.0
  %3928 = vmatprep.subr.mxu0 0.0
  %3929 = vmatpush1.msra.mxu0 0.0
  %3930 = vmatprep.subr.mxu0 0.0
  %3931 = vmatpush1.msra.mxu0 0.0
  %3932 = vmatprep.subr.mxu0 0.0
  %3933 = vmatpush1.msra.mxu0 0.0
  %3934 = vmatprep.subr.mxu0 0.0
  %3935 = vmatpush1.msra.mxu0 0.0
  %3936 = vmatprep.subr.mxu0 0.0
  %3937 = vmatpush1.msra.mxu0 0.0
  %3938 = vmatprep.subr.mxu0 0.0
  %3939 = vmatpush1.msra.mxu0 0.0
  %3940 = vmatprep.subr.mxu0 0.0
  %3941 = vmatpush1.msra.mxu0 0.0
  %3942 = vmatprep.subr.mxu0 0.0
  %3943 = vmatpush1.msra.mxu0 0.0
  %3944 = vmatprep.subr.mxu0 0.0
  %3945 = vmatpush1.msra.mxu0 0.0
  %3946 = vmatprep.subr.mxu0 0.0
  %3947 = vmatpush1.msra.mxu0 0.0
  %3948 = vmatprep.subr.mxu0 %v3489
  %3949 = vmatpush1.msra.mxu0 %v3488
  %3950 = vmatprep.subr.mxu0 %v3481
  %3951 = vmatpush1.msra.mxu0 %v3480
  %3952 = vmatprep.subr.mxu0 %v3473
  %3953 = vmatpush1.msra.mxu0 %v3472
  %3954 = vmatprep.subr.mxu0 %v3465
  %3955 = vmatpush1.msra.mxu0 %v3464
  %3956 = vmatprep.subr.mxu0 0.0
  %3957 = vmatpush2.msra.mxu0 0.0
  %3958 = vmatprep.subr.mxu0 0.0
  %3959 = vmatpush2.msra.mxu0 0.0
  %3960 = vmatprep.subr.mxu0 0.0
  %3961 = vmatpush2.msra.mxu0 0.0
  %3962 = vmatprep.subr.mxu0 0.0
  %3963 = vmatpush2.msra.mxu0 0.0
  %3964 = vmatprep.subr.mxu0 0.0
  %3965 = vmatpush2.msra.mxu0 0.0
  %3966 = vmatprep.subr.mxu0 0.0
  %3967 = vmatpush2.msra.mxu0 0.0
  %3968 = vmatprep.subr.mxu0 0.0
  %3969 = vmatpush2.msra.mxu0 0.0
  %3970 = vmatprep.subr.mxu0 0.0
  %3971 = vmatpush2.msra.mxu0 0.0
  %3972 = vmatprep.subr.mxu0 0.0
  %3973 = vmatpush2.msra.mxu0 0.0
  %3974 = vmatprep.subr.mxu0 0.0
  %3975 = vmatpush2.msra.mxu0 0.0
  %3976 = vmatprep.subr.mxu0 0.0
  %3977 = vmatpush2.msra.mxu0 0.0
  %3978 = vmatprep.subr.mxu0 0.0
  %3979 = vmatpush2.msra.mxu0 0.0
  %3980 = vmatprep.subr.mxu0 0.0
  %3981 = vmatpush2.msra.mxu0 0.0
  %3982 = vmatprep.subr.mxu0 0.0
  %3983 = vmatpush2.msra.mxu0 0.0
  %3984 = vmatprep.subr.mxu0 0.0
  %3985 = vmatpush2.msra.mxu0 0.0
  %3986 = vmatprep.subr.mxu0 0.0
  %3987 = vmatpush2.msra.mxu0 0.0
  %3988 = vmatprep.mubr.f32.mxu0 0.0
  %3989 = vmatmul.mubr.f32.gmra.mxu0 %v3780
  %v3990 = vpop.f32.mrf.mxu0
  %v3991 = vadd.f32 0.0, %v3990
  %v3992 = vpop.f32.mrf.mxu0
  %v3993 = vadd.f32 0.0, %v3992
  %3994 = vdwg.mxu0
  %3995 = vmatprep.subr.mxu0 0.0
  %3996 = vmatpush1.msra.mxu0 0.0
  %3997 = vmatprep.subr.mxu0 0.0
  %3998 = vmatpush1.msra.mxu0 0.0
  %3999 = vmatprep.subr.mxu0 0.0
  %4000 = vmatpush1.msra.mxu0 0.0
  %4001 = vmatprep.subr.mxu0 0.0
  %4002 = vmatpush1.msra.mxu0 0.0
  %4003 = vmatprep.subr.mxu0 0.0
  %4004 = vmatpush1.msra.mxu0 0.0
  %4005 = vmatprep.subr.mxu0 0.0
  %4006 = vmatpush1.msra.mxu0 0.0
  %4007 = vmatprep.subr.mxu0 0.0
  %4008 = vmatpush1.msra.mxu0 0.0
  %4009 = vmatprep.subr.mxu0 0.0
  %4010 = vmatpush1.msra.mxu0 0.0
  %4011 = vmatprep.subr.mxu0 0.0
  %4012 = vmatpush1.msra.mxu0 0.0
  %4013 = vmatprep.subr.mxu0 0.0
  %4014 = vmatpush1.msra.mxu0 0.0
  %4015 = vmatprep.subr.mxu0 0.0
  %4016 = vmatpush1.msra.mxu0 0.0
  %4017 = vmatprep.subr.mxu0 0.0
  %4018 = vmatpush1.msra.mxu0 0.0
  %4019 = vmatprep.subr.mxu0 %v3491
  %4020 = vmatpush1.msra.mxu0 %v3490
  %4021 = vmatprep.subr.mxu0 %v3483
  %4022 = vmatpush1.msra.mxu0 %v3482
  %4023 = vmatprep.subr.mxu0 %v3475
  %4024 = vmatpush1.msra.mxu0 %v3474
  %4025 = vmatprep.subr.mxu0 %v3467
  %4026 = vmatpush1.msra.mxu0 %v3466
  %4027 = vmatprep.subr.mxu0 0.0
  %4028 = vmatpush2.msra.mxu0 0.0
  %4029 = vmatprep.subr.mxu0 0.0
  %4030 = vmatpush2.msra.mxu0 0.0
  %4031 = vmatprep.subr.mxu0 0.0
  %4032 = vmatpush2.msra.mxu0 0.0
  %4033 = vmatprep.subr.mxu0 0.0
  %4034 = vmatpush2.msra.mxu0 0.0
  %4035 = vmatprep.subr.mxu0 0.0
  %4036 = vmatpush2.msra.mxu0 0.0
  %4037 = vmatprep.subr.mxu0 0.0
  %4038 = vmatpush2.msra.mxu0 0.0
  %4039 = vmatprep.subr.mxu0 0.0
  %4040 = vmatpush2.msra.mxu0 0.0
  %4041 = vmatprep.subr.mxu0 0.0
  %4042 = vmatpush2.msra.mxu0 0.0
  %4043 = vmatprep.subr.mxu0 0.0
  %4044 = vmatpush2.msra.mxu0 0.0
  %4045 = vmatprep.subr.mxu0 0.0
  %4046 = vmatpush2.msra.mxu0 0.0
  %4047 = vmatprep.subr.mxu0 0.0
  %4048 = vmatpush2.msra.mxu0 0.0
  %4049 = vmatprep.subr.mxu0 0.0
  %4050 = vmatpush2.msra.mxu0 0.0
  %4051 = vmatprep.subr.mxu0 0.0
  %4052 = vmatpush2.msra.mxu0 0.0
  %4053 = vmatprep.subr.mxu0 0.0
  %4054 = vmatpush2.msra.mxu0 0.0
  %4055 = vmatprep.subr.mxu0 0.0
  %4056 = vmatpush2.msra.mxu0 0.0
  %4057 = vmatprep.subr.mxu0 0.0
  %4058 = vmatpush2.msra.mxu0 0.0
  %4059 = vmatprep.mubr.f32.mxu0 0.0
  %4060 = vmatmul.mubr.f32.gmra.mxu0 %v3780
  %v4061 = vpop.f32.mrf.mxu0
  %v4062 = vadd.f32 0.0, %v4061
  %v4063 = vpop.f32.mrf.mxu0
  %v4064 = vadd.f32 0.0, %v4063
  %4065 = vdwg.mxu0
  %v4066 = vmul.f32 %v3562, %v3849
  %v4067 = vmul.f32 %v3564, %v3851
  %v4068 = vmul.f32 %v3633, %v3920
  %v4069 = vmul.f32 %v3635, %v3922
  %v4070 = vmul.f32 %v3704, %v3991
  %v4071 = vmul.f32 %v3706, %v3993
  %v4072 = vmul.f32 %v3775, %v4062
  %v4073 = vmul.f32 %v3777, %v4064
  %v4074 = vld [vmem:[%s45] sm:$0xff]
  %v4075 = vld [vmem:[%s45 + $0x8] sm:$0xff]
  %v4076 = vld [vmem:[%s45 + $0x10] sm:$0xff]
  %v4077 = vld [vmem:[%s45 + $0x18] sm:$0xff]
  %v4078 = vld [vmem:[%s47] sm:$0xff]
  %v4079 = vld [vmem:[%s47 + $0x8] sm:$0xff]
  %v4080 = vld [vmem:[%s47 + $0x10] sm:$0xff]
  %v4081 = vld [vmem:[%s47 + $0x18] sm:$0xff]
  %4082 = vmatprep.subr.mxu0 0.0
  %4083 = vmatpush1.msra.mxu0 0.0
  %4084 = vmatprep.subr.mxu0 0.0
  %4085 = vmatpush1.msra.mxu0 0.0
  %4086 = vmatprep.subr.mxu0 0.0
  %4087 = vmatpush1.msra.mxu0 0.0
  %4088 = vmatprep.subr.mxu0 0.0
  %4089 = vmatpush1.msra.mxu0 0.0
  %4090 = vmatprep.subr.mxu0 0.0
  %4091 = vmatpush1.msra.mxu0 0.0
  %4092 = vmatprep.subr.mxu0 0.0
  %4093 = vmatpush1.msra.mxu0 0.0
  %4094 = vmatprep.subr.mxu0 0.0
  %4095 = vmatpush1.msra.mxu0 0.0
  %4096 = vmatprep.subr.mxu0 0.0
  %4097 = vmatpush1.msra.mxu0 0.0
  %4098 = vmatprep.subr.mxu0 0.0
  %4099 = vmatpush1.msra.mxu0 0.0
  %4100 = vmatprep.subr.mxu0 0.0
  %4101 = vmatpush1.msra.mxu0 0.0
  %4102 = vmatprep.subr.mxu0 0.0
  %4103 = vmatpush1.msra.mxu0 0.0
  %4104 = vmatprep.subr.mxu0 0.0
  %4105 = vmatpush1.msra.mxu0 0.0
  %4106 = vmatprep.subr.mxu0 0.0
  %4107 = vmatpush1.msra.mxu0 %v4081
  %4108 = vmatprep.subr.mxu0 0.0
  %4109 = vmatpush1.msra.mxu0 %v4080
  %4110 = vmatprep.subr.mxu0 0.0
  %4111 = vmatpush1.msra.mxu0 %v4079
  %4112 = vmatprep.subr.mxu0 0.0
  %4113 = vmatpush1.msra.mxu0 %v4078
  %4114 = vmatprep.subr.mxu0 0.0
  %4115 = vmatpush2.msra.mxu0 0.0
  %4116 = vmatprep.subr.mxu0 0.0
  %4117 = vmatpush2.msra.mxu0 0.0
  %4118 = vmatprep.subr.mxu0 0.0
  %4119 = vmatpush2.msra.mxu0 0.0
  %4120 = vmatprep.subr.mxu0 0.0
  %4121 = vmatpush2.msra.mxu0 0.0
  %4122 = vmatprep.subr.mxu0 0.0
  %4123 = vmatpush2.msra.mxu0 0.0
  %4124 = vmatprep.subr.mxu0 0.0
  %4125 = vmatpush2.msra.mxu0 0.0
  %4126 = vmatprep.subr.mxu0 0.0
  %4127 = vmatpush2.msra.mxu0 0.0
  %4128 = vmatprep.subr.mxu0 0.0
  %4129 = vmatpush2.msra.mxu0 0.0
  %4130 = vmatprep.subr.mxu0 0.0
  %4131 = vmatpush2.msra.mxu0 0.0
  %4132 = vmatprep.subr.mxu0 0.0
  %4133 = vmatpush2.msra.mxu0 0.0
  %4134 = vmatprep.subr.mxu0 0.0
  %4135 = vmatpush2.msra.mxu0 0.0
  %4136 = vmatprep.subr.mxu0 0.0
  %4137 = vmatpush2.msra.mxu0 0.0
  %4138 = vmatprep.subr.mxu0 0.0
  %4139 = vmatpush2.msra.mxu0 0.0
  %4140 = vmatprep.subr.mxu0 0.0
  %4141 = vmatpush2.msra.mxu0 0.0
  %4142 = vmatprep.subr.mxu0 0.0
  %4143 = vmatpush2.msra.mxu0 0.0
  %4144 = vmatprep.subr.mxu0 0.0
  %4145 = vmatpush2.msra.mxu0 0.0
  %4146 = vmatprep.mubr.f32.mxu0 0.0
  %4147 = vmatmul.mubr.f32.gmra.mxu0 %v3780
  %v4148 = vpop.f32.mrf.mxu0
  %v4149 = vadd.f32 0.0, %v4148
  %v4150 = vpop.f32.mrf.mxu0
  %4151 = vdwg.mxu0
  %4152 = vmatprep.subr.mxu0 0.0
  %4153 = vmatpush1.msra.mxu0 0.0
  %4154 = vmatprep.subr.mxu0 0.0
  %4155 = vmatpush1.msra.mxu0 0.0
  %4156 = vmatprep.subr.mxu0 0.0
  %4157 = vmatpush1.msra.mxu0 0.0
  %4158 = vmatprep.subr.mxu0 0.0
  %4159 = vmatpush1.msra.mxu0 0.0
  %4160 = vmatprep.subr.mxu0 0.0
  %4161 = vmatpush1.msra.mxu0 0.0
  %4162 = vmatprep.subr.mxu0 0.0
  %4163 = vmatpush1.msra.mxu0 0.0
  %4164 = vmatprep.subr.mxu0 0.0
  %4165 = vmatpush1.msra.mxu0 0.0
  %4166 = vmatprep.subr.mxu0 0.0
  %4167 = vmatpush1.msra.mxu0 0.0
  %4168 = vmatprep.subr.mxu0 0.0
  %4169 = vmatpush1.msra.mxu0 0.0
  %4170 = vmatprep.subr.mxu0 0.0
  %4171 = vmatpush1.msra.mxu0 0.0
  %4172 = vmatprep.subr.mxu0 0.0
  %4173 = vmatpush1.msra.mxu0 0.0
  %4174 = vmatprep.subr.mxu0 0.0
  %4175 = vmatpush1.msra.mxu0 0.0
  %4176 = vmatprep.subr.mxu0 0.0
  %4177 = vmatpush1.msra.mxu0 %v4077
  %4178 = vmatprep.subr.mxu0 0.0
  %4179 = vmatpush1.msra.mxu0 %v4076
  %4180 = vmatprep.subr.mxu0 0.0
  %4181 = vmatpush1.msra.mxu0 %v4075
  %4182 = vmatprep.subr.mxu0 0.0
  %4183 = vmatpush1.msra.mxu0 %v4074
  %4184 = vmatprep.subr.mxu0 0.0
  %4185 = vmatpush2.msra.mxu0 0.0
  %4186 = vmatprep.subr.mxu0 0.0
  %4187 = vmatpush2.msra.mxu0 0.0
  %4188 = vmatprep.subr.mxu0 0.0
  %4189 = vmatpush2.msra.mxu0 0.0
  %4190 = vmatprep.subr.mxu0 0.0
  %4191 = vmatpush2.msra.mxu0 0.0
  %4192 = vmatprep.subr.mxu0 0.0
  %4193 = vmatpush2.msra.mxu0 0.0
  %4194 = vmatprep.subr.mxu0 0.0
  %4195 = vmatpush2.msra.mxu0 0.0
  %4196 = vmatprep.subr.mxu0 0.0
  %4197 = vmatpush2.msra.mxu0 0.0
  %4198 = vmatprep.subr.mxu0 0.0
  %4199 = vmatpush2.msra.mxu0 0.0
  %4200 = vmatprep.subr.mxu0 0.0
  %4201 = vmatpush2.msra.mxu0 0.0
  %4202 = vmatprep.subr.mxu0 0.0
  %4203 = vmatpush2.msra.mxu0 0.0
  %4204 = vmatprep.subr.mxu0 0.0
  %4205 = vmatpush2.msra.mxu0 0.0
  %4206 = vmatprep.subr.mxu0 0.0
  %4207 = vmatpush2.msra.mxu0 0.0
  %4208 = vmatprep.subr.mxu0 0.0
  %4209 = vmatpush2.msra.mxu0 0.0
  %4210 = vmatprep.subr.mxu0 0.0
  %4211 = vmatpush2.msra.mxu0 0.0
  %4212 = vmatprep.subr.mxu0 0.0
  %4213 = vmatpush2.msra.mxu0 0.0
  %4214 = vmatprep.subr.mxu0 0.0
  %4215 = vmatpush2.msra.mxu0 0.0
  %4216 = vmatprep.mubr.f32.mxu0 0.0
  %4217 = vmatmul.mubr.f32.gmra.mxu0 %v3493
  %v4218 = vpop.f32.mrf.mxu0
  %v4219 = vadd.f32 %v4149, %v4218
  %v4220 = vpop.f32.mrf.mxu0
  %4221 = vdwg.mxu0
  %v4222 = vld [vmem:[%s43] sm:$0x1]
  %v4224 = vlaneseq
  %v4225 = vshrl.u32 %v4224, 7
  %v4226 = vsub.s32 0, %v4225
  %v4227 = vrot.slane %v4222, %v4226
  %v4229 = vadd.f32 %v4219, %v4227
  %v4230 = vmax.f32 %v4229, 0.0
  %v4231 = vld [vmem:[%s91] sm:$0xff]
  %v4232 = vld [vmem:[%s91 + $0x8] sm:$0xff]
  %v4233 = vld [vmem:[%s91 + $0x10] sm:$0xff]
  %v4234 = vld [vmem:[%s91 + $0x18] sm:$0xff]
  %v4235 = vld [vmem:[%s91 + $0x20] sm:$0xff]
  %v4236 = vld [vmem:[%s91 + $0x28] sm:$0xff]
  %v4237 = vld [vmem:[%s91 + $0x30] sm:$0xff]
  %v4238 = vld [vmem:[%s91 + $0x38] sm:$0xff]
  %v4239 = vld [vmem:[%s91 + $0x40] sm:$0xff]
  %v4240 = vld [vmem:[%s91 + $0x48] sm:$0xff]
  %v4241 = vld [vmem:[%s91 + $0x50] sm:$0xff]
  %v4242 = vld [vmem:[%s91 + $0x58] sm:$0xff]
  %v4243 = vld [vmem:[%s91 + $0x60] sm:$0xff]
  %v4244 = vld [vmem:[%s91 + $0x68] sm:$0xff]
  %v4245 = vld [vmem:[%s91 + $0x70] sm:$0xff]
  %v4246 = vld [vmem:[%s91 + $0x78] sm:$0xff]
  %v4247 = vld [vmem:[%s91 + $0x80] sm:$0xff]
  %v4248 = vld [vmem:[%s91 + $0x88] sm:$0xff]
  %v4249 = vld [vmem:[%s91 + $0x90] sm:$0xff]
  %v4250 = vld [vmem:[%s91 + $0x98] sm:$0xff]
  %v4251 = vld [vmem:[%s91 + $0xa0] sm:$0xff]
  %v4252 = vld [vmem:[%s91 + $0xa8] sm:$0xff]
  %v4253 = vld [vmem:[%s91 + $0xb0] sm:$0xff]
  %v4254 = vld [vmem:[%s91 + $0xb8] sm:$0xff]
  %v4255 = vld [vmem:[%s91 + $0xc0] sm:$0xff]
  %v4256 = vld [vmem:[%s91 + $0xc8] sm:$0xff]
  %v4257 = vld [vmem:[%s91 + $0xd0] sm:$0xff]
  %v4258 = vld [vmem:[%s91 + $0xd8] sm:$0xff]
  %v4259 = vld [vmem:[%s91 + $0xe0] sm:$0xff]
  %v4260 = vld [vmem:[%s91 + $0xe8] sm:$0xff]
  %v4261 = vld [vmem:[%s91 + $0xf0] sm:$0xff]
  %v4262 = vld [vmem:[%s91 + $0xf8] sm:$0xff]
  %v4263 = vld [vmem:[%s91 + $0x100] sm:$0xff]
  %v4264 = vld [vmem:[%s91 + $0x108] sm:$0xff]
  %v4265 = vld [vmem:[%s91 + $0x110] sm:$0xff]
  %v4266 = vld [vmem:[%s91 + $0x118] sm:$0xff]
  %v4267 = vld [vmem:[%s91 + $0x120] sm:$0xff]
  %v4268 = vld [vmem:[%s91 + $0x128] sm:$0xff]
  %v4269 = vld [vmem:[%s91 + $0x130] sm:$0xff]
  %v4270 = vld [vmem:[%s91 + $0x138] sm:$0xff]
  %v4271 = vld [vmem:[%s91 + $0x140] sm:$0xff]
  %v4272 = vld [vmem:[%s91 + $0x148] sm:$0xff]
  %v4273 = vld [vmem:[%s91 + $0x150] sm:$0xff]
  %v4274 = vld [vmem:[%s91 + $0x158] sm:$0xff]
  %v4275 = vld [vmem:[%s91 + $0x160] sm:$0xff]
  %v4276 = vld [vmem:[%s91 + $0x168] sm:$0xff]
  %v4277 = vld [vmem:[%s91 + $0x170] sm:$0xff]
  %v4278 = vld [vmem:[%s91 + $0x178] sm:$0xff]
  %v4279 = vld [vmem:[%s91 + $0x180] sm:$0xff]
  %v4280 = vld [vmem:[%s91 + $0x188] sm:$0xff]
  %v4281 = vld [vmem:[%s91 + $0x190] sm:$0xff]
  %v4282 = vld [vmem:[%s91 + $0x198] sm:$0xff]
  %v4283 = vld [vmem:[%s91 + $0x1a0] sm:$0xff]
  %v4284 = vld [vmem:[%s91 + $0x1a8] sm:$0xff]
  %v4285 = vld [vmem:[%s91 + $0x1b0] sm:$0xff]
  %v4286 = vld [vmem:[%s91 + $0x1b8] sm:$0xff]
  %v4287 = vld [vmem:[%s91 + $0x1c0] sm:$0xff]
  %v4288 = vld [vmem:[%s91 + $0x1c8] sm:$0xff]
  %v4289 = vld [vmem:[%s91 + $0x1d0] sm:$0xff]
  %v4290 = vld [vmem:[%s91 + $0x1d8] sm:$0xff]
  %v4291 = vld [vmem:[%s91 + $0x1e0] sm:$0xff]
  %v4292 = vld [vmem:[%s91 + $0x1e8] sm:$0xff]
  %v4293 = vld [vmem:[%s91 + $0x1f0] sm:$0xff]
  %v4294 = vld [vmem:[%s91 + $0x1f8] sm:$0xff]
  %v4295 = vld [vmem:[%s91 + $0x200] sm:$0xff]
  %v4296 = vld [vmem:[%s91 + $0x208] sm:$0xff]
  %v4297 = vld [vmem:[%s91 + $0x210] sm:$0xff]
  %v4298 = vld [vmem:[%s91 + $0x218] sm:$0xff]
  %v4299 = vld [vmem:[%s91 + $0x220] sm:$0xff]
  %v4300 = vld [vmem:[%s91 + $0x228] sm:$0xff]
  %v4301 = vld [vmem:[%s91 + $0x230] sm:$0xff]
  %v4302 = vld [vmem:[%s91 + $0x238] sm:$0xff]
  %v4303 = vld [vmem:[%s91 + $0x240] sm:$0xff]
  %v4304 = vld [vmem:[%s91 + $0x248] sm:$0xff]
  %v4305 = vld [vmem:[%s91 + $0x250] sm:$0xff]
  %v4306 = vld [vmem:[%s91 + $0x258] sm:$0xff]
  %v4307 = vld [vmem:[%s91 + $0x260] sm:$0xff]
  %v4308 = vld [vmem:[%s91 + $0x268] sm:$0xff]
  %v4309 = vld [vmem:[%s91 + $0x270] sm:$0xff]
  %v4310 = vld [vmem:[%s91 + $0x278] sm:$0xff]
  %v4311 = vld [vmem:[%s91 + $0x280] sm:$0xff]
  %v4312 = vld [vmem:[%s91 + $0x288] sm:$0xff]
  %v4313 = vld [vmem:[%s91 + $0x290] sm:$0xff]
  %v4314 = vld [vmem:[%s91 + $0x298] sm:$0xff]
  %v4315 = vld [vmem:[%s91 + $0x2a0] sm:$0xff]
  %v4316 = vld [vmem:[%s91 + $0x2a8] sm:$0xff]
  %v4317 = vld [vmem:[%s91 + $0x2b0] sm:$0xff]
  %v4318 = vld [vmem:[%s91 + $0x2b8] sm:$0xff]
  %v4319 = vld [vmem:[%s91 + $0x2c0] sm:$0xff]
  %v4320 = vld [vmem:[%s91 + $0x2c8] sm:$0xff]
  %v4321 = vld [vmem:[%s91 + $0x2d0] sm:$0xff]
  %v4322 = vld [vmem:[%s91 + $0x2d8] sm:$0xff]
  %v4323 = vld [vmem:[%s91 + $0x2e0] sm:$0xff]
  %v4324 = vld [vmem:[%s91 + $0x2e8] sm:$0xff]
  %v4325 = vld [vmem:[%s91 + $0x2f0] sm:$0xff]
  %v4326 = vld [vmem:[%s91 + $0x2f8] sm:$0xff]
  %v4327 = vld [vmem:[%s91 + $0x300] sm:$0xff]
  %v4328 = vld [vmem:[%s91 + $0x308] sm:$0xff]
  %v4329 = vld [vmem:[%s91 + $0x310] sm:$0xff]
  %v4330 = vld [vmem:[%s91 + $0x318] sm:$0xff]
  %v4331 = vld [vmem:[%s91 + $0x320] sm:$0xff]
  %v4332 = vld [vmem:[%s91 + $0x328] sm:$0xff]
  %v4333 = vld [vmem:[%s91 + $0x330] sm:$0xff]
  %v4334 = vld [vmem:[%s91 + $0x338] sm:$0xff]
  %v4335 = vld [vmem:[%s91 + $0x340] sm:$0xff]
  %v4336 = vld [vmem:[%s91 + $0x348] sm:$0xff]
  %v4337 = vld [vmem:[%s91 + $0x350] sm:$0xff]
  %v4338 = vld [vmem:[%s91 + $0x358] sm:$0xff]
  %v4339 = vld [vmem:[%s91 + $0x360] sm:$0xff]
  %v4340 = vld [vmem:[%s91 + $0x368] sm:$0xff]
  %v4341 = vld [vmem:[%s91 + $0x370] sm:$0xff]
  %v4342 = vld [vmem:[%s91 + $0x378] sm:$0xff]
  %v4343 = vld [vmem:[%s91 + $0x380] sm:$0xff]
  %v4344 = vld [vmem:[%s91 + $0x388] sm:$0xff]
  %v4345 = vld [vmem:[%s91 + $0x390] sm:$0xff]
  %v4346 = vld [vmem:[%s91 + $0x398] sm:$0xff]
  %v4347 = vld [vmem:[%s91 + $0x3a0] sm:$0xff]
  %v4348 = vld [vmem:[%s91 + $0x3a8] sm:$0xff]
  %v4349 = vld [vmem:[%s91 + $0x3b0] sm:$0xff]
  %v4350 = vld [vmem:[%s91 + $0x3b8] sm:$0xff]
  %v4351 = vld [vmem:[%s91 + $0x3c0] sm:$0xff]
  %v4352 = vld [vmem:[%s91 + $0x3c8] sm:$0xff]
  %v4353 = vld [vmem:[%s91 + $0x3d0] sm:$0xff]
  %v4354 = vld [vmem:[%s91 + $0x3d8] sm:$0xff]
  %v4355 = vld [vmem:[%s91 + $0x3e0] sm:$0xff]
  %v4356 = vld [vmem:[%s91 + $0x3e8] sm:$0xff]
  %v4357 = vld [vmem:[%s91 + $0x3f0] sm:$0xff]
  %v4358 = vld [vmem:[%s91 + $0x3f8] sm:$0xff]
  %v4359 = vld [vmem:[%s89] sm:$0x1]
  %v4361 = vlaneseq
  %v4362 = vshrl.u32 %v4361, 7
  %v4363 = vsub.s32 0, %v4362
  %v4364 = vrot.slane %v4359, %v4363
  %4366 = vmatprep.subr.mxu0 0.0
  %4367 = vmatpush1.msra.mxu0 %v4246
  %4368 = vmatprep.subr.mxu0 0.0
  %4369 = vmatpush1.msra.mxu0 %v4245
  %4370 = vmatprep.subr.mxu0 0.0
  %4371 = vmatpush1.msra.mxu0 %v4244
  %4372 = vmatprep.subr.mxu0 0.0
  %4373 = vmatpush1.msra.mxu0 %v4243
  %4374 = vmatprep.subr.mxu0 0.0
  %4375 = vmatpush1.msra.mxu0 %v4242
  %4376 = vmatprep.subr.mxu0 0.0
  %4377 = vmatpush1.msra.mxu0 %v4241
  %4378 = vmatprep.subr.mxu0 0.0
  %4379 = vmatpush1.msra.mxu0 %v4240
  %4380 = vmatprep.subr.mxu0 0.0
  %4381 = vmatpush1.msra.mxu0 %v4239
  %4382 = vmatprep.subr.mxu0 0.0
  %4383 = vmatpush1.msra.mxu0 %v4238
  %4384 = vmatprep.subr.mxu0 0.0
  %4385 = vmatpush1.msra.mxu0 %v4237
  %4386 = vmatprep.subr.mxu0 0.0
  %4387 = vmatpush1.msra.mxu0 %v4236
  %4388 = vmatprep.subr.mxu0 0.0
  %4389 = vmatpush1.msra.mxu0 %v4235
  %4390 = vmatprep.subr.mxu0 0.0
  %4391 = vmatpush1.msra.mxu0 %v4234
  %4392 = vmatprep.subr.mxu0 0.0
  %4393 = vmatpush1.msra.mxu0 %v4233
  %4394 = vmatprep.subr.mxu0 0.0
  %4395 = vmatpush1.msra.mxu0 %v4232
  %4396 = vmatprep.subr.mxu0 0.0
  %4397 = vmatpush1.msra.mxu0 %v4231
  %4398 = vmatprep.subr.mxu0 0.0
  %4399 = vmatpush2.msra.mxu0 %v4262
  %4400 = vmatprep.subr.mxu0 0.0
  %4401 = vmatpush2.msra.mxu0 %v4261
  %4402 = vmatprep.subr.mxu0 0.0
  %4403 = vmatpush2.msra.mxu0 %v4260
  %4404 = vmatprep.subr.mxu0 0.0
  %4405 = vmatpush2.msra.mxu0 %v4259
  %4406 = vmatprep.subr.mxu0 0.0
  %4407 = vmatpush2.msra.mxu0 %v4258
  %4408 = vmatprep.subr.mxu0 0.0
  %4409 = vmatpush2.msra.mxu0 %v4257
  %4410 = vmatprep.subr.mxu0 0.0
  %4411 = vmatpush2.msra.mxu0 %v4256
  %4412 = vmatprep.subr.mxu0 0.0
  %4413 = vmatpush2.msra.mxu0 %v4255
  %4414 = vmatprep.subr.mxu0 0.0
  %4415 = vmatpush2.msra.mxu0 %v4254
  %4416 = vmatprep.subr.mxu0 0.0
  %4417 = vmatpush2.msra.mxu0 %v4253
  %4418 = vmatprep.subr.mxu0 0.0
  %4419 = vmatpush2.msra.mxu0 %v4252
  %4420 = vmatprep.subr.mxu0 0.0
  %4421 = vmatpush2.msra.mxu0 %v4251
  %4422 = vmatprep.subr.mxu0 0.0
  %4423 = vmatpush2.msra.mxu0 %v4250
  %4424 = vmatprep.subr.mxu0 0.0
  %4425 = vmatpush2.msra.mxu0 %v4249
  %4426 = vmatprep.subr.mxu0 0.0
  %4427 = vmatpush2.msra.mxu0 %v4248
  %4428 = vmatprep.subr.mxu0 0.0
  %4429 = vmatpush2.msra.mxu0 %v4247
  %4430 = vmatprep.mubr.f32.mxu0 %v4067
  %4431 = vmatmul.mubr.f32.gmra.mxu0 %v4066
  %v4432 = vpop.f32.mrf.mxu0
  %v4433 = vadd.f32 %v4364, %v4432
  %v4434 = vpop.f32.mrf.mxu0
  %4435 = vdwg.mxu0
  %4436 = vmatprep.subr.mxu0 0.0
  %4437 = vmatpush1.msra.mxu0 %v4278
  %4438 = vmatprep.subr.mxu0 0.0
  %4439 = vmatpush1.msra.mxu0 %v4277
  %4440 = vmatprep.subr.mxu0 0.0
  %4441 = vmatpush1.msra.mxu0 %v4276
  %4442 = vmatprep.subr.mxu0 0.0
  %4443 = vmatpush1.msra.mxu0 %v4275
  %4444 = vmatprep.subr.mxu0 0.0
  %4445 = vmatpush1.msra.mxu0 %v4274
  %4446 = vmatprep.subr.mxu0 0.0
  %4447 = vmatpush1.msra.mxu0 %v4273
  %4448 = vmatprep.subr.mxu0 0.0
  %4449 = vmatpush1.msra.mxu0 %v4272
  %4450 = vmatprep.subr.mxu0 0.0
  %4451 = vmatpush1.msra.mxu0 %v4271
  %4452 = vmatprep.subr.mxu0 0.0
  %4453 = vmatpush1.msra.mxu0 %v4270
  %4454 = vmatprep.subr.mxu0 0.0
  %4455 = vmatpush1.msra.mxu0 %v4269
  %4456 = vmatprep.subr.mxu0 0.0
  %4457 = vmatpush1.msra.mxu0 %v4268
  %4458 = vmatprep.subr.mxu0 0.0
  %4459 = vmatpush1.msra.mxu0 %v4267
  %4460 = vmatprep.subr.mxu0 0.0
  %4461 = vmatpush1.msra.mxu0 %v4266
  %4462 = vmatprep.subr.mxu0 0.0
  %4463 = vmatpush1.msra.mxu0 %v4265
  %4464 = vmatprep.subr.mxu0 0.0
  %4465 = vmatpush1.msra.mxu0 %v4264
  %4466 = vmatprep.subr.mxu0 0.0
  %4467 = vmatpush1.msra.mxu0 %v4263
  %4468 = vmatprep.subr.mxu0 0.0
  %4469 = vmatpush2.msra.mxu0 %v4294
  %4470 = vmatprep.subr.mxu0 0.0
  %4471 = vmatpush2.msra.mxu0 %v4293
  %4472 = vmatprep.subr.mxu0 0.0
  %4473 = vmatpush2.msra.mxu0 %v4292
  %4474 = vmatprep.subr.mxu0 0.0
  %4475 = vmatpush2.msra.mxu0 %v4291
  %4476 = vmatprep.subr.mxu0 0.0
  %4477 = vmatpush2.msra.mxu0 %v4290
  %4478 = vmatprep.subr.mxu0 0.0
  %4479 = vmatpush2.msra.mxu0 %v4289
  %4480 = vmatprep.subr.mxu0 0.0
  %4481 = vmatpush2.msra.mxu0 %v4288
  %4482 = vmatprep.subr.mxu0 0.0
  %4483 = vmatpush2.msra.mxu0 %v4287
  %4484 = vmatprep.subr.mxu0 0.0
  %4485 = vmatpush2.msra.mxu0 %v4286
  %4486 = vmatprep.subr.mxu0 0.0
  %4487 = vmatpush2.msra.mxu0 %v4285
  %4488 = vmatprep.subr.mxu0 0.0
  %4489 = vmatpush2.msra.mxu0 %v4284
  %4490 = vmatprep.subr.mxu0 0.0
  %4491 = vmatpush2.msra.mxu0 %v4283
  %4492 = vmatprep.subr.mxu0 0.0
  %4493 = vmatpush2.msra.mxu0 %v4282
  %4494 = vmatprep.subr.mxu0 0.0
  %4495 = vmatpush2.msra.mxu0 %v4281
  %4496 = vmatprep.subr.mxu0 0.0
  %4497 = vmatpush2.msra.mxu0 %v4280
  %4498 = vmatprep.subr.mxu0 0.0
  %4499 = vmatpush2.msra.mxu0 %v4279
  %4500 = vmatprep.mubr.f32.mxu0 %v4069
  %4501 = vmatmul.mubr.f32.gmra.mxu0 %v4068
  %v4502 = vpop.f32.mrf.mxu0
  %v4503 = vadd.f32 %v4433, %v4502
  %v4504 = vpop.f32.mrf.mxu0
  %4505 = vdwg.mxu0
  %4506 = vmatprep.subr.mxu0 0.0
  %4507 = vmatpush1.msra.mxu0 %v4310
  %4508 = vmatprep.subr.mxu0 0.0
  %4509 = vmatpush1.msra.mxu0 %v4309
  %4510 = vmatprep.subr.mxu0 0.0
  %4511 = vmatpush1.msra.mxu0 %v4308
  %4512 = vmatprep.subr.mxu0 0.0
  %4513 = vmatpush1.msra.mxu0 %v4307
  %4514 = vmatprep.subr.mxu0 0.0
  %4515 = vmatpush1.msra.mxu0 %v4306
  %4516 = vmatprep.subr.mxu0 0.0
  %4517 = vmatpush1.msra.mxu0 %v4305
  %4518 = vmatprep.subr.mxu0 0.0
  %4519 = vmatpush1.msra.mxu0 %v4304
  %4520 = vmatprep.subr.mxu0 0.0
  %4521 = vmatpush1.msra.mxu0 %v4303
  %4522 = vmatprep.subr.mxu0 0.0
  %4523 = vmatpush1.msra.mxu0 %v4302
  %4524 = vmatprep.subr.mxu0 0.0
  %4525 = vmatpush1.msra.mxu0 %v4301
  %4526 = vmatprep.subr.mxu0 0.0
  %4527 = vmatpush1.msra.mxu0 %v4300
  %4528 = vmatprep.subr.mxu0 0.0
  %4529 = vmatpush1.msra.mxu0 %v4299
  %4530 = vmatprep.subr.mxu0 0.0
  %4531 = vmatpush1.msra.mxu0 %v4298
  %4532 = vmatprep.subr.mxu0 0.0
  %4533 = vmatpush1.msra.mxu0 %v4297
  %4534 = vmatprep.subr.mxu0 0.0
  %4535 = vmatpush1.msra.mxu0 %v4296
  %4536 = vmatprep.subr.mxu0 0.0
  %4537 = vmatpush1.msra.mxu0 %v4295
  %4538 = vmatprep.subr.mxu0 0.0
  %4539 = vmatpush2.msra.mxu0 %v4326
  %4540 = vmatprep.subr.mxu0 0.0
  %4541 = vmatpush2.msra.mxu0 %v4325
  %4542 = vmatprep.subr.mxu0 0.0
  %4543 = vmatpush2.msra.mxu0 %v4324
  %4544 = vmatprep.subr.mxu0 0.0
  %4545 = vmatpush2.msra.mxu0 %v4323
  %4546 = vmatprep.subr.mxu0 0.0
  %4547 = vmatpush2.msra.mxu0 %v4322
  %4548 = vmatprep.subr.mxu0 0.0
  %4549 = vmatpush2.msra.mxu0 %v4321
  %4550 = vmatprep.subr.mxu0 0.0
  %4551 = vmatpush2.msra.mxu0 %v4320
  %4552 = vmatprep.subr.mxu0 0.0
  %4553 = vmatpush2.msra.mxu0 %v4319
  %4554 = vmatprep.subr.mxu0 0.0
  %4555 = vmatpush2.msra.mxu0 %v4318
  %4556 = vmatprep.subr.mxu0 0.0
  %4557 = vmatpush2.msra.mxu0 %v4317
  %4558 = vmatprep.subr.mxu0 0.0
  %4559 = vmatpush2.msra.mxu0 %v4316
  %4560 = vmatprep.subr.mxu0 0.0
  %4561 = vmatpush2.msra.mxu0 %v4315
  %4562 = vmatprep.subr.mxu0 0.0
  %4563 = vmatpush2.msra.mxu0 %v4314
  %4564 = vmatprep.subr.mxu0 0.0
  %4565 = vmatpush2.msra.mxu0 %v4313
  %4566 = vmatprep.subr.mxu0 0.0
  %4567 = vmatpush2.msra.mxu0 %v4312
  %4568 = vmatprep.subr.mxu0 0.0
  %4569 = vmatpush2.msra.mxu0 %v4311
  %4570 = vmatprep.mubr.f32.mxu0 %v4071
  %4571 = vmatmul.mubr.f32.gmra.mxu0 %v4070
  %v4572 = vpop.f32.mrf.mxu0
  %v4573 = vadd.f32 %v4503, %v4572
  %v4574 = vpop.f32.mrf.mxu0
  %4575 = vdwg.mxu0
  %4576 = vmatprep.subr.mxu0 0.0
  %4577 = vmatpush1.msra.mxu0 %v4342
  %4578 = vmatprep.subr.mxu0 0.0
  %4579 = vmatpush1.msra.mxu0 %v4341
  %4580 = vmatprep.subr.mxu0 0.0
  %4581 = vmatpush1.msra.mxu0 %v4340
  %4582 = vmatprep.subr.mxu0 0.0
  %4583 = vmatpush1.msra.mxu0 %v4339
  %4584 = vmatprep.subr.mxu0 0.0
  %4585 = vmatpush1.msra.mxu0 %v4338
  %4586 = vmatprep.subr.mxu0 0.0
  %4587 = vmatpush1.msra.mxu0 %v4337
  %4588 = vmatprep.subr.mxu0 0.0
  %4589 = vmatpush1.msra.mxu0 %v4336
  %4590 = vmatprep.subr.mxu0 0.0
  %4591 = vmatpush1.msra.mxu0 %v4335
  %4592 = vmatprep.subr.mxu0 0.0
  %4593 = vmatpush1.msra.mxu0 %v4334
  %4594 = vmatprep.subr.mxu0 0.0
  %4595 = vmatpush1.msra.mxu0 %v4333
  %4596 = vmatprep.subr.mxu0 0.0
  %4597 = vmatpush1.msra.mxu0 %v4332
  %4598 = vmatprep.subr.mxu0 0.0
  %4599 = vmatpush1.msra.mxu0 %v4331
  %4600 = vmatprep.subr.mxu0 0.0
  %4601 = vmatpush1.msra.mxu0 %v4330
  %4602 = vmatprep.subr.mxu0 0.0
  %4603 = vmatpush1.msra.mxu0 %v4329
  %4604 = vmatprep.subr.mxu0 0.0
  %4605 = vmatpush1.msra.mxu0 %v4328
  %4606 = vmatprep.subr.mxu0 0.0
  %4607 = vmatpush1.msra.mxu0 %v4327
  %4608 = vmatprep.subr.mxu0 0.0
  %4609 = vmatpush2.msra.mxu0 %v4358
  %4610 = vmatprep.subr.mxu0 0.0
  %4611 = vmatpush2.msra.mxu0 %v4357
  %4612 = vmatprep.subr.mxu0 0.0
  %4613 = vmatpush2.msra.mxu0 %v4356
  %4614 = vmatprep.subr.mxu0 0.0
  %4615 = vmatpush2.msra.mxu0 %v4355
  %4616 = vmatprep.subr.mxu0 0.0
  %4617 = vmatpush2.msra.mxu0 %v4354
  %4618 = vmatprep.subr.mxu0 0.0
  %4619 = vmatpush2.msra.mxu0 %v4353
  %4620 = vmatprep.subr.mxu0 0.0
  %4621 = vmatpush2.msra.mxu0 %v4352
  %4622 = vmatprep.subr.mxu0 0.0
  %4623 = vmatpush2.msra.mxu0 %v4351
  %4624 = vmatprep.subr.mxu0 0.0
  %4625 = vmatpush2.msra.mxu0 %v4350
  %4626 = vmatprep.subr.mxu0 0.0
  %4627 = vmatpush2.msra.mxu0 %v4349
  %4628 = vmatprep.subr.mxu0 0.0
  %4629 = vmatpush2.msra.mxu0 %v4348
  %4630 = vmatprep.subr.mxu0 0.0
  %4631 = vmatpush2.msra.mxu0 %v4347
  %4632 = vmatprep.subr.mxu0 0.0
  %4633 = vmatpush2.msra.mxu0 %v4346
  %4634 = vmatprep.subr.mxu0 0.0
  %4635 = vmatpush2.msra.mxu0 %v4345
  %4636 = vmatprep.subr.mxu0 0.0
  %4637 = vmatpush2.msra.mxu0 %v4344
  %4638 = vmatprep.subr.mxu0 0.0
  %4639 = vmatpush2.msra.mxu0 %v4343
  %4640 = vmatprep.mubr.f32.mxu0 %v4073
  %4641 = vmatmul.mubr.f32.gmra.mxu0 %v4072
  %v4642 = vpop.f32.mrf.mxu0
  %v4643 = vadd.f32 %v4573, %v4642
  %v4644 = vpop.f32.mrf.mxu0
  %4645 = vdwg.mxu0
  %v4646 = vsub.f32 0.0, %v4643
  %v4647 = vmul.f32 %v4646, 1.442695
  %v4648 = vpow.pop %v4647
  %v4649 = vadd.f32 %v4648, 1.0
  %v4650 = vrcp.pop %v4649
  %v4651 = vmul.f32 1.0, %v4650
  %v4652 = vmul.f32 %v4651, %v4230
  %v4653 = vld [vmem:[%s67] sm:$0xff]
  %v4654 = vld [vmem:[%s67 + $0x8] sm:$0xff]
  %v4655 = vld [vmem:[%s67 + $0x10] sm:$0xff]
  %v4656 = vld [vmem:[%s67 + $0x18] sm:$0xff]
  %v4657 = vld [vmem:[%s67 + $0x20] sm:$0xff]
  %v4658 = vld [vmem:[%s67 + $0x28] sm:$0xff]
  %v4659 = vld [vmem:[%s67 + $0x30] sm:$0xff]
  %v4660 = vld [vmem:[%s67 + $0x38] sm:$0xff]
  %v4661 = vld [vmem:[%s65] sm:$0x1]
  %v4663 = vlaneseq
  %v4664 = vshrl.u32 %v4663, 7
  %v4665 = vsub.s32 0, %v4664
  %v4666 = vrot.slane %v4661, %v4665
  %v4669 = vsel %vm962, %v4652, 0
  %4671 = vmatprep.subr.mxu0 0.0
  %4672 = vmatpush1.msra.mxu0 0.0
  %4673 = vmatprep.subr.mxu0 0.0
  %4674 = vmatpush1.msra.mxu0 0.0
  %4675 = vmatprep.subr.mxu0 0.0
  %4676 = vmatpush1.msra.mxu0 0.0
  %4677 = vmatprep.subr.mxu0 0.0
  %4678 = vmatpush1.msra.mxu0 0.0
  %4679 = vmatprep.subr.mxu0 0.0
  %4680 = vmatpush1.msra.mxu0 0.0
  %4681 = vmatprep.subr.mxu0 0.0
  %4682 = vmatpush1.msra.mxu0 0.0
  %4683 = vmatprep.subr.mxu0 0.0
  %4684 = vmatpush1.msra.mxu0 0.0
  %4685 = vmatprep.subr.mxu0 0.0
  %4686 = vmatpush1.msra.mxu0 0.0
  %4687 = vmatprep.subr.mxu0 0.0
  %4688 = vmatpush1.msra.mxu0 %v4660
  %4689 = vmatprep.subr.mxu0 0.0
  %4690 = vmatpush1.msra.mxu0 %v4659
  %4691 = vmatprep.subr.mxu0 0.0
  %4692 = vmatpush1.msra.mxu0 %v4658
  %4693 = vmatprep.subr.mxu0 0.0
  %4694 = vmatpush1.msra.mxu0 %v4657
  %4695 = vmatprep.subr.mxu0 0.0
  %4696 = vmatpush1.msra.mxu0 %v4656
  %4697 = vmatprep.subr.mxu0 0.0
  %4698 = vmatpush1.msra.mxu0 %v4655
  %4699 = vmatprep.subr.mxu0 0.0
  %4700 = vmatpush1.msra.mxu0 %v4654
  %4701 = vmatprep.subr.mxu0 0.0
  %4702 = vmatpush1.msra.mxu0 %v4653
  %4703 = vmatprep.subr.mxu0 0.0
  %4704 = vmatpush2.msra.mxu0 0.0
  %4705 = vmatprep.subr.mxu0 0.0
  %4706 = vmatpush2.msra.mxu0 0.0
  %4707 = vmatprep.subr.mxu0 0.0
  %4708 = vmatpush2.msra.mxu0 0.0
  %4709 = vmatprep.subr.mxu0 0.0
  %4710 = vmatpush2.msra.mxu0 0.0
  %4711 = vmatprep.subr.mxu0 0.0
  %4712 = vmatpush2.msra.mxu0 0.0
  %4713 = vmatprep.subr.mxu0 0.0
  %4714 = vmatpush2.msra.mxu0 0.0
  %4715 = vmatprep.subr.mxu0 0.0
  %4716 = vmatpush2.msra.mxu0 0.0
  %4717 = vmatprep.subr.mxu0 0.0
  %4718 = vmatpush2.msra.mxu0 0.0
  %4719 = vmatprep.subr.mxu0 0.0
  %4720 = vmatpush2.msra.mxu0 0.0
  %4721 = vmatprep.subr.mxu0 0.0
  %4722 = vmatpush2.msra.mxu0 0.0
  %4723 = vmatprep.subr.mxu0 0.0
  %4724 = vmatpush2.msra.mxu0 0.0
  %4725 = vmatprep.subr.mxu0 0.0
  %4726 = vmatpush2.msra.mxu0 0.0
  %4727 = vmatprep.subr.mxu0 0.0
  %4728 = vmatpush2.msra.mxu0 0.0
  %4729 = vmatprep.subr.mxu0 0.0
  %4730 = vmatpush2.msra.mxu0 0.0
  %4731 = vmatprep.subr.mxu0 0.0
  %4732 = vmatpush2.msra.mxu0 0.0
  %4733 = vmatprep.subr.mxu0 0.0
  %4734 = vmatpush2.msra.mxu0 0.0
  %4735 = vmatprep.mubr.f32.mxu0 0.0
  %4736 = vmatmul.mubr.f32.gmra.mxu0 %v4669
  %v4737 = vpop.f32.mrf.mxu0
  %v4738 = vadd.f32 %v4666, %v4737
  %v4739 = vpop.f32.mrf.mxu0
  %4740 = vdwg.mxu0
  %v4741 = vmax.f32 %v4738, 0.0
  %v4742 = vadd.s32 %v3179, 32
  %v4743 = vadd.s32 %v3179, 40
  %v4744 = vadd.s32 %v3179, 48
  %v4745 = vadd.s32 %v3179, 56
  %v4746 = vmul.u32 %v4742, 32
  %v4747 = vmul.u32 %v4743, 32
  %v4748 = vmul.u32 %v4744, 32
  %v4749 = vmul.u32 %v4745, 32
  %v4750 = vsub.s32 %v3184, %v4746
  %v4751 = vsub.s32 %v3185, %v4746
  %v4752 = vsub.s32 %v3186, %v4746
  %v4753 = vsub.s32 %v3187, %v4746
  %v4754 = vsub.s32 %v3188, %v4746
  %v4755 = vsub.s32 %v3189, %v4746
  %v4756 = vsub.s32 %v3190, %v4746
  %v4757 = vsub.s32 %v3191, %v4746
  %v4758 = vsub.s32 %v3184, %v4747
  %v4759 = vsub.s32 %v3185, %v4747
  %v4760 = vsub.s32 %v3186, %v4747
  %v4761 = vsub.s32 %v3187, %v4747
  %v4762 = vsub.s32 %v3188, %v4747
  %v4763 = vsub.s32 %v3189, %v4747
  %v4764 = vsub.s32 %v3190, %v4747
  %v4765 = vsub.s32 %v3191, %v4747
  %v4766 = vsub.s32 %v3184, %v4748
  %v4767 = vsub.s32 %v3185, %v4748
  %v4768 = vsub.s32 %v3186, %v4748
  %v4769 = vsub.s32 %v3187, %v4748
  %v4770 = vsub.s32 %v3188, %v4748
  %v4771 = vsub.s32 %v3189, %v4748
  %v4772 = vsub.s32 %v3190, %v4748
  %v4773 = vsub.s32 %v3191, %v4748
  %v4774 = vsub.s32 %v3184, %v4749
  %v4775 = vsub.s32 %v3185, %v4749
  %v4776 = vsub.s32 %v3186, %v4749
  %v4777 = vsub.s32 %v3187, %v4749
  %v4778 = vsub.s32 %v3188, %v4749
  %v4779 = vsub.s32 %v3189, %v4749
  %v4780 = vsub.s32 %v3190, %v4749
  %v4781 = vsub.s32 %v3191, %v4749
  %vm4782 = vcmp.ge.s32.totalorder %v4750, 0
  %vm4783 = vcmp.ge.s32.totalorder %v4751, 0
  %vm4784 = vcmp.ge.s32.totalorder %v4752, 0
  %vm4785 = vcmp.ge.s32.totalorder %v4753, 0
  %vm4786 = vcmp.ge.s32.totalorder %v4754, 0
  %vm4787 = vcmp.ge.s32.totalorder %v4755, 0
  %vm4788 = vcmp.ge.s32.totalorder %v4756, 0
  %vm4789 = vcmp.ge.s32.totalorder %v4757, 0
  %vm4790 = vcmp.ge.s32.totalorder %v4758, 0
  %vm4791 = vcmp.ge.s32.totalorder %v4759, 0
  %vm4792 = vcmp.ge.s32.totalorder %v4760, 0
  %vm4793 = vcmp.ge.s32.totalorder %v4761, 0
  %vm4794 = vcmp.ge.s32.totalorder %v4762, 0
  %vm4795 = vcmp.ge.s32.totalorder %v4763, 0
  %vm4796 = vcmp.ge.s32.totalorder %v4764, 0
  %vm4797 = vcmp.ge.s32.totalorder %v4765, 0
  %vm4798 = vcmp.ge.s32.totalorder %v4766, 0
  %vm4799 = vcmp.ge.s32.totalorder %v4767, 0
  %vm4800 = vcmp.ge.s32.totalorder %v4768, 0
  %vm4801 = vcmp.ge.s32.totalorder %v4769, 0
  %vm4802 = vcmp.ge.s32.totalorder %v4770, 0
  %vm4803 = vcmp.ge.s32.totalorder %v4771, 0
  %vm4804 = vcmp.ge.s32.totalorder %v4772, 0
  %vm4805 = vcmp.ge.s32.totalorder %v4773, 0
  %vm4806 = vcmp.ge.s32.totalorder %v4774, 0
  %vm4807 = vcmp.ge.s32.totalorder %v4775, 0
  %vm4808 = vcmp.ge.s32.totalorder %v4776, 0
  %vm4809 = vcmp.ge.s32.totalorder %v4777, 0
  %vm4810 = vcmp.ge.s32.totalorder %v4778, 0
  %vm4811 = vcmp.ge.s32.totalorder %v4779, 0
  %vm4812 = vcmp.ge.s32.totalorder %v4780, 0
  %vm4813 = vcmp.ge.s32.totalorder %v4781, 0
  %vm4814 = vcmp.lt.s32.totalorder %v4750, 32
  %vm4815 = vcmp.lt.s32.totalorder %v4751, 32
  %vm4816 = vcmp.lt.s32.totalorder %v4752, 32
  %vm4817 = vcmp.lt.s32.totalorder %v4753, 32
  %vm4818 = vcmp.lt.s32.totalorder %v4754, 32
  %vm4819 = vcmp.lt.s32.totalorder %v4755, 32
  %vm4820 = vcmp.lt.s32.totalorder %v4756, 32
  %vm4821 = vcmp.lt.s32.totalorder %v4757, 32
  %vm4822 = vcmp.lt.s32.totalorder %v4758, 32
  %vm4823 = vcmp.lt.s32.totalorder %v4759, 32
  %vm4824 = vcmp.lt.s32.totalorder %v4760, 32
  %vm4825 = vcmp.lt.s32.totalorder %v4761, 32
  %vm4826 = vcmp.lt.s32.totalorder %v4762, 32
  %vm4827 = vcmp.lt.s32.totalorder %v4763, 32
  %vm4828 = vcmp.lt.s32.totalorder %v4764, 32
  %vm4829 = vcmp.lt.s32.totalorder %v4765, 32
  %vm4830 = vcmp.lt.s32.totalorder %v4766, 32
  %vm4831 = vcmp.lt.s32.totalorder %v4767, 32
  %vm4832 = vcmp.lt.s32.totalorder %v4768, 32
  %vm4833 = vcmp.lt.s32.totalorder %v4769, 32
  %vm4834 = vcmp.lt.s32.totalorder %v4770, 32
  %vm4835 = vcmp.lt.s32.totalorder %v4771, 32
  %vm4836 = vcmp.lt.s32.totalorder %v4772, 32
  %vm4837 = vcmp.lt.s32.totalorder %v4773, 32
  %vm4838 = vcmp.lt.s32.totalorder %v4774, 32
  %vm4839 = vcmp.lt.s32.totalorder %v4775, 32
  %vm4840 = vcmp.lt.s32.totalorder %v4776, 32
  %vm4841 = vcmp.lt.s32.totalorder %v4777, 32
  %vm4842 = vcmp.lt.s32.totalorder %v4778, 32
  %vm4843 = vcmp.lt.s32.totalorder %v4779, 32
  %vm4844 = vcmp.lt.s32.totalorder %v4780, 32
  %vm4845 = vcmp.lt.s32.totalorder %v4781, 32
  %vm4846 = vmand %vm4782, %vm4814
  %vm4847 = vmand %vm4783, %vm4815
  %vm4848 = vmand %vm4784, %vm4816
  %vm4849 = vmand %vm4785, %vm4817
  %vm4850 = vmand %vm4786, %vm4818
  %vm4851 = vmand %vm4787, %vm4819
  %vm4852 = vmand %vm4788, %vm4820
  %vm4853 = vmand %vm4789, %vm4821
  %vm4854 = vmand %vm4790, %vm4822
  %vm4855 = vmand %vm4791, %vm4823
  %vm4856 = vmand %vm4792, %vm4824
  %vm4857 = vmand %vm4793, %vm4825
  %vm4858 = vmand %vm4794, %vm4826
  %vm4859 = vmand %vm4795, %vm4827
  %vm4860 = vmand %vm4796, %vm4828
  %vm4861 = vmand %vm4797, %vm4829
  %vm4862 = vmand %vm4798, %vm4830
  %vm4863 = vmand %vm4799, %vm4831
  %vm4864 = vmand %vm4800, %vm4832
  %vm4865 = vmand %vm4801, %vm4833
  %vm4866 = vmand %vm4802, %vm4834
  %vm4867 = vmand %vm4803, %vm4835
  %vm4868 = vmand %vm4804, %vm4836
  %vm4869 = vmand %vm4805, %vm4837
  %vm4870 = vmand %vm4806, %vm4838
  %vm4871 = vmand %vm4807, %vm4839
  %vm4872 = vmand %vm4808, %vm4840
  %vm4873 = vmand %vm4809, %vm4841
  %vm4874 = vmand %vm4810, %vm4842
  %vm4875 = vmand %vm4811, %vm4843
  %vm4876 = vmand %vm4812, %vm4844
  %vm4877 = vmand %vm4813, %vm4845
  %v4878 = vsel %vm4846, 1, 0
  %v4879 = vsel %vm4847, 1, 0
  %v4880 = vsel %vm4848, 1, 0
  %v4881 = vsel %vm4849, 1, 0
  %v4882 = vsel %vm4850, 1, 0
  %v4883 = vsel %vm4851, 1, 0
  %v4884 = vsel %vm4852, 1, 0
  %v4885 = vsel %vm4853, 1, 0
  %v4886 = vsel %vm4854, 1, 0
  %v4887 = vsel %vm4855, 1, 0
  %v4888 = vsel %vm4856, 1, 0
  %v4889 = vsel %vm4857, 1, 0
  %v4890 = vsel %vm4858, 1, 0
  %v4891 = vsel %vm4859, 1, 0
  %v4892 = vsel %vm4860, 1, 0
  %v4893 = vsel %vm4861, 1, 0
  %v4894 = vsel %vm4862, 1, 0
  %v4895 = vsel %vm4863, 1, 0
  %v4896 = vsel %vm4864, 1, 0
  %v4897 = vsel %vm4865, 1, 0
  %v4898 = vsel %vm4866, 1, 0
  %v4899 = vsel %vm4867, 1, 0
  %v4900 = vsel %vm4868, 1, 0
  %v4901 = vsel %vm4869, 1, 0
  %v4902 = vsel %vm4870, 1, 0
  %v4903 = vsel %vm4871, 1, 0
  %v4904 = vsel %vm4872, 1, 0
  %v4905 = vsel %vm4873, 1, 0
  %v4906 = vsel %vm4874, 1, 0
  %v4907 = vsel %vm4875, 1, 0
  %v4908 = vsel %vm4876, 1, 0
  %v4909 = vsel %vm4877, 1, 0
  %v4910 = vcvt.s32.f32 %v4878
  %v4911 = vcvt.s32.f32 %v4879
  %v4912 = vcvt.s32.f32 %v4880
  %v4913 = vcvt.s32.f32 %v4881
  %v4914 = vcvt.s32.f32 %v4882
  %v4915 = vcvt.s32.f32 %v4883
  %v4916 = vcvt.s32.f32 %v4884
  %v4917 = vcvt.s32.f32 %v4885
  %v4918 = vcvt.s32.f32 %v4886
  %v4919 = vcvt.s32.f32 %v4887
  %v4920 = vcvt.s32.f32 %v4888
  %v4921 = vcvt.s32.f32 %v4889
  %v4922 = vcvt.s32.f32 %v4890
  %v4923 = vcvt.s32.f32 %v4891
  %v4924 = vcvt.s32.f32 %v4892
  %v4925 = vcvt.s32.f32 %v4893
  %v4926 = vcvt.s32.f32 %v4894
  %v4927 = vcvt.s32.f32 %v4895
  %v4928 = vcvt.s32.f32 %v4896
  %v4929 = vcvt.s32.f32 %v4897
  %v4930 = vcvt.s32.f32 %v4898
  %v4931 = vcvt.s32.f32 %v4899
  %v4932 = vcvt.s32.f32 %v4900
  %v4933 = vcvt.s32.f32 %v4901
  %v4934 = vcvt.s32.f32 %v4902
  %v4935 = vcvt.s32.f32 %v4903
  %v4936 = vcvt.s32.f32 %v4904
  %v4937 = vcvt.s32.f32 %v4905
  %v4938 = vcvt.s32.f32 %v4906
  %v4939 = vcvt.s32.f32 %v4907
  %v4940 = vcvt.s32.f32 %v4908
  %v4941 = vcvt.s32.f32 %v4909
  %v4942 = vadd.s32 %v3388, 32
  %v4943 = vadd.s32 %v3389, 32
  %v4944 = vadd.s32 %v3390, 32
  %v4945 = vadd.s32 %v3391, 32
  %v4946 = vadd.s32 %v3392, 32
  %v4947 = vadd.s32 %v3393, 32
  %v4948 = vadd.s32 %v3394, 32
  %v4949 = vadd.s32 %v3395, 32
  %vm4950 = vcmp.eq.s32.totalorder %v4942, %v3179
  %vm4951 = vcmp.eq.s32.totalorder %v4943, %v3179
  %vm4952 = vcmp.eq.s32.totalorder %v4944, %v3179
  %vm4953 = vcmp.eq.s32.totalorder %v4945, %v3179
  %vm4954 = vcmp.eq.s32.totalorder %v4946, %v3179
  %vm4955 = vcmp.eq.s32.totalorder %v4947, %v3179
  %vm4956 = vcmp.eq.s32.totalorder %v4948, %v3179
  %vm4957 = vcmp.eq.s32.totalorder %v4949, %v3179
  %vm4958 = vcmp.eq.s32.totalorder %v4942, %v3180
  %vm4959 = vcmp.eq.s32.totalorder %v4943, %v3180
  %vm4960 = vcmp.eq.s32.totalorder %v4944, %v3180
  %vm4961 = vcmp.eq.s32.totalorder %v4945, %v3180
  %vm4962 = vcmp.eq.s32.totalorder %v4946, %v3180
  %vm4963 = vcmp.eq.s32.totalorder %v4947, %v3180
  %vm4964 = vcmp.eq.s32.totalorder %v4948, %v3180
  %vm4965 = vcmp.eq.s32.totalorder %v4949, %v3180
  %vm4966 = vcmp.eq.s32.totalorder %v4942, %v3181
  %vm4967 = vcmp.eq.s32.totalorder %v4943, %v3181
  %vm4968 = vcmp.eq.s32.totalorder %v4944, %v3181
  %vm4969 = vcmp.eq.s32.totalorder %v4945, %v3181
  %vm4970 = vcmp.eq.s32.totalorder %v4946, %v3181
  %vm4971 = vcmp.eq.s32.totalorder %v4947, %v3181
  %vm4972 = vcmp.eq.s32.totalorder %v4948, %v3181
  %vm4973 = vcmp.eq.s32.totalorder %v4949, %v3181
  %vm4974 = vcmp.eq.s32.totalorder %v4942, %v3182
  %vm4975 = vcmp.eq.s32.totalorder %v4943, %v3182
  %vm4976 = vcmp.eq.s32.totalorder %v4944, %v3182
  %vm4977 = vcmp.eq.s32.totalorder %v4945, %v3182
  %vm4978 = vcmp.eq.s32.totalorder %v4946, %v3182
  %vm4979 = vcmp.eq.s32.totalorder %v4947, %v3182
  %vm4980 = vcmp.eq.s32.totalorder %v4948, %v3182
  %vm4981 = vcmp.eq.s32.totalorder %v4949, %v3182
  %vm4982 = vcmp.eq.s32.totalorder %v4942, %v4742
  %vm4983 = vcmp.eq.s32.totalorder %v4943, %v4742
  %vm4984 = vcmp.eq.s32.totalorder %v4944, %v4742
  %vm4985 = vcmp.eq.s32.totalorder %v4945, %v4742
  %vm4986 = vcmp.eq.s32.totalorder %v4946, %v4742
  %vm4987 = vcmp.eq.s32.totalorder %v4947, %v4742
  %vm4988 = vcmp.eq.s32.totalorder %v4948, %v4742
  %vm4989 = vcmp.eq.s32.totalorder %v4949, %v4742
  %vm4990 = vcmp.eq.s32.totalorder %v4942, %v4743
  %vm4991 = vcmp.eq.s32.totalorder %v4943, %v4743
  %vm4992 = vcmp.eq.s32.totalorder %v4944, %v4743
  %vm4993 = vcmp.eq.s32.totalorder %v4945, %v4743
  %vm4994 = vcmp.eq.s32.totalorder %v4946, %v4743
  %vm4995 = vcmp.eq.s32.totalorder %v4947, %v4743
  %vm4996 = vcmp.eq.s32.totalorder %v4948, %v4743
  %vm4997 = vcmp.eq.s32.totalorder %v4949, %v4743
  %vm4998 = vcmp.eq.s32.totalorder %v4942, %v4744
  %vm4999 = vcmp.eq.s32.totalorder %v4943, %v4744
  %vm5000 = vcmp.eq.s32.totalorder %v4944, %v4744
  %vm5001 = vcmp.eq.s32.totalorder %v4945, %v4744
  %vm5002 = vcmp.eq.s32.totalorder %v4946, %v4744
  %vm5003 = vcmp.eq.s32.totalorder %v4947, %v4744
  %vm5004 = vcmp.eq.s32.totalorder %v4948, %v4744
  %vm5005 = vcmp.eq.s32.totalorder %v4949, %v4744
  %vm5006 = vcmp.eq.s32.totalorder %v4942, %v4745
  %vm5007 = vcmp.eq.s32.totalorder %v4943, %v4745
  %vm5008 = vcmp.eq.s32.totalorder %v4944, %v4745
  %vm5009 = vcmp.eq.s32.totalorder %v4945, %v4745
  %vm5010 = vcmp.eq.s32.totalorder %v4946, %v4745
  %vm5011 = vcmp.eq.s32.totalorder %v4947, %v4745
  %vm5012 = vcmp.eq.s32.totalorder %v4948, %v4745
  %vm5013 = vcmp.eq.s32.totalorder %v4949, %v4745
  %v5014 = vsel %vm4950, 1, 0
  %v5015 = vsel %vm4951, 1, 0
  %v5016 = vsel %vm4952, 1, 0
  %v5017 = vsel %vm4953, 1, 0
  %v5018 = vsel %vm4954, 1, 0
  %v5019 = vsel %vm4955, 1, 0
  %v5020 = vsel %vm4956, 1, 0
  %v5021 = vsel %vm4957, 1, 0
  %v5022 = vsel %vm4958, 1, 0
  %v5023 = vsel %vm4959, 1, 0
  %v5024 = vsel %vm4960, 1, 0
  %v5025 = vsel %vm4961, 1, 0
  %v5026 = vsel %vm4962, 1, 0
  %v5027 = vsel %vm4963, 1, 0
  %v5028 = vsel %vm4964, 1, 0
  %v5029 = vsel %vm4965, 1, 0
  %v5030 = vsel %vm4966, 1, 0
  %v5031 = vsel %vm4967, 1, 0
  %v5032 = vsel %vm4968, 1, 0
  %v5033 = vsel %vm4969, 1, 0
  %v5034 = vsel %vm4970, 1, 0
  %v5035 = vsel %vm4971, 1, 0
  %v5036 = vsel %vm4972, 1, 0
  %v5037 = vsel %vm4973, 1, 0
  %v5038 = vsel %vm4974, 1, 0
  %v5039 = vsel %vm4975, 1, 0
  %v5040 = vsel %vm4976, 1, 0
  %v5041 = vsel %vm4977, 1, 0
  %v5042 = vsel %vm4978, 1, 0
  %v5043 = vsel %vm4979, 1, 0
  %v5044 = vsel %vm4980, 1, 0
  %v5045 = vsel %vm4981, 1, 0
  %v5046 = vsel %vm4982, 1, 0
  %v5047 = vsel %vm4983, 1, 0
  %v5048 = vsel %vm4984, 1, 0
  %v5049 = vsel %vm4985, 1, 0
  %v5050 = vsel %vm4986, 1, 0
  %v5051 = vsel %vm4987, 1, 0
  %v5052 = vsel %vm4988, 1, 0
  %v5053 = vsel %vm4989, 1, 0
  %v5054 = vsel %vm4990, 1, 0
  %v5055 = vsel %vm4991, 1, 0
  %v5056 = vsel %vm4992, 1, 0
  %v5057 = vsel %vm4993, 1, 0
  %v5058 = vsel %vm4994, 1, 0
  %v5059 = vsel %vm4995, 1, 0
  %v5060 = vsel %vm4996, 1, 0
  %v5061 = vsel %vm4997, 1, 0
  %v5062 = vsel %vm4998, 1, 0
  %v5063 = vsel %vm4999, 1, 0
  %v5064 = vsel %vm5000, 1, 0
  %v5065 = vsel %vm5001, 1, 0
  %v5066 = vsel %vm5002, 1, 0
  %v5067 = vsel %vm5003, 1, 0
  %v5068 = vsel %vm5004, 1, 0
  %v5069 = vsel %vm5005, 1, 0
  %v5070 = vsel %vm5006, 1, 0
  %v5071 = vsel %vm5007, 1, 0
  %v5072 = vsel %vm5008, 1, 0
  %v5073 = vsel %vm5009, 1, 0
  %v5074 = vsel %vm5010, 1, 0
  %v5075 = vsel %vm5011, 1, 0
  %v5076 = vsel %vm5012, 1, 0
  %v5077 = vsel %vm5013, 1, 0
  %v5078 = vcvt.s32.f32 %v5014
  %v5079 = vcvt.s32.f32 %v5015
  %v5080 = vcvt.s32.f32 %v5016
  %v5081 = vcvt.s32.f32 %v5017
  %v5082 = vcvt.s32.f32 %v5018
  %v5083 = vcvt.s32.f32 %v5019
  %v5084 = vcvt.s32.f32 %v5020
  %v5085 = vcvt.s32.f32 %v5021
  %v5086 = vcvt.s32.f32 %v5022
  %v5087 = vcvt.s32.f32 %v5023
  %v5088 = vcvt.s32.f32 %v5024
  %v5089 = vcvt.s32.f32 %v5025
  %v5090 = vcvt.s32.f32 %v5026
  %v5091 = vcvt.s32.f32 %v5027
  %v5092 = vcvt.s32.f32 %v5028
  %v5093 = vcvt.s32.f32 %v5029
  %v5094 = vcvt.s32.f32 %v5030
  %v5095 = vcvt.s32.f32 %v5031
  %v5096 = vcvt.s32.f32 %v5032
  %v5097 = vcvt.s32.f32 %v5033
  %v5098 = vcvt.s32.f32 %v5034
  %v5099 = vcvt.s32.f32 %v5035
  %v5100 = vcvt.s32.f32 %v5036
  %v5101 = vcvt.s32.f32 %v5037
  %v5102 = vcvt.s32.f32 %v5038
  %v5103 = vcvt.s32.f32 %v5039
  %v5104 = vcvt.s32.f32 %v5040
  %v5105 = vcvt.s32.f32 %v5041
  %v5106 = vcvt.s32.f32 %v5042
  %v5107 = vcvt.s32.f32 %v5043
  %v5108 = vcvt.s32.f32 %v5044
  %v5109 = vcvt.s32.f32 %v5045
  %v5110 = vcvt.s32.f32 %v5046
  %v5111 = vcvt.s32.f32 %v5047
  %v5112 = vcvt.s32.f32 %v5048
  %v5113 = vcvt.s32.f32 %v5049
  %v5114 = vcvt.s32.f32 %v5050
  %v5115 = vcvt.s32.f32 %v5051
  %v5116 = vcvt.s32.f32 %v5052
  %v5117 = vcvt.s32.f32 %v5053
  %v5118 = vcvt.s32.f32 %v5054
  %v5119 = vcvt.s32.f32 %v5055
  %v5120 = vcvt.s32.f32 %v5056
  %v5121 = vcvt.s32.f32 %v5057
  %v5122 = vcvt.s32.f32 %v5058
  %v5123 = vcvt.s32.f32 %v5059
  %v5124 = vcvt.s32.f32 %v5060
  %v5125 = vcvt.s32.f32 %v5061
  %v5126 = vcvt.s32.f32 %v5062
  %v5127 = vcvt.s32.f32 %v5063
  %v5128 = vcvt.s32.f32 %v5064
  %v5129 = vcvt.s32.f32 %v5065
  %v5130 = vcvt.s32.f32 %v5066
  %v5131 = vcvt.s32.f32 %v5067
  %v5132 = vcvt.s32.f32 %v5068
  %v5133 = vcvt.s32.f32 %v5069
  %v5134 = vcvt.s32.f32 %v5070
  %v5135 = vcvt.s32.f32 %v5071
  %v5136 = vcvt.s32.f32 %v5072
  %v5137 = vcvt.s32.f32 %v5073
  %v5138 = vcvt.s32.f32 %v5074
  %v5139 = vcvt.s32.f32 %v5075
  %v5140 = vcvt.s32.f32 %v5076
  %v5141 = vcvt.s32.f32 %v5077
  %v5143 = vsel %vm962, %v4741, 0
  %5145 = vmatprep.subr.mxu0 0.0
  %5146 = vmatpush1.msra.mxu0 0.0
  %5147 = vmatprep.subr.mxu0 0.0
  %5148 = vmatpush1.msra.mxu0 0.0
  %5149 = vmatprep.subr.mxu0 0.0
  %5150 = vmatpush1.msra.mxu0 0.0
  %5151 = vmatprep.subr.mxu0 0.0
  %5152 = vmatpush1.msra.mxu0 0.0
  %5153 = vmatprep.subr.mxu0 0.0
  %5154 = vmatpush1.msra.mxu0 0.0
  %5155 = vmatprep.subr.mxu0 0.0
  %5156 = vmatpush1.msra.mxu0 0.0
  %5157 = vmatprep.subr.mxu0 0.0
  %5158 = vmatpush1.msra.mxu0 0.0
  %5159 = vmatprep.subr.mxu0 0.0
  %5160 = vmatpush1.msra.mxu0 0.0
  %5161 = vmatprep.subr.mxu0 %v4935
  %5162 = vmatpush1.msra.mxu0 %v4934
  %5163 = vmatprep.subr.mxu0 %v4927
  %5164 = vmatpush1.msra.mxu0 %v4926
  %5165 = vmatprep.subr.mxu0 %v4919
  %5166 = vmatpush1.msra.mxu0 %v4918
  %5167 = vmatprep.subr.mxu0 %v4911
  %5168 = vmatpush1.msra.mxu0 %v4910
  %5169 = vmatprep.subr.mxu0 %v3381
  %5170 = vmatpush1.msra.mxu0 %v3380
  %5171 = vmatprep.subr.mxu0 %v3373
  %5172 = vmatpush1.msra.mxu0 %v3372
  %5173 = vmatprep.subr.mxu0 %v3365
  %5174 = vmatpush1.msra.mxu0 %v3364
  %5175 = vmatprep.subr.mxu0 %v3357
  %5176 = vmatpush1.msra.mxu0 %v3356
  %5177 = vmatprep.subr.mxu0 0.0
  %5178 = vmatpush2.msra.mxu0 0.0
  %5179 = vmatprep.subr.mxu0 0.0
  %5180 = vmatpush2.msra.mxu0 0.0
  %5181 = vmatprep.subr.mxu0 0.0
  %5182 = vmatpush2.msra.mxu0 0.0
  %5183 = vmatprep.subr.mxu0 0.0
  %5184 = vmatpush2.msra.mxu0 0.0
  %5185 = vmatprep.subr.mxu0 0.0
  %5186 = vmatpush2.msra.mxu0 0.0
  %5187 = vmatprep.subr.mxu0 0.0
  %5188 = vmatpush2.msra.mxu0 0.0
  %5189 = vmatprep.subr.mxu0 0.0
  %5190 = vmatpush2.msra.mxu0 0.0
  %5191 = vmatprep.subr.mxu0 0.0
  %5192 = vmatpush2.msra.mxu0 0.0
  %5193 = vmatprep.subr.mxu0 0.0
  %5194 = vmatpush2.msra.mxu0 0.0
  %5195 = vmatprep.subr.mxu0 0.0
  %5196 = vmatpush2.msra.mxu0 0.0
  %5197 = vmatprep.subr.mxu0 0.0
  %5198 = vmatpush2.msra.mxu0 0.0
  %5199 = vmatprep.subr.mxu0 0.0
  %5200 = vmatpush2.msra.mxu0 0.0
  %5201 = vmatprep.subr.mxu0 0.0
  %5202 = vmatpush2.msra.mxu0 0.0
  %5203 = vmatprep.subr.mxu0 0.0
  %5204 = vmatpush2.msra.mxu0 0.0
  %5205 = vmatprep.subr.mxu0 0.0
  %5206 = vmatpush2.msra.mxu0 0.0
  %5207 = vmatprep.subr.mxu0 0.0
  %5208 = vmatpush2.msra.mxu0 0.0
  %5209 = vmatprep.mubr.f32.mxu0 0.0
  %5210 = vmatmul.mubr.f32.gmra.mxu0 %v5143
  %v5211 = vpop.f32.mrf.mxu0
  %v5212 = vadd.f32 0.0, %v5211
  %v5213 = vpop.f32.mrf.mxu0
  %v5214 = vadd.f32 0.0, %v5213
  %5215 = vdwg.mxu0
  %5216 = vmatprep.subr.mxu0 0.0
  %5217 = vmatpush1.msra.mxu0 0.0
  %5218 = vmatprep.subr.mxu0 0.0
  %5219 = vmatpush1.msra.mxu0 0.0
  %5220 = vmatprep.subr.mxu0 0.0
  %5221 = vmatpush1.msra.mxu0 0.0
  %5222 = vmatprep.subr.mxu0 0.0
  %5223 = vmatpush1.msra.mxu0 0.0
  %5224 = vmatprep.subr.mxu0 0.0
  %5225 = vmatpush1.msra.mxu0 0.0
  %5226 = vmatprep.subr.mxu0 0.0
  %5227 = vmatpush1.msra.mxu0 0.0
  %5228 = vmatprep.subr.mxu0 0.0
  %5229 = vmatpush1.msra.mxu0 0.0
  %5230 = vmatprep.subr.mxu0 0.0
  %5231 = vmatpush1.msra.mxu0 0.0
  %5232 = vmatprep.subr.mxu0 %v4937
  %5233 = vmatpush1.msra.mxu0 %v4936
  %5234 = vmatprep.subr.mxu0 %v4929
  %5235 = vmatpush1.msra.mxu0 %v4928
  %5236 = vmatprep.subr.mxu0 %v4921
  %5237 = vmatpush1.msra.mxu0 %v4920
  %5238 = vmatprep.subr.mxu0 %v4913
  %5239 = vmatpush1.msra.mxu0 %v4912
  %5240 = vmatprep.subr.mxu0 %v3383
  %5241 = vmatpush1.msra.mxu0 %v3382
  %5242 = vmatprep.subr.mxu0 %v3375
  %5243 = vmatpush1.msra.mxu0 %v3374
  %5244 = vmatprep.subr.mxu0 %v3367
  %5245 = vmatpush1.msra.mxu0 %v3366
  %5246 = vmatprep.subr.mxu0 %v3359
  %5247 = vmatpush1.msra.mxu0 %v3358
  %5248 = vmatprep.subr.mxu0 0.0
  %5249 = vmatpush2.msra.mxu0 0.0
  %5250 = vmatprep.subr.mxu0 0.0
  %5251 = vmatpush2.msra.mxu0 0.0
  %5252 = vmatprep.subr.mxu0 0.0
  %5253 = vmatpush2.msra.mxu0 0.0
  %5254 = vmatprep.subr.mxu0 0.0
  %5255 = vmatpush2.msra.mxu0 0.0
  %5256 = vmatprep.subr.mxu0 0.0
  %5257 = vmatpush2.msra.mxu0 0.0
  %5258 = vmatprep.subr.mxu0 0.0
  %5259 = vmatpush2.msra.mxu0 0.0
  %5260 = vmatprep.subr.mxu0 0.0
  %5261 = vmatpush2.msra.mxu0 0.0
  %5262 = vmatprep.subr.mxu0 0.0
  %5263 = vmatpush2.msra.mxu0 0.0
  %5264 = vmatprep.subr.mxu0 0.0
  %5265 = vmatpush2.msra.mxu0 0.0
  %5266 = vmatprep.subr.mxu0 0.0
  %5267 = vmatpush2.msra.mxu0 0.0
  %5268 = vmatprep.subr.mxu0 0.0
  %5269 = vmatpush2.msra.mxu0 0.0
  %5270 = vmatprep.subr.mxu0 0.0
  %5271 = vmatpush2.msra.mxu0 0.0
  %5272 = vmatprep.subr.mxu0 0.0
  %5273 = vmatpush2.msra.mxu0 0.0
  %5274 = vmatprep.subr.mxu0 0.0
  %5275 = vmatpush2.msra.mxu0 0.0
  %5276 = vmatprep.subr.mxu0 0.0
  %5277 = vmatpush2.msra.mxu0 0.0
  %5278 = vmatprep.subr.mxu0 0.0
  %5279 = vmatpush2.msra.mxu0 0.0
  %5280 = vmatprep.mubr.f32.mxu0 0.0
  %5281 = vmatmul.mubr.f32.gmra.mxu0 %v5143
  %v5282 = vpop.f32.mrf.mxu0
  %v5283 = vadd.f32 0.0, %v5282
  %v5284 = vpop.f32.mrf.mxu0
  %v5285 = vadd.f32 0.0, %v5284
  %5286 = vdwg.mxu0
  %5287 = vmatprep.subr.mxu0 0.0
  %5288 = vmatpush1.msra.mxu0 0.0
  %5289 = vmatprep.subr.mxu0 0.0
  %5290 = vmatpush1.msra.mxu0 0.0
  %5291 = vmatprep.subr.mxu0 0.0
  %5292 = vmatpush1.msra.mxu0 0.0
  %5293 = vmatprep.subr.mxu0 0.0
  %5294 = vmatpush1.msra.mxu0 0.0
  %5295 = vmatprep.subr.mxu0 0.0
  %5296 = vmatpush1.msra.mxu0 0.0
  %5297 = vmatprep.subr.mxu0 0.0
  %5298 = vmatpush1.msra.mxu0 0.0
  %5299 = vmatprep.subr.mxu0 0.0
  %5300 = vmatpush1.msra.mxu0 0.0
  %5301 = vmatprep.subr.mxu0 0.0
  %5302 = vmatpush1.msra.mxu0 0.0
  %5303 = vmatprep.subr.mxu0 %v4939
  %5304 = vmatpush1.msra.mxu0 %v4938
  %5305 = vmatprep.subr.mxu0 %v4931
  %5306 = vmatpush1.msra.mxu0 %v4930
  %5307 = vmatprep.subr.mxu0 %v4923
  %5308 = vmatpush1.msra.mxu0 %v4922
  %5309 = vmatprep.subr.mxu0 %v4915
  %5310 = vmatpush1.msra.mxu0 %v4914
  %5311 = vmatprep.subr.mxu0 %v3385
  %5312 = vmatpush1.msra.mxu0 %v3384
  %5313 = vmatprep.subr.mxu0 %v3377
  %5314 = vmatpush1.msra.mxu0 %v3376
  %5315 = vmatprep.subr.mxu0 %v3369
  %5316 = vmatpush1.msra.mxu0 %v3368
  %5317 = vmatprep.subr.mxu0 %v3361
  %5318 = vmatpush1.msra.mxu0 %v3360
  %5319 = vmatprep.subr.mxu0 0.0
  %5320 = vmatpush2.msra.mxu0 0.0
  %5321 = vmatprep.subr.mxu0 0.0
  %5322 = vmatpush2.msra.mxu0 0.0
  %5323 = vmatprep.subr.mxu0 0.0
  %5324 = vmatpush2.msra.mxu0 0.0
  %5325 = vmatprep.subr.mxu0 0.0
  %5326 = vmatpush2.msra.mxu0 0.0
  %5327 = vmatprep.subr.mxu0 0.0
  %5328 = vmatpush2.msra.mxu0 0.0
  %5329 = vmatprep.subr.mxu0 0.0
  %5330 = vmatpush2.msra.mxu0 0.0
  %5331 = vmatprep.subr.mxu0 0.0
  %5332 = vmatpush2.msra.mxu0 0.0
  %5333 = vmatprep.subr.mxu0 0.0
  %5334 = vmatpush2.msra.mxu0 0.0
  %5335 = vmatprep.subr.mxu0 0.0
  %5336 = vmatpush2.msra.mxu0 0.0
  %5337 = vmatprep.subr.mxu0 0.0
  %5338 = vmatpush2.msra.mxu0 0.0
  %5339 = vmatprep.subr.mxu0 0.0
  %5340 = vmatpush2.msra.mxu0 0.0
  %5341 = vmatprep.subr.mxu0 0.0
  %5342 = vmatpush2.msra.mxu0 0.0
  %5343 = vmatprep.subr.mxu0 0.0
  %5344 = vmatpush2.msra.mxu0 0.0
  %5345 = vmatprep.subr.mxu0 0.0
  %5346 = vmatpush2.msra.mxu0 0.0
  %5347 = vmatprep.subr.mxu0 0.0
  %5348 = vmatpush2.msra.mxu0 0.0
  %5349 = vmatprep.subr.mxu0 0.0
  %5350 = vmatpush2.msra.mxu0 0.0
  %5351 = vmatprep.mubr.f32.mxu0 0.0
  %5352 = vmatmul.mubr.f32.gmra.mxu0 %v5143
  %v5353 = vpop.f32.mrf.mxu0
  %v5354 = vadd.f32 0.0, %v5353
  %v5355 = vpop.f32.mrf.mxu0
  %v5356 = vadd.f32 0.0, %v5355
  %5357 = vdwg.mxu0
  %5358 = vmatprep.subr.mxu0 0.0
  %5359 = vmatpush1.msra.mxu0 0.0
  %5360 = vmatprep.subr.mxu0 0.0
  %5361 = vmatpush1.msra.mxu0 0.0
  %5362 = vmatprep.subr.mxu0 0.0
  %5363 = vmatpush1.msra.mxu0 0.0
  %5364 = vmatprep.subr.mxu0 0.0
  %5365 = vmatpush1.msra.mxu0 0.0
  %5366 = vmatprep.subr.mxu0 0.0
  %5367 = vmatpush1.msra.mxu0 0.0
  %5368 = vmatprep.subr.mxu0 0.0
  %5369 = vmatpush1.msra.mxu0 0.0
  %5370 = vmatprep.subr.mxu0 0.0
  %5371 = vmatpush1.msra.mxu0 0.0
  %5372 = vmatprep.subr.mxu0 0.0
  %5373 = vmatpush1.msra.mxu0 0.0
  %5374 = vmatprep.subr.mxu0 %v4941
  %5375 = vmatpush1.msra.mxu0 %v4940
  %5376 = vmatprep.subr.mxu0 %v4933
  %5377 = vmatpush1.msra.mxu0 %v4932
  %5378 = vmatprep.subr.mxu0 %v4925
  %5379 = vmatpush1.msra.mxu0 %v4924
  %5380 = vmatprep.subr.mxu0 %v4917
  %5381 = vmatpush1.msra.mxu0 %v4916
  %5382 = vmatprep.subr.mxu0 %v3387
  %5383 = vmatpush1.msra.mxu0 %v3386
  %5384 = vmatprep.subr.mxu0 %v3379
  %5385 = vmatpush1.msra.mxu0 %v3378
  %5386 = vmatprep.subr.mxu0 %v3371
  %5387 = vmatpush1.msra.mxu0 %v3370
  %5388 = vmatprep.subr.mxu0 %v3363
  %5389 = vmatpush1.msra.mxu0 %v3362
  %5390 = vmatprep.subr.mxu0 0.0
  %5391 = vmatpush2.msra.mxu0 0.0
  %5392 = vmatprep.subr.mxu0 0.0
  %5393 = vmatpush2.msra.mxu0 0.0
  %5394 = vmatprep.subr.mxu0 0.0
  %5395 = vmatpush2.msra.mxu0 0.0
  %5396 = vmatprep.subr.mxu0 0.0
  %5397 = vmatpush2.msra.mxu0 0.0
  %5398 = vmatprep.subr.mxu0 0.0
  %5399 = vmatpush2.msra.mxu0 0.0
  %5400 = vmatprep.subr.mxu0 0.0
  %5401 = vmatpush2.msra.mxu0 0.0
  %5402 = vmatprep.subr.mxu0 0.0
  %5403 = vmatpush2.msra.mxu0 0.0
  %5404 = vmatprep.subr.mxu0 0.0
  %5405 = vmatpush2.msra.mxu0 0.0
  %5406 = vmatprep.subr.mxu0 0.0
  %5407 = vmatpush2.msra.mxu0 0.0
  %5408 = vmatprep.subr.mxu0 0.0
  %5409 = vmatpush2.msra.mxu0 0.0
  %5410 = vmatprep.subr.mxu0 0.0
  %5411 = vmatpush2.msra.mxu0 0.0
  %5412 = vmatprep.subr.mxu0 0.0
  %5413 = vmatpush2.msra.mxu0 0.0
  %5414 = vmatprep.subr.mxu0 0.0
  %5415 = vmatpush2.msra.mxu0 0.0
  %5416 = vmatprep.subr.mxu0 0.0
  %5417 = vmatpush2.msra.mxu0 0.0
  %5418 = vmatprep.subr.mxu0 0.0
  %5419 = vmatpush2.msra.mxu0 0.0
  %5420 = vmatprep.subr.mxu0 0.0
  %5421 = vmatpush2.msra.mxu0 0.0
  %5422 = vmatprep.mubr.f32.mxu0 0.0
  %5423 = vmatmul.mubr.f32.gmra.mxu0 %v5143
  %v5424 = vpop.f32.mrf.mxu0
  %v5425 = vadd.f32 0.0, %v5424
  %v5426 = vpop.f32.mrf.mxu0
  %v5427 = vadd.f32 0.0, %v5426
  %5428 = vdwg.mxu0
  %5429 = vmatprep.subr.mxu0 0.0
  %5430 = vmatpush1.msra.mxu0 0.0
  %5431 = vmatprep.subr.mxu0 0.0
  %5432 = vmatpush1.msra.mxu0 0.0
  %5433 = vmatprep.subr.mxu0 0.0
  %5434 = vmatpush1.msra.mxu0 0.0
  %5435 = vmatprep.subr.mxu0 0.0
  %5436 = vmatpush1.msra.mxu0 0.0
  %5437 = vmatprep.subr.mxu0 0.0
  %5438 = vmatpush1.msra.mxu0 0.0
  %5439 = vmatprep.subr.mxu0 0.0
  %5440 = vmatpush1.msra.mxu0 0.0
  %5441 = vmatprep.subr.mxu0 0.0
  %5442 = vmatpush1.msra.mxu0 0.0
  %5443 = vmatprep.subr.mxu0 0.0
  %5444 = vmatpush1.msra.mxu0 0.0
  %5445 = vmatprep.subr.mxu0 %v5135
  %5446 = vmatpush1.msra.mxu0 %v5134
  %5447 = vmatprep.subr.mxu0 %v5127
  %5448 = vmatpush1.msra.mxu0 %v5126
  %5449 = vmatprep.subr.mxu0 %v5119
  %5450 = vmatpush1.msra.mxu0 %v5118
  %5451 = vmatprep.subr.mxu0 %v5111
  %5452 = vmatpush1.msra.mxu0 %v5110
  %5453 = vmatprep.subr.mxu0 %v5103
  %5454 = vmatpush1.msra.mxu0 %v5102
  %5455 = vmatprep.subr.mxu0 %v5095
  %5456 = vmatpush1.msra.mxu0 %v5094
  %5457 = vmatprep.subr.mxu0 %v5087
  %5458 = vmatpush1.msra.mxu0 %v5086
  %5459 = vmatprep.subr.mxu0 %v5079
  %5460 = vmatpush1.msra.mxu0 %v5078
  %5461 = vmatprep.subr.mxu0 0.0
  %5462 = vmatpush2.msra.mxu0 0.0
  %5463 = vmatprep.subr.mxu0 0.0
  %5464 = vmatpush2.msra.mxu0 0.0
  %5465 = vmatprep.subr.mxu0 0.0
  %5466 = vmatpush2.msra.mxu0 0.0
  %5467 = vmatprep.subr.mxu0 0.0
  %5468 = vmatpush2.msra.mxu0 0.0
  %5469 = vmatprep.subr.mxu0 0.0
  %5470 = vmatpush2.msra.mxu0 0.0
  %5471 = vmatprep.subr.mxu0 0.0
  %5472 = vmatpush2.msra.mxu0 0.0
  %5473 = vmatprep.subr.mxu0 0.0
  %5474 = vmatpush2.msra.mxu0 0.0
  %5475 = vmatprep.subr.mxu0 0.0
  %5476 = vmatpush2.msra.mxu0 0.0
  %5477 = vmatprep.subr.mxu0 0.0
  %5478 = vmatpush2.msra.mxu0 0.0
  %5479 = vmatprep.subr.mxu0 0.0
  %5480 = vmatpush2.msra.mxu0 0.0
  %5481 = vmatprep.subr.mxu0 0.0
  %5482 = vmatpush2.msra.mxu0 0.0
  %5483 = vmatprep.subr.mxu0 0.0
  %5484 = vmatpush2.msra.mxu0 0.0
  %5485 = vmatprep.subr.mxu0 0.0
  %5486 = vmatpush2.msra.mxu0 0.0
  %5487 = vmatprep.subr.mxu0 0.0
  %5488 = vmatpush2.msra.mxu0 0.0
  %5489 = vmatprep.subr.mxu0 0.0
  %5490 = vmatpush2.msra.mxu0 0.0
  %5491 = vmatprep.subr.mxu0 0.0
  %5492 = vmatpush2.msra.mxu0 0.0
  %5493 = vmatprep.mubr.f32.mxu0 0.0
  %5494 = vmatmul.mubr.f32.gmra.mxu0 %v5143
  %v5495 = vpop.f32.mrf.mxu0
  %v5496 = vadd.f32 0.0, %v5495
  %v5497 = vpop.f32.mrf.mxu0
  %v5498 = vadd.f32 0.0, %v5497
  %5499 = vdwg.mxu0
  %5500 = vmatprep.subr.mxu0 0.0
  %5501 = vmatpush1.msra.mxu0 0.0
  %5502 = vmatprep.subr.mxu0 0.0
  %5503 = vmatpush1.msra.mxu0 0.0
  %5504 = vmatprep.subr.mxu0 0.0
  %5505 = vmatpush1.msra.mxu0 0.0
  %5506 = vmatprep.subr.mxu0 0.0
  %5507 = vmatpush1.msra.mxu0 0.0
  %5508 = vmatprep.subr.mxu0 0.0
  %5509 = vmatpush1.msra.mxu0 0.0
  %5510 = vmatprep.subr.mxu0 0.0
  %5511 = vmatpush1.msra.mxu0 0.0
  %5512 = vmatprep.subr.mxu0 0.0
  %5513 = vmatpush1.msra.mxu0 0.0
  %5514 = vmatprep.subr.mxu0 0.0
  %5515 = vmatpush1.msra.mxu0 0.0
  %5516 = vmatprep.subr.mxu0 %v5137
  %5517 = vmatpush1.msra.mxu0 %v5136
  %5518 = vmatprep.subr.mxu0 %v5129
  %5519 = vmatpush1.msra.mxu0 %v5128
  %5520 = vmatprep.subr.mxu0 %v5121
  %5521 = vmatpush1.msra.mxu0 %v5120
  %5522 = vmatprep.subr.mxu0 %v5113
  %5523 = vmatpush1.msra.mxu0 %v5112
  %5524 = vmatprep.subr.mxu0 %v5105
  %5525 = vmatpush1.msra.mxu0 %v5104
  %5526 = vmatprep.subr.mxu0 %v5097
  %5527 = vmatpush1.msra.mxu0 %v5096
  %5528 = vmatprep.subr.mxu0 %v5089
  %5529 = vmatpush1.msra.mxu0 %v5088
  %5530 = vmatprep.subr.mxu0 %v5081
  %5531 = vmatpush1.msra.mxu0 %v5080
  %5532 = vmatprep.subr.mxu0 0.0
  %5533 = vmatpush2.msra.mxu0 0.0
  %5534 = vmatprep.subr.mxu0 0.0
  %5535 = vmatpush2.msra.mxu0 0.0
  %5536 = vmatprep.subr.mxu0 0.0
  %5537 = vmatpush2.msra.mxu0 0.0
  %5538 = vmatprep.subr.mxu0 0.0
  %5539 = vmatpush2.msra.mxu0 0.0
  %5540 = vmatprep.subr.mxu0 0.0
  %5541 = vmatpush2.msra.mxu0 0.0
  %5542 = vmatprep.subr.mxu0 0.0
  %5543 = vmatpush2.msra.mxu0 0.0
  %5544 = vmatprep.subr.mxu0 0.0
  %5545 = vmatpush2.msra.mxu0 0.0
  %5546 = vmatprep.subr.mxu0 0.0
  %5547 = vmatpush2.msra.mxu0 0.0
  %5548 = vmatprep.subr.mxu0 0.0
  %5549 = vmatpush2.msra.mxu0 0.0
  %5550 = vmatprep.subr.mxu0 0.0
  %5551 = vmatpush2.msra.mxu0 0.0
  %5552 = vmatprep.subr.mxu0 0.0
  %5553 = vmatpush2.msra.mxu0 0.0
  %5554 = vmatprep.subr.mxu0 0.0
  %5555 = vmatpush2.msra.mxu0 0.0
  %5556 = vmatprep.subr.mxu0 0.0
  %5557 = vmatpush2.msra.mxu0 0.0
  %5558 = vmatprep.subr.mxu0 0.0
  %5559 = vmatpush2.msra.mxu0 0.0
  %5560 = vmatprep.subr.mxu0 0.0
  %5561 = vmatpush2.msra.mxu0 0.0
  %5562 = vmatprep.subr.mxu0 0.0
  %5563 = vmatpush2.msra.mxu0 0.0
  %5564 = vmatprep.mubr.f32.mxu0 0.0
  %5565 = vmatmul.mubr.f32.gmra.mxu0 %v5143
  %v5566 = vpop.f32.mrf.mxu0
  %v5567 = vadd.f32 0.0, %v5566
  %v5568 = vpop.f32.mrf.mxu0
  %v5569 = vadd.f32 0.0, %v5568
  %5570 = vdwg.mxu0
  %5571 = vmatprep.subr.mxu0 0.0
  %5572 = vmatpush1.msra.mxu0 0.0
  %5573 = vmatprep.subr.mxu0 0.0
  %5574 = vmatpush1.msra.mxu0 0.0
  %5575 = vmatprep.subr.mxu0 0.0
  %5576 = vmatpush1.msra.mxu0 0.0
  %5577 = vmatprep.subr.mxu0 0.0
  %5578 = vmatpush1.msra.mxu0 0.0
  %5579 = vmatprep.subr.mxu0 0.0
  %5580 = vmatpush1.msra.mxu0 0.0
  %5581 = vmatprep.subr.mxu0 0.0
  %5582 = vmatpush1.msra.mxu0 0.0
  %5583 = vmatprep.subr.mxu0 0.0
  %5584 = vmatpush1.msra.mxu0 0.0
  %5585 = vmatprep.subr.mxu0 0.0
  %5586 = vmatpush1.msra.mxu0 0.0
  %5587 = vmatprep.subr.mxu0 %v5139
  %5588 = vmatpush1.msra.mxu0 %v5138
  %5589 = vmatprep.subr.mxu0 %v5131
  %5590 = vmatpush1.msra.mxu0 %v5130
  %5591 = vmatprep.subr.mxu0 %v5123
  %5592 = vmatpush1.msra.mxu0 %v5122
  %5593 = vmatprep.subr.mxu0 %v5115
  %5594 = vmatpush1.msra.mxu0 %v5114
  %5595 = vmatprep.subr.mxu0 %v5107
  %5596 = vmatpush1.msra.mxu0 %v5106
  %5597 = vmatprep.subr.mxu0 %v5099
  %5598 = vmatpush1.msra.mxu0 %v5098
  %5599 = vmatprep.subr.mxu0 %v5091
  %5600 = vmatpush1.msra.mxu0 %v5090
  %5601 = vmatprep.subr.mxu0 %v5083
  %5602 = vmatpush1.msra.mxu0 %v5082
  %5603 = vmatprep.subr.mxu0 0.0
  %5604 = vmatpush2.msra.mxu0 0.0
  %5605 = vmatprep.subr.mxu0 0.0
  %5606 = vmatpush2.msra.mxu0 0.0
  %5607 = vmatprep.subr.mxu0 0.0
  %5608 = vmatpush2.msra.mxu0 0.0
  %5609 = vmatprep.subr.mxu0 0.0
  %5610 = vmatpush2.msra.mxu0 0.0
  %5611 = vmatprep.subr.mxu0 0.0
  %5612 = vmatpush2.msra.mxu0 0.0
  %5613 = vmatprep.subr.mxu0 0.0
  %5614 = vmatpush2.msra.mxu0 0.0
  %5615 = vmatprep.subr.mxu0 0.0
  %5616 = vmatpush2.msra.mxu0 0.0
  %5617 = vmatprep.subr.mxu0 0.0
  %5618 = vmatpush2.msra.mxu0 0.0
  %5619 = vmatprep.subr.mxu0 0.0
  %5620 = vmatpush2.msra.mxu0 0.0
  %5621 = vmatprep.subr.mxu0 0.0
  %5622 = vmatpush2.msra.mxu0 0.0
  %5623 = vmatprep.subr.mxu0 0.0
  %5624 = vmatpush2.msra.mxu0 0.0
  %5625 = vmatprep.subr.mxu0 0.0
  %5626 = vmatpush2.msra.mxu0 0.0
  %5627 = vmatprep.subr.mxu0 0.0
  %5628 = vmatpush2.msra.mxu0 0.0
  %5629 = vmatprep.subr.mxu0 0.0
  %5630 = vmatpush2.msra.mxu0 0.0
  %5631 = vmatprep.subr.mxu0 0.0
  %5632 = vmatpush2.msra.mxu0 0.0
  %5633 = vmatprep.subr.mxu0 0.0
  %5634 = vmatpush2.msra.mxu0 0.0
  %5635 = vmatprep.mubr.f32.mxu0 0.0
  %5636 = vmatmul.mubr.f32.gmra.mxu0 %v5143
  %v5637 = vpop.f32.mrf.mxu0
  %v5638 = vadd.f32 0.0, %v5637
  %v5639 = vpop.f32.mrf.mxu0
  %v5640 = vadd.f32 0.0, %v5639
  %5641 = vdwg.mxu0
  %5642 = vmatprep.subr.mxu0 0.0
  %5643 = vmatpush1.msra.mxu0 0.0
  %5644 = vmatprep.subr.mxu0 0.0
  %5645 = vmatpush1.msra.mxu0 0.0
  %5646 = vmatprep.subr.mxu0 0.0
  %5647 = vmatpush1.msra.mxu0 0.0
  %5648 = vmatprep.subr.mxu0 0.0
  %5649 = vmatpush1.msra.mxu0 0.0
  %5650 = vmatprep.subr.mxu0 0.0
  %5651 = vmatpush1.msra.mxu0 0.0
  %5652 = vmatprep.subr.mxu0 0.0
  %5653 = vmatpush1.msra.mxu0 0.0
  %5654 = vmatprep.subr.mxu0 0.0
  %5655 = vmatpush1.msra.mxu0 0.0
  %5656 = vmatprep.subr.mxu0 0.0
  %5657 = vmatpush1.msra.mxu0 0.0
  %5658 = vmatprep.subr.mxu0 %v5141
  %5659 = vmatpush1.msra.mxu0 %v5140
  %5660 = vmatprep.subr.mxu0 %v5133
  %5661 = vmatpush1.msra.mxu0 %v5132
  %5662 = vmatprep.subr.mxu0 %v5125
  %5663 = vmatpush1.msra.mxu0 %v5124
  %5664 = vmatprep.subr.mxu0 %v5117
  %5665 = vmatpush1.msra.mxu0 %v5116
  %5666 = vmatprep.subr.mxu0 %v5109
  %5667 = vmatpush1.msra.mxu0 %v5108
  %5668 = vmatprep.subr.mxu0 %v5101
  %5669 = vmatpush1.msra.mxu0 %v5100
  %5670 = vmatprep.subr.mxu0 %v5093
  %5671 = vmatpush1.msra.mxu0 %v5092
  %5672 = vmatprep.subr.mxu0 %v5085
  %5673 = vmatpush1.msra.mxu0 %v5084
  %5674 = vmatprep.subr.mxu0 0.0
  %5675 = vmatpush2.msra.mxu0 0.0
  %5676 = vmatprep.subr.mxu0 0.0
  %5677 = vmatpush2.msra.mxu0 0.0
  %5678 = vmatprep.subr.mxu0 0.0
  %5679 = vmatpush2.msra.mxu0 0.0
  %5680 = vmatprep.subr.mxu0 0.0
  %5681 = vmatpush2.msra.mxu0 0.0
  %5682 = vmatprep.subr.mxu0 0.0
  %5683 = vmatpush2.msra.mxu0 0.0
  %5684 = vmatprep.subr.mxu0 0.0
  %5685 = vmatpush2.msra.mxu0 0.0
  %5686 = vmatprep.subr.mxu0 0.0
  %5687 = vmatpush2.msra.mxu0 0.0
  %5688 = vmatprep.subr.mxu0 0.0
  %5689 = vmatpush2.msra.mxu0 0.0
  %5690 = vmatprep.subr.mxu0 0.0
  %5691 = vmatpush2.msra.mxu0 0.0
  %5692 = vmatprep.subr.mxu0 0.0
  %5693 = vmatpush2.msra.mxu0 0.0
  %5694 = vmatprep.subr.mxu0 0.0
  %5695 = vmatpush2.msra.mxu0 0.0
  %5696 = vmatprep.subr.mxu0 0.0
  %5697 = vmatpush2.msra.mxu0 0.0
  %5698 = vmatprep.subr.mxu0 0.0
  %5699 = vmatpush2.msra.mxu0 0.0
  %5700 = vmatprep.subr.mxu0 0.0
  %5701 = vmatpush2.msra.mxu0 0.0
  %5702 = vmatprep.subr.mxu0 0.0
  %5703 = vmatpush2.msra.mxu0 0.0
  %5704 = vmatprep.subr.mxu0 0.0
  %5705 = vmatpush2.msra.mxu0 0.0
  %5706 = vmatprep.mubr.f32.mxu0 0.0
  %5707 = vmatmul.mubr.f32.gmra.mxu0 %v5143
  %v5708 = vpop.f32.mrf.mxu0
  %v5709 = vadd.f32 0.0, %v5708
  %v5710 = vpop.f32.mrf.mxu0
  %v5711 = vadd.f32 0.0, %v5710
  %5712 = vdwg.mxu0
  %v5713 = vmul.f32 %v5212, %v5496
  %v5714 = vmul.f32 %v5214, %v5498
  %v5715 = vmul.f32 %v5283, %v5567
  %v5716 = vmul.f32 %v5285, %v5569
  %v5717 = vmul.f32 %v5354, %v5638
  %v5718 = vmul.f32 %v5356, %v5640
  %v5719 = vmul.f32 %v5425, %v5709
  %v5720 = vmul.f32 %v5427, %v5711
  %v5721 = vld [vmem:[%s29] sm:$0xff]
  %v5722 = vld [vmem:[%s29 + $0x8] sm:$0xff]
  %v5723 = vld [vmem:[%s29 + $0x10] sm:$0xff]
  %v5724 = vld [vmem:[%s29 + $0x18] sm:$0xff]
  %v5725 = vld [vmem:[%s29 + $0x20] sm:$0xff]
  %v5726 = vld [vmem:[%s29 + $0x28] sm:$0xff]
  %v5727 = vld [vmem:[%s29 + $0x30] sm:$0xff]
  %v5728 = vld [vmem:[%s29 + $0x38] sm:$0xff]
  %v5729 = vld [vmem:[%s29 + $0x40] sm:$0xff]
  %v5730 = vld [vmem:[%s29 + $0x48] sm:$0xff]
  %v5731 = vld [vmem:[%s29 + $0x50] sm:$0xff]
  %v5732 = vld [vmem:[%s29 + $0x58] sm:$0xff]
  %v5733 = vld [vmem:[%s29 + $0x60] sm:$0xff]
  %v5734 = vld [vmem:[%s29 + $0x68] sm:$0xff]
  %v5735 = vld [vmem:[%s29 + $0x70] sm:$0xff]
  %v5736 = vld [vmem:[%s29 + $0x78] sm:$0xff]
  %v5737 = vld [vmem:[%s29 + $0x80] sm:$0xff]
  %v5738 = vld [vmem:[%s29 + $0x88] sm:$0xff]
  %v5739 = vld [vmem:[%s29 + $0x90] sm:$0xff]
  %v5740 = vld [vmem:[%s29 + $0x98] sm:$0xff]
  %v5741 = vld [vmem:[%s29 + $0xa0] sm:$0xff]
  %v5742 = vld [vmem:[%s29 + $0xa8] sm:$0xff]
  %v5743 = vld [vmem:[%s29 + $0xb0] sm:$0xff]
  %v5744 = vld [vmem:[%s29 + $0xb8] sm:$0xff]
  %v5745 = vld [vmem:[%s29 + $0xc0] sm:$0xff]
  %v5746 = vld [vmem:[%s29 + $0xc8] sm:$0xff]
  %v5747 = vld [vmem:[%s29 + $0xd0] sm:$0xff]
  %v5748 = vld [vmem:[%s29 + $0xd8] sm:$0xff]
  %v5749 = vld [vmem:[%s29 + $0xe0] sm:$0xff]
  %v5750 = vld [vmem:[%s29 + $0xe8] sm:$0xff]
  %v5751 = vld [vmem:[%s29 + $0xf0] sm:$0xff]
  %v5752 = vld [vmem:[%s29 + $0xf8] sm:$0xff]
  %v5753 = vld [vmem:[%s29 + $0x100] sm:$0xff]
  %v5754 = vld [vmem:[%s29 + $0x108] sm:$0xff]
  %v5755 = vld [vmem:[%s29 + $0x110] sm:$0xff]
  %v5756 = vld [vmem:[%s29 + $0x118] sm:$0xff]
  %v5757 = vld [vmem:[%s29 + $0x120] sm:$0xff]
  %v5758 = vld [vmem:[%s29 + $0x128] sm:$0xff]
  %v5759 = vld [vmem:[%s29 + $0x130] sm:$0xff]
  %v5760 = vld [vmem:[%s29 + $0x138] sm:$0xff]
  %v5761 = vld [vmem:[%s29 + $0x140] sm:$0xff]
  %v5762 = vld [vmem:[%s29 + $0x148] sm:$0xff]
  %v5763 = vld [vmem:[%s29 + $0x150] sm:$0xff]
  %v5764 = vld [vmem:[%s29 + $0x158] sm:$0xff]
  %v5765 = vld [vmem:[%s29 + $0x160] sm:$0xff]
  %v5766 = vld [vmem:[%s29 + $0x168] sm:$0xff]
  %v5767 = vld [vmem:[%s29 + $0x170] sm:$0xff]
  %v5768 = vld [vmem:[%s29 + $0x178] sm:$0xff]
  %v5769 = vld [vmem:[%s29 + $0x180] sm:$0xff]
  %v5770 = vld [vmem:[%s29 + $0x188] sm:$0xff]
  %v5771 = vld [vmem:[%s29 + $0x190] sm:$0xff]
  %v5772 = vld [vmem:[%s29 + $0x198] sm:$0xff]
  %v5773 = vld [vmem:[%s29 + $0x1a0] sm:$0xff]
  %v5774 = vld [vmem:[%s29 + $0x1a8] sm:$0xff]
  %v5775 = vld [vmem:[%s29 + $0x1b0] sm:$0xff]
  %v5776 = vld [vmem:[%s29 + $0x1b8] sm:$0xff]
  %v5777 = vld [vmem:[%s29 + $0x1c0] sm:$0xff]
  %v5778 = vld [vmem:[%s29 + $0x1c8] sm:$0xff]
  %v5779 = vld [vmem:[%s29 + $0x1d0] sm:$0xff]
  %v5780 = vld [vmem:[%s29 + $0x1d8] sm:$0xff]
  %v5781 = vld [vmem:[%s29 + $0x1e0] sm:$0xff]
  %v5782 = vld [vmem:[%s29 + $0x1e8] sm:$0xff]
  %v5783 = vld [vmem:[%s29 + $0x1f0] sm:$0xff]
  %v5784 = vld [vmem:[%s29 + $0x1f8] sm:$0xff]
  %v5785 = vld [vmem:[%s29 + $0x200] sm:$0xff]
  %v5786 = vld [vmem:[%s29 + $0x208] sm:$0xff]
  %v5787 = vld [vmem:[%s29 + $0x210] sm:$0xff]
  %v5788 = vld [vmem:[%s29 + $0x218] sm:$0xff]
  %v5789 = vld [vmem:[%s29 + $0x220] sm:$0xff]
  %v5790 = vld [vmem:[%s29 + $0x228] sm:$0xff]
  %v5791 = vld [vmem:[%s29 + $0x230] sm:$0xff]
  %v5792 = vld [vmem:[%s29 + $0x238] sm:$0xff]
  %v5793 = vld [vmem:[%s29 + $0x240] sm:$0xff]
  %v5794 = vld [vmem:[%s29 + $0x248] sm:$0xff]
  %v5795 = vld [vmem:[%s29 + $0x250] sm:$0xff]
  %v5796 = vld [vmem:[%s29 + $0x258] sm:$0xff]
  %v5797 = vld [vmem:[%s29 + $0x260] sm:$0xff]
  %v5798 = vld [vmem:[%s29 + $0x268] sm:$0xff]
  %v5799 = vld [vmem:[%s29 + $0x270] sm:$0xff]
  %v5800 = vld [vmem:[%s29 + $0x278] sm:$0xff]
  %v5801 = vld [vmem:[%s29 + $0x280] sm:$0xff]
  %v5802 = vld [vmem:[%s29 + $0x288] sm:$0xff]
  %v5803 = vld [vmem:[%s29 + $0x290] sm:$0xff]
  %v5804 = vld [vmem:[%s29 + $0x298] sm:$0xff]
  %v5805 = vld [vmem:[%s29 + $0x2a0] sm:$0xff]
  %v5806 = vld [vmem:[%s29 + $0x2a8] sm:$0xff]
  %v5807 = vld [vmem:[%s29 + $0x2b0] sm:$0xff]
  %v5808 = vld [vmem:[%s29 + $0x2b8] sm:$0xff]
  %v5809 = vld [vmem:[%s29 + $0x2c0] sm:$0xff]
  %v5810 = vld [vmem:[%s29 + $0x2c8] sm:$0xff]
  %v5811 = vld [vmem:[%s29 + $0x2d0] sm:$0xff]
  %v5812 = vld [vmem:[%s29 + $0x2d8] sm:$0xff]
  %v5813 = vld [vmem:[%s29 + $0x2e0] sm:$0xff]
  %v5814 = vld [vmem:[%s29 + $0x2e8] sm:$0xff]
  %v5815 = vld [vmem:[%s29 + $0x2f0] sm:$0xff]
  %v5816 = vld [vmem:[%s29 + $0x2f8] sm:$0xff]
  %v5817 = vld [vmem:[%s29 + $0x300] sm:$0xff]
  %v5818 = vld [vmem:[%s29 + $0x308] sm:$0xff]
  %v5819 = vld [vmem:[%s29 + $0x310] sm:$0xff]
  %v5820 = vld [vmem:[%s29 + $0x318] sm:$0xff]
  %v5821 = vld [vmem:[%s29 + $0x320] sm:$0xff]
  %v5822 = vld [vmem:[%s29 + $0x328] sm:$0xff]
  %v5823 = vld [vmem:[%s29 + $0x330] sm:$0xff]
  %v5824 = vld [vmem:[%s29 + $0x338] sm:$0xff]
  %v5825 = vld [vmem:[%s29 + $0x340] sm:$0xff]
  %v5826 = vld [vmem:[%s29 + $0x348] sm:$0xff]
  %v5827 = vld [vmem:[%s29 + $0x350] sm:$0xff]
  %v5828 = vld [vmem:[%s29 + $0x358] sm:$0xff]
  %v5829 = vld [vmem:[%s29 + $0x360] sm:$0xff]
  %v5830 = vld [vmem:[%s29 + $0x368] sm:$0xff]
  %v5831 = vld [vmem:[%s29 + $0x370] sm:$0xff]
  %v5832 = vld [vmem:[%s29 + $0x378] sm:$0xff]
  %v5833 = vld [vmem:[%s29 + $0x380] sm:$0xff]
  %v5834 = vld [vmem:[%s29 + $0x388] sm:$0xff]
  %v5835 = vld [vmem:[%s29 + $0x390] sm:$0xff]
  %v5836 = vld [vmem:[%s29 + $0x398] sm:$0xff]
  %v5837 = vld [vmem:[%s29 + $0x3a0] sm:$0xff]
  %v5838 = vld [vmem:[%s29 + $0x3a8] sm:$0xff]
  %v5839 = vld [vmem:[%s29 + $0x3b0] sm:$0xff]
  %v5840 = vld [vmem:[%s29 + $0x3b8] sm:$0xff]
  %v5841 = vld [vmem:[%s29 + $0x3c0] sm:$0xff]
  %v5842 = vld [vmem:[%s29 + $0x3c8] sm:$0xff]
  %v5843 = vld [vmem:[%s29 + $0x3d0] sm:$0xff]
  %v5844 = vld [vmem:[%s29 + $0x3d8] sm:$0xff]
  %v5845 = vld [vmem:[%s29 + $0x3e0] sm:$0xff]
  %v5846 = vld [vmem:[%s29 + $0x3e8] sm:$0xff]
  %v5847 = vld [vmem:[%s29 + $0x3f0] sm:$0xff]
  %v5848 = vld [vmem:[%s29 + $0x3f8] sm:$0xff]
  %v5849 = vld [vmem:[%s31] sm:$0xff]
  %v5850 = vld [vmem:[%s31 + $0x8] sm:$0xff]
  %v5851 = vld [vmem:[%s31 + $0x10] sm:$0xff]
  %v5852 = vld [vmem:[%s31 + $0x18] sm:$0xff]
  %v5853 = vld [vmem:[%s31 + $0x20] sm:$0xff]
  %v5854 = vld [vmem:[%s31 + $0x28] sm:$0xff]
  %v5855 = vld [vmem:[%s31 + $0x30] sm:$0xff]
  %v5856 = vld [vmem:[%s31 + $0x38] sm:$0xff]
  %5857 = vmatprep.subr.mxu0 0.0
  %5858 = vmatpush1.msra.mxu0 0.0
  %5859 = vmatprep.subr.mxu0 0.0
  %5860 = vmatpush1.msra.mxu0 0.0
  %5861 = vmatprep.subr.mxu0 0.0
  %5862 = vmatpush1.msra.mxu0 0.0
  %5863 = vmatprep.subr.mxu0 0.0
  %5864 = vmatpush1.msra.mxu0 0.0
  %5865 = vmatprep.subr.mxu0 0.0
  %5866 = vmatpush1.msra.mxu0 0.0
  %5867 = vmatprep.subr.mxu0 0.0
  %5868 = vmatpush1.msra.mxu0 0.0
  %5869 = vmatprep.subr.mxu0 0.0
  %5870 = vmatpush1.msra.mxu0 0.0
  %5871 = vmatprep.subr.mxu0 0.0
  %5872 = vmatpush1.msra.mxu0 0.0
  %5873 = vmatprep.subr.mxu0 0.0
  %5874 = vmatpush1.msra.mxu0 %v5856
  %5875 = vmatprep.subr.mxu0 0.0
  %5876 = vmatpush1.msra.mxu0 %v5855
  %5877 = vmatprep.subr.mxu0 0.0
  %5878 = vmatpush1.msra.mxu0 %v5854
  %5879 = vmatprep.subr.mxu0 0.0
  %5880 = vmatpush1.msra.mxu0 %v5853
  %5881 = vmatprep.subr.mxu0 0.0
  %5882 = vmatpush1.msra.mxu0 %v5852
  %5883 = vmatprep.subr.mxu0 0.0
  %5884 = vmatpush1.msra.mxu0 %v5851
  %5885 = vmatprep.subr.mxu0 0.0
  %5886 = vmatpush1.msra.mxu0 %v5850
  %5887 = vmatprep.subr.mxu0 0.0
  %5888 = vmatpush1.msra.mxu0 %v5849
  %5889 = vmatprep.subr.mxu0 0.0
  %5890 = vmatpush2.msra.mxu0 0.0
  %5891 = vmatprep.subr.mxu0 0.0
  %5892 = vmatpush2.msra.mxu0 0.0
  %5893 = vmatprep.subr.mxu0 0.0
  %5894 = vmatpush2.msra.mxu0 0.0
  %5895 = vmatprep.subr.mxu0 0.0
  %5896 = vmatpush2.msra.mxu0 0.0
  %5897 = vmatprep.subr.mxu0 0.0
  %5898 = vmatpush2.msra.mxu0 0.0
  %5899 = vmatprep.subr.mxu0 0.0
  %5900 = vmatpush2.msra.mxu0 0.0
  %5901 = vmatprep.subr.mxu0 0.0
  %5902 = vmatpush2.msra.mxu0 0.0
  %5903 = vmatprep.subr.mxu0 0.0
  %5904 = vmatpush2.msra.mxu0 0.0
  %5905 = vmatprep.subr.mxu0 0.0
  %5906 = vmatpush2.msra.mxu0 0.0
  %5907 = vmatprep.subr.mxu0 0.0
  %5908 = vmatpush2.msra.mxu0 0.0
  %5909 = vmatprep.subr.mxu0 0.0
  %5910 = vmatpush2.msra.mxu0 0.0
  %5911 = vmatprep.subr.mxu0 0.0
  %5912 = vmatpush2.msra.mxu0 0.0
  %5913 = vmatprep.subr.mxu0 0.0
  %5914 = vmatpush2.msra.mxu0 0.0
  %5915 = vmatprep.subr.mxu0 0.0
  %5916 = vmatpush2.msra.mxu0 0.0
  %5917 = vmatprep.subr.mxu0 0.0
  %5918 = vmatpush2.msra.mxu0 0.0
  %5919 = vmatprep.subr.mxu0 0.0
  %5920 = vmatpush2.msra.mxu0 0.0
  %5921 = vmatprep.mubr.f32.mxu0 0.0
  %5922 = vmatmul.mubr.f32.gmra.mxu0 %v5143
  %v5923 = vpop.f32.mrf.mxu0
  %v5924 = vadd.f32 0.0, %v5923
  %v5925 = vpop.f32.mrf.mxu0
  %5926 = vdwg.mxu0
  %5927 = vmatprep.subr.mxu0 0.0
  %5928 = vmatpush1.msra.mxu0 %v5736
  %5929 = vmatprep.subr.mxu0 0.0
  %5930 = vmatpush1.msra.mxu0 %v5735
  %5931 = vmatprep.subr.mxu0 0.0
  %5932 = vmatpush1.msra.mxu0 %v5734
  %5933 = vmatprep.subr.mxu0 0.0
  %5934 = vmatpush1.msra.mxu0 %v5733
  %5935 = vmatprep.subr.mxu0 0.0
  %5936 = vmatpush1.msra.mxu0 %v5732
  %5937 = vmatprep.subr.mxu0 0.0
  %5938 = vmatpush1.msra.mxu0 %v5731
  %5939 = vmatprep.subr.mxu0 0.0
  %5940 = vmatpush1.msra.mxu0 %v5730
  %5941 = vmatprep.subr.mxu0 0.0
  %5942 = vmatpush1.msra.mxu0 %v5729
  %5943 = vmatprep.subr.mxu0 0.0
  %5944 = vmatpush1.msra.mxu0 %v5728
  %5945 = vmatprep.subr.mxu0 0.0
  %5946 = vmatpush1.msra.mxu0 %v5727
  %5947 = vmatprep.subr.mxu0 0.0
  %5948 = vmatpush1.msra.mxu0 %v5726
  %5949 = vmatprep.subr.mxu0 0.0
  %5950 = vmatpush1.msra.mxu0 %v5725
  %5951 = vmatprep.subr.mxu0 0.0
  %5952 = vmatpush1.msra.mxu0 %v5724
  %5953 = vmatprep.subr.mxu0 0.0
  %5954 = vmatpush1.msra.mxu0 %v5723
  %5955 = vmatprep.subr.mxu0 0.0
  %5956 = vmatpush1.msra.mxu0 %v5722
  %5957 = vmatprep.subr.mxu0 0.0
  %5958 = vmatpush1.msra.mxu0 %v5721
  %5959 = vmatprep.subr.mxu0 0.0
  %5960 = vmatpush2.msra.mxu0 %v5752
  %5961 = vmatprep.subr.mxu0 0.0
  %5962 = vmatpush2.msra.mxu0 %v5751
  %5963 = vmatprep.subr.mxu0 0.0
  %5964 = vmatpush2.msra.mxu0 %v5750
  %5965 = vmatprep.subr.mxu0 0.0
  %5966 = vmatpush2.msra.mxu0 %v5749
  %5967 = vmatprep.subr.mxu0 0.0
  %5968 = vmatpush2.msra.mxu0 %v5748
  %5969 = vmatprep.subr.mxu0 0.0
  %5970 = vmatpush2.msra.mxu0 %v5747
  %5971 = vmatprep.subr.mxu0 0.0
  %5972 = vmatpush2.msra.mxu0 %v5746
  %5973 = vmatprep.subr.mxu0 0.0
  %5974 = vmatpush2.msra.mxu0 %v5745
  %5975 = vmatprep.subr.mxu0 0.0
  %5976 = vmatpush2.msra.mxu0 %v5744
  %5977 = vmatprep.subr.mxu0 0.0
  %5978 = vmatpush2.msra.mxu0 %v5743
  %5979 = vmatprep.subr.mxu0 0.0
  %5980 = vmatpush2.msra.mxu0 %v5742
  %5981 = vmatprep.subr.mxu0 0.0
  %5982 = vmatpush2.msra.mxu0 %v5741
  %5983 = vmatprep.subr.mxu0 0.0
  %5984 = vmatpush2.msra.mxu0 %v5740
  %5985 = vmatprep.subr.mxu0 0.0
  %5986 = vmatpush2.msra.mxu0 %v5739
  %5987 = vmatprep.subr.mxu0 0.0
  %5988 = vmatpush2.msra.mxu0 %v5738
  %5989 = vmatprep.subr.mxu0 0.0
  %5990 = vmatpush2.msra.mxu0 %v5737
  %5991 = vmatprep.mubr.f32.mxu0 %v5714
  %5992 = vmatmul.mubr.f32.gmra.mxu0 %v5713
  %v5993 = vpop.f32.mrf.mxu0
  %v5994 = vadd.f32 %v5924, %v5993
  %v5995 = vpop.f32.mrf.mxu0
  %5996 = vdwg.mxu0
  %5997 = vmatprep.subr.mxu0 0.0
  %5998 = vmatpush1.msra.mxu0 %v5768
  %5999 = vmatprep.subr.mxu0 0.0
  %6000 = vmatpush1.msra.mxu0 %v5767
  %6001 = vmatprep.subr.mxu0 0.0
  %6002 = vmatpush1.msra.mxu0 %v5766
  %6003 = vmatprep.subr.mxu0 0.0
  %6004 = vmatpush1.msra.mxu0 %v5765
  %6005 = vmatprep.subr.mxu0 0.0
  %6006 = vmatpush1.msra.mxu0 %v5764
  %6007 = vmatprep.subr.mxu0 0.0
  %6008 = vmatpush1.msra.mxu0 %v5763
  %6009 = vmatprep.subr.mxu0 0.0
  %6010 = vmatpush1.msra.mxu0 %v5762
  %6011 = vmatprep.subr.mxu0 0.0
  %6012 = vmatpush1.msra.mxu0 %v5761
  %6013 = vmatprep.subr.mxu0 0.0
  %6014 = vmatpush1.msra.mxu0 %v5760
  %6015 = vmatprep.subr.mxu0 0.0
  %6016 = vmatpush1.msra.mxu0 %v5759
  %6017 = vmatprep.subr.mxu0 0.0
  %6018 = vmatpush1.msra.mxu0 %v5758
  %6019 = vmatprep.subr.mxu0 0.0
  %6020 = vmatpush1.msra.mxu0 %v5757
  %6021 = vmatprep.subr.mxu0 0.0
  %6022 = vmatpush1.msra.mxu0 %v5756
  %6023 = vmatprep.subr.mxu0 0.0
  %6024 = vmatpush1.msra.mxu0 %v5755
  %6025 = vmatprep.subr.mxu0 0.0
  %6026 = vmatpush1.msra.mxu0 %v5754
  %6027 = vmatprep.subr.mxu0 0.0
  %6028 = vmatpush1.msra.mxu0 %v5753
  %6029 = vmatprep.subr.mxu0 0.0
  %6030 = vmatpush2.msra.mxu0 %v5784
  %6031 = vmatprep.subr.mxu0 0.0
  %6032 = vmatpush2.msra.mxu0 %v5783
  %6033 = vmatprep.subr.mxu0 0.0
  %6034 = vmatpush2.msra.mxu0 %v5782
  %6035 = vmatprep.subr.mxu0 0.0
  %6036 = vmatpush2.msra.mxu0 %v5781
  %6037 = vmatprep.subr.mxu0 0.0
  %6038 = vmatpush2.msra.mxu0 %v5780
  %6039 = vmatprep.subr.mxu0 0.0
  %6040 = vmatpush2.msra.mxu0 %v5779
  %6041 = vmatprep.subr.mxu0 0.0
  %6042 = vmatpush2.msra.mxu0 %v5778
  %6043 = vmatprep.subr.mxu0 0.0
  %6044 = vmatpush2.msra.mxu0 %v5777
  %6045 = vmatprep.subr.mxu0 0.0
  %6046 = vmatpush2.msra.mxu0 %v5776
  %6047 = vmatprep.subr.mxu0 0.0
  %6048 = vmatpush2.msra.mxu0 %v5775
  %6049 = vmatprep.subr.mxu0 0.0
  %6050 = vmatpush2.msra.mxu0 %v5774
  %6051 = vmatprep.subr.mxu0 0.0
  %6052 = vmatpush2.msra.mxu0 %v5773
  %6053 = vmatprep.subr.mxu0 0.0
  %6054 = vmatpush2.msra.mxu0 %v5772
  %6055 = vmatprep.subr.mxu0 0.0
  %6056 = vmatpush2.msra.mxu0 %v5771
  %6057 = vmatprep.subr.mxu0 0.0
  %6058 = vmatpush2.msra.mxu0 %v5770
  %6059 = vmatprep.subr.mxu0 0.0
  %6060 = vmatpush2.msra.mxu0 %v5769
  %6061 = vmatprep.mubr.f32.mxu0 %v5716
  %6062 = vmatmul.mubr.f32.gmra.mxu0 %v5715
  %v6063 = vpop.f32.mrf.mxu0
  %v6064 = vadd.f32 %v5994, %v6063
  %v6065 = vpop.f32.mrf.mxu0
  %6066 = vdwg.mxu0
  %6067 = vmatprep.subr.mxu0 0.0
  %6068 = vmatpush1.msra.mxu0 %v5800
  %6069 = vmatprep.subr.mxu0 0.0
  %6070 = vmatpush1.msra.mxu0 %v5799
  %6071 = vmatprep.subr.mxu0 0.0
  %6072 = vmatpush1.msra.mxu0 %v5798
  %6073 = vmatprep.subr.mxu0 0.0
  %6074 = vmatpush1.msra.mxu0 %v5797
  %6075 = vmatprep.subr.mxu0 0.0
  %6076 = vmatpush1.msra.mxu0 %v5796
  %6077 = vmatprep.subr.mxu0 0.0
  %6078 = vmatpush1.msra.mxu0 %v5795
  %6079 = vmatprep.subr.mxu0 0.0
  %6080 = vmatpush1.msra.mxu0 %v5794
  %6081 = vmatprep.subr.mxu0 0.0
  %6082 = vmatpush1.msra.mxu0 %v5793
  %6083 = vmatprep.subr.mxu0 0.0
  %6084 = vmatpush1.msra.mxu0 %v5792
  %6085 = vmatprep.subr.mxu0 0.0
  %6086 = vmatpush1.msra.mxu0 %v5791
  %6087 = vmatprep.subr.mxu0 0.0
  %6088 = vmatpush1.msra.mxu0 %v5790
  %6089 = vmatprep.subr.mxu0 0.0
  %6090 = vmatpush1.msra.mxu0 %v5789
  %6091 = vmatprep.subr.mxu0 0.0
  %6092 = vmatpush1.msra.mxu0 %v5788
  %6093 = vmatprep.subr.mxu0 0.0
  %6094 = vmatpush1.msra.mxu0 %v5787
  %6095 = vmatprep.subr.mxu0 0.0
  %6096 = vmatpush1.msra.mxu0 %v5786
  %6097 = vmatprep.subr.mxu0 0.0
  %6098 = vmatpush1.msra.mxu0 %v5785
  %6099 = vmatprep.subr.mxu0 0.0
  %6100 = vmatpush2.msra.mxu0 %v5816
  %6101 = vmatprep.subr.mxu0 0.0
  %6102 = vmatpush2.msra.mxu0 %v5815
  %6103 = vmatprep.subr.mxu0 0.0
  %6104 = vmatpush2.msra.mxu0 %v5814
  %6105 = vmatprep.subr.mxu0 0.0
  %6106 = vmatpush2.msra.mxu0 %v5813
  %6107 = vmatprep.subr.mxu0 0.0
  %6108 = vmatpush2.msra.mxu0 %v5812
  %6109 = vmatprep.subr.mxu0 0.0
  %6110 = vmatpush2.msra.mxu0 %v5811
  %6111 = vmatprep.subr.mxu0 0.0
  %6112 = vmatpush2.msra.mxu0 %v5810
  %6113 = vmatprep.subr.mxu0 0.0
  %6114 = vmatpush2.msra.mxu0 %v5809
  %6115 = vmatprep.subr.mxu0 0.0
  %6116 = vmatpush2.msra.mxu0 %v5808
  %6117 = vmatprep.subr.mxu0 0.0
  %6118 = vmatpush2.msra.mxu0 %v5807
  %6119 = vmatprep.subr.mxu0 0.0
  %6120 = vmatpush2.msra.mxu0 %v5806
  %6121 = vmatprep.subr.mxu0 0.0
  %6122 = vmatpush2.msra.mxu0 %v5805
  %6123 = vmatprep.subr.mxu0 0.0
  %6124 = vmatpush2.msra.mxu0 %v5804
  %6125 = vmatprep.subr.mxu0 0.0
  %6126 = vmatpush2.msra.mxu0 %v5803
  %6127 = vmatprep.subr.mxu0 0.0
  %6128 = vmatpush2.msra.mxu0 %v5802
  %6129 = vmatprep.subr.mxu0 0.0
  %6130 = vmatpush2.msra.mxu0 %v5801
  %6131 = vmatprep.mubr.f32.mxu0 %v5718
  %6132 = vmatmul.mubr.f32.gmra.mxu0 %v5717
  %v6133 = vpop.f32.mrf.mxu0
  %v6134 = vadd.f32 %v6064, %v6133
  %v6135 = vpop.f32.mrf.mxu0
  %6136 = vdwg.mxu0
  %6137 = vmatprep.subr.mxu0 0.0
  %6138 = vmatpush1.msra.mxu0 %v5832
  %6139 = vmatprep.subr.mxu0 0.0
  %6140 = vmatpush1.msra.mxu0 %v5831
  %6141 = vmatprep.subr.mxu0 0.0
  %6142 = vmatpush1.msra.mxu0 %v5830
  %6143 = vmatprep.subr.mxu0 0.0
  %6144 = vmatpush1.msra.mxu0 %v5829
  %6145 = vmatprep.subr.mxu0 0.0
  %6146 = vmatpush1.msra.mxu0 %v5828
  %6147 = vmatprep.subr.mxu0 0.0
  %6148 = vmatpush1.msra.mxu0 %v5827
  %6149 = vmatprep.subr.mxu0 0.0
  %6150 = vmatpush1.msra.mxu0 %v5826
  %6151 = vmatprep.subr.mxu0 0.0
  %6152 = vmatpush1.msra.mxu0 %v5825
  %6153 = vmatprep.subr.mxu0 0.0
  %6154 = vmatpush1.msra.mxu0 %v5824
  %6155 = vmatprep.subr.mxu0 0.0
  %6156 = vmatpush1.msra.mxu0 %v5823
  %6157 = vmatprep.subr.mxu0 0.0
  %6158 = vmatpush1.msra.mxu0 %v5822
  %6159 = vmatprep.subr.mxu0 0.0
  %6160 = vmatpush1.msra.mxu0 %v5821
  %6161 = vmatprep.subr.mxu0 0.0
  %6162 = vmatpush1.msra.mxu0 %v5820
  %6163 = vmatprep.subr.mxu0 0.0
  %6164 = vmatpush1.msra.mxu0 %v5819
  %6165 = vmatprep.subr.mxu0 0.0
  %6166 = vmatpush1.msra.mxu0 %v5818
  %6167 = vmatprep.subr.mxu0 0.0
  %6168 = vmatpush1.msra.mxu0 %v5817
  %6169 = vmatprep.subr.mxu0 0.0
  %6170 = vmatpush2.msra.mxu0 %v5848
  %6171 = vmatprep.subr.mxu0 0.0
  %6172 = vmatpush2.msra.mxu0 %v5847
  %6173 = vmatprep.subr.mxu0 0.0
  %6174 = vmatpush2.msra.mxu0 %v5846
  %6175 = vmatprep.subr.mxu0 0.0
  %6176 = vmatpush2.msra.mxu0 %v5845
  %6177 = vmatprep.subr.mxu0 0.0
  %6178 = vmatpush2.msra.mxu0 %v5844
  %6179 = vmatprep.subr.mxu0 0.0
  %6180 = vmatpush2.msra.mxu0 %v5843
  %6181 = vmatprep.subr.mxu0 0.0
  %6182 = vmatpush2.msra.mxu0 %v5842
  %6183 = vmatprep.subr.mxu0 0.0
  %6184 = vmatpush2.msra.mxu0 %v5841
  %6185 = vmatprep.subr.mxu0 0.0
  %6186 = vmatpush2.msra.mxu0 %v5840
  %6187 = vmatprep.subr.mxu0 0.0
  %6188 = vmatpush2.msra.mxu0 %v5839
  %6189 = vmatprep.subr.mxu0 0.0
  %6190 = vmatpush2.msra.mxu0 %v5838
  %6191 = vmatprep.subr.mxu0 0.0
  %6192 = vmatpush2.msra.mxu0 %v5837
  %6193 = vmatprep.subr.mxu0 0.0
  %6194 = vmatpush2.msra.mxu0 %v5836
  %6195 = vmatprep.subr.mxu0 0.0
  %6196 = vmatpush2.msra.mxu0 %v5835
  %6197 = vmatprep.subr.mxu0 0.0
  %6198 = vmatpush2.msra.mxu0 %v5834
  %6199 = vmatprep.subr.mxu0 0.0
  %6200 = vmatpush2.msra.mxu0 %v5833
  %6201 = vmatprep.mubr.f32.mxu0 %v5720
  %6202 = vmatmul.mubr.f32.gmra.mxu0 %v5719
  %v6203 = vpop.f32.mrf.mxu0
  %v6204 = vadd.f32 %v6134, %v6203
  %v6205 = vpop.f32.mrf.mxu0
  %6206 = vdwg.mxu0
  %v6207 = vld [vmem:[%s27] sm:$0x1]
  %v6209 = vlaneseq
  %v6210 = vshrl.u32 %v6209, 7
  %v6211 = vsub.s32 0, %v6210
  %v6212 = vrot.slane %v6207, %v6211
  %v6214 = vadd.f32 %v6204, %v6212
  %v6215 = vmax.f32 %v6214, 0.0
  %v6216 = vld [vmem:[%s33] sm:$0xff]
  %v6217 = vld [vmem:[%s33 + $0x8] sm:$0xff]
  %v6218 = vld [vmem:[%s33 + $0x10] sm:$0xff]
  %v6219 = vld [vmem:[%s33 + $0x18] sm:$0xff]
  %v6220 = vld [vmem:[%s33 + $0x20] sm:$0xff]
  %v6221 = vld [vmem:[%s33 + $0x28] sm:$0xff]
  %v6222 = vld [vmem:[%s33 + $0x30] sm:$0xff]
  %v6223 = vld [vmem:[%s33 + $0x38] sm:$0xff]
  %v6224 = vld [vmem:[%s37] sm:$0xff]
  %v6225 = vld [vmem:[%s37 + $0x8] sm:$0xff]
  %v6226 = vld [vmem:[%s37 + $0x10] sm:$0xff]
  %v6227 = vld [vmem:[%s37 + $0x18] sm:$0xff]
  %v6228 = vld [vmem:[%s37 + $0x20] sm:$0xff]
  %v6229 = vld [vmem:[%s37 + $0x28] sm:$0xff]
  %v6230 = vld [vmem:[%s37 + $0x30] sm:$0xff]
  %v6231 = vld [vmem:[%s37 + $0x38] sm:$0xff]
  %6232 = vmatprep.subr.mxu0 0.0
  %6233 = vmatpush1.msra.mxu0 0.0
  %6234 = vmatprep.subr.mxu0 0.0
  %6235 = vmatpush1.msra.mxu0 0.0
  %6236 = vmatprep.subr.mxu0 0.0
  %6237 = vmatpush1.msra.mxu0 0.0
  %6238 = vmatprep.subr.mxu0 0.0
  %6239 = vmatpush1.msra.mxu0 0.0
  %6240 = vmatprep.subr.mxu0 0.0
  %6241 = vmatpush1.msra.mxu0 0.0
  %6242 = vmatprep.subr.mxu0 0.0
  %6243 = vmatpush1.msra.mxu0 0.0
  %6244 = vmatprep.subr.mxu0 0.0
  %6245 = vmatpush1.msra.mxu0 0.0
  %6246 = vmatprep.subr.mxu0 0.0
  %6247 = vmatpush1.msra.mxu0 0.0
  %6248 = vmatprep.subr.mxu0 0.0
  %6249 = vmatpush1.msra.mxu0 %v6231
  %6250 = vmatprep.subr.mxu0 0.0
  %6251 = vmatpush1.msra.mxu0 %v6230
  %6252 = vmatprep.subr.mxu0 0.0
  %6253 = vmatpush1.msra.mxu0 %v6229
  %6254 = vmatprep.subr.mxu0 0.0
  %6255 = vmatpush1.msra.mxu0 %v6228
  %6256 = vmatprep.subr.mxu0 0.0
  %6257 = vmatpush1.msra.mxu0 %v6227
  %6258 = vmatprep.subr.mxu0 0.0
  %6259 = vmatpush1.msra.mxu0 %v6226
  %6260 = vmatprep.subr.mxu0 0.0
  %6261 = vmatpush1.msra.mxu0 %v6225
  %6262 = vmatprep.subr.mxu0 0.0
  %6263 = vmatpush1.msra.mxu0 %v6224
  %6264 = vmatprep.subr.mxu0 0.0
  %6265 = vmatpush2.msra.mxu0 0.0
  %6266 = vmatprep.subr.mxu0 0.0
  %6267 = vmatpush2.msra.mxu0 0.0
  %6268 = vmatprep.subr.mxu0 0.0
  %6269 = vmatpush2.msra.mxu0 0.0
  %6270 = vmatprep.subr.mxu0 0.0
  %6271 = vmatpush2.msra.mxu0 0.0
  %6272 = vmatprep.subr.mxu0 0.0
  %6273 = vmatpush2.msra.mxu0 0.0
  %6274 = vmatprep.subr.mxu0 0.0
  %6275 = vmatpush2.msra.mxu0 0.0
  %6276 = vmatprep.subr.mxu0 0.0
  %6277 = vmatpush2.msra.mxu0 0.0
  %6278 = vmatprep.subr.mxu0 0.0
  %6279 = vmatpush2.msra.mxu0 0.0
  %6280 = vmatprep.subr.mxu0 0.0
  %6281 = vmatpush2.msra.mxu0 0.0
  %6282 = vmatprep.subr.mxu0 0.0
  %6283 = vmatpush2.msra.mxu0 0.0
  %6284 = vmatprep.subr.mxu0 0.0
  %6285 = vmatpush2.msra.mxu0 0.0
  %6286 = vmatprep.subr.mxu0 0.0
  %6287 = vmatpush2.msra.mxu0 0.0
  %6288 = vmatprep.subr.mxu0 0.0
  %6289 = vmatpush2.msra.mxu0 0.0
  %6290 = vmatprep.subr.mxu0 0.0
  %6291 = vmatpush2.msra.mxu0 0.0
  %6292 = vmatprep.subr.mxu0 0.0
  %6293 = vmatpush2.msra.mxu0 0.0
  %6294 = vmatprep.subr.mxu0 0.0
  %6295 = vmatpush2.msra.mxu0 0.0
  %6296 = vmatprep.mubr.f32.mxu0 0.0
  %6297 = vmatmul.mubr.f32.gmra.mxu0 %v5143
  %v6298 = vpop.f32.mrf.mxu0
  %v6299 = vadd.f32 0.0, %v6298
  %v6300 = vpop.f32.mrf.mxu0
  %6301 = vdwg.mxu0
  %v6303 = vsel %vm962, %v6215, 0
  %6305 = vmatprep.subr.mxu0 0.0
  %6306 = vmatpush1.msra.mxu0 0.0
  %6307 = vmatprep.subr.mxu0 0.0
  %6308 = vmatpush1.msra.mxu0 0.0
  %6309 = vmatprep.subr.mxu0 0.0
  %6310 = vmatpush1.msra.mxu0 0.0
  %6311 = vmatprep.subr.mxu0 0.0
  %6312 = vmatpush1.msra.mxu0 0.0
  %6313 = vmatprep.subr.mxu0 0.0
  %6314 = vmatpush1.msra.mxu0 0.0
  %6315 = vmatprep.subr.mxu0 0.0
  %6316 = vmatpush1.msra.mxu0 0.0
  %6317 = vmatprep.subr.mxu0 0.0
  %6318 = vmatpush1.msra.mxu0 0.0
  %6319 = vmatprep.subr.mxu0 0.0
  %6320 = vmatpush1.msra.mxu0 0.0
  %6321 = vmatprep.subr.mxu0 0.0
  %6322 = vmatpush1.msra.mxu0 %v6223
  %6323 = vmatprep.subr.mxu0 0.0
  %6324 = vmatpush1.msra.mxu0 %v6222
  %6325 = vmatprep.subr.mxu0 0.0
  %6326 = vmatpush1.msra.mxu0 %v6221
  %6327 = vmatprep.subr.mxu0 0.0
  %6328 = vmatpush1.msra.mxu0 %v6220
  %6329 = vmatprep.subr.mxu0 0.0
  %6330 = vmatpush1.msra.mxu0 %v6219
  %6331 = vmatprep.subr.mxu0 0.0
  %6332 = vmatpush1.msra.mxu0 %v6218
  %6333 = vmatprep.subr.mxu0 0.0
  %6334 = vmatpush1.msra.mxu0 %v6217
  %6335 = vmatprep.subr.mxu0 0.0
  %6336 = vmatpush1.msra.mxu0 %v6216
  %6337 = vmatprep.subr.mxu0 0.0
  %6338 = vmatpush2.msra.mxu0 0.0
  %6339 = vmatprep.subr.mxu0 0.0
  %6340 = vmatpush2.msra.mxu0 0.0
  %6341 = vmatprep.subr.mxu0 0.0
  %6342 = vmatpush2.msra.mxu0 0.0
  %6343 = vmatprep.subr.mxu0 0.0
  %6344 = vmatpush2.msra.mxu0 0.0
  %6345 = vmatprep.subr.mxu0 0.0
  %6346 = vmatpush2.msra.mxu0 0.0
  %6347 = vmatprep.subr.mxu0 0.0
  %6348 = vmatpush2.msra.mxu0 0.0
  %6349 = vmatprep.subr.mxu0 0.0
  %6350 = vmatpush2.msra.mxu0 0.0
  %6351 = vmatprep.subr.mxu0 0.0
  %6352 = vmatpush2.msra.mxu0 0.0
  %6353 = vmatprep.subr.mxu0 0.0
  %6354 = vmatpush2.msra.mxu0 0.0
  %6355 = vmatprep.subr.mxu0 0.0
  %6356 = vmatpush2.msra.mxu0 0.0
  %6357 = vmatprep.subr.mxu0 0.0
  %6358 = vmatpush2.msra.mxu0 0.0
  %6359 = vmatprep.subr.mxu0 0.0
  %6360 = vmatpush2.msra.mxu0 0.0
  %6361 = vmatprep.subr.mxu0 0.0
  %6362 = vmatpush2.msra.mxu0 0.0
  %6363 = vmatprep.subr.mxu0 0.0
  %6364 = vmatpush2.msra.mxu0 0.0
  %6365 = vmatprep.subr.mxu0 0.0
  %6366 = vmatpush2.msra.mxu0 0.0
  %6367 = vmatprep.subr.mxu0 0.0
  %6368 = vmatpush2.msra.mxu0 0.0
  %6369 = vmatprep.mubr.f32.mxu0 0.0
  %6370 = vmatmul.mubr.f32.gmra.mxu0 %v6303
  %v6371 = vpop.f32.mrf.mxu0
  %v6372 = vadd.f32 %v6299, %v6371
  %v6373 = vpop.f32.mrf.mxu0
  %6374 = vdwg.mxu0
  %v6375 = vld [vmem:[%s35] sm:$0x1]
  %v6377 = vlaneseq
  %v6378 = vshrl.u32 %v6377, 7
  %v6379 = vsub.s32 0, %v6378
  %v6380 = vrot.slane %v6375, %v6379
  %v6382 = vadd.f32 %v6372, %v6380
  %v6383 = vmax.f32 %v6382, 0.0
  %v6384 = vld [vmem:[%s87] sm:$0xff]
  %v6385 = vld [vmem:[%s87 + $0x8] sm:$0xff]
  %v6386 = vld [vmem:[%s87 + $0x10] sm:$0xff]
  %v6387 = vld [vmem:[%s87 + $0x18] sm:$0xff]
  %v6388 = vld [vmem:[%s87 + $0x20] sm:$0xff]
  %v6389 = vld [vmem:[%s87 + $0x28] sm:$0xff]
  %v6390 = vld [vmem:[%s87 + $0x30] sm:$0xff]
  %v6391 = vld [vmem:[%s87 + $0x38] sm:$0xff]
  %v6392 = vld [vmem:[%s85] sm:$0x1]
  %v6394 = vlaneseq
  %v6395 = vshrl.u32 %v6394, 7
  %v6396 = vsub.s32 0, %v6395
  %v6397 = vrot.slane %v6392, %v6396
  %v6400 = vsel %vm962, %v6383, 0
  %6402 = vmatprep.subr.mxu0 0.0
  %6403 = vmatpush1.msra.mxu0 0.0
  %6404 = vmatprep.subr.mxu0 0.0
  %6405 = vmatpush1.msra.mxu0 0.0
  %6406 = vmatprep.subr.mxu0 0.0
  %6407 = vmatpush1.msra.mxu0 0.0
  %6408 = vmatprep.subr.mxu0 0.0
  %6409 = vmatpush1.msra.mxu0 0.0
  %6410 = vmatprep.subr.mxu0 0.0
  %6411 = vmatpush1.msra.mxu0 0.0
  %6412 = vmatprep.subr.mxu0 0.0
  %6413 = vmatpush1.msra.mxu0 0.0
  %6414 = vmatprep.subr.mxu0 0.0
  %6415 = vmatpush1.msra.mxu0 0.0
  %6416 = vmatprep.subr.mxu0 0.0
  %6417 = vmatpush1.msra.mxu0 0.0
  %6418 = vmatprep.subr.mxu0 0.0
  %6419 = vmatpush1.msra.mxu0 %v6391
  %6420 = vmatprep.subr.mxu0 0.0
  %6421 = vmatpush1.msra.mxu0 %v6390
  %6422 = vmatprep.subr.mxu0 0.0
  %6423 = vmatpush1.msra.mxu0 %v6389
  %6424 = vmatprep.subr.mxu0 0.0
  %6425 = vmatpush1.msra.mxu0 %v6388
  %6426 = vmatprep.subr.mxu0 0.0
  %6427 = vmatpush1.msra.mxu0 %v6387
  %6428 = vmatprep.subr.mxu0 0.0
  %6429 = vmatpush1.msra.mxu0 %v6386
  %6430 = vmatprep.subr.mxu0 0.0
  %6431 = vmatpush1.msra.mxu0 %v6385
  %6432 = vmatprep.subr.mxu0 0.0
  %6433 = vmatpush1.msra.mxu0 %v6384
  %6434 = vmatprep.subr.mxu0 0.0
  %6435 = vmatpush2.msra.mxu0 0.0
  %6436 = vmatprep.subr.mxu0 0.0
  %6437 = vmatpush2.msra.mxu0 0.0
  %6438 = vmatprep.subr.mxu0 0.0
  %6439 = vmatpush2.msra.mxu0 0.0
  %6440 = vmatprep.subr.mxu0 0.0
  %6441 = vmatpush2.msra.mxu0 0.0
  %6442 = vmatprep.subr.mxu0 0.0
  %6443 = vmatpush2.msra.mxu0 0.0
  %6444 = vmatprep.subr.mxu0 0.0
  %6445 = vmatpush2.msra.mxu0 0.0
  %6446 = vmatprep.subr.mxu0 0.0
  %6447 = vmatpush2.msra.mxu0 0.0
  %6448 = vmatprep.subr.mxu0 0.0
  %6449 = vmatpush2.msra.mxu0 0.0
  %6450 = vmatprep.subr.mxu0 0.0
  %6451 = vmatpush2.msra.mxu0 0.0
  %6452 = vmatprep.subr.mxu0 0.0
  %6453 = vmatpush2.msra.mxu0 0.0
  %6454 = vmatprep.subr.mxu0 0.0
  %6455 = vmatpush2.msra.mxu0 0.0
  %6456 = vmatprep.subr.mxu0 0.0
  %6457 = vmatpush2.msra.mxu0 0.0
  %6458 = vmatprep.subr.mxu0 0.0
  %6459 = vmatpush2.msra.mxu0 0.0
  %6460 = vmatprep.subr.mxu0 0.0
  %6461 = vmatpush2.msra.mxu0 0.0
  %6462 = vmatprep.subr.mxu0 0.0
  %6463 = vmatpush2.msra.mxu0 0.0
  %6464 = vmatprep.subr.mxu0 0.0
  %6465 = vmatpush2.msra.mxu0 0.0
  %6466 = vmatprep.mubr.f32.mxu0 0.0
  %6467 = vmatmul.mubr.f32.gmra.mxu0 %v6400
  %v6468 = vpop.f32.mrf.mxu0
  %v6469 = vadd.f32 %v6397, %v6468
  %v6470 = vpop.f32.mrf.mxu0
  %6471 = vdwg.mxu0
  %6472 = vst [vmem:[%s93] sm:$0x3] %v6469
  // Predicated region
  $region186: #{graphomic_forward.1} parent=0 // pred_check
    _
  $region187: #{graphomic_forward.1} parent=0 // pred_check_branch
    %6474 = sbr.rel (0) target = $region189
  $region188: #{graphomic_forward.1} parent=0 // pred_region
    _
  $region189: #{graphomic_forward.1} parent=0 // pred_fallthru
    _
  // Predicated region
  $region190: #{graphomic_forward.1} parent=0 // pred_check
    _
  $region191: #{graphomic_forward.1} parent=0 // pred_check_branch
    %6476 = sbr.rel (0) target = $region193
  $region192: #{graphomic_forward.1} parent=0 // pred_region
    _
  $region193: #{graphomic_forward.1} parent=0 // pred_fallthru
    _

</llo_original>
